<compile_context>
chip_gen: v7x
topology: tpu7x:2x2x1
jax: 0.10.0
libtpu: 0.0.40
codegen_flags: <defaults>
</compile_context>

<pallas_src>
import functools

import jax
import jax.numpy as jnp
from jax.experimental import pallas as pl
from jax.experimental.pallas import tpu as pltpu


def _convlstm_kernel(accx_ref, wh_ref, mask_ref, peep_ref, out_ref,
                     h_ref, c_ref, *, Cout, N, W, KH, KW, Ts):
    t = pl.program_id(1)                      # time-block index (sequential)

    @pl.when(t == 0)
    def _init():                              # fresh (h, c) per batch element
        h_ref[...] = jnp.zeros_like(h_ref)
        c_ref[...] = jnp.zeros_like(c_ref)

    h = h_ref[...]                            # (Cout, N) f32, lane-dense
    c = c_ref[...]                            # (Cout, N) f32, lane-dense

    PH, PW = KH // 2, KW // 2

    def rot(x, s):
        # out[:, n] = x[:, (n + s) % N] -- explicit lane rotation via
        # slice+concat (unambiguous semantics, lowers to cheap lane shuffles).
        s = s % N
        if s == 0:
            return x
        return jnp.concatenate([x[:, s:], x[:, :s]], axis=1)

    def sig(x):
        # sigmoid(x) == 0.5*tanh(0.5*x) + 0.5 : keeps the op on the EUP.
        return 0.5 * jnp.tanh(0.5 * x) + 0.5

    for ts in range(Ts):                      # static unroll over the time block
        # --- im2col of h_{t-1}, built in registers: 9 lane rotations of the
        # (Cout, N) state, dense border mask, bf16 cast, concat along K. ---
        cols = []
        for k in range(KH * KW):
            dh = k // KW - PH
            dw = k % KW - PW
            shifted = rot(h, dh * W + dw)
            shifted = shifted * mask_ref[k * Cout:(k + 1) * Cout, :]
            cols.append(shifted.astype(jnp.bfloat16))
        hcol = jnp.concatenate(cols, axis=0)                  # (9*Cout, N) bf16

        # Fused recurrent matmul (4C, 9C) @ (9C, N) in bf16 with f32
        # accumulation, plus the precomputed input conv (+ bias).
        acc = accx_ref[ts] + jnp.dot(wh_ref[...], hcol,
                                     preferred_element_type=jnp.float32)

        wci = peep_ref[0 * Cout:1 * Cout, :]
        wcf = peep_ref[1 * Cout:2 * Cout, :]
        wco = peep_ref[2 * Cout:3 * Cout, :]

        # Gate order matches torch.chunk(conv, 4, dim=1): i, f, C(g), o.
        # Every tile below is (Cout, N) = (32, 256): fully lane-dense.
        i_gate = sig(acc[0 * Cout:1 * Cout, :] + wci * c)
        f_gate = sig(acc[1 * Cout:2 * Cout, :] + wcf * c)
        c = f_gate * c + i_gate * jnp.tanh(acc[2 * Cout:3 * Cout, :])
        o_gate = sig(acc[3 * Cout:4 * Cout, :] + wco * c)
        h = o_gate * jnp.tanh(c)

        out_ref[ts] = h                       # unmasked 256-lane store

    h_ref[...] = h                            # carry state to next time block
    c_ref[...] = c


def init_convlstm_params(key, in_channels, out_channels, kernel_size, frame_size):
    """Deterministic parameter init (conv + peephole weights), PyTorch shapes."""
    H, W = frame_size
    KH = KW = kernel_size
    k1, k2, k3, k4, k5 = jax.random.split(key, 5)
    # TODO(synk): the module's default WeightsInitializer.Zeros yields an
    # all-trivial forward; use deterministic Gaussian init so the kernel does
    # real work (shapes match nn.Conv2d(in+out, 4*out, k) + peephole params).
    conv_w = 0.08 * jax.random.normal(
        k1, (4 * out_channels, in_channels + out_channels, KH, KW), jnp.float32)
    conv_b = 0.05 * jax.random.normal(k2, (4 * out_channels,), jnp.float32)
    w_ci = 0.1 * jax.random.normal(k3, (out_channels, H, W), jnp.float32)
    w_cf = 0.1 * jax.random.normal(k4, (out_channels, H, W), jnp.float32)
    w_co = 0.1 * jax.random.normal(k5, (out_channels, H, W), jnp.float32)
    return conv_w, conv_b, w_ci, w_cf, w_co


def _pick_time_block(S, per_step_bytes, budget_bytes=8 * 1024 * 1024):
    """Largest divisor of S whose double-buffered accx+out blocks fit budget."""
    for cand in range(S, 0, -1):
        if S % cand == 0 and 2 * cand * per_step_bytes <= budget_bytes:
            return cand
    return 1


def conv_lstm_forward(x, params):
    """x: (B, Cin, S, H, W) -> (B, Cout, S, H, W), matching the PyTorch module."""
    conv_w, conv_b, w_ci, w_cf, w_co = params
    B, Cin, S, H, W = x.shape
    C4, Ctot, KH, KW = conv_w.shape
    Cout = C4 // 4
    assert Ctot == Cin + Cout
    PH, PW = KH // 2, KW // 2                 # 'same' padding for odd kernel
    N = H * W                                 # flattened spatial (lane) extent
    # Layout assumptions (hold for the test shapes).  TODO(synk): pad N / Cout
    # in the wrapper if other shapes are needed.
    assert N % 128 == 0, "H*W must be a multiple of 128 for lane-dense tiles"
    assert Cout % 8 == 0, "Cout must be a multiple of 8 for sublane-aligned slices"

    x = x.astype(jnp.float32)

    # Time block: amortize per-grid-step overhead, budgeted against VMEM.
    per_step_bytes = (4 * Cout + Cout) * N * 4        # accx block + out block
    Ts = _pick_time_block(S, per_step_bytes)

    # ---- input-to-hidden conv (+ bias) for all frames at once: no recurrence,
    # so it runs as a single batched XLA conv outside the sequential kernel.
    # DEFAULT precision (single bf16 MXU pass) per the perf review. ----
    x_bt = jnp.transpose(x, (0, 2, 1, 3, 4)).reshape(B * S, Cin, H, W)
    acc_x = jax.lax.conv_general_dilated(
        x_bt, conv_w[:, :Cin], window_strides=(1, 1), padding="SAME",
        dimension_numbers=("NCHW", "OIHW", "NCHW"),
        precision=jax.lax.Precision.DEFAULT)
    acc_x = acc_x + conv_b[None, :, None, None]
    acc_x = acc_x.reshape(B, S, 4 * Cout, N)          # (B, S, 4C, N), N lane-dense

    # ---- recurrent weights -> fused (4*Cout, 9*Cout) bf16 matmul layout ----
    wh = jnp.transpose(conv_w[:, Cin:], (0, 2, 3, 1))         # (4C, KH, KW, C)
    wh_flat = wh.reshape(4 * Cout, KH * KW * Cout).astype(jnp.bfloat16)

    # ---- per-tap validity mask (image border), dense (9*Cout, N) layout ----
    yy = jnp.arange(H)[:, None]
    xx = jnp.arange(W)[None, :]
    rows = []
    for kh in range(KH):
        for kw in range(KW):
            dh, dw = kh - PH, kw - PW
            m = ((yy + dh >= 0) & (yy + dh < H) &
                 (xx + dw >= 0) & (xx + dw < W)).reshape(N)
            rows.append(jnp.broadcast_to(m.astype(jnp.float32), (Cout, N)))
    mask = jnp.concatenate(rows, axis=0)                      # (9*Cout, N)

    # ---- peephole weights packed into a single lane-dense (3*Cout, N) input ----
    peep = jnp.concatenate([w_ci.reshape(Cout, N),
                            w_cf.reshape(Cout, N),
                            w_co.reshape(Cout, N)], axis=0)

    kernel = functools.partial(_convlstm_kernel, Cout=Cout, N=N, W=W,
                               KH=KH, KW=KW, Ts=Ts)

    out = pl.pallas_call(
        kernel,
        out_shape=jax.ShapeDtypeStruct((B, S, Cout, N), jnp.float32),
        grid_spec=pltpu.PrefetchScalarGridSpec(
            num_scalar_prefetch=0,
            grid=(B, S // Ts),
            in_specs=[
                pl.BlockSpec((None, Ts, 4 * Cout, N), lambda b, t: (b, t, 0, 0)),
                pl.BlockSpec((4 * Cout, KH * KW * Cout), lambda b, t: (0, 0)),
                pl.BlockSpec((KH * KW * Cout, N), lambda b, t: (0, 0)),
                pl.BlockSpec((3 * Cout, N), lambda b, t: (0, 0)),
            ],
            out_specs=pl.BlockSpec((None, Ts, Cout, N), lambda b, t: (b, t, 0, 0)),
            scratch_shapes=[
                pltpu.VMEM((Cout, N), jnp.float32),            # hidden state
                pltpu.VMEM((Cout, N), jnp.float32),            # cell state
            ],
        ),
        compiler_params=pltpu.CompilerParams(
            # Batch elements are independent; the time axis (innermost) carries
            # (h, c) in scratch and must stay sequential.
            dimension_semantics=("parallel", "arbitrary"),
            vmem_limit_bytes=32 * 1024 * 1024),
    )(acc_x, wh_flat, mask, peep)

    out = out.reshape(B, S, Cout, H, W)
    return jnp.transpose(out, (0, 2, 1, 3, 4))                # (B, Cout, S, H, W)


def conv_lstm_reference(x, params):
    """Pure-JAX reference mirroring the PyTorch module (NCHW, f32 HIGHEST)."""
    conv_w, conv_b, w_ci, w_cf, w_co = params
    B, Cin, S, H, W = x.shape
    Cout = w_ci.shape[0]
    h = jnp.zeros((B, Cout, H, W), jnp.float32)
    c = jnp.zeros((B, Cout, H, W), jnp.float32)
    outs = []
    for t in range(S):
        z = jnp.concatenate([x[:, :, t], h], axis=1)
        conv = jax.lax.conv_general_dilated(
            z, conv_w, window_strides=(1, 1), padding="SAME",
            dimension_numbers=("NCHW", "OIHW", "NCHW"),
            precision=jax.lax.Precision.HIGHEST)
        conv = conv + conv_b[None, :, None, None]
        i_c, f_c, g_c, o_c = jnp.split(conv, 4, axis=1)
        i = jax.nn.sigmoid(i_c + w_ci[None] * c)
        f = jax.nn.sigmoid(f_c + w_cf[None] * c)
        c = f * c + i * jnp.tanh(g_c)
        o = jax.nn.sigmoid(o_c + w_co[None] * c)
        h = o * jnp.tanh(c)
        outs.append(h)
    return jnp.stack(outs, axis=2)


if __name__ == "__main__":
    B, Cin, Cout, S, H, W = 2, 4, 32, 8, 16, 16
    key = jax.random.PRNGKey(0)
    kx, kp = jax.random.split(key)

    x = jax.random.normal(kx, (B, Cin, S, H, W), jnp.float32)
    params = init_convlstm_params(kp, Cin, Cout, kernel_size=3, frame_size=(H, W))

    out = jax.block_until_ready(conv_lstm_forward(x, params))
    assert out.shape == (B, Cout, S, H, W), out.shape

    ref = jax.block_until_ready(conv_lstm_reference(x, params))
    max_err = float(jnp.max(jnp.abs(out - ref)))
    # Tolerance accounts for the bf16 recurrent matmul + DEFAULT-precision
    # input conv feeding back through h over S=8 steps (reference is f32
    # HIGHEST); structural bugs produce O(0.3+) errors and would still trip.
    assert max_err < 5e-2, f"max abs error too large: {max_err}"

    print("KERNEL_OK")
</pallas_src>

<mosaic_0001>
module attributes {stable_mosaic.version = 11 : i64} {
  func.func @_convlstm_kernel(%arg0: i32, %arg1: i32, %arg2: memref<1x8x128x256xf32, #tpu.memory_space<vmem>>, %arg3: memref<128x288xbf16, #tpu.memory_space<vmem>>, %arg4: memref<288x256xf32, #tpu.memory_space<vmem>>, %arg5: memref<96x256xf32, #tpu.memory_space<vmem>>, %arg6: memref<1x8x32x256xf32, #tpu.memory_space<vmem>>, %arg7: memref<32x256xf32, #tpu.memory_space<vmem>>, %arg8: memref<32x256xf32, #tpu.memory_space<vmem>>) attributes {dimension_semantics = [#tpu.dimension_semantics<parallel>, #tpu.dimension_semantics<arbitrary>], iteration_bounds = array<i64: 2, 1>, scalar_prefetch = 0 : i64, scratch_operands = 2 : i64, tpu.core_type = #tpu.core_type<tc>, window_params = [{transform_indices = @transform_0, window_bounds = array<i64: 1, 8, 128, 256>}, {pipeline_mode = #tpu.pipeline_mode<synchronous>, transform_indices = @transform_1, window_bounds = array<i64: 128, 288>}, {pipeline_mode = #tpu.pipeline_mode<synchronous>, transform_indices = @transform_2, window_bounds = array<i64: 288, 256>}, {pipeline_mode = #tpu.pipeline_mode<synchronous>, transform_indices = @transform_3, window_bounds = array<i64: 96, 256>}, {transform_indices = @transform_4, window_bounds = array<i64: 1, 8, 32, 256>}]} {
    %c0_i32 = arith.constant 0 : i32
    %0 = arith.cmpi eq, %arg1, %c0_i32 : i32
    %1 = arith.extui %0 : i1 to i32
    %c0_i32_0 = arith.constant 0 : i32
    %2 = arith.cmpi ne, %1, %c0_i32_0 : i32
    scf.if %2 {
      %cst_344 = arith.constant 0.000000e+00 : f32
      %807 = vector.broadcast %cst_344 : f32 to vector<32x256xf32>
      %c0_345 = arith.constant 0 : index
      %c0_346 = arith.constant 0 : index
      %808 = vector.load %arg7[%c0_345, %c0_346] : memref<32x256xf32, #tpu.memory_space<vmem>>, vector<32x256xf32>
      tpu.vector_store %arg7[%c0_345, %c0_346], %807 {strides = array<i32>} : memref<32x256xf32, #tpu.memory_space<vmem>>, vector<32x256xf32>,
      %cst_347 = arith.constant 0.000000e+00 : f32
      %809 = vector.broadcast %cst_347 : f32 to vector<32x256xf32>
      %c0_348 = arith.constant 0 : index
      %c0_349 = arith.constant 0 : index
      %810 = vector.load %arg8[%c0_348, %c0_349] : memref<32x256xf32, #tpu.memory_space<vmem>>, vector<32x256xf32>
      tpu.vector_store %arg8[%c0_348, %c0_349], %809 {strides = array<i32>} : memref<32x256xf32, #tpu.memory_space<vmem>>, vector<32x256xf32>,
    } else {
    }
    %c0 = arith.constant 0 : index
    %c0_1 = arith.constant 0 : index
    %3 = vector.load %arg7[%c0, %c0_1] : memref<32x256xf32, #tpu.memory_space<vmem>>, vector<32x256xf32>
    %c0_2 = arith.constant 0 : index
    %c0_3 = arith.constant 0 : index
    %4 = vector.load %arg8[%c0_2, %c0_3] : memref<32x256xf32, #tpu.memory_space<vmem>>, vector<32x256xf32>
    %5 = vector.extract_strided_slice %3 {offsets = [0, 239], sizes = [32, 17], strides = [1, 1]} : vector<32x256xf32> to vector<32x17xf32>
    %6 = vector.extract_strided_slice %3 {offsets = [0, 0], sizes = [32, 239], strides = [1, 1]} : vector<32x256xf32> to vector<32x239xf32>
    %7 = tpu.concatenate %5, %6 in 1 : vector<32x17xf32>, vector<32x239xf32> -> vector<32x256xf32>
    %c0_4 = arith.constant 0 : index
    %c0_5 = arith.constant 0 : index
    %8 = vector.load %arg4[%c0_4, %c0_5] : memref<288x256xf32, #tpu.memory_space<vmem>>, vector<32x256xf32>
    %9 = arith.mulf %7, %8 : vector<32x256xf32>
    %10 = arith.truncf %9 : vector<32x256xf32> to vector<32x256xbf16>
    %11 = vector.extract_strided_slice %3 {offsets = [0, 240], sizes = [32, 16], strides = [1, 1]} : vector<32x256xf32> to vector<32x16xf32>
    %12 = vector.extract_strided_slice %3 {offsets = [0, 0], sizes = [32, 240], strides = [1, 1]} : vector<32x256xf32> to vector<32x240xf32>
    %13 = tpu.concatenate %11, %12 in 1 : vector<32x16xf32>, vector<32x240xf32> -> vector<32x256xf32>
    %c32 = arith.constant 32 : index
    %c0_6 = arith.constant 0 : index
    %14 = vector.load %arg4[%c32, %c0_6] : memref<288x256xf32, #tpu.memory_space<vmem>>, vector<32x256xf32>
    %15 = arith.mulf %13, %14 : vector<32x256xf32>
    %16 = arith.truncf %15 : vector<32x256xf32> to vector<32x256xbf16>
    %17 = vector.extract_strided_slice %3 {offsets = [0, 241], sizes = [32, 15], strides = [1, 1]} : vector<32x256xf32> to vector<32x15xf32>
    %18 = vector.extract_strided_slice %3 {offsets = [0, 0], sizes = [32, 241], strides = [1, 1]} : vector<32x256xf32> to vector<32x241xf32>
    %19 = tpu.concatenate %17, %18 in 1 : vector<32x15xf32>, vector<32x241xf32> -> vector<32x256xf32>
    %c64 = arith.constant 64 : index
    %c0_7 = arith.constant 0 : index
    %20 = vector.load %arg4[%c64, %c0_7] : memref<288x256xf32, #tpu.memory_space<vmem>>, vector<32x256xf32>
    %21 = arith.mulf %19, %20 : vector<32x256xf32>
    %22 = arith.truncf %21 : vector<32x256xf32> to vector<32x256xbf16>
    %23 = vector.extract_strided_slice %3 {offsets = [0, 255], sizes = [32, 1], strides = [1, 1]} : vector<32x256xf32> to vector<32x1xf32>
    %24 = vector.extract_strided_slice %3 {offsets = [0, 0], sizes = [32, 255], strides = [1, 1]} : vector<32x256xf32> to vector<32x255xf32>
    %25 = tpu.concatenate %23, %24 in 1 : vector<32x1xf32>, vector<32x255xf32> -> vector<32x256xf32>
    %c96 = arith.constant 96 : index
    %c0_8 = arith.constant 0 : index
    %26 = vector.load %arg4[%c96, %c0_8] : memref<288x256xf32, #tpu.memory_space<vmem>>, vector<32x256xf32>
    %27 = arith.mulf %25, %26 : vector<32x256xf32>
    %28 = arith.truncf %27 : vector<32x256xf32> to vector<32x256xbf16>
    %c128 = arith.constant 128 : index
    %c0_9 = arith.constant 0 : index
    %29 = vector.load %arg4[%c128, %c0_9] : memref<288x256xf32, #tpu.memory_space<vmem>>, vector<32x256xf32>
    %30 = arith.mulf %3, %29 : vector<32x256xf32>
    %31 = arith.truncf %30 : vector<32x256xf32> to vector<32x256xbf16>
    %32 = vector.extract_strided_slice %3 {offsets = [0, 1], sizes = [32, 255], strides = [1, 1]} : vector<32x256xf32> to vector<32x255xf32>
    %33 = vector.extract_strided_slice %3 {offsets = [0, 0], sizes = [32, 1], strides = [1, 1]} : vector<32x256xf32> to vector<32x1xf32>
    %34 = tpu.concatenate %32, %33 in 1 : vector<32x255xf32>, vector<32x1xf32> -> vector<32x256xf32>
    %c160 = arith.constant 160 : index
    %c0_10 = arith.constant 0 : index
    %35 = vector.load %arg4[%c160, %c0_10] : memref<288x256xf32, #tpu.memory_space<vmem>>, vector<32x256xf32>
    %36 = arith.mulf %34, %35 : vector<32x256xf32>
    %37 = arith.truncf %36 : vector<32x256xf32> to vector<32x256xbf16>
    %38 = vector.extract_strided_slice %3 {offsets = [0, 15], sizes = [32, 241], strides = [1, 1]} : vector<32x256xf32> to vector<32x241xf32>
    %39 = vector.extract_strided_slice %3 {offsets = [0, 0], sizes = [32, 15], strides = [1, 1]} : vector<32x256xf32> to vector<32x15xf32>
    %40 = tpu.concatenate %38, %39 in 1 : vector<32x241xf32>, vector<32x15xf32> -> vector<32x256xf32>
    %c192 = arith.constant 192 : index
    %c0_11 = arith.constant 0 : index
    %41 = vector.load %arg4[%c192, %c0_11] : memref<288x256xf32, #tpu.memory_space<vmem>>, vector<32x256xf32>
    %42 = arith.mulf %40, %41 : vector<32x256xf32>
    %43 = arith.truncf %42 : vector<32x256xf32> to vector<32x256xbf16>
    %44 = vector.extract_strided_slice %3 {offsets = [0, 16], sizes = [32, 240], strides = [1, 1]} : vector<32x256xf32> to vector<32x240xf32>
    %45 = vector.extract_strided_slice %3 {offsets = [0, 0], sizes = [32, 16], strides = [1, 1]} : vector<32x256xf32> to vector<32x16xf32>
    %46 = tpu.concatenate %44, %45 in 1 : vector<32x240xf32>, vector<32x16xf32> -> vector<32x256xf32>
    %c224 = arith.constant 224 : index
    %c0_12 = arith.constant 0 : index
    %47 = vector.load %arg4[%c224, %c0_12] : memref<288x256xf32, #tpu.memory_space<vmem>>, vector<32x256xf32>
    %48 = arith.mulf %46, %47 : vector<32x256xf32>
    %49 = arith.truncf %48 : vector<32x256xf32> to vector<32x256xbf16>
    %50 = vector.extract_strided_slice %3 {offsets = [0, 17], sizes = [32, 239], strides = [1, 1]} : vector<32x256xf32> to vector<32x239xf32>
    %51 = vector.extract_strided_slice %3 {offsets = [0, 0], sizes = [32, 17], strides = [1, 1]} : vector<32x256xf32> to vector<32x17xf32>
    %52 = tpu.concatenate %50, %51 in 1 : vector<32x239xf32>, vector<32x17xf32> -> vector<32x256xf32>
    %c256 = arith.constant 256 : index
    %c0_13 = arith.constant 0 : index
    %53 = vector.load %arg4[%c256, %c0_13] : memref<288x256xf32, #tpu.memory_space<vmem>>, vector<32x256xf32>
    %54 = arith.mulf %52, %53 : vector<32x256xf32>
    %55 = arith.truncf %54 : vector<32x256xf32> to vector<32x256xbf16>
    %56 = tpu.concatenate %10, %16, %22, %28, %31, %37, %43, %49, %55 in 0 : vector<32x256xbf16>, vector<32x256xbf16>, vector<32x256xbf16>, vector<32x256xbf16>, vector<32x256xbf16>, vector<32x256xbf16>, vector<32x256xbf16>, vector<32x256xbf16>, vector<32x256xbf16> -> vector<288x256xbf16>
    %c0_14 = arith.constant 0 : index
    %c0_15 = arith.constant 0 : index
    %c0_16 = arith.constant 0 : index
    %c0_17 = arith.constant 0 : index
    %57 = vector.load %arg2[%c0_14, %c0_15, %c0_16, %c0_17] : memref<1x8x128x256xf32, #tpu.memory_space<vmem>>, vector<1x1x128x256xf32>
    %58 = vector.shape_cast %57 : vector<1x1x128x256xf32> to vector<128x256xf32>
    %c0_18 = arith.constant 0 : index
    %c0_19 = arith.constant 0 : index
    %59 = vector.load %arg3[%c0_18, %c0_19] : memref<128x288xbf16, #tpu.memory_space<vmem>>, vector<128x288xbf16>
    %cst = arith.constant dense<0.000000e+00> : vector<128x256xf32>
    %60 = tpu.matmul %59, %56, %cst {dimension_numbers = #tpu.dot_dimension_numbers<[1], [0], [0], [1], [0, 0, 1, 1], [], []>} : vector<128x288xbf16>, vector<288x256xbf16>, vector<128x256xf32> -> vector<128x256xf32>
    %61 = arith.addf %58, %60 : vector<128x256xf32>
    %c0_20 = arith.constant 0 : index
    %c0_21 = arith.constant 0 : index
    %62 = vector.load %arg5[%c0_20, %c0_21] : memref<96x256xf32, #tpu.memory_space<vmem>>, vector<32x256xf32>
    %c32_22 = arith.constant 32 : index
    %c0_23 = arith.constant 0 : index
    %63 = vector.load %arg5[%c32_22, %c0_23] : memref<96x256xf32, #tpu.memory_space<vmem>>, vector<32x256xf32>
    %c64_24 = arith.constant 64 : index
    %c0_25 = arith.constant 0 : index
    %64 = vector.load %arg5[%c64_24, %c0_25] : memref<96x256xf32, #tpu.memory_space<vmem>>, vector<32x256xf32>
    %65 = vector.extract_strided_slice %61 {offsets = [0, 0], sizes = [32, 256], strides = [1, 1]} : vector<128x256xf32> to vector<32x256xf32>
    %66 = arith.mulf %62, %4 : vector<32x256xf32>
    %67 = arith.addf %65, %66 : vector<32x256xf32>
    %cst_26 = arith.constant 5.000000e-01 : f32
    %68 = vector.broadcast %cst_26 : f32 to vector<32x256xf32>
    %69 = arith.mulf %68, %67 : vector<32x256xf32>
    %70 = math.tanh %69 : vector<32x256xf32>
    %cst_27 = arith.constant 5.000000e-01 : f32
    %71 = vector.broadcast %cst_27 : f32 to vector<32x256xf32>
    %72 = arith.mulf %71, %70 : vector<32x256xf32>
    %cst_28 = arith.constant 5.000000e-01 : f32
    %73 = vector.broadcast %cst_28 : f32 to vector<32x256xf32>
    %74 = arith.addf %72, %73 : vector<32x256xf32>
    %75 = vector.extract_strided_slice %61 {offsets = [32, 0], sizes = [32, 256], strides = [1, 1]} : vector<128x256xf32> to vector<32x256xf32>
    %76 = arith.mulf %63, %4 : vector<32x256xf32>
    %77 = arith.addf %75, %76 : vector<32x256xf32>
    %cst_29 = arith.constant 5.000000e-01 : f32
    %78 = vector.broadcast %cst_29 : f32 to vector<32x256xf32>
    %79 = arith.mulf %78, %77 : vector<32x256xf32>
    %80 = math.tanh %79 : vector<32x256xf32>
    %cst_30 = arith.constant 5.000000e-01 : f32
    %81 = vector.broadcast %cst_30 : f32 to vector<32x256xf32>
    %82 = arith.mulf %81, %80 : vector<32x256xf32>
    %cst_31 = arith.constant 5.000000e-01 : f32
    %83 = vector.broadcast %cst_31 : f32 to vector<32x256xf32>
    %84 = arith.addf %82, %83 : vector<32x256xf32>
    %85 = arith.mulf %84, %4 : vector<32x256xf32>
    %86 = vector.extract_strided_slice %61 {offsets = [64, 0], sizes = [32, 256], strides = [1, 1]} : vector<128x256xf32> to vector<32x256xf32>
    %87 = math.tanh %86 : vector<32x256xf32>
    %88 = arith.mulf %74, %87 : vector<32x256xf32>
    %89 = arith.addf %85, %88 : vector<32x256xf32>
    %90 = vector.extract_strided_slice %61 {offsets = [96, 0], sizes = [32, 256], strides = [1, 1]} : vector<128x256xf32> to vector<32x256xf32>
    %91 = arith.mulf %64, %89 : vector<32x256xf32>
    %92 = arith.addf %90, %91 : vector<32x256xf32>
    %cst_32 = arith.constant 5.000000e-01 : f32
    %93 = vector.broadcast %cst_32 : f32 to vector<32x256xf32>
    %94 = arith.mulf %93, %92 : vector<32x256xf32>
    %95 = math.tanh %94 : vector<32x256xf32>
    %cst_33 = arith.constant 5.000000e-01 : f32
    %96 = vector.broadcast %cst_33 : f32 to vector<32x256xf32>
    %97 = arith.mulf %96, %95 : vector<32x256xf32>
    %cst_34 = arith.constant 5.000000e-01 : f32
    %98 = vector.broadcast %cst_34 : f32 to vector<32x256xf32>
    %99 = arith.addf %97, %98 : vector<32x256xf32>
    %100 = math.tanh %89 : vector<32x256xf32>
    %101 = arith.mulf %99, %100 : vector<32x256xf32>
    %c0_35 = arith.constant 0 : index
    %c0_36 = arith.constant 0 : index
    %c0_37 = arith.constant 0 : index
    %c0_38 = arith.constant 0 : index
    %102 = vector.load %arg6[%c0_35, %c0_36, %c0_37, %c0_38] : memref<1x8x32x256xf32, #tpu.memory_space<vmem>>, vector<1x1x32x256xf32>
    %103 = vector.shape_cast %102 : vector<1x1x32x256xf32> to vector<32x256xf32>
    %104 = vector.shape_cast %101 : vector<32x256xf32> to vector<1x1x32x256xf32>
    tpu.vector_store %arg6[%c0_35, %c0_36, %c0_37, %c0_38], %104 {strides = array<i32>} : memref<1x8x32x256xf32, #tpu.memory_space<vmem>>, vector<1x1x32x256xf32>,
    %105 = vector.extract_strided_slice %101 {offsets = [0, 239], sizes = [32, 17], strides = [1, 1]} : vector<32x256xf32> to vector<32x17xf32>
    %106 = vector.extract_strided_slice %101 {offsets = [0, 0], sizes = [32, 239], strides = [1, 1]} : vector<32x256xf32> to vector<32x239xf32>
    %107 = tpu.concatenate %105, %106 in 1 : vector<32x17xf32>, vector<32x239xf32> -> vector<32x256xf32>
    %c0_39 = arith.constant 0 : index
    %c0_40 = arith.constant 0 : index
    %108 = vector.load %arg4[%c0_39, %c0_40] : memref<288x256xf32, #tpu.memory_space<vmem>>, vector<32x256xf32>
    %109 = arith.mulf %107, %108 : vector<32x256xf32>
    %110 = arith.truncf %109 : vector<32x256xf32> to vector<32x256xbf16>
    %111 = vector.extract_strided_slice %101 {offsets = [0, 240], sizes = [32, 16], strides = [1, 1]} : vector<32x256xf32> to vector<32x16xf32>
    %112 = vector.extract_strided_slice %101 {offsets = [0, 0], sizes = [32, 240], strides = [1, 1]} : vector<32x256xf32> to vector<32x240xf32>
    %113 = tpu.concatenate %111, %112 in 1 : vector<32x16xf32>, vector<32x240xf32> -> vector<32x256xf32>
    %c32_41 = arith.constant 32 : index
    %c0_42 = arith.constant 0 : index
    %114 = vector.load %arg4[%c32_41, %c0_42] : memref<288x256xf32, #tpu.memory_space<vmem>>, vector<32x256xf32>
    %115 = arith.mulf %113, %114 : vector<32x256xf32>
    %116 = arith.truncf %115 : vector<32x256xf32> to vector<32x256xbf16>
    %117 = vector.extract_strided_slice %101 {offsets = [0, 241], sizes = [32, 15], strides = [1, 1]} : vector<32x256xf32> to vector<32x15xf32>
    %118 = vector.extract_strided_slice %101 {offsets = [0, 0], sizes = [32, 241], strides = [1, 1]} : vector<32x256xf32> to vector<32x241xf32>
    %119 = tpu.concatenate %117, %118 in 1 : vector<32x15xf32>, vector<32x241xf32> -> vector<32x256xf32>
    %c64_43 = arith.constant 64 : index
    %c0_44 = arith.constant 0 : index
    %120 = vector.load %arg4[%c64_43, %c0_44] : memref<288x256xf32, #tpu.memory_space<vmem>>, vector<32x256xf32>
    %121 = arith.mulf %119, %120 : vector<32x256xf32>
    %122 = arith.truncf %121 : vector<32x256xf32> to vector<32x256xbf16>
    %123 = vector.extract_strided_slice %101 {offsets = [0, 255], sizes = [32, 1], strides = [1, 1]} : vector<32x256xf32> to vector<32x1xf32>
    %124 = vector.extract_strided_slice %101 {offsets = [0, 0], sizes = [32, 255], strides = [1, 1]} : vector<32x256xf32> to vector<32x255xf32>
    %125 = tpu.concatenate %123, %124 in 1 : vector<32x1xf32>, vector<32x255xf32> -> vector<32x256xf32>
    %c96_45 = arith.constant 96 : index
    %c0_46 = arith.constant 0 : index
    %126 = vector.load %arg4[%c96_45, %c0_46] : memref<288x256xf32, #tpu.memory_space<vmem>>, vector<32x256xf32>
    %127 = arith.mulf %125, %126 : vector<32x256xf32>
    %128 = arith.truncf %127 : vector<32x256xf32> to vector<32x256xbf16>
    %c128_47 = arith.constant 128 : index
    %c0_48 = arith.constant 0 : index
    %129 = vector.load %arg4[%c128_47, %c0_48] : memref<288x256xf32, #tpu.memory_space<vmem>>, vector<32x256xf32>
    %130 = arith.mulf %101, %129 : vector<32x256xf32>
    %131 = arith.truncf %130 : vector<32x256xf32> to vector<32x256xbf16>
    %132 = vector.extract_strided_slice %101 {offsets = [0, 1], sizes = [32, 255], strides = [1, 1]} : vector<32x256xf32> to vector<32x255xf32>
    %133 = vector.extract_strided_slice %101 {offsets = [0, 0], sizes = [32, 1], strides = [1, 1]} : vector<32x256xf32> to vector<32x1xf32>
    %134 = tpu.concatenate %132, %133 in 1 : vector<32x255xf32>, vector<32x1xf32> -> vector<32x256xf32>
    %c160_49 = arith.constant 160 : index
    %c0_50 = arith.constant 0 : index
    %135 = vector.load %arg4[%c160_49, %c0_50] : memref<288x256xf32, #tpu.memory_space<vmem>>, vector<32x256xf32>
    %136 = arith.mulf %134, %135 : vector<32x256xf32>
    %137 = arith.truncf %136 : vector<32x256xf32> to vector<32x256xbf16>
    %138 = vector.extract_strided_slice %101 {offsets = [0, 15], sizes = [32, 241], strides = [1, 1]} : vector<32x256xf32> to vector<32x241xf32>
    %139 = vector.extract_strided_slice %101 {offsets = [0, 0], sizes = [32, 15], strides = [1, 1]} : vector<32x256xf32> to vector<32x15xf32>
    %140 = tpu.concatenate %138, %139 in 1 : vector<32x241xf32>, vector<32x15xf32> -> vector<32x256xf32>
    %c192_51 = arith.constant 192 : index
    %c0_52 = arith.constant 0 : index
    %141 = vector.load %arg4[%c192_51, %c0_52] : memref<288x256xf32, #tpu.memory_space<vmem>>, vector<32x256xf32>
    %142 = arith.mulf %140, %141 : vector<32x256xf32>
    %143 = arith.truncf %142 : vector<32x256xf32> to vector<32x256xbf16>
    %144 = vector.extract_strided_slice %101 {offsets = [0, 16], sizes = [32, 240], strides = [1, 1]} : vector<32x256xf32> to vector<32x240xf32>
    %145 = vector.extract_strided_slice %101 {offsets = [0, 0], sizes = [32, 16], strides = [1, 1]} : vector<32x256xf32> to vector<32x16xf32>
    %146 = tpu.concatenate %144, %145 in 1 : vector<32x240xf32>, vector<32x16xf32> -> vector<32x256xf32>
    %c224_53 = arith.constant 224 : index
    %c0_54 = arith.constant 0 : index
    %147 = vector.load %arg4[%c224_53, %c0_54] : memref<288x256xf32, #tpu.memory_space<vmem>>, vector<32x256xf32>
    %148 = arith.mulf %146, %147 : vector<32x256xf32>
    %149 = arith.truncf %148 : vector<32x256xf32> to vector<32x256xbf16>
    %150 = vector.extract_strided_slice %101 {offsets = [0, 17], sizes = [32, 239], strides = [1, 1]} : vector<32x256xf32> to vector<32x239xf32>
    %151 = vector.extract_strided_slice %101 {offsets = [0, 0], sizes = [32, 17], strides = [1, 1]} : vector<32x256xf32> to vector<32x17xf32>
    %152 = tpu.concatenate %150, %151 in 1 : vector<32x239xf32>, vector<32x17xf32> -> vector<32x256xf32>
    %c256_55 = arith.constant 256 : index
    %c0_56 = arith.constant 0 : index
    %153 = vector.load %arg4[%c256_55, %c0_56] : memref<288x256xf32, #tpu.memory_space<vmem>>, vector<32x256xf32>
    %154 = arith.mulf %152, %153 : vector<32x256xf32>
    %155 = arith.truncf %154 : vector<32x256xf32> to vector<32x256xbf16>
    %156 = tpu.concatenate %110, %116, %122, %128, %131, %137, %143, %149, %155 in 0 : vector<32x256xbf16>, vector<32x256xbf16>, vector<32x256xbf16>, vector<32x256xbf16>, vector<32x256xbf16>, vector<32x256xbf16>, vector<32x256xbf16>, vector<32x256xbf16>, vector<32x256xbf16> -> vector<288x256xbf16>
    %c0_57 = arith.constant 0 : index
    %c1 = arith.constant 1 : index
    %c0_58 = arith.constant 0 : index
    %c0_59 = arith.constant 0 : index
    %157 = vector.load %arg2[%c0_57, %c1, %c0_58, %c0_59] : memref<1x8x128x256xf32, #tpu.memory_space<vmem>>, vector<1x1x128x256xf32>
    %158 = vector.shape_cast %157 : vector<1x1x128x256xf32> to vector<128x256xf32>
    %c0_60 = arith.constant 0 : index
    %c0_61 = arith.constant 0 : index
    %159 = vector.load %arg3[%c0_60, %c0_61] : memref<128x288xbf16, #tpu.memory_space<vmem>>, vector<128x288xbf16>
    %cst_62 = arith.constant dense<0.000000e+00> : vector<128x256xf32>
    %160 = tpu.matmul %159, %156, %cst_62 {dimension_numbers = #tpu.dot_dimension_numbers<[1], [0], [0], [1], [0, 0, 1, 1], [], []>} : vector<128x288xbf16>, vector<288x256xbf16>, vector<128x256xf32> -> vector<128x256xf32>
    %161 = arith.addf %158, %160 : vector<128x256xf32>
    %c0_63 = arith.constant 0 : index
    %c0_64 = arith.constant 0 : index
    %162 = vector.load %arg5[%c0_63, %c0_64] : memref<96x256xf32, #tpu.memory_space<vmem>>, vector<32x256xf32>
    %c32_65 = arith.constant 32 : index
    %c0_66 = arith.constant 0 : index
    %163 = vector.load %arg5[%c32_65, %c0_66] : memref<96x256xf32, #tpu.memory_space<vmem>>, vector<32x256xf32>
    %c64_67 = arith.constant 64 : index
    %c0_68 = arith.constant 0 : index
    %164 = vector.load %arg5[%c64_67, %c0_68] : memref<96x256xf32, #tpu.memory_space<vmem>>, vector<32x256xf32>
    %165 = vector.extract_strided_slice %161 {offsets = [0, 0], sizes = [32, 256], strides = [1, 1]} : vector<128x256xf32> to vector<32x256xf32>
    %166 = arith.mulf %162, %89 : vector<32x256xf32>
    %167 = arith.addf %165, %166 : vector<32x256xf32>
    %cst_69 = arith.constant 5.000000e-01 : f32
    %168 = vector.broadcast %cst_69 : f32 to vector<32x256xf32>
    %169 = arith.mulf %168, %167 : vector<32x256xf32>
    %170 = math.tanh %169 : vector<32x256xf32>
    %cst_70 = arith.constant 5.000000e-01 : f32
    %171 = vector.broadcast %cst_70 : f32 to vector<32x256xf32>
    %172 = arith.mulf %171, %170 : vector<32x256xf32>
    %cst_71 = arith.constant 5.000000e-01 : f32
    %173 = vector.broadcast %cst_71 : f32 to vector<32x256xf32>
    %174 = arith.addf %172, %173 : vector<32x256xf32>
    %175 = vector.extract_strided_slice %161 {offsets = [32, 0], sizes = [32, 256], strides = [1, 1]} : vector<128x256xf32> to vector<32x256xf32>
    %176 = arith.mulf %163, %89 : vector<32x256xf32>
    %177 = arith.addf %175, %176 : vector<32x256xf32>
    %cst_72 = arith.constant 5.000000e-01 : f32
    %178 = vector.broadcast %cst_72 : f32 to vector<32x256xf32>
    %179 = arith.mulf %178, %177 : vector<32x256xf32>
    %180 = math.tanh %179 : vector<32x256xf32>
    %cst_73 = arith.constant 5.000000e-01 : f32
    %181 = vector.broadcast %cst_73 : f32 to vector<32x256xf32>
    %182 = arith.mulf %181, %180 : vector<32x256xf32>
    %cst_74 = arith.constant 5.000000e-01 : f32
    %183 = vector.broadcast %cst_74 : f32 to vector<32x256xf32>
    %184 = arith.addf %182, %183 : vector<32x256xf32>
    %185 = arith.mulf %184, %89 : vector<32x256xf32>
    %186 = vector.extract_strided_slice %161 {offsets = [64, 0], sizes = [32, 256], strides = [1, 1]} : vector<128x256xf32> to vector<32x256xf32>
    %187 = math.tanh %186 : vector<32x256xf32>
    %188 = arith.mulf %174, %187 : vector<32x256xf32>
    %189 = arith.addf %185, %188 : vector<32x256xf32>
    %190 = vector.extract_strided_slice %161 {offsets = [96, 0], sizes = [32, 256], strides = [1, 1]} : vector<128x256xf32> to vector<32x256xf32>
    %191 = arith.mulf %164, %189 : vector<32x256xf32>
    %192 = arith.addf %190, %191 : vector<32x256xf32>
    %cst_75 = arith.constant 5.000000e-01 : f32
    %193 = vector.broadcast %cst_75 : f32 to vector<32x256xf32>
    %194 = arith.mulf %193, %192 : vector<32x256xf32>
    %195 = math.tanh %194 : vector<32x256xf32>
    %cst_76 = arith.constant 5.000000e-01 : f32
    %196 = vector.broadcast %cst_76 : f32 to vector<32x256xf32>
    %197 = arith.mulf %196, %195 : vector<32x256xf32>
    %cst_77 = arith.constant 5.000000e-01 : f32
    %198 = vector.broadcast %cst_77 : f32 to vector<32x256xf32>
    %199 = arith.addf %197, %198 : vector<32x256xf32>
    %200 = math.tanh %189 : vector<32x256xf32>
    %201 = arith.mulf %199, %200 : vector<32x256xf32>
    %c0_78 = arith.constant 0 : index
    %c1_79 = arith.constant 1 : index
    %c0_80 = arith.constant 0 : index
    %c0_81 = arith.constant 0 : index
    %202 = vector.load %arg6[%c0_78, %c1_79, %c0_80, %c0_81] : memref<1x8x32x256xf32, #tpu.memory_space<vmem>>, vector<1x1x32x256xf32>
    %203 = vector.shape_cast %202 : vector<1x1x32x256xf32> to vector<32x256xf32>
    %204 = vector.shape_cast %201 : vector<32x256xf32> to vector<1x1x32x256xf32>
    tpu.vector_store %arg6[%c0_78, %c1_79, %c0_80, %c0_81], %204 {strides = array<i32>} : memref<1x8x32x256xf32, #tpu.memory_space<vmem>>, vector<1x1x32x256xf32>,
    %205 = vector.extract_strided_slice %201 {offsets = [0, 239], sizes = [32, 17], strides = [1, 1]} : vector<32x256xf32> to vector<32x17xf32>
    %206 = vector.extract_strided_slice %201 {offsets = [0, 0], sizes = [32, 239], strides = [1, 1]} : vector<32x256xf32> to vector<32x239xf32>
    %207 = tpu.concatenate %205, %206 in 1 : vector<32x17xf32>, vector<32x239xf32> -> vector<32x256xf32>
    %c0_82 = arith.constant 0 : index
    %c0_83 = arith.constant 0 : index
    %208 = vector.load %arg4[%c0_82, %c0_83] : memref<288x256xf32, #tpu.memory_space<vmem>>, vector<32x256xf32>
    %209 = arith.mulf %207, %208 : vector<32x256xf32>
    %210 = arith.truncf %209 : vector<32x256xf32> to vector<32x256xbf16>
    %211 = vector.extract_strided_slice %201 {offsets = [0, 240], sizes = [32, 16], strides = [1, 1]} : vector<32x256xf32> to vector<32x16xf32>
    %212 = vector.extract_strided_slice %201 {offsets = [0, 0], sizes = [32, 240], strides = [1, 1]} : vector<32x256xf32> to vector<32x240xf32>
    %213 = tpu.concatenate %211, %212 in 1 : vector<32x16xf32>, vector<32x240xf32> -> vector<32x256xf32>
    %c32_84 = arith.constant 32 : index
    %c0_85 = arith.constant 0 : index
    %214 = vector.load %arg4[%c32_84, %c0_85] : memref<288x256xf32, #tpu.memory_space<vmem>>, vector<32x256xf32>
    %215 = arith.mulf %213, %214 : vector<32x256xf32>
    %216 = arith.truncf %215 : vector<32x256xf32> to vector<32x256xbf16>
    %217 = vector.extract_strided_slice %201 {offsets = [0, 241], sizes = [32, 15], strides = [1, 1]} : vector<32x256xf32> to vector<32x15xf32>
    %218 = vector.extract_strided_slice %201 {offsets = [0, 0], sizes = [32, 241], strides = [1, 1]} : vector<32x256xf32> to vector<32x241xf32>
    %219 = tpu.concatenate %217, %218 in 1 : vector<32x15xf32>, vector<32x241xf32> -> vector<32x256xf32>
    %c64_86 = arith.constant 64 : index
    %c0_87 = arith.constant 0 : index
    %220 = vector.load %arg4[%c64_86, %c0_87] : memref<288x256xf32, #tpu.memory_space<vmem>>, vector<32x256xf32>
    %221 = arith.mulf %219, %220 : vector<32x256xf32>
    %222 = arith.truncf %221 : vector<32x256xf32> to vector<32x256xbf16>
    %223 = vector.extract_strided_slice %201 {offsets = [0, 255], sizes = [32, 1], strides = [1, 1]} : vector<32x256xf32> to vector<32x1xf32>
    %224 = vector.extract_strided_slice %201 {offsets = [0, 0], sizes = [32, 255], strides = [1, 1]} : vector<32x256xf32> to vector<32x255xf32>
    %225 = tpu.concatenate %223, %224 in 1 : vector<32x1xf32>, vector<32x255xf32> -> vector<32x256xf32>
    %c96_88 = arith.constant 96 : index
    %c0_89 = arith.constant 0 : index
    %226 = vector.load %arg4[%c96_88, %c0_89] : memref<288x256xf32, #tpu.memory_space<vmem>>, vector<32x256xf32>
    %227 = arith.mulf %225, %226 : vector<32x256xf32>
    %228 = arith.truncf %227 : vector<32x256xf32> to vector<32x256xbf16>
    %c128_90 = arith.constant 128 : index
    %c0_91 = arith.constant 0 : index
    %229 = vector.load %arg4[%c128_90, %c0_91] : memref<288x256xf32, #tpu.memory_space<vmem>>, vector<32x256xf32>
    %230 = arith.mulf %201, %229 : vector<32x256xf32>
    %231 = arith.truncf %230 : vector<32x256xf32> to vector<32x256xbf16>
    %232 = vector.extract_strided_slice %201 {offsets = [0, 1], sizes = [32, 255], strides = [1, 1]} : vector<32x256xf32> to vector<32x255xf32>
    %233 = vector.extract_strided_slice %201 {offsets = [0, 0], sizes = [32, 1], strides = [1, 1]} : vector<32x256xf32> to vector<32x1xf32>
    %234 = tpu.concatenate %232, %233 in 1 : vector<32x255xf32>, vector<32x1xf32> -> vector<32x256xf32>
    %c160_92 = arith.constant 160 : index
    %c0_93 = arith.constant 0 : index
    %235 = vector.load %arg4[%c160_92, %c0_93] : memref<288x256xf32, #tpu.memory_space<vmem>>, vector<32x256xf32>
    %236 = arith.mulf %234, %235 : vector<32x256xf32>
    %237 = arith.truncf %236 : vector<32x256xf32> to vector<32x256xbf16>
    %238 = vector.extract_strided_slice %201 {offsets = [0, 15], sizes = [32, 241], strides = [1, 1]} : vector<32x256xf32> to vector<32x241xf32>
    %239 = vector.extract_strided_slice %201 {offsets = [0, 0], sizes = [32, 15], strides = [1, 1]} : vector<32x256xf32> to vector<32x15xf32>
    %240 = tpu.concatenate %238, %239 in 1 : vector<32x241xf32>, vector<32x15xf32> -> vector<32x256xf32>
    %c192_94 = arith.constant 192 : index
    %c0_95 = arith.constant 0 : index
    %241 = vector.load %arg4[%c192_94, %c0_95] : memref<288x256xf32, #tpu.memory_space<vmem>>, vector<32x256xf32>
    %242 = arith.mulf %240, %241 : vector<32x256xf32>
    %243 = arith.truncf %242 : vector<32x256xf32> to vector<32x256xbf16>
    %244 = vector.extract_strided_slice %201 {offsets = [0, 16], sizes = [32, 240], strides = [1, 1]} : vector<32x256xf32> to vector<32x240xf32>
    %245 = vector.extract_strided_slice %201 {offsets = [0, 0], sizes = [32, 16], strides = [1, 1]} : vector<32x256xf32> to vector<32x16xf32>
    %246 = tpu.concatenate %244, %245 in 1 : vector<32x240xf32>, vector<32x16xf32> -> vector<32x256xf32>
    %c224_96 = arith.constant 224 : index
    %c0_97 = arith.constant 0 : index
    %247 = vector.load %arg4[%c224_96, %c0_97] : memref<288x256xf32, #tpu.memory_space<vmem>>, vector<32x256xf32>
    %248 = arith.mulf %246, %247 : vector<32x256xf32>
    %249 = arith.truncf %248 : vector<32x256xf32> to vector<32x256xbf16>
    %250 = vector.extract_strided_slice %201 {offsets = [0, 17], sizes = [32, 239], strides = [1, 1]} : vector<32x256xf32> to vector<32x239xf32>
    %251 = vector.extract_strided_slice %201 {offsets = [0, 0], sizes = [32, 17], strides = [1, 1]} : vector<32x256xf32> to vector<32x17xf32>
    %252 = tpu.concatenate %250, %251 in 1 : vector<32x239xf32>, vector<32x17xf32> -> vector<32x256xf32>
    %c256_98 = arith.constant 256 : index
    %c0_99 = arith.constant 0 : index
    %253 = vector.load %arg4[%c256_98, %c0_99] : memref<288x256xf32, #tpu.memory_space<vmem>>, vector<32x256xf32>
    %254 = arith.mulf %252, %253 : vector<32x256xf32>
    %255 = arith.truncf %254 : vector<32x256xf32> to vector<32x256xbf16>
    %256 = tpu.concatenate %210, %216, %222, %228, %231, %237, %243, %249, %255 in 0 : vector<32x256xbf16>, vector<32x256xbf16>, vector<32x256xbf16>, vector<32x256xbf16>, vector<32x256xbf16>, vector<32x256xbf16>, vector<32x256xbf16>, vector<32x256xbf16>, vector<32x256xbf16> -> vector<288x256xbf16>
    %c0_100 = arith.constant 0 : index
    %c2 = arith.constant 2 : index
    %c0_101 = arith.constant 0 : index
    %c0_102 = arith.constant 0 : index
    %257 = vector.load %arg2[%c0_100, %c2, %c0_101, %c0_102] : memref<1x8x128x256xf32, #tpu.memory_space<vmem>>, vector<1x1x128x256xf32>
    %258 = vector.shape_cast %257 : vector<1x1x128x256xf32> to vector<128x256xf32>
    %c0_103 = arith.constant 0 : index
    %c0_104 = arith.constant 0 : index
    %259 = vector.load %arg3[%c0_103, %c0_104] : memref<128x288xbf16, #tpu.memory_space<vmem>>, vector<128x288xbf16>
    %cst_105 = arith.constant dense<0.000000e+00> : vector<128x256xf32>
    %260 = tpu.matmul %259, %256, %cst_105 {dimension_numbers = #tpu.dot_dimension_numbers<[1], [0], [0], [1], [0, 0, 1, 1], [], []>} : vector<128x288xbf16>, vector<288x256xbf16>, vector<128x256xf32> -> vector<128x256xf32>
    %261 = arith.addf %258, %260 : vector<128x256xf32>
    %c0_106 = arith.constant 0 : index
    %c0_107 = arith.constant 0 : index
    %262 = vector.load %arg5[%c0_106, %c0_107] : memref<96x256xf32, #tpu.memory_space<vmem>>, vector<32x256xf32>
    %c32_108 = arith.constant 32 : index
    %c0_109 = arith.constant 0 : index
    %263 = vector.load %arg5[%c32_108, %c0_109] : memref<96x256xf32, #tpu.memory_space<vmem>>, vector<32x256xf32>
    %c64_110 = arith.constant 64 : index
    %c0_111 = arith.constant 0 : index
    %264 = vector.load %arg5[%c64_110, %c0_111] : memref<96x256xf32, #tpu.memory_space<vmem>>, vector<32x256xf32>
    %265 = vector.extract_strided_slice %261 {offsets = [0, 0], sizes = [32, 256], strides = [1, 1]} : vector<128x256xf32> to vector<32x256xf32>
    %266 = arith.mulf %262, %189 : vector<32x256xf32>
    %267 = arith.addf %265, %266 : vector<32x256xf32>
    %cst_112 = arith.constant 5.000000e-01 : f32
    %268 = vector.broadcast %cst_112 : f32 to vector<32x256xf32>
    %269 = arith.mulf %268, %267 : vector<32x256xf32>
    %270 = math.tanh %269 : vector<32x256xf32>
    %cst_113 = arith.constant 5.000000e-01 : f32
    %271 = vector.broadcast %cst_113 : f32 to vector<32x256xf32>
    %272 = arith.mulf %271, %270 : vector<32x256xf32>
    %cst_114 = arith.constant 5.000000e-01 : f32
    %273 = vector.broadcast %cst_114 : f32 to vector<32x256xf32>
    %274 = arith.addf %272, %273 : vector<32x256xf32>
    %275 = vector.extract_strided_slice %261 {offsets = [32, 0], sizes = [32, 256], strides = [1, 1]} : vector<128x256xf32> to vector<32x256xf32>
    %276 = arith.mulf %263, %189 : vector<32x256xf32>
    %277 = arith.addf %275, %276 : vector<32x256xf32>
    %cst_115 = arith.constant 5.000000e-01 : f32
    %278 = vector.broadcast %cst_115 : f32 to vector<32x256xf32>
    %279 = arith.mulf %278, %277 : vector<32x256xf32>
    %280 = math.tanh %279 : vector<32x256xf32>
    %cst_116 = arith.constant 5.000000e-01 : f32
    %281 = vector.broadcast %cst_116 : f32 to vector<32x256xf32>
    %282 = arith.mulf %281, %280 : vector<32x256xf32>
    %cst_117 = arith.constant 5.000000e-01 : f32
    %283 = vector.broadcast %cst_117 : f32 to vector<32x256xf32>
    %284 = arith.addf %282, %283 : vector<32x256xf32>
    %285 = arith.mulf %284, %189 : vector<32x256xf32>
    %286 = vector.extract_strided_slice %261 {offsets = [64, 0], sizes = [32, 256], strides = [1, 1]} : vector<128x256xf32> to vector<32x256xf32>
    %287 = math.tanh %286 : vector<32x256xf32>
    %288 = arith.mulf %274, %287 : vector<32x256xf32>
    %289 = arith.addf %285, %288 : vector<32x256xf32>
    %290 = vector.extract_strided_slice %261 {offsets = [96, 0], sizes = [32, 256], strides = [1, 1]} : vector<128x256xf32> to vector<32x256xf32>
    %291 = arith.mulf %264, %289 : vector<32x256xf32>
    %292 = arith.addf %290, %291 : vector<32x256xf32>
    %cst_118 = arith.constant 5.000000e-01 : f32
    %293 = vector.broadcast %cst_118 : f32 to vector<32x256xf32>
    %294 = arith.mulf %293, %292 : vector<32x256xf32>
    %295 = math.tanh %294 : vector<32x256xf32>
    %cst_119 = arith.constant 5.000000e-01 : f32
    %296 = vector.broadcast %cst_119 : f32 to vector<32x256xf32>
    %297 = arith.mulf %296, %295 : vector<32x256xf32>
    %cst_120 = arith.constant 5.000000e-01 : f32
    %298 = vector.broadcast %cst_120 : f32 to vector<32x256xf32>
    %299 = arith.addf %297, %298 : vector<32x256xf32>
    %300 = math.tanh %289 : vector<32x256xf32>
    %301 = arith.mulf %299, %300 : vector<32x256xf32>
    %c0_121 = arith.constant 0 : index
    %c2_122 = arith.constant 2 : index
    %c0_123 = arith.constant 0 : index
    %c0_124 = arith.constant 0 : index
    %302 = vector.load %arg6[%c0_121, %c2_122, %c0_123, %c0_124] : memref<1x8x32x256xf32, #tpu.memory_space<vmem>>, vector<1x1x32x256xf32>
    %303 = vector.shape_cast %302 : vector<1x1x32x256xf32> to vector<32x256xf32>
    %304 = vector.shape_cast %301 : vector<32x256xf32> to vector<1x1x32x256xf32>
    tpu.vector_store %arg6[%c0_121, %c2_122, %c0_123, %c0_124], %304 {strides = array<i32>} : memref<1x8x32x256xf32, #tpu.memory_space<vmem>>, vector<1x1x32x256xf32>,
    %305 = vector.extract_strided_slice %301 {offsets = [0, 239], sizes = [32, 17], strides = [1, 1]} : vector<32x256xf32> to vector<32x17xf32>
    %306 = vector.extract_strided_slice %301 {offsets = [0, 0], sizes = [32, 239], strides = [1, 1]} : vector<32x256xf32> to vector<32x239xf32>
    %307 = tpu.concatenate %305, %306 in 1 : vector<32x17xf32>, vector<32x239xf32> -> vector<32x256xf32>
    %c0_125 = arith.constant 0 : index
    %c0_126 = arith.constant 0 : index
    %308 = vector.load %arg4[%c0_125, %c0_126] : memref<288x256xf32, #tpu.memory_space<vmem>>, vector<32x256xf32>
    %309 = arith.mulf %307, %308 : vector<32x256xf32>
    %310 = arith.truncf %309 : vector<32x256xf32> to vector<32x256xbf16>
    %311 = vector.extract_strided_slice %301 {offsets = [0, 240], sizes = [32, 16], strides = [1, 1]} : vector<32x256xf32> to vector<32x16xf32>
    %312 = vector.extract_strided_slice %301 {offsets = [0, 0], sizes = [32, 240], strides = [1, 1]} : vector<32x256xf32> to vector<32x240xf32>
    %313 = tpu.concatenate %311, %312 in 1 : vector<32x16xf32>, vector<32x240xf32> -> vector<32x256xf32>
    %c32_127 = arith.constant 32 : index
    %c0_128 = arith.constant 0 : index
    %314 = vector.load %arg4[%c32_127, %c0_128] : memref<288x256xf32, #tpu.memory_space<vmem>>, vector<32x256xf32>
    %315 = arith.mulf %313, %314 : vector<32x256xf32>
    %316 = arith.truncf %315 : vector<32x256xf32> to vector<32x256xbf16>
    %317 = vector.extract_strided_slice %301 {offsets = [0, 241], sizes = [32, 15], strides = [1, 1]} : vector<32x256xf32> to vector<32x15xf32>
    %318 = vector.extract_strided_slice %301 {offsets = [0, 0], sizes = [32, 241], strides = [1, 1]} : vector<32x256xf32> to vector<32x241xf32>
    %319 = tpu.concatenate %317, %318 in 1 : vector<32x15xf32>, vector<32x241xf32> -> vector<32x256xf32>
    %c64_129 = arith.constant 64 : index
    %c0_130 = arith.constant 0 : index
    %320 = vector.load %arg4[%c64_129, %c0_130] : memref<288x256xf32, #tpu.memory_space<vmem>>, vector<32x256xf32>
    %321 = arith.mulf %319, %320 : vector<32x256xf32>
    %322 = arith.truncf %321 : vector<32x256xf32> to vector<32x256xbf16>
    %323 = vector.extract_strided_slice %301 {offsets = [0, 255], sizes = [32, 1], strides = [1, 1]} : vector<32x256xf32> to vector<32x1xf32>
    %324 = vector.extract_strided_slice %301 {offsets = [0, 0], sizes = [32, 255], strides = [1, 1]} : vector<32x256xf32> to vector<32x255xf32>
    %325 = tpu.concatenate %323, %324 in 1 : vector<32x1xf32>, vector<32x255xf32> -> vector<32x256xf32>
    %c96_131 = arith.constant 96 : index
    %c0_132 = arith.constant 0 : index
    %326 = vector.load %arg4[%c96_131, %c0_132] : memref<288x256xf32, #tpu.memory_space<vmem>>, vector<32x256xf32>
    %327 = arith.mulf %325, %326 : vector<32x256xf32>
    %328 = arith.truncf %327 : vector<32x256xf32> to vector<32x256xbf16>
    %c128_133 = arith.constant 128 : index
    %c0_134 = arith.constant 0 : index
    %329 = vector.load %arg4[%c128_133, %c0_134] : memref<288x256xf32, #tpu.memory_space<vmem>>, vector<32x256xf32>
    %330 = arith.mulf %301, %329 : vector<32x256xf32>
    %331 = arith.truncf %330 : vector<32x256xf32> to vector<32x256xbf16>
    %332 = vector.extract_strided_slice %301 {offsets = [0, 1], sizes = [32, 255], strides = [1, 1]} : vector<32x256xf32> to vector<32x255xf32>
    %333 = vector.extract_strided_slice %301 {offsets = [0, 0], sizes = [32, 1], strides = [1, 1]} : vector<32x256xf32> to vector<32x1xf32>
    %334 = tpu.concatenate %332, %333 in 1 : vector<32x255xf32>, vector<32x1xf32> -> vector<32x256xf32>
    %c160_135 = arith.constant 160 : index
    %c0_136 = arith.constant 0 : index
    %335 = vector.load %arg4[%c160_135, %c0_136] : memref<288x256xf32, #tpu.memory_space<vmem>>, vector<32x256xf32>
    %336 = arith.mulf %334, %335 : vector<32x256xf32>
    %337 = arith.truncf %336 : vector<32x256xf32> to vector<32x256xbf16>
    %338 = vector.extract_strided_slice %301 {offsets = [0, 15], sizes = [32, 241], strides = [1, 1]} : vector<32x256xf32> to vector<32x241xf32>
    %339 = vector.extract_strided_slice %301 {offsets = [0, 0], sizes = [32, 15], strides = [1, 1]} : vector<32x256xf32> to vector<32x15xf32>
    %340 = tpu.concatenate %338, %339 in 1 : vector<32x241xf32>, vector<32x15xf32> -> vector<32x256xf32>
    %c192_137 = arith.constant 192 : index
    %c0_138 = arith.constant 0 : index
    %341 = vector.load %arg4[%c192_137, %c0_138] : memref<288x256xf32, #tpu.memory_space<vmem>>, vector<32x256xf32>
    %342 = arith.mulf %340, %341 : vector<32x256xf32>
    %343 = arith.truncf %342 : vector<32x256xf32> to vector<32x256xbf16>
    %344 = vector.extract_strided_slice %301 {offsets = [0, 16], sizes = [32, 240], strides = [1, 1]} : vector<32x256xf32> to vector<32x240xf32>
    %345 = vector.extract_strided_slice %301 {offsets = [0, 0], sizes = [32, 16], strides = [1, 1]} : vector<32x256xf32> to vector<32x16xf32>
    %346 = tpu.concatenate %344, %345 in 1 : vector<32x240xf32>, vector<32x16xf32> -> vector<32x256xf32>
    %c224_139 = arith.constant 224 : index
    %c0_140 = arith.constant 0 : index
    %347 = vector.load %arg4[%c224_139, %c0_140] : memref<288x256xf32, #tpu.memory_space<vmem>>, vector<32x256xf32>
    %348 = arith.mulf %346, %347 : vector<32x256xf32>
    %349 = arith.truncf %348 : vector<32x256xf32> to vector<32x256xbf16>
    %350 = vector.extract_strided_slice %301 {offsets = [0, 17], sizes = [32, 239], strides = [1, 1]} : vector<32x256xf32> to vector<32x239xf32>
    %351 = vector.extract_strided_slice %301 {offsets = [0, 0], sizes = [32, 17], strides = [1, 1]} : vector<32x256xf32> to vector<32x17xf32>
    %352 = tpu.concatenate %350, %351 in 1 : vector<32x239xf32>, vector<32x17xf32> -> vector<32x256xf32>
    %c256_141 = arith.constant 256 : index
    %c0_142 = arith.constant 0 : index
    %353 = vector.load %arg4[%c256_141, %c0_142] : memref<288x256xf32, #tpu.memory_space<vmem>>, vector<32x256xf32>
    %354 = arith.mulf %352, %353 : vector<32x256xf32>
    %355 = arith.truncf %354 : vector<32x256xf32> to vector<32x256xbf16>
    %356 = tpu.concatenate %310, %316, %322, %328, %331, %337, %343, %349, %355 in 0 : vector<32x256xbf16>, vector<32x256xbf16>, vector<32x256xbf16>, vector<32x256xbf16>, vector<32x256xbf16>, vector<32x256xbf16>, vector<32x256xbf16>, vector<32x256xbf16>, vector<32x256xbf16> -> vector<288x256xbf16>
    %c0_143 = arith.constant 0 : index
    %c3 = arith.constant 3 : index
    %c0_144 = arith.constant 0 : index
    %c0_145 = arith.constant 0 : index
    %357 = vector.load %arg2[%c0_143, %c3, %c0_144, %c0_145] : memref<1x8x128x256xf32, #tpu.memory_space<vmem>>, vector<1x1x128x256xf32>
    %358 = vector.shape_cast %357 : vector<1x1x128x256xf32> to vector<128x256xf32>
    %c0_146 = arith.constant 0 : index
    %c0_147 = arith.constant 0 : index
    %359 = vector.load %arg3[%c0_146, %c0_147] : memref<128x288xbf16, #tpu.memory_space<vmem>>, vector<128x288xbf16>
    %cst_148 = arith.constant dense<0.000000e+00> : vector<128x256xf32>
    %360 = tpu.matmul %359, %356, %cst_148 {dimension_numbers = #tpu.dot_dimension_numbers<[1], [0], [0], [1], [0, 0, 1, 1], [], []>} : vector<128x288xbf16>, vector<288x256xbf16>, vector<128x256xf32> -> vector<128x256xf32>
    %361 = arith.addf %358, %360 : vector<128x256xf32>
    %c0_149 = arith.constant 0 : index
    %c0_150 = arith.constant 0 : index
    %362 = vector.load %arg5[%c0_149, %c0_150] : memref<96x256xf32, #tpu.memory_space<vmem>>, vector<32x256xf32>
    %c32_151 = arith.constant 32 : index
    %c0_152 = arith.constant 0 : index
    %363 = vector.load %arg5[%c32_151, %c0_152] : memref<96x256xf32, #tpu.memory_space<vmem>>, vector<32x256xf32>
    %c64_153 = arith.constant 64 : index
    %c0_154 = arith.constant 0 : index
    %364 = vector.load %arg5[%c64_153, %c0_154] : memref<96x256xf32, #tpu.memory_space<vmem>>, vector<32x256xf32>
    %365 = vector.extract_strided_slice %361 {offsets = [0, 0], sizes = [32, 256], strides = [1, 1]} : vector<128x256xf32> to vector<32x256xf32>
    %366 = arith.mulf %362, %289 : vector<32x256xf32>
    %367 = arith.addf %365, %366 : vector<32x256xf32>
    %cst_155 = arith.constant 5.000000e-01 : f32
    %368 = vector.broadcast %cst_155 : f32 to vector<32x256xf32>
    %369 = arith.mulf %368, %367 : vector<32x256xf32>
    %370 = math.tanh %369 : vector<32x256xf32>
    %cst_156 = arith.constant 5.000000e-01 : f32
    %371 = vector.broadcast %cst_156 : f32 to vector<32x256xf32>
    %372 = arith.mulf %371, %370 : vector<32x256xf32>
    %cst_157 = arith.constant 5.000000e-01 : f32
    %373 = vector.broadcast %cst_157 : f32 to vector<32x256xf32>
    %374 = arith.addf %372, %373 : vector<32x256xf32>
    %375 = vector.extract_strided_slice %361 {offsets = [32, 0], sizes = [32, 256], strides = [1, 1]} : vector<128x256xf32> to vector<32x256xf32>
    %376 = arith.mulf %363, %289 : vector<32x256xf32>
    %377 = arith.addf %375, %376 : vector<32x256xf32>
    %cst_158 = arith.constant 5.000000e-01 : f32
    %378 = vector.broadcast %cst_158 : f32 to vector<32x256xf32>
    %379 = arith.mulf %378, %377 : vector<32x256xf32>
    %380 = math.tanh %379 : vector<32x256xf32>
    %cst_159 = arith.constant 5.000000e-01 : f32
    %381 = vector.broadcast %cst_159 : f32 to vector<32x256xf32>
    %382 = arith.mulf %381, %380 : vector<32x256xf32>
    %cst_160 = arith.constant 5.000000e-01 : f32
    %383 = vector.broadcast %cst_160 : f32 to vector<32x256xf32>
    %384 = arith.addf %382, %383 : vector<32x256xf32>
    %385 = arith.mulf %384, %289 : vector<32x256xf32>
    %386 = vector.extract_strided_slice %361 {offsets = [64, 0], sizes = [32, 256], strides = [1, 1]} : vector<128x256xf32> to vector<32x256xf32>
    %387 = math.tanh %386 : vector<32x256xf32>
    %388 = arith.mulf %374, %387 : vector<32x256xf32>
    %389 = arith.addf %385, %388 : vector<32x256xf32>
    %390 = vector.extract_strided_slice %361 {offsets = [96, 0], sizes = [32, 256], strides = [1, 1]} : vector<128x256xf32> to vector<32x256xf32>
    %391 = arith.mulf %364, %389 : vector<32x256xf32>
    %392 = arith.addf %390, %391 : vector<32x256xf32>
    %cst_161 = arith.constant 5.000000e-01 : f32
    %393 = vector.broadcast %cst_161 : f32 to vector<32x256xf32>
    %394 = arith.mulf %393, %392 : vector<32x256xf32>
    %395 = math.tanh %394 : vector<32x256xf32>
    %cst_162 = arith.constant 5.000000e-01 : f32
    %396 = vector.broadcast %cst_162 : f32 to vector<32x256xf32>
    %397 = arith.mulf %396, %395 : vector<32x256xf32>
    %cst_163 = arith.constant 5.000000e-01 : f32
    %398 = vector.broadcast %cst_163 : f32 to vector<32x256xf32>
    %399 = arith.addf %397, %398 : vector<32x256xf32>
    %400 = math.tanh %389 : vector<32x256xf32>
    %401 = arith.mulf %399, %400 : vector<32x256xf32>
    %c0_164 = arith.constant 0 : index
    %c3_165 = arith.constant 3 : index
    %c0_166 = arith.constant 0 : index
    %c0_167 = arith.constant 0 : index
    %402 = vector.load %arg6[%c0_164, %c3_165, %c0_166, %c0_167] : memref<1x8x32x256xf32, #tpu.memory_space<vmem>>, vector<1x1x32x256xf32>
    %403 = vector.shape_cast %402 : vector<1x1x32x256xf32> to vector<32x256xf32>
    %404 = vector.shape_cast %401 : vector<32x256xf32> to vector<1x1x32x256xf32>
    tpu.vector_store %arg6[%c0_164, %c3_165, %c0_166, %c0_167], %404 {strides = array<i32>} : memref<1x8x32x256xf32, #tpu.memory_space<vmem>>, vector<1x1x32x256xf32>,
    %405 = vector.extract_strided_slice %401 {offsets = [0, 239], sizes = [32, 17], strides = [1, 1]} : vector<32x256xf32> to vector<32x17xf32>
    %406 = vector.extract_strided_slice %401 {offsets = [0, 0], sizes = [32, 239], strides = [1, 1]} : vector<32x256xf32> to vector<32x239xf32>
    %407 = tpu.concatenate %405, %406 in 1 : vector<32x17xf32>, vector<32x239xf32> -> vector<32x256xf32>
    %c0_168 = arith.constant 0 : index
    %c0_169 = arith.constant 0 : index
    %408 = vector.load %arg4[%c0_168, %c0_169] : memref<288x256xf32, #tpu.memory_space<vmem>>, vector<32x256xf32>
    %409 = arith.mulf %407, %408 : vector<32x256xf32>
    %410 = arith.truncf %409 : vector<32x256xf32> to vector<32x256xbf16>
    %411 = vector.extract_strided_slice %401 {offsets = [0, 240], sizes = [32, 16], strides = [1, 1]} : vector<32x256xf32> to vector<32x16xf32>
    %412 = vector.extract_strided_slice %401 {offsets = [0, 0], sizes = [32, 240], strides = [1, 1]} : vector<32x256xf32> to vector<32x240xf32>
    %413 = tpu.concatenate %411, %412 in 1 : vector<32x16xf32>, vector<32x240xf32> -> vector<32x256xf32>
    %c32_170 = arith.constant 32 : index
    %c0_171 = arith.constant 0 : index
    %414 = vector.load %arg4[%c32_170, %c0_171] : memref<288x256xf32, #tpu.memory_space<vmem>>, vector<32x256xf32>
    %415 = arith.mulf %413, %414 : vector<32x256xf32>
    %416 = arith.truncf %415 : vector<32x256xf32> to vector<32x256xbf16>
    %417 = vector.extract_strided_slice %401 {offsets = [0, 241], sizes = [32, 15], strides = [1, 1]} : vector<32x256xf32> to vector<32x15xf32>
    %418 = vector.extract_strided_slice %401 {offsets = [0, 0], sizes = [32, 241], strides = [1, 1]} : vector<32x256xf32> to vector<32x241xf32>
    %419 = tpu.concatenate %417, %418 in 1 : vector<32x15xf32>, vector<32x241xf32> -> vector<32x256xf32>
    %c64_172 = arith.constant 64 : index
    %c0_173 = arith.constant 0 : index
    %420 = vector.load %arg4[%c64_172, %c0_173] : memref<288x256xf32, #tpu.memory_space<vmem>>, vector<32x256xf32>
    %421 = arith.mulf %419, %420 : vector<32x256xf32>
    %422 = arith.truncf %421 : vector<32x256xf32> to vector<32x256xbf16>
    %423 = vector.extract_strided_slice %401 {offsets = [0, 255], sizes = [32, 1], strides = [1, 1]} : vector<32x256xf32> to vector<32x1xf32>
    %424 = vector.extract_strided_slice %401 {offsets = [0, 0], sizes = [32, 255], strides = [1, 1]} : vector<32x256xf32> to vector<32x255xf32>
    %425 = tpu.concatenate %423, %424 in 1 : vector<32x1xf32>, vector<32x255xf32> -> vector<32x256xf32>
    %c96_174 = arith.constant 96 : index
    %c0_175 = arith.constant 0 : index
    %426 = vector.load %arg4[%c96_174, %c0_175] : memref<288x256xf32, #tpu.memory_space<vmem>>, vector<32x256xf32>
    %427 = arith.mulf %425, %426 : vector<32x256xf32>
    %428 = arith.truncf %427 : vector<32x256xf32> to vector<32x256xbf16>
    %c128_176 = arith.constant 128 : index
    %c0_177 = arith.constant 0 : index
    %429 = vector.load %arg4[%c128_176, %c0_177] : memref<288x256xf32, #tpu.memory_space<vmem>>, vector<32x256xf32>
    %430 = arith.mulf %401, %429 : vector<32x256xf32>
    %431 = arith.truncf %430 : vector<32x256xf32> to vector<32x256xbf16>
    %432 = vector.extract_strided_slice %401 {offsets = [0, 1], sizes = [32, 255], strides = [1, 1]} : vector<32x256xf32> to vector<32x255xf32>
    %433 = vector.extract_strided_slice %401 {offsets = [0, 0], sizes = [32, 1], strides = [1, 1]} : vector<32x256xf32> to vector<32x1xf32>
    %434 = tpu.concatenate %432, %433 in 1 : vector<32x255xf32>, vector<32x1xf32> -> vector<32x256xf32>
    %c160_178 = arith.constant 160 : index
    %c0_179 = arith.constant 0 : index
    %435 = vector.load %arg4[%c160_178, %c0_179] : memref<288x256xf32, #tpu.memory_space<vmem>>, vector<32x256xf32>
    %436 = arith.mulf %434, %435 : vector<32x256xf32>
    %437 = arith.truncf %436 : vector<32x256xf32> to vector<32x256xbf16>
    %438 = vector.extract_strided_slice %401 {offsets = [0, 15], sizes = [32, 241], strides = [1, 1]} : vector<32x256xf32> to vector<32x241xf32>
    %439 = vector.extract_strided_slice %401 {offsets = [0, 0], sizes = [32, 15], strides = [1, 1]} : vector<32x256xf32> to vector<32x15xf32>
    %440 = tpu.concatenate %438, %439 in 1 : vector<32x241xf32>, vector<32x15xf32> -> vector<32x256xf32>
    %c192_180 = arith.constant 192 : index
    %c0_181 = arith.constant 0 : index
    %441 = vector.load %arg4[%c192_180, %c0_181] : memref<288x256xf32, #tpu.memory_space<vmem>>, vector<32x256xf32>
    %442 = arith.mulf %440, %441 : vector<32x256xf32>
    %443 = arith.truncf %442 : vector<32x256xf32> to vector<32x256xbf16>
    %444 = vector.extract_strided_slice %401 {offsets = [0, 16], sizes = [32, 240], strides = [1, 1]} : vector<32x256xf32> to vector<32x240xf32>
    %445 = vector.extract_strided_slice %401 {offsets = [0, 0], sizes = [32, 16], strides = [1, 1]} : vector<32x256xf32> to vector<32x16xf32>
    %446 = tpu.concatenate %444, %445 in 1 : vector<32x240xf32>, vector<32x16xf32> -> vector<32x256xf32>
    %c224_182 = arith.constant 224 : index
    %c0_183 = arith.constant 0 : index
    %447 = vector.load %arg4[%c224_182, %c0_183] : memref<288x256xf32, #tpu.memory_space<vmem>>, vector<32x256xf32>
    %448 = arith.mulf %446, %447 : vector<32x256xf32>
    %449 = arith.truncf %448 : vector<32x256xf32> to vector<32x256xbf16>
    %450 = vector.extract_strided_slice %401 {offsets = [0, 17], sizes = [32, 239], strides = [1, 1]} : vector<32x256xf32> to vector<32x239xf32>
    %451 = vector.extract_strided_slice %401 {offsets = [0, 0], sizes = [32, 17], strides = [1, 1]} : vector<32x256xf32> to vector<32x17xf32>
    %452 = tpu.concatenate %450, %451 in 1 : vector<32x239xf32>, vector<32x17xf32> -> vector<32x256xf32>
    %c256_184 = arith.constant 256 : index
    %c0_185 = arith.constant 0 : index
    %453 = vector.load %arg4[%c256_184, %c0_185] : memref<288x256xf32, #tpu.memory_space<vmem>>, vector<32x256xf32>
    %454 = arith.mulf %452, %453 : vector<32x256xf32>
    %455 = arith.truncf %454 : vector<32x256xf32> to vector<32x256xbf16>
    %456 = tpu.concatenate %410, %416, %422, %428, %431, %437, %443, %449, %455 in 0 : vector<32x256xbf16>, vector<32x256xbf16>, vector<32x256xbf16>, vector<32x256xbf16>, vector<32x256xbf16>, vector<32x256xbf16>, vector<32x256xbf16>, vector<32x256xbf16>, vector<32x256xbf16> -> vector<288x256xbf16>
    %c0_186 = arith.constant 0 : index
    %c4 = arith.constant 4 : index
    %c0_187 = arith.constant 0 : index
    %c0_188 = arith.constant 0 : index
    %457 = vector.load %arg2[%c0_186, %c4, %c0_187, %c0_188] : memref<1x8x128x256xf32, #tpu.memory_space<vmem>>, vector<1x1x128x256xf32>
    %458 = vector.shape_cast %457 : vector<1x1x128x256xf32> to vector<128x256xf32>
    %c0_189 = arith.constant 0 : index
    %c0_190 = arith.constant 0 : index
    %459 = vector.load %arg3[%c0_189, %c0_190] : memref<128x288xbf16, #tpu.memory_space<vmem>>, vector<128x288xbf16>
    %cst_191 = arith.constant dense<0.000000e+00> : vector<128x256xf32>
    %460 = tpu.matmul %459, %456, %cst_191 {dimension_numbers = #tpu.dot_dimension_numbers<[1], [0], [0], [1], [0, 0, 1, 1], [], []>} : vector<128x288xbf16>, vector<288x256xbf16>, vector<128x256xf32> -> vector<128x256xf32>
    %461 = arith.addf %458, %460 : vector<128x256xf32>
    %c0_192 = arith.constant 0 : index
    %c0_193 = arith.constant 0 : index
    %462 = vector.load %arg5[%c0_192, %c0_193] : memref<96x256xf32, #tpu.memory_space<vmem>>, vector<32x256xf32>
    %c32_194 = arith.constant 32 : index
    %c0_195 = arith.constant 0 : index
    %463 = vector.load %arg5[%c32_194, %c0_195] : memref<96x256xf32, #tpu.memory_space<vmem>>, vector<32x256xf32>
    %c64_196 = arith.constant 64 : index
    %c0_197 = arith.constant 0 : index
    %464 = vector.load %arg5[%c64_196, %c0_197] : memref<96x256xf32, #tpu.memory_space<vmem>>, vector<32x256xf32>
    %465 = vector.extract_strided_slice %461 {offsets = [0, 0], sizes = [32, 256], strides = [1, 1]} : vector<128x256xf32> to vector<32x256xf32>
    %466 = arith.mulf %462, %389 : vector<32x256xf32>
    %467 = arith.addf %465, %466 : vector<32x256xf32>
    %cst_198 = arith.constant 5.000000e-01 : f32
    %468 = vector.broadcast %cst_198 : f32 to vector<32x256xf32>
    %469 = arith.mulf %468, %467 : vector<32x256xf32>
    %470 = math.tanh %469 : vector<32x256xf32>
    %cst_199 = arith.constant 5.000000e-01 : f32
    %471 = vector.broadcast %cst_199 : f32 to vector<32x256xf32>
    %472 = arith.mulf %471, %470 : vector<32x256xf32>
    %cst_200 = arith.constant 5.000000e-01 : f32
    %473 = vector.broadcast %cst_200 : f32 to vector<32x256xf32>
    %474 = arith.addf %472, %473 : vector<32x256xf32>
    %475 = vector.extract_strided_slice %461 {offsets = [32, 0], sizes = [32, 256], strides = [1, 1]} : vector<128x256xf32> to vector<32x256xf32>
    %476 = arith.mulf %463, %389 : vector<32x256xf32>
    %477 = arith.addf %475, %476 : vector<32x256xf32>
    %cst_201 = arith.constant 5.000000e-01 : f32
    %478 = vector.broadcast %cst_201 : f32 to vector<32x256xf32>
    %479 = arith.mulf %478, %477 : vector<32x256xf32>
    %480 = math.tanh %479 : vector<32x256xf32>
    %cst_202 = arith.constant 5.000000e-01 : f32
    %481 = vector.broadcast %cst_202 : f32 to vector<32x256xf32>
    %482 = arith.mulf %481, %480 : vector<32x256xf32>
    %cst_203 = arith.constant 5.000000e-01 : f32
    %483 = vector.broadcast %cst_203 : f32 to vector<32x256xf32>
    %484 = arith.addf %482, %483 : vector<32x256xf32>
    %485 = arith.mulf %484, %389 : vector<32x256xf32>
    %486 = vector.extract_strided_slice %461 {offsets = [64, 0], sizes = [32, 256], strides = [1, 1]} : vector<128x256xf32> to vector<32x256xf32>
    %487 = math.tanh %486 : vector<32x256xf32>
    %488 = arith.mulf %474, %487 : vector<32x256xf32>
    %489 = arith.addf %485, %488 : vector<32x256xf32>
    %490 = vector.extract_strided_slice %461 {offsets = [96, 0], sizes = [32, 256], strides = [1, 1]} : vector<128x256xf32> to vector<32x256xf32>
    %491 = arith.mulf %464, %489 : vector<32x256xf32>
    %492 = arith.addf %490, %491 : vector<32x256xf32>
    %cst_204 = arith.constant 5.000000e-01 : f32
    %493 = vector.broadcast %cst_204 : f32 to vector<32x256xf32>
    %494 = arith.mulf %493, %492 : vector<32x256xf32>
    %495 = math.tanh %494 : vector<32x256xf32>
    %cst_205 = arith.constant 5.000000e-01 : f32
    %496 = vector.broadcast %cst_205 : f32 to vector<32x256xf32>
    %497 = arith.mulf %496, %495 : vector<32x256xf32>
    %cst_206 = arith.constant 5.000000e-01 : f32
    %498 = vector.broadcast %cst_206 : f32 to vector<32x256xf32>
    %499 = arith.addf %497, %498 : vector<32x256xf32>
    %500 = math.tanh %489 : vector<32x256xf32>
    %501 = arith.mulf %499, %500 : vector<32x256xf32>
    %c0_207 = arith.constant 0 : index
    %c4_208 = arith.constant 4 : index
    %c0_209 = arith.constant 0 : index
    %c0_210 = arith.constant 0 : index
    %502 = vector.load %arg6[%c0_207, %c4_208, %c0_209, %c0_210] : memref<1x8x32x256xf32, #tpu.memory_space<vmem>>, vector<1x1x32x256xf32>
    %503 = vector.shape_cast %502 : vector<1x1x32x256xf32> to vector<32x256xf32>
    %504 = vector.shape_cast %501 : vector<32x256xf32> to vector<1x1x32x256xf32>
    tpu.vector_store %arg6[%c0_207, %c4_208, %c0_209, %c0_210], %504 {strides = array<i32>} : memref<1x8x32x256xf32, #tpu.memory_space<vmem>>, vector<1x1x32x256xf32>,
    %505 = vector.extract_strided_slice %501 {offsets = [0, 239], sizes = [32, 17], strides = [1, 1]} : vector<32x256xf32> to vector<32x17xf32>
    %506 = vector.extract_strided_slice %501 {offsets = [0, 0], sizes = [32, 239], strides = [1, 1]} : vector<32x256xf32> to vector<32x239xf32>
    %507 = tpu.concatenate %505, %506 in 1 : vector<32x17xf32>, vector<32x239xf32> -> vector<32x256xf32>
    %c0_211 = arith.constant 0 : index
    %c0_212 = arith.constant 0 : index
    %508 = vector.load %arg4[%c0_211, %c0_212] : memref<288x256xf32, #tpu.memory_space<vmem>>, vector<32x256xf32>
    %509 = arith.mulf %507, %508 : vector<32x256xf32>
    %510 = arith.truncf %509 : vector<32x256xf32> to vector<32x256xbf16>
    %511 = vector.extract_strided_slice %501 {offsets = [0, 240], sizes = [32, 16], strides = [1, 1]} : vector<32x256xf32> to vector<32x16xf32>
    %512 = vector.extract_strided_slice %501 {offsets = [0, 0], sizes = [32, 240], strides = [1, 1]} : vector<32x256xf32> to vector<32x240xf32>
    %513 = tpu.concatenate %511, %512 in 1 : vector<32x16xf32>, vector<32x240xf32> -> vector<32x256xf32>
    %c32_213 = arith.constant 32 : index
    %c0_214 = arith.constant 0 : index
    %514 = vector.load %arg4[%c32_213, %c0_214] : memref<288x256xf32, #tpu.memory_space<vmem>>, vector<32x256xf32>
    %515 = arith.mulf %513, %514 : vector<32x256xf32>
    %516 = arith.truncf %515 : vector<32x256xf32> to vector<32x256xbf16>
    %517 = vector.extract_strided_slice %501 {offsets = [0, 241], sizes = [32, 15], strides = [1, 1]} : vector<32x256xf32> to vector<32x15xf32>
    %518 = vector.extract_strided_slice %501 {offsets = [0, 0], sizes = [32, 241], strides = [1, 1]} : vector<32x256xf32> to vector<32x241xf32>
    %519 = tpu.concatenate %517, %518 in 1 : vector<32x15xf32>, vector<32x241xf32> -> vector<32x256xf32>
    %c64_215 = arith.constant 64 : index
    %c0_216 = arith.constant 0 : index
    %520 = vector.load %arg4[%c64_215, %c0_216] : memref<288x256xf32, #tpu.memory_space<vmem>>, vector<32x256xf32>
    %521 = arith.mulf %519, %520 : vector<32x256xf32>
    %522 = arith.truncf %521 : vector<32x256xf32> to vector<32x256xbf16>
    %523 = vector.extract_strided_slice %501 {offsets = [0, 255], sizes = [32, 1], strides = [1, 1]} : vector<32x256xf32> to vector<32x1xf32>
    %524 = vector.extract_strided_slice %501 {offsets = [0, 0], sizes = [32, 255], strides = [1, 1]} : vector<32x256xf32> to vector<32x255xf32>
    %525 = tpu.concatenate %523, %524 in 1 : vector<32x1xf32>, vector<32x255xf32> -> vector<32x256xf32>
    %c96_217 = arith.constant 96 : index
    %c0_218 = arith.constant 0 : index
    %526 = vector.load %arg4[%c96_217, %c0_218] : memref<288x256xf32, #tpu.memory_space<vmem>>, vector<32x256xf32>
    %527 = arith.mulf %525, %526 : vector<32x256xf32>
    %528 = arith.truncf %527 : vector<32x256xf32> to vector<32x256xbf16>
    %c128_219 = arith.constant 128 : index
    %c0_220 = arith.constant 0 : index
    %529 = vector.load %arg4[%c128_219, %c0_220] : memref<288x256xf32, #tpu.memory_space<vmem>>, vector<32x256xf32>
    %530 = arith.mulf %501, %529 : vector<32x256xf32>
    %531 = arith.truncf %530 : vector<32x256xf32> to vector<32x256xbf16>
    %532 = vector.extract_strided_slice %501 {offsets = [0, 1], sizes = [32, 255], strides = [1, 1]} : vector<32x256xf32> to vector<32x255xf32>
    %533 = vector.extract_strided_slice %501 {offsets = [0, 0], sizes = [32, 1], strides = [1, 1]} : vector<32x256xf32> to vector<32x1xf32>
    %534 = tpu.concatenate %532, %533 in 1 : vector<32x255xf32>, vector<32x1xf32> -> vector<32x256xf32>
    %c160_221 = arith.constant 160 : index
    %c0_222 = arith.constant 0 : index
    %535 = vector.load %arg4[%c160_221, %c0_222] : memref<288x256xf32, #tpu.memory_space<vmem>>, vector<32x256xf32>
    %536 = arith.mulf %534, %535 : vector<32x256xf32>
    %537 = arith.truncf %536 : vector<32x256xf32> to vector<32x256xbf16>
    %538 = vector.extract_strided_slice %501 {offsets = [0, 15], sizes = [32, 241], strides = [1, 1]} : vector<32x256xf32> to vector<32x241xf32>
    %539 = vector.extract_strided_slice %501 {offsets = [0, 0], sizes = [32, 15], strides = [1, 1]} : vector<32x256xf32> to vector<32x15xf32>
    %540 = tpu.concatenate %538, %539 in 1 : vector<32x241xf32>, vector<32x15xf32> -> vector<32x256xf32>
    %c192_223 = arith.constant 192 : index
    %c0_224 = arith.constant 0 : index
    %541 = vector.load %arg4[%c192_223, %c0_224] : memref<288x256xf32, #tpu.memory_space<vmem>>, vector<32x256xf32>
    %542 = arith.mulf %540, %541 : vector<32x256xf32>
    %543 = arith.truncf %542 : vector<32x256xf32> to vector<32x256xbf16>
    %544 = vector.extract_strided_slice %501 {offsets = [0, 16], sizes = [32, 240], strides = [1, 1]} : vector<32x256xf32> to vector<32x240xf32>
    %545 = vector.extract_strided_slice %501 {offsets = [0, 0], sizes = [32, 16], strides = [1, 1]} : vector<32x256xf32> to vector<32x16xf32>
    %546 = tpu.concatenate %544, %545 in 1 : vector<32x240xf32>, vector<32x16xf32> -> vector<32x256xf32>
    %c224_225 = arith.constant 224 : index
    %c0_226 = arith.constant 0 : index
    %547 = vector.load %arg4[%c224_225, %c0_226] : memref<288x256xf32, #tpu.memory_space<vmem>>, vector<32x256xf32>
    %548 = arith.mulf %546, %547 : vector<32x256xf32>
    %549 = arith.truncf %548 : vector<32x256xf32> to vector<32x256xbf16>
    %550 = vector.extract_strided_slice %501 {offsets = [0, 17], sizes = [32, 239], strides = [1, 1]} : vector<32x256xf32> to vector<32x239xf32>
    %551 = vector.extract_strided_slice %501 {offsets = [0, 0], sizes = [32, 17], strides = [1, 1]} : vector<32x256xf32> to vector<32x17xf32>
    %552 = tpu.concatenate %550, %551 in 1 : vector<32x239xf32>, vector<32x17xf32> -> vector<32x256xf32>
    %c256_227 = arith.constant 256 : index
    %c0_228 = arith.constant 0 : index
    %553 = vector.load %arg4[%c256_227, %c0_228] : memref<288x256xf32, #tpu.memory_space<vmem>>, vector<32x256xf32>
    %554 = arith.mulf %552, %553 : vector<32x256xf32>
    %555 = arith.truncf %554 : vector<32x256xf32> to vector<32x256xbf16>
    %556 = tpu.concatenate %510, %516, %522, %528, %531, %537, %543, %549, %555 in 0 : vector<32x256xbf16>, vector<32x256xbf16>, vector<32x256xbf16>, vector<32x256xbf16>, vector<32x256xbf16>, vector<32x256xbf16>, vector<32x256xbf16>, vector<32x256xbf16>, vector<32x256xbf16> -> vector<288x256xbf16>
    %c0_229 = arith.constant 0 : index
    %c5 = arith.constant 5 : index
    %c0_230 = arith.constant 0 : index
    %c0_231 = arith.constant 0 : index
    %557 = vector.load %arg2[%c0_229, %c5, %c0_230, %c0_231] : memref<1x8x128x256xf32, #tpu.memory_space<vmem>>, vector<1x1x128x256xf32>
    %558 = vector.shape_cast %557 : vector<1x1x128x256xf32> to vector<128x256xf32>
    %c0_232 = arith.constant 0 : index
    %c0_233 = arith.constant 0 : index
    %559 = vector.load %arg3[%c0_232, %c0_233] : memref<128x288xbf16, #tpu.memory_space<vmem>>, vector<128x288xbf16>
    %cst_234 = arith.constant dense<0.000000e+00> : vector<128x256xf32>
    %560 = tpu.matmul %559, %556, %cst_234 {dimension_numbers = #tpu.dot_dimension_numbers<[1], [0], [0], [1], [0, 0, 1, 1], [], []>} : vector<128x288xbf16>, vector<288x256xbf16>, vector<128x256xf32> -> vector<128x256xf32>
    %561 = arith.addf %558, %560 : vector<128x256xf32>
    %c0_235 = arith.constant 0 : index
    %c0_236 = arith.constant 0 : index
    %562 = vector.load %arg5[%c0_235, %c0_236] : memref<96x256xf32, #tpu.memory_space<vmem>>, vector<32x256xf32>
    %c32_237 = arith.constant 32 : index
    %c0_238 = arith.constant 0 : index
    %563 = vector.load %arg5[%c32_237, %c0_238] : memref<96x256xf32, #tpu.memory_space<vmem>>, vector<32x256xf32>
    %c64_239 = arith.constant 64 : index
    %c0_240 = arith.constant 0 : index
    %564 = vector.load %arg5[%c64_239, %c0_240] : memref<96x256xf32, #tpu.memory_space<vmem>>, vector<32x256xf32>
    %565 = vector.extract_strided_slice %561 {offsets = [0, 0], sizes = [32, 256], strides = [1, 1]} : vector<128x256xf32> to vector<32x256xf32>
    %566 = arith.mulf %562, %489 : vector<32x256xf32>
    %567 = arith.addf %565, %566 : vector<32x256xf32>
    %cst_241 = arith.constant 5.000000e-01 : f32
    %568 = vector.broadcast %cst_241 : f32 to vector<32x256xf32>
    %569 = arith.mulf %568, %567 : vector<32x256xf32>
    %570 = math.tanh %569 : vector<32x256xf32>
    %cst_242 = arith.constant 5.000000e-01 : f32
    %571 = vector.broadcast %cst_242 : f32 to vector<32x256xf32>
    %572 = arith.mulf %571, %570 : vector<32x256xf32>
    %cst_243 = arith.constant 5.000000e-01 : f32
    %573 = vector.broadcast %cst_243 : f32 to vector<32x256xf32>
    %574 = arith.addf %572, %573 : vector<32x256xf32>
    %575 = vector.extract_strided_slice %561 {offsets = [32, 0], sizes = [32, 256], strides = [1, 1]} : vector<128x256xf32> to vector<32x256xf32>
    %576 = arith.mulf %563, %489 : vector<32x256xf32>
    %577 = arith.addf %575, %576 : vector<32x256xf32>
    %cst_244 = arith.constant 5.000000e-01 : f32
    %578 = vector.broadcast %cst_244 : f32 to vector<32x256xf32>
    %579 = arith.mulf %578, %577 : vector<32x256xf32>
    %580 = math.tanh %579 : vector<32x256xf32>
    %cst_245 = arith.constant 5.000000e-01 : f32
    %581 = vector.broadcast %cst_245 : f32 to vector<32x256xf32>
    %582 = arith.mulf %581, %580 : vector<32x256xf32>
    %cst_246 = arith.constant 5.000000e-01 : f32
    %583 = vector.broadcast %cst_246 : f32 to vector<32x256xf32>
    %584 = arith.addf %582, %583 : vector<32x256xf32>
    %585 = arith.mulf %584, %489 : vector<32x256xf32>
    %586 = vector.extract_strided_slice %561 {offsets = [64, 0], sizes = [32, 256], strides = [1, 1]} : vector<128x256xf32> to vector<32x256xf32>
    %587 = math.tanh %586 : vector<32x256xf32>
    %588 = arith.mulf %574, %587 : vector<32x256xf32>
    %589 = arith.addf %585, %588 : vector<32x256xf32>
    %590 = vector.extract_strided_slice %561 {offsets = [96, 0], sizes = [32, 256], strides = [1, 1]} : vector<128x256xf32> to vector<32x256xf32>
    %591 = arith.mulf %564, %589 : vector<32x256xf32>
    %592 = arith.addf %590, %591 : vector<32x256xf32>
    %cst_247 = arith.constant 5.000000e-01 : f32
    %593 = vector.broadcast %cst_247 : f32 to vector<32x256xf32>
    %594 = arith.mulf %593, %592 : vector<32x256xf32>
    %595 = math.tanh %594 : vector<32x256xf32>
    %cst_248 = arith.constant 5.000000e-01 : f32
    %596 = vector.broadcast %cst_248 : f32 to vector<32x256xf32>
    %597 = arith.mulf %596, %595 : vector<32x256xf32>
    %cst_249 = arith.constant 5.000000e-01 : f32
    %598 = vector.broadcast %cst_249 : f32 to vector<32x256xf32>
    %599 = arith.addf %597, %598 : vector<32x256xf32>
    %600 = math.tanh %589 : vector<32x256xf32>
    %601 = arith.mulf %599, %600 : vector<32x256xf32>
    %c0_250 = arith.constant 0 : index
    %c5_251 = arith.constant 5 : index
    %c0_252 = arith.constant 0 : index
    %c0_253 = arith.constant 0 : index
    %602 = vector.load %arg6[%c0_250, %c5_251, %c0_252, %c0_253] : memref<1x8x32x256xf32, #tpu.memory_space<vmem>>, vector<1x1x32x256xf32>
    %603 = vector.shape_cast %602 : vector<1x1x32x256xf32> to vector<32x256xf32>
    %604 = vector.shape_cast %601 : vector<32x256xf32> to vector<1x1x32x256xf32>
    tpu.vector_store %arg6[%c0_250, %c5_251, %c0_252, %c0_253], %604 {strides = array<i32>} : memref<1x8x32x256xf32, #tpu.memory_space<vmem>>, vector<1x1x32x256xf32>,
    %605 = vector.extract_strided_slice %601 {offsets = [0, 239], sizes = [32, 17], strides = [1, 1]} : vector<32x256xf32> to vector<32x17xf32>
    %606 = vector.extract_strided_slice %601 {offsets = [0, 0], sizes = [32, 239], strides = [1, 1]} : vector<32x256xf32> to vector<32x239xf32>
    %607 = tpu.concatenate %605, %606 in 1 : vector<32x17xf32>, vector<32x239xf32> -> vector<32x256xf32>
    %c0_254 = arith.constant 0 : index
    %c0_255 = arith.constant 0 : index
    %608 = vector.load %arg4[%c0_254, %c0_255] : memref<288x256xf32, #tpu.memory_space<vmem>>, vector<32x256xf32>
    %609 = arith.mulf %607, %608 : vector<32x256xf32>
    %610 = arith.truncf %609 : vector<32x256xf32> to vector<32x256xbf16>
    %611 = vector.extract_strided_slice %601 {offsets = [0, 240], sizes = [32, 16], strides = [1, 1]} : vector<32x256xf32> to vector<32x16xf32>
    %612 = vector.extract_strided_slice %601 {offsets = [0, 0], sizes = [32, 240], strides = [1, 1]} : vector<32x256xf32> to vector<32x240xf32>
    %613 = tpu.concatenate %611, %612 in 1 : vector<32x16xf32>, vector<32x240xf32> -> vector<32x256xf32>
    %c32_256 = arith.constant 32 : index
    %c0_257 = arith.constant 0 : index
    %614 = vector.load %arg4[%c32_256, %c0_257] : memref<288x256xf32, #tpu.memory_space<vmem>>, vector<32x256xf32>
    %615 = arith.mulf %613, %614 : vector<32x256xf32>
    %616 = arith.truncf %615 : vector<32x256xf32> to vector<32x256xbf16>
    %617 = vector.extract_strided_slice %601 {offsets = [0, 241], sizes = [32, 15], strides = [1, 1]} : vector<32x256xf32> to vector<32x15xf32>
    %618 = vector.extract_strided_slice %601 {offsets = [0, 0], sizes = [32, 241], strides = [1, 1]} : vector<32x256xf32> to vector<32x241xf32>
    %619 = tpu.concatenate %617, %618 in 1 : vector<32x15xf32>, vector<32x241xf32> -> vector<32x256xf32>
    %c64_258 = arith.constant 64 : index
    %c0_259 = arith.constant 0 : index
    %620 = vector.load %arg4[%c64_258, %c0_259] : memref<288x256xf32, #tpu.memory_space<vmem>>, vector<32x256xf32>
    %621 = arith.mulf %619, %620 : vector<32x256xf32>
    %622 = arith.truncf %621 : vector<32x256xf32> to vector<32x256xbf16>
    %623 = vector.extract_strided_slice %601 {offsets = [0, 255], sizes = [32, 1], strides = [1, 1]} : vector<32x256xf32> to vector<32x1xf32>
    %624 = vector.extract_strided_slice %601 {offsets = [0, 0], sizes = [32, 255], strides = [1, 1]} : vector<32x256xf32> to vector<32x255xf32>
    %625 = tpu.concatenate %623, %624 in 1 : vector<32x1xf32>, vector<32x255xf32> -> vector<32x256xf32>
    %c96_260 = arith.constant 96 : index
    %c0_261 = arith.constant 0 : index
    %626 = vector.load %arg4[%c96_260, %c0_261] : memref<288x256xf32, #tpu.memory_space<vmem>>, vector<32x256xf32>
    %627 = arith.mulf %625, %626 : vector<32x256xf32>
    %628 = arith.truncf %627 : vector<32x256xf32> to vector<32x256xbf16>
    %c128_262 = arith.constant 128 : index
    %c0_263 = arith.constant 0 : index
    %629 = vector.load %arg4[%c128_262, %c0_263] : memref<288x256xf32, #tpu.memory_space<vmem>>, vector<32x256xf32>
    %630 = arith.mulf %601, %629 : vector<32x256xf32>
    %631 = arith.truncf %630 : vector<32x256xf32> to vector<32x256xbf16>
    %632 = vector.extract_strided_slice %601 {offsets = [0, 1], sizes = [32, 255], strides = [1, 1]} : vector<32x256xf32> to vector<32x255xf32>
    %633 = vector.extract_strided_slice %601 {offsets = [0, 0], sizes = [32, 1], strides = [1, 1]} : vector<32x256xf32> to vector<32x1xf32>
    %634 = tpu.concatenate %632, %633 in 1 : vector<32x255xf32>, vector<32x1xf32> -> vector<32x256xf32>
    %c160_264 = arith.constant 160 : index
    %c0_265 = arith.constant 0 : index
    %635 = vector.load %arg4[%c160_264, %c0_265] : memref<288x256xf32, #tpu.memory_space<vmem>>, vector<32x256xf32>
    %636 = arith.mulf %634, %635 : vector<32x256xf32>
    %637 = arith.truncf %636 : vector<32x256xf32> to vector<32x256xbf16>
    %638 = vector.extract_strided_slice %601 {offsets = [0, 15], sizes = [32, 241], strides = [1, 1]} : vector<32x256xf32> to vector<32x241xf32>
    %639 = vector.extract_strided_slice %601 {offsets = [0, 0], sizes = [32, 15], strides = [1, 1]} : vector<32x256xf32> to vector<32x15xf32>
    %640 = tpu.concatenate %638, %639 in 1 : vector<32x241xf32>, vector<32x15xf32> -> vector<32x256xf32>
    %c192_266 = arith.constant 192 : index
    %c0_267 = arith.constant 0 : index
    %641 = vector.load %arg4[%c192_266, %c0_267] : memref<288x256xf32, #tpu.memory_space<vmem>>, vector<32x256xf32>
    %642 = arith.mulf %640, %641 : vector<32x256xf32>
    %643 = arith.truncf %642 : vector<32x256xf32> to vector<32x256xbf16>
    %644 = vector.extract_strided_slice %601 {offsets = [0, 16], sizes = [32, 240], strides = [1, 1]} : vector<32x256xf32> to vector<32x240xf32>
    %645 = vector.extract_strided_slice %601 {offsets = [0, 0], sizes = [32, 16], strides = [1, 1]} : vector<32x256xf32> to vector<32x16xf32>
    %646 = tpu.concatenate %644, %645 in 1 : vector<32x240xf32>, vector<32x16xf32> -> vector<32x256xf32>
    %c224_268 = arith.constant 224 : index
    %c0_269 = arith.constant 0 : index
    %647 = vector.load %arg4[%c224_268, %c0_269] : memref<288x256xf32, #tpu.memory_space<vmem>>, vector<32x256xf32>
    %648 = arith.mulf %646, %647 : vector<32x256xf32>
    %649 = arith.truncf %648 : vector<32x256xf32> to vector<32x256xbf16>
    %650 = vector.extract_strided_slice %601 {offsets = [0, 17], sizes = [32, 239], strides = [1, 1]} : vector<32x256xf32> to vector<32x239xf32>
    %651 = vector.extract_strided_slice %601 {offsets = [0, 0], sizes = [32, 17], strides = [1, 1]} : vector<32x256xf32> to vector<32x17xf32>
    %652 = tpu.concatenate %650, %651 in 1 : vector<32x239xf32>, vector<32x17xf32> -> vector<32x256xf32>
    %c256_270 = arith.constant 256 : index
    %c0_271 = arith.constant 0 : index
    %653 = vector.load %arg4[%c256_270, %c0_271] : memref<288x256xf32, #tpu.memory_space<vmem>>, vector<32x256xf32>
    %654 = arith.mulf %652, %653 : vector<32x256xf32>
    %655 = arith.truncf %654 : vector<32x256xf32> to vector<32x256xbf16>
    %656 = tpu.concatenate %610, %616, %622, %628, %631, %637, %643, %649, %655 in 0 : vector<32x256xbf16>, vector<32x256xbf16>, vector<32x256xbf16>, vector<32x256xbf16>, vector<32x256xbf16>, vector<32x256xbf16>, vector<32x256xbf16>, vector<32x256xbf16>, vector<32x256xbf16> -> vector<288x256xbf16>
    %c0_272 = arith.constant 0 : index
    %c6 = arith.constant 6 : index
    %c0_273 = arith.constant 0 : index
    %c0_274 = arith.constant 0 : index
    %657 = vector.load %arg2[%c0_272, %c6, %c0_273, %c0_274] : memref<1x8x128x256xf32, #tpu.memory_space<vmem>>, vector<1x1x128x256xf32>
    %658 = vector.shape_cast %657 : vector<1x1x128x256xf32> to vector<128x256xf32>
    %c0_275 = arith.constant 0 : index
    %c0_276 = arith.constant 0 : index
    %659 = vector.load %arg3[%c0_275, %c0_276] : memref<128x288xbf16, #tpu.memory_space<vmem>>, vector<128x288xbf16>
    %cst_277 = arith.constant dense<0.000000e+00> : vector<128x256xf32>
    %660 = tpu.matmul %659, %656, %cst_277 {dimension_numbers = #tpu.dot_dimension_numbers<[1], [0], [0], [1], [0, 0, 1, 1], [], []>} : vector<128x288xbf16>, vector<288x256xbf16>, vector<128x256xf32> -> vector<128x256xf32>
    %661 = arith.addf %658, %660 : vector<128x256xf32>
    %c0_278 = arith.constant 0 : index
    %c0_279 = arith.constant 0 : index
    %662 = vector.load %arg5[%c0_278, %c0_279] : memref<96x256xf32, #tpu.memory_space<vmem>>, vector<32x256xf32>
    %c32_280 = arith.constant 32 : index
    %c0_281 = arith.constant 0 : index
    %663 = vector.load %arg5[%c32_280, %c0_281] : memref<96x256xf32, #tpu.memory_space<vmem>>, vector<32x256xf32>
    %c64_282 = arith.constant 64 : index
    %c0_283 = arith.constant 0 : index
    %664 = vector.load %arg5[%c64_282, %c0_283] : memref<96x256xf32, #tpu.memory_space<vmem>>, vector<32x256xf32>
    %665 = vector.extract_strided_slice %661 {offsets = [0, 0], sizes = [32, 256], strides = [1, 1]} : vector<128x256xf32> to vector<32x256xf32>
    %666 = arith.mulf %662, %589 : vector<32x256xf32>
    %667 = arith.addf %665, %666 : vector<32x256xf32>
    %cst_284 = arith.constant 5.000000e-01 : f32
    %668 = vector.broadcast %cst_284 : f32 to vector<32x256xf32>
    %669 = arith.mulf %668, %667 : vector<32x256xf32>
    %670 = math.tanh %669 : vector<32x256xf32>
    %cst_285 = arith.constant 5.000000e-01 : f32
    %671 = vector.broadcast %cst_285 : f32 to vector<32x256xf32>
    %672 = arith.mulf %671, %670 : vector<32x256xf32>
    %cst_286 = arith.constant 5.000000e-01 : f32
    %673 = vector.broadcast %cst_286 : f32 to vector<32x256xf32>
    %674 = arith.addf %672, %673 : vector<32x256xf32>
    %675 = vector.extract_strided_slice %661 {offsets = [32, 0], sizes = [32, 256], strides = [1, 1]} : vector<128x256xf32> to vector<32x256xf32>
    %676 = arith.mulf %663, %589 : vector<32x256xf32>
    %677 = arith.addf %675, %676 : vector<32x256xf32>
    %cst_287 = arith.constant 5.000000e-01 : f32
    %678 = vector.broadcast %cst_287 : f32 to vector<32x256xf32>
    %679 = arith.mulf %678, %677 : vector<32x256xf32>
    %680 = math.tanh %679 : vector<32x256xf32>
    %cst_288 = arith.constant 5.000000e-01 : f32
    %681 = vector.broadcast %cst_288 : f32 to vector<32x256xf32>
    %682 = arith.mulf %681, %680 : vector<32x256xf32>
    %cst_289 = arith.constant 5.000000e-01 : f32
    %683 = vector.broadcast %cst_289 : f32 to vector<32x256xf32>
    %684 = arith.addf %682, %683 : vector<32x256xf32>
    %685 = arith.mulf %684, %589 : vector<32x256xf32>
    %686 = vector.extract_strided_slice %661 {offsets = [64, 0], sizes = [32, 256], strides = [1, 1]} : vector<128x256xf32> to vector<32x256xf32>
    %687 = math.tanh %686 : vector<32x256xf32>
    %688 = arith.mulf %674, %687 : vector<32x256xf32>
    %689 = arith.addf %685, %688 : vector<32x256xf32>
    %690 = vector.extract_strided_slice %661 {offsets = [96, 0], sizes = [32, 256], strides = [1, 1]} : vector<128x256xf32> to vector<32x256xf32>
    %691 = arith.mulf %664, %689 : vector<32x256xf32>
    %692 = arith.addf %690, %691 : vector<32x256xf32>
    %cst_290 = arith.constant 5.000000e-01 : f32
    %693 = vector.broadcast %cst_290 : f32 to vector<32x256xf32>
    %694 = arith.mulf %693, %692 : vector<32x256xf32>
    %695 = math.tanh %694 : vector<32x256xf32>
    %cst_291 = arith.constant 5.000000e-01 : f32
    %696 = vector.broadcast %cst_291 : f32 to vector<32x256xf32>
    %697 = arith.mulf %696, %695 : vector<32x256xf32>
    %cst_292 = arith.constant 5.000000e-01 : f32
    %698 = vector.broadcast %cst_292 : f32 to vector<32x256xf32>
    %699 = arith.addf %697, %698 : vector<32x256xf32>
    %700 = math.tanh %689 : vector<32x256xf32>
    %701 = arith.mulf %699, %700 : vector<32x256xf32>
    %c0_293 = arith.constant 0 : index
    %c6_294 = arith.constant 6 : index
    %c0_295 = arith.constant 0 : index
    %c0_296 = arith.constant 0 : index
    %702 = vector.load %arg6[%c0_293, %c6_294, %c0_295, %c0_296] : memref<1x8x32x256xf32, #tpu.memory_space<vmem>>, vector<1x1x32x256xf32>
    %703 = vector.shape_cast %702 : vector<1x1x32x256xf32> to vector<32x256xf32>
    %704 = vector.shape_cast %701 : vector<32x256xf32> to vector<1x1x32x256xf32>
    tpu.vector_store %arg6[%c0_293, %c6_294, %c0_295, %c0_296], %704 {strides = array<i32>} : memref<1x8x32x256xf32, #tpu.memory_space<vmem>>, vector<1x1x32x256xf32>,
    %705 = vector.extract_strided_slice %701 {offsets = [0, 239], sizes = [32, 17], strides = [1, 1]} : vector<32x256xf32> to vector<32x17xf32>
    %706 = vector.extract_strided_slice %701 {offsets = [0, 0], sizes = [32, 239], strides = [1, 1]} : vector<32x256xf32> to vector<32x239xf32>
    %707 = tpu.concatenate %705, %706 in 1 : vector<32x17xf32>, vector<32x239xf32> -> vector<32x256xf32>
    %c0_297 = arith.constant 0 : index
    %c0_298 = arith.constant 0 : index
    %708 = vector.load %arg4[%c0_297, %c0_298] : memref<288x256xf32, #tpu.memory_space<vmem>>, vector<32x256xf32>
    %709 = arith.mulf %707, %708 : vector<32x256xf32>
    %710 = arith.truncf %709 : vector<32x256xf32> to vector<32x256xbf16>
    %711 = vector.extract_strided_slice %701 {offsets = [0, 240], sizes = [32, 16], strides = [1, 1]} : vector<32x256xf32> to vector<32x16xf32>
    %712 = vector.extract_strided_slice %701 {offsets = [0, 0], sizes = [32, 240], strides = [1, 1]} : vector<32x256xf32> to vector<32x240xf32>
    %713 = tpu.concatenate %711, %712 in 1 : vector<32x16xf32>, vector<32x240xf32> -> vector<32x256xf32>
    %c32_299 = arith.constant 32 : index
    %c0_300 = arith.constant 0 : index
    %714 = vector.load %arg4[%c32_299, %c0_300] : memref<288x256xf32, #tpu.memory_space<vmem>>, vector<32x256xf32>
    %715 = arith.mulf %713, %714 : vector<32x256xf32>
    %716 = arith.truncf %715 : vector<32x256xf32> to vector<32x256xbf16>
    %717 = vector.extract_strided_slice %701 {offsets = [0, 241], sizes = [32, 15], strides = [1, 1]} : vector<32x256xf32> to vector<32x15xf32>
    %718 = vector.extract_strided_slice %701 {offsets = [0, 0], sizes = [32, 241], strides = [1, 1]} : vector<32x256xf32> to vector<32x241xf32>
    %719 = tpu.concatenate %717, %718 in 1 : vector<32x15xf32>, vector<32x241xf32> -> vector<32x256xf32>
    %c64_301 = arith.constant 64 : index
    %c0_302 = arith.constant 0 : index
    %720 = vector.load %arg4[%c64_301, %c0_302] : memref<288x256xf32, #tpu.memory_space<vmem>>, vector<32x256xf32>
    %721 = arith.mulf %719, %720 : vector<32x256xf32>
    %722 = arith.truncf %721 : vector<32x256xf32> to vector<32x256xbf16>
    %723 = vector.extract_strided_slice %701 {offsets = [0, 255], sizes = [32, 1], strides = [1, 1]} : vector<32x256xf32> to vector<32x1xf32>
    %724 = vector.extract_strided_slice %701 {offsets = [0, 0], sizes = [32, 255], strides = [1, 1]} : vector<32x256xf32> to vector<32x255xf32>
    %725 = tpu.concatenate %723, %724 in 1 : vector<32x1xf32>, vector<32x255xf32> -> vector<32x256xf32>
    %c96_303 = arith.constant 96 : index
    %c0_304 = arith.constant 0 : index
    %726 = vector.load %arg4[%c96_303, %c0_304] : memref<288x256xf32, #tpu.memory_space<vmem>>, vector<32x256xf32>
    %727 = arith.mulf %725, %726 : vector<32x256xf32>
    %728 = arith.truncf %727 : vector<32x256xf32> to vector<32x256xbf16>
    %c128_305 = arith.constant 128 : index
    %c0_306 = arith.constant 0 : index
    %729 = vector.load %arg4[%c128_305, %c0_306] : memref<288x256xf32, #tpu.memory_space<vmem>>, vector<32x256xf32>
    %730 = arith.mulf %701, %729 : vector<32x256xf32>
    %731 = arith.truncf %730 : vector<32x256xf32> to vector<32x256xbf16>
    %732 = vector.extract_strided_slice %701 {offsets = [0, 1], sizes = [32, 255], strides = [1, 1]} : vector<32x256xf32> to vector<32x255xf32>
    %733 = vector.extract_strided_slice %701 {offsets = [0, 0], sizes = [32, 1], strides = [1, 1]} : vector<32x256xf32> to vector<32x1xf32>
    %734 = tpu.concatenate %732, %733 in 1 : vector<32x255xf32>, vector<32x1xf32> -> vector<32x256xf32>
    %c160_307 = arith.constant 160 : index
    %c0_308 = arith.constant 0 : index
    %735 = vector.load %arg4[%c160_307, %c0_308] : memref<288x256xf32, #tpu.memory_space<vmem>>, vector<32x256xf32>
    %736 = arith.mulf %734, %735 : vector<32x256xf32>
    %737 = arith.truncf %736 : vector<32x256xf32> to vector<32x256xbf16>
    %738 = vector.extract_strided_slice %701 {offsets = [0, 15], sizes = [32, 241], strides = [1, 1]} : vector<32x256xf32> to vector<32x241xf32>
    %739 = vector.extract_strided_slice %701 {offsets = [0, 0], sizes = [32, 15], strides = [1, 1]} : vector<32x256xf32> to vector<32x15xf32>
    %740 = tpu.concatenate %738, %739 in 1 : vector<32x241xf32>, vector<32x15xf32> -> vector<32x256xf32>
    %c192_309 = arith.constant 192 : index
    %c0_310 = arith.constant 0 : index
    %741 = vector.load %arg4[%c192_309, %c0_310] : memref<288x256xf32, #tpu.memory_space<vmem>>, vector<32x256xf32>
    %742 = arith.mulf %740, %741 : vector<32x256xf32>
    %743 = arith.truncf %742 : vector<32x256xf32> to vector<32x256xbf16>
    %744 = vector.extract_strided_slice %701 {offsets = [0, 16], sizes = [32, 240], strides = [1, 1]} : vector<32x256xf32> to vector<32x240xf32>
    %745 = vector.extract_strided_slice %701 {offsets = [0, 0], sizes = [32, 16], strides = [1, 1]} : vector<32x256xf32> to vector<32x16xf32>
    %746 = tpu.concatenate %744, %745 in 1 : vector<32x240xf32>, vector<32x16xf32> -> vector<32x256xf32>
    %c224_311 = arith.constant 224 : index
    %c0_312 = arith.constant 0 : index
    %747 = vector.load %arg4[%c224_311, %c0_312] : memref<288x256xf32, #tpu.memory_space<vmem>>, vector<32x256xf32>
    %748 = arith.mulf %746, %747 : vector<32x256xf32>
    %749 = arith.truncf %748 : vector<32x256xf32> to vector<32x256xbf16>
    %750 = vector.extract_strided_slice %701 {offsets = [0, 17], sizes = [32, 239], strides = [1, 1]} : vector<32x256xf32> to vector<32x239xf32>
    %751 = vector.extract_strided_slice %701 {offsets = [0, 0], sizes = [32, 17], strides = [1, 1]} : vector<32x256xf32> to vector<32x17xf32>
    %752 = tpu.concatenate %750, %751 in 1 : vector<32x239xf32>, vector<32x17xf32> -> vector<32x256xf32>
    %c256_313 = arith.constant 256 : index
    %c0_314 = arith.constant 0 : index
    %753 = vector.load %arg4[%c256_313, %c0_314] : memref<288x256xf32, #tpu.memory_space<vmem>>, vector<32x256xf32>
    %754 = arith.mulf %752, %753 : vector<32x256xf32>
    %755 = arith.truncf %754 : vector<32x256xf32> to vector<32x256xbf16>
    %756 = tpu.concatenate %710, %716, %722, %728, %731, %737, %743, %749, %755 in 0 : vector<32x256xbf16>, vector<32x256xbf16>, vector<32x256xbf16>, vector<32x256xbf16>, vector<32x256xbf16>, vector<32x256xbf16>, vector<32x256xbf16>, vector<32x256xbf16>, vector<32x256xbf16> -> vector<288x256xbf16>
    %c0_315 = arith.constant 0 : index
    %c7 = arith.constant 7 : index
    %c0_316 = arith.constant 0 : index
    %c0_317 = arith.constant 0 : index
    %757 = vector.load %arg2[%c0_315, %c7, %c0_316, %c0_317] : memref<1x8x128x256xf32, #tpu.memory_space<vmem>>, vector<1x1x128x256xf32>
    %758 = vector.shape_cast %757 : vector<1x1x128x256xf32> to vector<128x256xf32>
    %c0_318 = arith.constant 0 : index
    %c0_319 = arith.constant 0 : index
    %759 = vector.load %arg3[%c0_318, %c0_319] : memref<128x288xbf16, #tpu.memory_space<vmem>>, vector<128x288xbf16>
    %cst_320 = arith.constant dense<0.000000e+00> : vector<128x256xf32>
    %760 = tpu.matmul %759, %756, %cst_320 {dimension_numbers = #tpu.dot_dimension_numbers<[1], [0], [0], [1], [0, 0, 1, 1], [], []>} : vector<128x288xbf16>, vector<288x256xbf16>, vector<128x256xf32> -> vector<128x256xf32>
    %761 = arith.addf %758, %760 : vector<128x256xf32>
    %c0_321 = arith.constant 0 : index
    %c0_322 = arith.constant 0 : index
    %762 = vector.load %arg5[%c0_321, %c0_322] : memref<96x256xf32, #tpu.memory_space<vmem>>, vector<32x256xf32>
    %c32_323 = arith.constant 32 : index
    %c0_324 = arith.constant 0 : index
    %763 = vector.load %arg5[%c32_323, %c0_324] : memref<96x256xf32, #tpu.memory_space<vmem>>, vector<32x256xf32>
    %c64_325 = arith.constant 64 : index
    %c0_326 = arith.constant 0 : index
    %764 = vector.load %arg5[%c64_325, %c0_326] : memref<96x256xf32, #tpu.memory_space<vmem>>, vector<32x256xf32>
    %765 = vector.extract_strided_slice %761 {offsets = [0, 0], sizes = [32, 256], strides = [1, 1]} : vector<128x256xf32> to vector<32x256xf32>
    %766 = arith.mulf %762, %689 : vector<32x256xf32>
    %767 = arith.addf %765, %766 : vector<32x256xf32>
    %cst_327 = arith.constant 5.000000e-01 : f32
    %768 = vector.broadcast %cst_327 : f32 to vector<32x256xf32>
    %769 = arith.mulf %768, %767 : vector<32x256xf32>
    %770 = math.tanh %769 : vector<32x256xf32>
    %cst_328 = arith.constant 5.000000e-01 : f32
    %771 = vector.broadcast %cst_328 : f32 to vector<32x256xf32>
    %772 = arith.mulf %771, %770 : vector<32x256xf32>
    %cst_329 = arith.constant 5.000000e-01 : f32
    %773 = vector.broadcast %cst_329 : f32 to vector<32x256xf32>
    %774 = arith.addf %772, %773 : vector<32x256xf32>
    %775 = vector.extract_strided_slice %761 {offsets = [32, 0], sizes = [32, 256], strides = [1, 1]} : vector<128x256xf32> to vector<32x256xf32>
    %776 = arith.mulf %763, %689 : vector<32x256xf32>
    %777 = arith.addf %775, %776 : vector<32x256xf32>
    %cst_330 = arith.constant 5.000000e-01 : f32
    %778 = vector.broadcast %cst_330 : f32 to vector<32x256xf32>
    %779 = arith.mulf %778, %777 : vector<32x256xf32>
    %780 = math.tanh %779 : vector<32x256xf32>
    %cst_331 = arith.constant 5.000000e-01 : f32
    %781 = vector.broadcast %cst_331 : f32 to vector<32x256xf32>
    %782 = arith.mulf %781, %780 : vector<32x256xf32>
    %cst_332 = arith.constant 5.000000e-01 : f32
    %783 = vector.broadcast %cst_332 : f32 to vector<32x256xf32>
    %784 = arith.addf %782, %783 : vector<32x256xf32>
    %785 = arith.mulf %784, %689 : vector<32x256xf32>
    %786 = vector.extract_strided_slice %761 {offsets = [64, 0], sizes = [32, 256], strides = [1, 1]} : vector<128x256xf32> to vector<32x256xf32>
    %787 = math.tanh %786 : vector<32x256xf32>
    %788 = arith.mulf %774, %787 : vector<32x256xf32>
    %789 = arith.addf %785, %788 : vector<32x256xf32>
    %790 = vector.extract_strided_slice %761 {offsets = [96, 0], sizes = [32, 256], strides = [1, 1]} : vector<128x256xf32> to vector<32x256xf32>
    %791 = arith.mulf %764, %789 : vector<32x256xf32>
    %792 = arith.addf %790, %791 : vector<32x256xf32>
    %cst_333 = arith.constant 5.000000e-01 : f32
    %793 = vector.broadcast %cst_333 : f32 to vector<32x256xf32>
    %794 = arith.mulf %793, %792 : vector<32x256xf32>
    %795 = math.tanh %794 : vector<32x256xf32>
    %cst_334 = arith.constant 5.000000e-01 : f32
    %796 = vector.broadcast %cst_334 : f32 to vector<32x256xf32>
    %797 = arith.mulf %796, %795 : vector<32x256xf32>
    %cst_335 = arith.constant 5.000000e-01 : f32
    %798 = vector.broadcast %cst_335 : f32 to vector<32x256xf32>
    %799 = arith.addf %797, %798 : vector<32x256xf32>
    %800 = math.tanh %789 : vector<32x256xf32>
    %801 = arith.mulf %799, %800 : vector<32x256xf32>
    %c0_336 = arith.constant 0 : index
    %c7_337 = arith.constant 7 : index
    %c0_338 = arith.constant 0 : index
    %c0_339 = arith.constant 0 : index
    %802 = vector.load %arg6[%c0_336, %c7_337, %c0_338, %c0_339] : memref<1x8x32x256xf32, #tpu.memory_space<vmem>>, vector<1x1x32x256xf32>
    %803 = vector.shape_cast %802 : vector<1x1x32x256xf32> to vector<32x256xf32>
    %804 = vector.shape_cast %801 : vector<32x256xf32> to vector<1x1x32x256xf32>
    tpu.vector_store %arg6[%c0_336, %c7_337, %c0_338, %c0_339], %804 {strides = array<i32>} : memref<1x8x32x256xf32, #tpu.memory_space<vmem>>, vector<1x1x32x256xf32>,
    %c0_340 = arith.constant 0 : index
    %c0_341 = arith.constant 0 : index
    %805 = vector.load %arg7[%c0_340, %c0_341] : memref<32x256xf32, #tpu.memory_space<vmem>>, vector<32x256xf32>
    tpu.vector_store %arg7[%c0_340, %c0_341], %801 {strides = array<i32>} : memref<32x256xf32, #tpu.memory_space<vmem>>, vector<32x256xf32>,
    %c0_342 = arith.constant 0 : index
    %c0_343 = arith.constant 0 : index
    %806 = vector.load %arg8[%c0_342, %c0_343] : memref<32x256xf32, #tpu.memory_space<vmem>>, vector<32x256xf32>
    tpu.vector_store %arg8[%c0_342, %c0_343], %789 {strides = array<i32>} : memref<32x256xf32, #tpu.memory_space<vmem>>, vector<32x256xf32>,
    return
  }
  func.func @transform_0(%arg0: i32, %arg1: i32) -> (i32, i32, i32, i32) {
    %c0_i32 = arith.constant 0 : i32
    %c0_i32_0 = arith.constant 0 : i32
    %c0_i32_1 = arith.constant 0 : i32
    return %arg0, %arg1, %c0_i32, %c0_i32_0 : i32, i32, i32, i32
  }
  func.func @transform_1(%arg0: i32, %arg1: i32) -> (i32, i32) {
    %c0_i32 = arith.constant 0 : i32
    %c0_i32_0 = arith.constant 0 : i32
    %c0_i32_1 = arith.constant 0 : i32
    return %c0_i32, %c0_i32_0 : i32, i32
  }
  func.func @transform_2(%arg0: i32, %arg1: i32) -> (i32, i32) {
    %c0_i32 = arith.constant 0 : i32
    %c0_i32_0 = arith.constant 0 : i32
    %c0_i32_1 = arith.constant 0 : i32
    return %c0_i32, %c0_i32_0 : i32, i32
  }
  func.func @transform_3(%arg0: i32, %arg1: i32) -> (i32, i32) {
    %c0_i32 = arith.constant 0 : i32
    %c0_i32_0 = arith.constant 0 : i32
    %c0_i32_1 = arith.constant 0 : i32
    return %c0_i32, %c0_i32_0 : i32, i32
  }
  func.func @transform_4(%arg0: i32, %arg1: i32) -> (i32, i32, i32, i32) {
    %c0_i32 = arith.constant 0 : i32
    %c0_i32_0 = arith.constant 0 : i32
    %c0_i32_1 = arith.constant 0 : i32
    return %arg0, %arg1, %c0_i32, %c0_i32_0 : i32, i32, i32, i32
  }
}

</mosaic_0001>

<llo_original>
// kernel: tpu_custom_call.1
$region0: #{tpu_custom_call.1}
  #allocation0 [shape = 'u32[]', space=smem, size = 0x4, offset = 0x4, fixed_abs, tag = 'smem constant byte address 0x4 - core index']
  #allocation1 [shape = 'u32[144,128]{1,0:T(1,128)}', space=vmem, size = 0x12000, scoped, tag = 'internal scratch']
  #allocation2 [shape = 'f32[32,256]{1,0:T(8,128)}', space=vmem, size = 0x8000, scoped, tag = 'scratch operand']
  #allocation3 [shape = 'f32[32,256]{1,0:T(8,128)}', space=vmem, size = 0x8000, scoped, tag = 'scratch operand']
  %s0 = inlined_call_operand.hbm [shape: f32[2,8,128,256], index: 0, kind: input, shape index: {}]
  %s1 = inlined_call_operand.vmem [shape: bf16[128,288], index: 1, kind: input, shape index: {}]
  %s2 = inlined_call_operand.hbm [shape: f32[288,256], index: 2, kind: input, shape index: {}]
  %s3 = inlined_call_operand.hbm [shape: f32[96,256], index: 3, kind: input, shape index: {}]
  %s4 = inlined_call_operand.hbm [shape: f32[2,8,32,256], index: 4, kind: output, shape index: {}]
  %s5 = sld [smem:[#allocation0]]
  $region65: #{tpu_custom_call.1} parent=0
    _
  %s7 = ssub.s32 1, %s5
  %s8 = scalar_select 0, %s7, %s5
  $region1: #{tpu_custom_call.1} parent=0
    #allocation4 [shape = 'u8[2097152]{0}', space=vmem, size = 0x200000, scoped, tag = 'input window, operand 0']
    #allocation5 [shape = 's32[2]{0}', space=sflag, size = 0x8, scoped, tag = 'scoped memory for tpu_custom_call.1']
    #allocation6 [shape = 's32[2]{0}', space=sflag, size = 0x8, scoped, tag = 'scoped memory for tpu_custom_call.1']
    #allocation7 [shape = 'u8[294912]{0}', space=vmem, size = 0x48000, scoped, tag = 'input window, operand 2, single buffered']
    #allocation8 [shape = 's32[1]{0}', space=sflag, size = 0x4, scoped, tag = 'scoped memory for tpu_custom_call.1']
    #allocation9 [shape = 'u8[98304]{0}', space=vmem, size = 0x18000, scoped, tag = 'input window, operand 3, single buffered']
    #allocation10 [shape = 'u8[524288]{0}', space=vmem, size = 0x80000, scoped, tag = 'output window, operand 0']
    %9 = vsyncpa [#allocation5], 0
    %s10 = scalar_lea.sflag [#allocation5], 1
    %11 = vsyncpa %s10, 0
    %12 = vsyncpa [#allocation8], 0
    %13 = vsyncpa [#allocation6], 0
    %s14 = scalar_lea.sflag [#allocation6], 1
    %15 = vsyncpa %s14, 0
    loop: start=0, step=1, limit=4
    $region2: #{tpu_custom_call.1} parent=1 // loop_pre_header
      _
    $region3: #{tpu_custom_call.1} parent=1 // loop_header
      %s17 = sphi 0, %s21
      %p18 = scmp.ge.s32.totalorder %s17, 4
      %s24 = sphi 0, %s36
      %s25 = sphi 0, %s32
      %s26 = sphi 0, %s24
      %s27 = sphi 0, %s25
      %s28 = sphi 0, %s26
      %s29 = sphi 0, %s27
      %s41 = sphi 0, %s43
      %s44 = sphi 0, %s41
      %s45 = sphi 0, %s44
      %s61 = sphi 0, %s45
      %s65 = sphi 0, %s65
      %s67 = sphi 0, %s65
      %s68 = sphi 0, %s67
      %s82 = sphi 0, %s68
      %s86 = sphi 0, %s86
      %s88 = sphi 0, %s86
      %s89 = sphi 0, %s88
      %s103 = sphi 0, %s89
      %s107 = sphi 0, %s107
      %s109 = sphi 0, %s107
      %s110 = sphi 0, %s109
      %s124 = sphi 0, %s110
      %s132 = sphi 0, %s134
      %s135 = sphi 0, %s132
      %s136 = sphi 0, %s135
      %s152 = sphi 0, %s136
    $region4: #{tpu_custom_call.1} parent=1 // loop_header_branch
      %20 = sbr.rel (%p18) target = $region8
    $region5: #{tpu_custom_call.1} parent=1 // loop_body
      %s22 = ssub.s32 %s17, 1
      %s23 = ssub.s32 %s17, 2
      %s30 = sadd.s32 1, %s25
      %p31 = scmp.ge.s32.totalorder %s30, 1
      %s32 = scalar_select %p31, 0, %s30
      %s33 = sadd.s32 1, %s24
      %s34 = scalar_select %p31, %s33, %s24
      %p35 = scmp.ge.s32.totalorder %s34, 2
      %s36 = scalar_select %p35, 0, %s34
      %s37 = ssub.s32 %s24, %s36
      %s38 = ssub.s32 %s25, %s32
      %s39 = sor.u32 %s37, %s38
      %p40 = scmp.eq.s32.totalorder %s39, 0
      %s42 = sadd.s32 %s41, 1
      %s43 = scalar_select %p40, %s41, %s42
      %p46 = pneg %p40
      %p47 = scmp.eq.s32.totalorder %s17, 1
      %p48 = por %p46, %p47
      %p49 = scmp.ne.s32.totalorder %s41, %s44
      %p50 = scmp.eq.s32.totalorder %s17, 0
      %p51 = por %p49, %p50
      %p52 = scmp.ne.s32.totalorder %s41, %s44
      %p53 = scmp.eq.s32.totalorder %s22, 1
      %p54 = por %p52, %p53
      %p55 = scmp.ne.s32.totalorder %s44, %s45
      %p56 = scmp.eq.s32.totalorder %s22, 0
      %p57 = por %p55, %p56
      %p58 = scmp.ne.s32.totalorder %s44, %s45
      %p59 = scmp.eq.s32.totalorder %s23, 1
      %p60 = por %p58, %p59
      %p62 = scmp.ne.s32.totalorder %s45, %s61
      %p63 = scmp.eq.s32.totalorder %s23, 0
      %p64 = por %p62, %p63
      %s66 = sadd.s32 %s65, 1
      %p69 = scmp.eq.s32.totalorder %s17, 1
      %p70 = scmp.ne.s32.totalorder %s65, %s67
      %p71 = scmp.eq.s32.totalorder %s17, 0
      %p72 = por %p70, %p71
      %p73 = scmp.ne.s32.totalorder %s65, %s67
      %p74 = scmp.eq.s32.totalorder %s22, 1
      %p75 = por %p73, %p74
      %p76 = scmp.ne.s32.totalorder %s67, %s68
      %p77 = scmp.eq.s32.totalorder %s22, 0
      %p78 = por %p76, %p77
      %p79 = scmp.ne.s32.totalorder %s67, %s68
      %p80 = scmp.eq.s32.totalorder %s23, 1
      %p81 = por %p79, %p80
      %p83 = scmp.ne.s32.totalorder %s68, %s82
      %p84 = scmp.eq.s32.totalorder %s23, 0
      %p85 = por %p83, %p84
      %s87 = sadd.s32 %s86, 1
      %p90 = scmp.eq.s32.totalorder %s17, 1
      %p91 = scmp.ne.s32.totalorder %s86, %s88
      %p92 = scmp.eq.s32.totalorder %s17, 0
      %p93 = por %p91, %p92
      %p94 = scmp.ne.s32.totalorder %s86, %s88
      %p95 = scmp.eq.s32.totalorder %s22, 1
      %p96 = por %p94, %p95
      %p97 = scmp.ne.s32.totalorder %s88, %s89
      %p98 = scmp.eq.s32.totalorder %s22, 0
      %p99 = por %p97, %p98
      %p100 = scmp.ne.s32.totalorder %s88, %s89
      %p101 = scmp.eq.s32.totalorder %s23, 1
      %p102 = por %p100, %p101
      %p104 = scmp.ne.s32.totalorder %s89, %s103
      %p105 = scmp.eq.s32.totalorder %s23, 0
      %p106 = por %p104, %p105
      %s108 = sadd.s32 %s107, 1
      %p111 = scmp.eq.s32.totalorder %s17, 1
      %p112 = scmp.ne.s32.totalorder %s107, %s109
      %p113 = scmp.eq.s32.totalorder %s17, 0
      %p114 = por %p112, %p113
      %p115 = scmp.ne.s32.totalorder %s107, %s109
      %p116 = scmp.eq.s32.totalorder %s22, 1
      %p117 = por %p115, %p116
      %p118 = scmp.ne.s32.totalorder %s109, %s110
      %p119 = scmp.eq.s32.totalorder %s22, 0
      %p120 = por %p118, %p119
      %p121 = scmp.ne.s32.totalorder %s109, %s110
      %p122 = scmp.eq.s32.totalorder %s23, 1
      %p123 = por %p121, %p122
      %p125 = scmp.ne.s32.totalorder %s110, %s124
      %p126 = scmp.eq.s32.totalorder %s23, 0
      %p127 = por %p125, %p126
      %s128 = ssub.s32 %s24, %s36
      %s129 = ssub.s32 %s25, %s32
      %s130 = sor.u32 %s128, %s129
      %p131 = scmp.eq.s32.totalorder %s130, 0
      %s133 = sadd.s32 %s132, 1
      %s134 = scalar_select %p131, %s132, %s133
      %p137 = pneg %p131
      %p138 = scmp.eq.s32.totalorder %s17, 1
      %p139 = por %p137, %p138
      %p140 = scmp.ne.s32.totalorder %s132, %s135
      %p141 = scmp.eq.s32.totalorder %s17, 0
      %p142 = por %p140, %p141
      %p143 = scmp.ne.s32.totalorder %s132, %s135
      %p144 = scmp.eq.s32.totalorder %s22, 1
      %p145 = por %p143, %p144
      %p146 = scmp.ne.s32.totalorder %s135, %s136
      %p147 = scmp.eq.s32.totalorder %s22, 0
      %p148 = por %p146, %p147
      %p149 = scmp.ne.s32.totalorder %s135, %s136
      %p150 = scmp.eq.s32.totalorder %s23, 1
      %p151 = por %p149, %p150
      %p153 = scmp.ne.s32.totalorder %s136, %s152
      %p154 = scmp.eq.s32.totalorder %s23, 0
      %p155 = por %p153, %p154
      %p156 = scmp.le.s32.totalorder 1, %s17
      %p157 = scmp.lt.s32.totalorder %s17, 3
      %p158 = pnand %p156, %p157
      %p159 = pneg %p158
      // Predicated region
      $region9: #{tpu_custom_call.1} parent=5 // pred_check
        _
      $region10: #{tpu_custom_call.1} parent=5 // pred_check_branch
        %161 = sbr.rel (%p158) target = $region12
      $region11: #{tpu_custom_call.1} parent=5 // pred_region
        %s162 = ssub.s32 %s17, 1
        // Predicated region
        $region13: #{tpu_custom_call.1} parent=11 // pred_check
          %p163 = pneg %p78
        $region14: #{tpu_custom_call.1} parent=11 // pred_check_branch
          %165 = sbr.rel (%p163) target = $region16
        $region15: #{tpu_custom_call.1} parent=11 // pred_region
          _
        $region16: #{tpu_custom_call.1} parent=11 // pred_fallthru
          _
        // Predicated region
        $region17: #{tpu_custom_call.1} parent=11 // pred_check
          %p166 = pneg %p99
        $region18: #{tpu_custom_call.1} parent=11 // pred_check_branch
          %168 = sbr.rel (%p166) target = $region20
        $region19: #{tpu_custom_call.1} parent=11 // pred_region
          %s170 = ssub.s32 9216, 9216
          %171 = vsyncadd [#allocation8], %s170
          %s172 = sshll.u32 [#allocation7], 4
          %s173 = int_to_ptr.vmem [resolvable:$true] %s172
          %178 = dma.hbm_to_vmem [thread:$0]  %s2, 9216, %s173, [#allocation8], 256, 256, 16
        $region20: #{tpu_custom_call.1} parent=11 // pred_fallthru
          _
        // Predicated region
        $region21: #{tpu_custom_call.1} parent=11 // pred_check
          %p179 = pneg %p120
        $region22: #{tpu_custom_call.1} parent=11 // pred_check_branch
          %181 = sbr.rel (%p179) target = $region24
        $region23: #{tpu_custom_call.1} parent=11 // pred_region
          %s183 = ssub.s32 3072, 3072
          %184 = vsyncadd [#allocation8], %s183
          %s185 = sshll.u32 [#allocation9], 4
          %s186 = int_to_ptr.vmem [resolvable:$true] %s185
          %191 = dma.hbm_to_vmem [thread:$0]  %s3, 3072, %s186, [#allocation8], 256, 256, 16
        $region24: #{tpu_custom_call.1} parent=11 // pred_fallthru
          _
      $region12: #{tpu_custom_call.1} parent=5 // pred_fallthru
        _
      %p192 = scmp.lt.s32.totalorder %s17, 2
      // Predicated region
      $region25: #{tpu_custom_call.1} parent=5 // pred_check
        %p193 = pneg %p192
      $region26: #{tpu_custom_call.1} parent=5 // pred_check_branch
        %195 = sbr.rel (%p193) target = $region28
      $region27: #{tpu_custom_call.1} parent=5 // pred_region
        // Predicated region
        $region29: #{tpu_custom_call.1} parent=27 // pred_check
          %p196 = pneg %p51
        $region30: #{tpu_custom_call.1} parent=27 // pred_check_branch
          %198 = sbr.rel (%p196) target = $region32
        $region31: #{tpu_custom_call.1} parent=27 // pred_region
          %s199 = sand.u32 %s41, 1
          %s200 = scalar_lea.sflag [#allocation5], %s199
          %s201 = sand.u32 %s41, 1
          %s202 = smul.addr %s201, 2048
          %s203 = scalar_lea.vmem [#allocation4], %s202
          %s204 = smul.u32 8, %s25
          %s206 = ssub.s32 32768, 32768
          %207 = vsyncadd %s200, %s206
          %s208 = smul.addr %s204, 32
          %s209 = smul.addr %s24, 256
          %s210 = sadd.s32 %s208, %s209
          %s211 = smul.addr %s210, 128
          %s212 = scalar_lea.hbm %s0, %s211
          %s213 = sshll.u32 %s203, 4
          %s214 = int_to_ptr.vmem [resolvable:$true] %s213
          %219 = dma.hbm_to_vmem [thread:$0]  %s212, 32768, %s214, %s200, 256, 256, 16
        $region32: #{tpu_custom_call.1} parent=27 // pred_fallthru
          _
      $region28: #{tpu_custom_call.1} parent=5 // pred_fallthru
        _
      %p220 = scmp.le.s32.totalorder 1, %s17
      %p221 = scmp.lt.s32.totalorder %s17, 3
      %p222 = pnand %p220, %p221
      %p223 = pneg %p222
      // Predicated region
      $region33: #{tpu_custom_call.1} parent=5 // pred_check
        _
      $region34: #{tpu_custom_call.1} parent=5 // pred_check_branch
        %225 = sbr.rel (%p222) target = $region36
      $region35: #{tpu_custom_call.1} parent=5 // pred_region
        %s226 = ssub.s32 %s17, 1
        %s227 = sand.u32 %s44, 1
        %s228 = scalar_lea.sflag [#allocation5], %s227
        %s229 = sand.u32 %s44, 1
        %s230 = smul.addr %s229, 2048
        %s231 = scalar_lea.vmem [#allocation4], %s230
        // Predicated region
        $region37: #{tpu_custom_call.1} parent=35 // pred_check
          %p232 = pneg %p57
        $region38: #{tpu_custom_call.1} parent=35 // pred_check_branch
          %234 = sbr.rel (%p232) target = $region40
        $region39: #{tpu_custom_call.1} parent=35 // pred_region
          %235 = dma.done %s228, 32768
        $region40: #{tpu_custom_call.1} parent=35 // pred_fallthru
          _
        // Predicated region
        $region41: #{tpu_custom_call.1} parent=35 // pred_check
          %p236 = pneg %p99
        $region42: #{tpu_custom_call.1} parent=35 // pred_check_branch
          %238 = sbr.rel (%p236) target = $region44
        $region43: #{tpu_custom_call.1} parent=35 // pred_region
          %239 = dma.done [#allocation8], 9216
        $region44: #{tpu_custom_call.1} parent=35 // pred_fallthru
          _
        // Predicated region
        $region45: #{tpu_custom_call.1} parent=35 // pred_check
          %p240 = pneg %p120
        $region46: #{tpu_custom_call.1} parent=35 // pred_check_branch
          %242 = sbr.rel (%p240) target = $region48
        $region47: #{tpu_custom_call.1} parent=35 // pred_region
          %243 = dma.done [#allocation8], 3072
        $region48: #{tpu_custom_call.1} parent=35 // pred_fallthru
          _
        %s244 = sand.u32 %s44, 1
        %s245 = scalar_lea.sflag [#allocation5], %s244
        %s246 = sand.u32 %s44, 1
        %s247 = smul.addr %s246, 2048
        %s248 = scalar_lea.vmem [#allocation4], %s247
        %p249 = pneg %p57
        %p250 = pneg %p54
        %p251 = pneg %p78
        %p252 = pneg %p75
        %p253 = pneg %p99
        %p254 = pneg %p96
        %p255 = pneg %p120
        %p256 = pneg %p117
        %p257 = pneg %p148
        %p258 = pneg %p145
        %s259 = sand.u32 %s135, 1
        %s260 = scalar_lea.sflag [#allocation6], %s259
        %s261 = sand.u32 %s135, 1
        %s262 = smul.addr %s261, 512
        %s263 = scalar_lea.vmem [#allocation10], %s262
        %s264 = smul.u32 8, %s27
        %s265 = smul.u32 8, %s27
        %p267 = scmp.eq.s32.totalorder %s27, 0
        // Predicated region
        $region49: #{tpu_custom_call.1} parent=35 // pred_check
          %p268 = pneg %p267
        $region50: #{tpu_custom_call.1} parent=35 // pred_check_branch
          %270 = sbr.rel (%p268) target = $region52
        $region51: #{tpu_custom_call.1} parent=35 // pred_region
          %271 = vst [vmem:[#allocation2] sm:$0xff] 0.0
          %272 = vst [vmem:[#allocation2 + $0x8] sm:$0xff] 0.0
          %273 = vst [vmem:[#allocation2 + $0x10] sm:$0xff] 0.0
          %274 = vst [vmem:[#allocation2 + $0x18] sm:$0xff] 0.0
          %275 = vst [vmem:[#allocation2 + $0x20] sm:$0xff] 0.0
          %276 = vst [vmem:[#allocation2 + $0x28] sm:$0xff] 0.0
          %277 = vst [vmem:[#allocation2 + $0x30] sm:$0xff] 0.0
          %278 = vst [vmem:[#allocation2 + $0x38] sm:$0xff] 0.0
          %279 = vst [vmem:[#allocation3] sm:$0xff] 0.0
          %280 = vst [vmem:[#allocation3 + $0x8] sm:$0xff] 0.0
          %281 = vst [vmem:[#allocation3 + $0x10] sm:$0xff] 0.0
          %282 = vst [vmem:[#allocation3 + $0x18] sm:$0xff] 0.0
          %283 = vst [vmem:[#allocation3 + $0x20] sm:$0xff] 0.0
          %284 = vst [vmem:[#allocation3 + $0x28] sm:$0xff] 0.0
          %285 = vst [vmem:[#allocation3 + $0x30] sm:$0xff] 0.0
          %286 = vst [vmem:[#allocation3 + $0x38] sm:$0xff] 0.0
        $region52: #{tpu_custom_call.1} parent=35 // pred_fallthru
          _
        %v287 = vld [vmem:[#allocation2] sm:$0xff]
        %v288 = vld [vmem:[#allocation2 + $0x8] sm:$0xff]
        %v289 = vld [vmem:[#allocation2 + $0x10] sm:$0xff]
        %v290 = vld [vmem:[#allocation2 + $0x18] sm:$0xff]
        %v291 = vld [vmem:[#allocation2 + $0x20] sm:$0xff]
        %v292 = vld [vmem:[#allocation2 + $0x28] sm:$0xff]
        %v293 = vld [vmem:[#allocation2 + $0x30] sm:$0xff]
        %v294 = vld [vmem:[#allocation2 + $0x38] sm:$0xff]
        %v295 = vld [vmem:[#allocation3] sm:$0xff]
        %v296 = vld [vmem:[#allocation3 + $0x8] sm:$0xff]
        %v297 = vld [vmem:[#allocation3 + $0x10] sm:$0xff]
        %v298 = vld [vmem:[#allocation3 + $0x18] sm:$0xff]
        %v299 = vld [vmem:[#allocation3 + $0x20] sm:$0xff]
        %v300 = vld [vmem:[#allocation3 + $0x28] sm:$0xff]
        %v301 = vld [vmem:[#allocation3 + $0x30] sm:$0xff]
        %v302 = vld [vmem:[#allocation3 + $0x38] sm:$0xff]
        %307 = vrot.lane.b32.xlu0 %v288, 17
        %v308 = vpop.permute.xlu0 %307
        %309 = vrot.lane.b32.xlu0 %v290, 17
        %v310 = vpop.permute.xlu0 %309
        %311 = vrot.lane.b32.xlu0 %v292, 17
        %v312 = vpop.permute.xlu0 %311
        %313 = vrot.lane.b32.xlu0 %v294, 17
        %v314 = vpop.permute.xlu0 %313
        %323 = vrot.lane.b32.xlu0 %v287, 17
        %v324 = vpop.permute.xlu0 %323
        %325 = vrot.lane.b32.xlu0 %v289, 17
        %v326 = vpop.permute.xlu0 %325
        %327 = vrot.lane.b32.xlu0 %v291, 17
        %v328 = vpop.permute.xlu0 %327
        %329 = vrot.lane.b32.xlu0 %v293, 17
        %v330 = vpop.permute.xlu0 %329
        %vm331 = vcmask 138240
        %v332 = vsel %vm331, %v324, %v308
        %v333 = vsel %vm331, %v326, %v310
        %v334 = vsel %vm331, %v328, %v312
        %v335 = vsel %vm331, %v330, %v314
        %v344 = vsel %vm331, %v308, %v324
        %v345 = vsel %vm331, %v310, %v326
        %v346 = vsel %vm331, %v312, %v328
        %v347 = vsel %vm331, %v314, %v330
        %v348 = vld [vmem:[#allocation7] sm:$0xff]
        %v349 = vld [vmem:[#allocation7 + $0x8] sm:$0xff]
        %v350 = vld [vmem:[#allocation7 + $0x10] sm:$0xff]
        %v351 = vld [vmem:[#allocation7 + $0x18] sm:$0xff]
        %v352 = vld [vmem:[#allocation7 + $0x20] sm:$0xff]
        %v353 = vld [vmem:[#allocation7 + $0x28] sm:$0xff]
        %v354 = vld [vmem:[#allocation7 + $0x30] sm:$0xff]
        %v355 = vld [vmem:[#allocation7 + $0x38] sm:$0xff]
        %v356 = vmul.f32 %v344, %v348
        %v357 = vmul.f32 %v332, %v349
        %v358 = vmul.f32 %v345, %v350
        %v359 = vmul.f32 %v333, %v351
        %v360 = vmul.f32 %v346, %v352
        %v361 = vmul.f32 %v334, %v353
        %v362 = vmul.f32 %v347, %v354
        %v363 = vmul.f32 %v335, %v355
        %v364 = vpack.c.bf16 %v358, %v356
        %v365 = vpack.c.bf16 %v359, %v357
        %v366 = vpack.c.bf16 %v362, %v360
        %v367 = vpack.c.bf16 %v363, %v361
        %368 = vrot.lane.b32.xlu0 %v288, 16
        %v369 = vpop.permute.xlu0 %368
        %370 = vrot.lane.b32.xlu0 %v290, 16
        %v371 = vpop.permute.xlu0 %370
        %372 = vrot.lane.b32.xlu0 %v292, 16
        %v373 = vpop.permute.xlu0 %372
        %374 = vrot.lane.b32.xlu0 %v294, 16
        %v375 = vpop.permute.xlu0 %374
        %380 = vrot.lane.b32.xlu0 %v287, 16
        %v381 = vpop.permute.xlu0 %380
        %382 = vrot.lane.b32.xlu0 %v289, 16
        %v383 = vpop.permute.xlu0 %382
        %384 = vrot.lane.b32.xlu0 %v291, 16
        %v385 = vpop.permute.xlu0 %384
        %386 = vrot.lane.b32.xlu0 %v293, 16
        %v387 = vpop.permute.xlu0 %386
        %vm388 = vcmask 130048
        %v389 = vsel %vm388, %v381, %v369
        %v390 = vsel %vm388, %v383, %v371
        %v391 = vsel %vm388, %v385, %v373
        %v392 = vsel %vm388, %v387, %v375
        %v401 = vsel %vm388, %v369, %v381
        %v402 = vsel %vm388, %v371, %v383
        %v403 = vsel %vm388, %v373, %v385
        %v404 = vsel %vm388, %v375, %v387
        %v405 = vld [vmem:[#allocation7 + $0x40] sm:$0xff]
        %v406 = vld [vmem:[#allocation7 + $0x48] sm:$0xff]
        %v407 = vld [vmem:[#allocation7 + $0x50] sm:$0xff]
        %v408 = vld [vmem:[#allocation7 + $0x58] sm:$0xff]
        %v409 = vld [vmem:[#allocation7 + $0x60] sm:$0xff]
        %v410 = vld [vmem:[#allocation7 + $0x68] sm:$0xff]
        %v411 = vld [vmem:[#allocation7 + $0x70] sm:$0xff]
        %v412 = vld [vmem:[#allocation7 + $0x78] sm:$0xff]
        %v413 = vmul.f32 %v401, %v405
        %v414 = vmul.f32 %v389, %v406
        %v415 = vmul.f32 %v402, %v407
        %v416 = vmul.f32 %v390, %v408
        %v417 = vmul.f32 %v403, %v409
        %v418 = vmul.f32 %v391, %v410
        %v419 = vmul.f32 %v404, %v411
        %v420 = vmul.f32 %v392, %v412
        %v421 = vpack.c.bf16 %v415, %v413
        %v422 = vpack.c.bf16 %v416, %v414
        %v423 = vpack.c.bf16 %v419, %v417
        %v424 = vpack.c.bf16 %v420, %v418
        %425 = vrot.lane.b32.xlu0 %v288, 15
        %v426 = vpop.permute.xlu0 %425
        %427 = vrot.lane.b32.xlu0 %v290, 15
        %v428 = vpop.permute.xlu0 %427
        %429 = vrot.lane.b32.xlu0 %v292, 15
        %v430 = vpop.permute.xlu0 %429
        %431 = vrot.lane.b32.xlu0 %v294, 15
        %v432 = vpop.permute.xlu0 %431
        %437 = vrot.lane.b32.xlu0 %v287, 15
        %v438 = vpop.permute.xlu0 %437
        %439 = vrot.lane.b32.xlu0 %v289, 15
        %v440 = vpop.permute.xlu0 %439
        %441 = vrot.lane.b32.xlu0 %v291, 15
        %v442 = vpop.permute.xlu0 %441
        %443 = vrot.lane.b32.xlu0 %v293, 15
        %v444 = vpop.permute.xlu0 %443
        %vm445 = vcmask 121856
        %v446 = vsel %vm445, %v438, %v426
        %v447 = vsel %vm445, %v440, %v428
        %v448 = vsel %vm445, %v442, %v430
        %v449 = vsel %vm445, %v444, %v432
        %v458 = vsel %vm445, %v426, %v438
        %v459 = vsel %vm445, %v428, %v440
        %v460 = vsel %vm445, %v430, %v442
        %v461 = vsel %vm445, %v432, %v444
        %v462 = vld [vmem:[#allocation7 + $0x80] sm:$0xff]
        %v463 = vld [vmem:[#allocation7 + $0x88] sm:$0xff]
        %v464 = vld [vmem:[#allocation7 + $0x90] sm:$0xff]
        %v465 = vld [vmem:[#allocation7 + $0x98] sm:$0xff]
        %v466 = vld [vmem:[#allocation7 + $0xa0] sm:$0xff]
        %v467 = vld [vmem:[#allocation7 + $0xa8] sm:$0xff]
        %v468 = vld [vmem:[#allocation7 + $0xb0] sm:$0xff]
        %v469 = vld [vmem:[#allocation7 + $0xb8] sm:$0xff]
        %v470 = vmul.f32 %v458, %v462
        %v471 = vmul.f32 %v446, %v463
        %v472 = vmul.f32 %v459, %v464
        %v473 = vmul.f32 %v447, %v465
        %v474 = vmul.f32 %v460, %v466
        %v475 = vmul.f32 %v448, %v467
        %v476 = vmul.f32 %v461, %v468
        %v477 = vmul.f32 %v449, %v469
        %v478 = vpack.c.bf16 %v472, %v470
        %v479 = vpack.c.bf16 %v473, %v471
        %v480 = vpack.c.bf16 %v476, %v474
        %v481 = vpack.c.bf16 %v477, %v475
        %482 = vrot.lane.b32.xlu0 %v288, 1
        %v483 = vpop.permute.xlu0 %482
        %484 = vrot.lane.b32.xlu0 %v290, 1
        %v485 = vpop.permute.xlu0 %484
        %486 = vrot.lane.b32.xlu0 %v292, 1
        %v487 = vpop.permute.xlu0 %486
        %488 = vrot.lane.b32.xlu0 %v294, 1
        %v489 = vpop.permute.xlu0 %488
        %494 = vrot.lane.b32.xlu0 %v287, 1
        %v495 = vpop.permute.xlu0 %494
        %496 = vrot.lane.b32.xlu0 %v289, 1
        %v497 = vpop.permute.xlu0 %496
        %498 = vrot.lane.b32.xlu0 %v291, 1
        %v499 = vpop.permute.xlu0 %498
        %500 = vrot.lane.b32.xlu0 %v293, 1
        %v501 = vpop.permute.xlu0 %500
        %vm502 = vcmask 7168
        %v503 = vsel %vm502, %v495, %v483
        %v504 = vsel %vm502, %v497, %v485
        %v505 = vsel %vm502, %v499, %v487
        %v506 = vsel %vm502, %v501, %v489
        %v515 = vsel %vm502, %v483, %v495
        %v516 = vsel %vm502, %v485, %v497
        %v517 = vsel %vm502, %v487, %v499
        %v518 = vsel %vm502, %v489, %v501
        %v519 = vld [vmem:[#allocation7 + $0xc0] sm:$0xff]
        %v520 = vld [vmem:[#allocation7 + $0xc8] sm:$0xff]
        %v521 = vld [vmem:[#allocation7 + $0xd0] sm:$0xff]
        %v522 = vld [vmem:[#allocation7 + $0xd8] sm:$0xff]
        %v523 = vld [vmem:[#allocation7 + $0xe0] sm:$0xff]
        %v524 = vld [vmem:[#allocation7 + $0xe8] sm:$0xff]
        %v525 = vld [vmem:[#allocation7 + $0xf0] sm:$0xff]
        %v526 = vld [vmem:[#allocation7 + $0xf8] sm:$0xff]
        %v527 = vmul.f32 %v515, %v519
        %v528 = vmul.f32 %v503, %v520
        %v529 = vmul.f32 %v516, %v521
        %v530 = vmul.f32 %v504, %v522
        %v531 = vmul.f32 %v517, %v523
        %v532 = vmul.f32 %v505, %v524
        %v533 = vmul.f32 %v518, %v525
        %v534 = vmul.f32 %v506, %v526
        %v535 = vpack.c.bf16 %v529, %v527
        %v536 = vpack.c.bf16 %v530, %v528
        %v537 = vpack.c.bf16 %v533, %v531
        %v538 = vpack.c.bf16 %v534, %v532
        %v539 = vld [vmem:[#allocation7 + $0x100] sm:$0xff]
        %v540 = vld [vmem:[#allocation7 + $0x108] sm:$0xff]
        %v541 = vld [vmem:[#allocation7 + $0x110] sm:$0xff]
        %v542 = vld [vmem:[#allocation7 + $0x118] sm:$0xff]
        %v543 = vld [vmem:[#allocation7 + $0x120] sm:$0xff]
        %v544 = vld [vmem:[#allocation7 + $0x128] sm:$0xff]
        %v545 = vld [vmem:[#allocation7 + $0x130] sm:$0xff]
        %v546 = vld [vmem:[#allocation7 + $0x138] sm:$0xff]
        %v547 = vmul.f32 %v287, %v539
        %v548 = vmul.f32 %v288, %v540
        %v549 = vmul.f32 %v289, %v541
        %v550 = vmul.f32 %v290, %v542
        %v551 = vmul.f32 %v291, %v543
        %v552 = vmul.f32 %v292, %v544
        %v553 = vmul.f32 %v293, %v545
        %v554 = vmul.f32 %v294, %v546
        %v555 = vpack.c.bf16 %v549, %v547
        %v556 = vpack.c.bf16 %v550, %v548
        %v557 = vpack.c.bf16 %v553, %v551
        %v558 = vpack.c.bf16 %v554, %v552
        %559 = vrot.lane.b32.xlu0 %v287, 127
        %v560 = vpop.permute.xlu0 %559
        %561 = vrot.lane.b32.xlu0 %v288, 127
        %v562 = vpop.permute.xlu0 %561
        %563 = vrot.lane.b32.xlu0 %v289, 127
        %v564 = vpop.permute.xlu0 %563
        %565 = vrot.lane.b32.xlu0 %v290, 127
        %v566 = vpop.permute.xlu0 %565
        %567 = vrot.lane.b32.xlu0 %v291, 127
        %v568 = vpop.permute.xlu0 %567
        %569 = vrot.lane.b32.xlu0 %v292, 127
        %v570 = vpop.permute.xlu0 %569
        %571 = vrot.lane.b32.xlu0 %v293, 127
        %v572 = vpop.permute.xlu0 %571
        %573 = vrot.lane.b32.xlu0 %v294, 127
        %v574 = vpop.permute.xlu0 %573
        %vm575 = vcmask 1039360
        %v576 = vsel %vm575, %v560, %v562
        %v577 = vsel %vm575, %v564, %v566
        %v578 = vsel %vm575, %v568, %v570
        %v579 = vsel %vm575, %v572, %v574
        %v592 = vsel %vm575, %v562, %v560
        %v593 = vsel %vm575, %v566, %v564
        %v594 = vsel %vm575, %v570, %v568
        %v595 = vsel %vm575, %v574, %v572
        %v596 = vld [vmem:[#allocation7 + $0x140] sm:$0xff]
        %v597 = vld [vmem:[#allocation7 + $0x148] sm:$0xff]
        %v598 = vld [vmem:[#allocation7 + $0x150] sm:$0xff]
        %v599 = vld [vmem:[#allocation7 + $0x158] sm:$0xff]
        %v600 = vld [vmem:[#allocation7 + $0x160] sm:$0xff]
        %v601 = vld [vmem:[#allocation7 + $0x168] sm:$0xff]
        %v602 = vld [vmem:[#allocation7 + $0x170] sm:$0xff]
        %v603 = vld [vmem:[#allocation7 + $0x178] sm:$0xff]
        %v604 = vmul.f32 %v576, %v596
        %v605 = vmul.f32 %v592, %v597
        %v606 = vmul.f32 %v577, %v598
        %v607 = vmul.f32 %v593, %v599
        %v608 = vmul.f32 %v578, %v600
        %v609 = vmul.f32 %v594, %v601
        %v610 = vmul.f32 %v579, %v602
        %v611 = vmul.f32 %v595, %v603
        %v612 = vpack.c.bf16 %v606, %v604
        %v613 = vpack.c.bf16 %v607, %v605
        %v614 = vpack.c.bf16 %v610, %v608
        %v615 = vpack.c.bf16 %v611, %v609
        %616 = vrot.lane.b32.xlu0 %v287, 113
        %v617 = vpop.permute.xlu0 %616
        %618 = vrot.lane.b32.xlu0 %v288, 113
        %v619 = vpop.permute.xlu0 %618
        %620 = vrot.lane.b32.xlu0 %v289, 113
        %v621 = vpop.permute.xlu0 %620
        %622 = vrot.lane.b32.xlu0 %v290, 113
        %v623 = vpop.permute.xlu0 %622
        %624 = vrot.lane.b32.xlu0 %v291, 113
        %v625 = vpop.permute.xlu0 %624
        %626 = vrot.lane.b32.xlu0 %v292, 113
        %v627 = vpop.permute.xlu0 %626
        %628 = vrot.lane.b32.xlu0 %v293, 113
        %v629 = vpop.permute.xlu0 %628
        %630 = vrot.lane.b32.xlu0 %v294, 113
        %v631 = vpop.permute.xlu0 %630
        %vm632 = vcmask 924672
        %v633 = vsel %vm632, %v617, %v619
        %v634 = vsel %vm632, %v621, %v623
        %v635 = vsel %vm632, %v625, %v627
        %v636 = vsel %vm632, %v629, %v631
        %v649 = vsel %vm632, %v619, %v617
        %v650 = vsel %vm632, %v623, %v621
        %v651 = vsel %vm632, %v627, %v625
        %v652 = vsel %vm632, %v631, %v629
        %v653 = vld [vmem:[#allocation7 + $0x180] sm:$0xff]
        %v654 = vld [vmem:[#allocation7 + $0x188] sm:$0xff]
        %v655 = vld [vmem:[#allocation7 + $0x190] sm:$0xff]
        %v656 = vld [vmem:[#allocation7 + $0x198] sm:$0xff]
        %v657 = vld [vmem:[#allocation7 + $0x1a0] sm:$0xff]
        %v658 = vld [vmem:[#allocation7 + $0x1a8] sm:$0xff]
        %v659 = vld [vmem:[#allocation7 + $0x1b0] sm:$0xff]
        %v660 = vld [vmem:[#allocation7 + $0x1b8] sm:$0xff]
        %v661 = vmul.f32 %v633, %v653
        %v662 = vmul.f32 %v649, %v654
        %v663 = vmul.f32 %v634, %v655
        %v664 = vmul.f32 %v650, %v656
        %v665 = vmul.f32 %v635, %v657
        %v666 = vmul.f32 %v651, %v658
        %v667 = vmul.f32 %v636, %v659
        %v668 = vmul.f32 %v652, %v660
        %v669 = vpack.c.bf16 %v663, %v661
        %v670 = vpack.c.bf16 %v664, %v662
        %v671 = vpack.c.bf16 %v667, %v665
        %v672 = vpack.c.bf16 %v668, %v666
        %673 = vrot.lane.b32.xlu0 %v287, 112
        %v674 = vpop.permute.xlu0 %673
        %675 = vrot.lane.b32.xlu0 %v288, 112
        %v676 = vpop.permute.xlu0 %675
        %677 = vrot.lane.b32.xlu0 %v289, 112
        %v678 = vpop.permute.xlu0 %677
        %679 = vrot.lane.b32.xlu0 %v290, 112
        %v680 = vpop.permute.xlu0 %679
        %681 = vrot.lane.b32.xlu0 %v291, 112
        %v682 = vpop.permute.xlu0 %681
        %683 = vrot.lane.b32.xlu0 %v292, 112
        %v684 = vpop.permute.xlu0 %683
        %685 = vrot.lane.b32.xlu0 %v293, 112
        %v686 = vpop.permute.xlu0 %685
        %687 = vrot.lane.b32.xlu0 %v294, 112
        %v688 = vpop.permute.xlu0 %687
        %vm689 = vcmask 916480
        %v690 = vsel %vm689, %v674, %v676
        %v691 = vsel %vm689, %v678, %v680
        %v692 = vsel %vm689, %v682, %v684
        %v693 = vsel %vm689, %v686, %v688
        %v706 = vsel %vm689, %v676, %v674
        %v707 = vsel %vm689, %v680, %v678
        %v708 = vsel %vm689, %v684, %v682
        %v709 = vsel %vm689, %v688, %v686
        %v710 = vld [vmem:[#allocation7 + $0x1c0] sm:$0xff]
        %v711 = vld [vmem:[#allocation7 + $0x1c8] sm:$0xff]
        %v712 = vld [vmem:[#allocation7 + $0x1d0] sm:$0xff]
        %v713 = vld [vmem:[#allocation7 + $0x1d8] sm:$0xff]
        %v714 = vld [vmem:[#allocation7 + $0x1e0] sm:$0xff]
        %v715 = vld [vmem:[#allocation7 + $0x1e8] sm:$0xff]
        %v716 = vld [vmem:[#allocation7 + $0x1f0] sm:$0xff]
        %v717 = vld [vmem:[#allocation7 + $0x1f8] sm:$0xff]
        %v718 = vmul.f32 %v690, %v710
        %v719 = vmul.f32 %v706, %v711
        %v720 = vmul.f32 %v691, %v712
        %v721 = vmul.f32 %v707, %v713
        %v722 = vmul.f32 %v692, %v714
        %v723 = vmul.f32 %v708, %v715
        %v724 = vmul.f32 %v693, %v716
        %v725 = vmul.f32 %v709, %v717
        %v726 = vpack.c.bf16 %v720, %v718
        %v727 = vpack.c.bf16 %v721, %v719
        %v728 = vpack.c.bf16 %v724, %v722
        %v729 = vpack.c.bf16 %v725, %v723
        %730 = vrot.lane.b32.xlu0 %v287, 111
        %v731 = vpop.permute.xlu0 %730
        %732 = vrot.lane.b32.xlu0 %v288, 111
        %v733 = vpop.permute.xlu0 %732
        %734 = vrot.lane.b32.xlu0 %v289, 111
        %v735 = vpop.permute.xlu0 %734
        %736 = vrot.lane.b32.xlu0 %v290, 111
        %v737 = vpop.permute.xlu0 %736
        %738 = vrot.lane.b32.xlu0 %v291, 111
        %v739 = vpop.permute.xlu0 %738
        %740 = vrot.lane.b32.xlu0 %v292, 111
        %v741 = vpop.permute.xlu0 %740
        %742 = vrot.lane.b32.xlu0 %v293, 111
        %v743 = vpop.permute.xlu0 %742
        %744 = vrot.lane.b32.xlu0 %v294, 111
        %v745 = vpop.permute.xlu0 %744
        %vm746 = vcmask 908288
        %v747 = vsel %vm746, %v731, %v733
        %v748 = vsel %vm746, %v735, %v737
        %v749 = vsel %vm746, %v739, %v741
        %v750 = vsel %vm746, %v743, %v745
        %v763 = vsel %vm746, %v733, %v731
        %v764 = vsel %vm746, %v737, %v735
        %v765 = vsel %vm746, %v741, %v739
        %v766 = vsel %vm746, %v745, %v743
        %v767 = vld [vmem:[#allocation7 + $0x200] sm:$0xff]
        %v768 = vld [vmem:[#allocation7 + $0x208] sm:$0xff]
        %v769 = vld [vmem:[#allocation7 + $0x210] sm:$0xff]
        %v770 = vld [vmem:[#allocation7 + $0x218] sm:$0xff]
        %v771 = vld [vmem:[#allocation7 + $0x220] sm:$0xff]
        %v772 = vld [vmem:[#allocation7 + $0x228] sm:$0xff]
        %v773 = vld [vmem:[#allocation7 + $0x230] sm:$0xff]
        %v774 = vld [vmem:[#allocation7 + $0x238] sm:$0xff]
        %v775 = vmul.f32 %v747, %v767
        %v776 = vmul.f32 %v763, %v768
        %v777 = vmul.f32 %v748, %v769
        %v778 = vmul.f32 %v764, %v770
        %v779 = vmul.f32 %v749, %v771
        %v780 = vmul.f32 %v765, %v772
        %v781 = vmul.f32 %v750, %v773
        %v782 = vmul.f32 %v766, %v774
        %v783 = vpack.c.bf16 %v777, %v775
        %v784 = vpack.c.bf16 %v778, %v776
        %v785 = vpack.c.bf16 %v781, %v779
        %v786 = vpack.c.bf16 %v782, %v780
        %v787 = vld [vmem:[%s231] sm:$0xff]
        %v788 = vld [vmem:[%s231 + $0x8] sm:$0xff]
        %v789 = vld [vmem:[%s231 + $0x10] sm:$0xff]
        %v790 = vld [vmem:[%s231 + $0x18] sm:$0xff]
        %v791 = vld [vmem:[%s231 + $0x20] sm:$0xff]
        %v792 = vld [vmem:[%s231 + $0x28] sm:$0xff]
        %v793 = vld [vmem:[%s231 + $0x30] sm:$0xff]
        %v794 = vld [vmem:[%s231 + $0x38] sm:$0xff]
        %v795 = vld [vmem:[%s231 + $0x40] sm:$0xff]
        %v796 = vld [vmem:[%s231 + $0x48] sm:$0xff]
        %v797 = vld [vmem:[%s231 + $0x50] sm:$0xff]
        %v798 = vld [vmem:[%s231 + $0x58] sm:$0xff]
        %v799 = vld [vmem:[%s231 + $0x60] sm:$0xff]
        %v800 = vld [vmem:[%s231 + $0x68] sm:$0xff]
        %v801 = vld [vmem:[%s231 + $0x70] sm:$0xff]
        %v802 = vld [vmem:[%s231 + $0x78] sm:$0xff]
        %v803 = vld [vmem:[%s231 + $0x80] sm:$0xff]
        %v804 = vld [vmem:[%s231 + $0x88] sm:$0xff]
        %v805 = vld [vmem:[%s231 + $0x90] sm:$0xff]
        %v806 = vld [vmem:[%s231 + $0x98] sm:$0xff]
        %v807 = vld [vmem:[%s231 + $0xa0] sm:$0xff]
        %v808 = vld [vmem:[%s231 + $0xa8] sm:$0xff]
        %v809 = vld [vmem:[%s231 + $0xb0] sm:$0xff]
        %v810 = vld [vmem:[%s231 + $0xb8] sm:$0xff]
        %v811 = vld [vmem:[%s231 + $0xc0] sm:$0xff]
        %v812 = vld [vmem:[%s231 + $0xc8] sm:$0xff]
        %v813 = vld [vmem:[%s231 + $0xd0] sm:$0xff]
        %v814 = vld [vmem:[%s231 + $0xd8] sm:$0xff]
        %v815 = vld [vmem:[%s231 + $0xe0] sm:$0xff]
        %v816 = vld [vmem:[%s231 + $0xe8] sm:$0xff]
        %v817 = vld [vmem:[%s231 + $0xf0] sm:$0xff]
        %v818 = vld [vmem:[%s231 + $0xf8] sm:$0xff]
        %v819 = vld [vmem:[%s1] sm:$0xff]
        %v820 = vld [vmem:[%s1 + $0x8] sm:$0xf]
        %v821 = vld [vmem:[%s1 + $0xc] sm:$0xff]
        %v822 = vld [vmem:[%s1 + $0x14] sm:$0xf]
        %v823 = vld [vmem:[%s1 + $0x18] sm:$0xff]
        %v824 = vld [vmem:[%s1 + $0x20] sm:$0xf]
        %v825 = vld [vmem:[%s1 + $0x24] sm:$0xff]
        %v826 = vld [vmem:[%s1 + $0x2c] sm:$0xf]
        %v827 = vld [vmem:[%s1 + $0x30] sm:$0xff]
        %v828 = vld [vmem:[%s1 + $0x38] sm:$0xf]
        %v829 = vld [vmem:[%s1 + $0x3c] sm:$0xff]
        %v830 = vld [vmem:[%s1 + $0x44] sm:$0xf]
        %v831 = vld [vmem:[%s1 + $0x48] sm:$0xff]
        %v832 = vld [vmem:[%s1 + $0x50] sm:$0xf]
        %v833 = vld [vmem:[%s1 + $0x54] sm:$0xff]
        %v834 = vld [vmem:[%s1 + $0x5c] sm:$0xf]
        %v835 = vld [vmem:[%s1 + $0x60] sm:$0xff]
        %v836 = vld [vmem:[%s1 + $0x68] sm:$0xf]
        %v837 = vld [vmem:[%s1 + $0x6c] sm:$0xff]
        %v838 = vld [vmem:[%s1 + $0x74] sm:$0xf]
        %v839 = vld [vmem:[%s1 + $0x78] sm:$0xff]
        %v840 = vld [vmem:[%s1 + $0x80] sm:$0xf]
        %v841 = vld [vmem:[%s1 + $0x84] sm:$0xff]
        %v842 = vld [vmem:[%s1 + $0x8c] sm:$0xf]
        %v843 = vld [vmem:[%s1 + $0x90] sm:$0xff]
        %v844 = vld [vmem:[%s1 + $0x98] sm:$0xf]
        %v845 = vld [vmem:[%s1 + $0x9c] sm:$0xff]
        %v846 = vld [vmem:[%s1 + $0xa4] sm:$0xf]
        %v847 = vld [vmem:[%s1 + $0xa8] sm:$0xff]
        %v848 = vld [vmem:[%s1 + $0xb0] sm:$0xf]
        %v849 = vld [vmem:[%s1 + $0xb4] sm:$0xff]
        %v850 = vld [vmem:[%s1 + $0xbc] sm:$0xf]
        %v883 = vunpack.c.l.b16 %v819
        %v884 = vunpack.c.h.b16 %v819
        %v885 = vunpack.c.l.b16 %v820
        %v886 = vunpack.c.l.b16 %v821
        %v887 = vunpack.c.h.b16 %v821
        %v888 = vunpack.c.l.b16 %v822
        %v889 = vunpack.c.l.b16 %v823
        %v890 = vunpack.c.h.b16 %v823
        %v891 = vunpack.c.l.b16 %v824
        %v892 = vunpack.c.l.b16 %v825
        %v893 = vunpack.c.h.b16 %v825
        %v894 = vunpack.c.l.b16 %v826
        %v895 = vunpack.c.l.b16 %v827
        %v896 = vunpack.c.h.b16 %v827
        %v897 = vunpack.c.l.b16 %v828
        %v898 = vunpack.c.l.b16 %v829
        %v899 = vunpack.c.h.b16 %v829
        %v900 = vunpack.c.l.b16 %v830
        %v901 = vunpack.c.l.b16 %v831
        %v902 = vunpack.c.h.b16 %v831
        %v903 = vunpack.c.l.b16 %v832
        %v904 = vunpack.c.l.b16 %v833
        %v905 = vunpack.c.h.b16 %v833
        %v906 = vunpack.c.l.b16 %v834
        %v907 = vunpack.c.l.b16 %v835
        %v908 = vunpack.c.h.b16 %v835
        %v909 = vunpack.c.l.b16 %v836
        %v910 = vunpack.c.l.b16 %v837
        %v911 = vunpack.c.h.b16 %v837
        %v912 = vunpack.c.l.b16 %v838
        %v913 = vunpack.c.l.b16 %v839
        %v914 = vunpack.c.h.b16 %v839
        %v915 = vunpack.c.l.b16 %v840
        %v916 = vunpack.c.l.b16 %v841
        %v917 = vunpack.c.h.b16 %v841
        %v918 = vunpack.c.l.b16 %v842
        %v919 = vunpack.c.l.b16 %v843
        %v920 = vunpack.c.h.b16 %v843
        %v921 = vunpack.c.l.b16 %v844
        %v922 = vunpack.c.l.b16 %v845
        %v923 = vunpack.c.h.b16 %v845
        %v924 = vunpack.c.l.b16 %v846
        %v925 = vunpack.c.l.b16 %v847
        %v926 = vunpack.c.h.b16 %v847
        %v927 = vunpack.c.l.b16 %v848
        %v928 = vunpack.c.l.b16 %v849
        %v929 = vunpack.c.h.b16 %v849
        %v930 = vunpack.c.l.b16 %v850
        %v931 = vpack.c.b16 %v886, %v883
        %v932 = vpack.c.b16 %v887, %v884
        %v933 = vpack.c.b16 %v888, %v885
        %v934 = vpack.c.b16 %v892, %v889
        %v935 = vpack.c.b16 %v893, %v890
        %v936 = vpack.c.b16 %v894, %v891
        %v937 = vpack.c.b16 %v898, %v895
        %v938 = vpack.c.b16 %v899, %v896
        %v939 = vpack.c.b16 %v900, %v897
        %v940 = vpack.c.b16 %v904, %v901
        %v941 = vpack.c.b16 %v905, %v902
        %v942 = vpack.c.b16 %v906, %v903
        %v943 = vpack.c.b16 %v910, %v907
        %v944 = vpack.c.b16 %v911, %v908
        %v945 = vpack.c.b16 %v912, %v909
        %v946 = vpack.c.b16 %v916, %v913
        %v947 = vpack.c.b16 %v917, %v914
        %v948 = vpack.c.b16 %v918, %v915
        %v949 = vpack.c.b16 %v922, %v919
        %v950 = vpack.c.b16 %v923, %v920
        %v951 = vpack.c.b16 %v924, %v921
        %v952 = vpack.c.b16 %v928, %v925
        %v953 = vpack.c.b16 %v929, %v926
        %v954 = vpack.c.b16 %v930, %v927
        %vm971 = vcmask 261120
        %v973 = vsel %vm971, %v933, 0
        %v976 = vsel %vm971, %v936, 0
        %v979 = vsel %vm971, %v939, 0
        %v982 = vsel %vm971, %v942, 0
        %v985 = vsel %vm971, %v945, 0
        %v988 = vsel %vm971, %v948, 0
        %v991 = vsel %vm971, %v951, 0
        %v994 = vsel %vm971, %v954, 0
        %996 = vmatprep.subr.bf16.mxu0 %v365
        %997 = vmatpush1.bf16.msra.mxu0 %v364
        %998 = vmatprep.subr.bf16.mxu0 %v367
        %999 = vmatpush1.bf16.msra.mxu0 %v366
        %1000 = vmatprep.subr.bf16.mxu0 %v422
        %1001 = vmatpush1.bf16.msra.mxu0 %v421
        %1002 = vmatprep.subr.bf16.mxu0 %v424
        %1003 = vmatpush1.bf16.msra.mxu0 %v423
        %1004 = vmatprep.subr.bf16.mxu0 %v479
        %1005 = vmatpush1.bf16.msra.mxu0 %v478
        %1006 = vmatprep.subr.bf16.mxu0 %v481
        %1007 = vmatpush1.bf16.msra.mxu0 %v480
        %1008 = vmatprep.subr.bf16.mxu0 %v536
        %1009 = vmatpush1.bf16.msra.mxu0 %v535
        %1010 = vmatprep.subr.bf16.mxu0 %v538
        %1011 = vmatpush1.bf16.msra.mxu0 %v537
        %1012 = vmatprep.subr.bf16.mxu0 %v556
        %1013 = vmatpush1.bf16.msra.mxu0 %v555
        %1014 = vmatprep.subr.bf16.mxu0 %v558
        %1015 = vmatpush1.bf16.msra.mxu0 %v557
        %1016 = vmatprep.subr.bf16.mxu0 %v613
        %1017 = vmatpush1.bf16.msra.mxu0 %v612
        %1018 = vmatprep.subr.bf16.mxu0 %v615
        %1019 = vmatpush1.bf16.msra.mxu0 %v614
        %1020 = vmatprep.subr.bf16.mxu0 %v670
        %1021 = vmatpush1.bf16.msra.mxu0 %v669
        %1022 = vmatprep.subr.bf16.mxu0 %v672
        %1023 = vmatpush1.bf16.msra.mxu0 %v671
        %1024 = vmatprep.subr.bf16.mxu0 %v727
        %1025 = vmatpush1.bf16.msra.mxu0 %v726
        %1026 = vmatprep.subr.bf16.mxu0 %v729
        %1027 = vmatpush1.bf16.msra.mxu0 %v728
        %1028 = vmatprep.mubr.bf16.mxu0 %v932
        %1029 = vmatmul.mubr.bf16.gmra.mrb[0].mxu0 %v931
        %v1030 = vpop.f32.mrb[0].mxu0
        %v1031 = vadd.f32 0.0, %v1030
        %v1032 = vpop.f32.mrb[0].mxu0
        %v1033 = vadd.f32 0.0, %v1032
        %v1034 = vpop.f32.mrb[0].mxu0
        %v1035 = vadd.f32 0.0, %v1034
        %v1036 = vpop.f32.mrb[0].mxu0
        %v1037 = vadd.f32 0.0, %v1036
        %1038 = vmatprep.mubr.bf16.mxu0 %v935
        %1039 = vmatmul.mubr.bf16.gmra.mrb[0].mxu0 %v934
        %v1040 = vpop.f32.mrb[0].mxu0
        %v1041 = vadd.f32 0.0, %v1040
        %v1042 = vpop.f32.mrb[0].mxu0
        %v1043 = vadd.f32 0.0, %v1042
        %v1044 = vpop.f32.mrb[0].mxu0
        %v1045 = vadd.f32 0.0, %v1044
        %v1046 = vpop.f32.mrb[0].mxu0
        %v1047 = vadd.f32 0.0, %v1046
        %1048 = vmatprep.mubr.bf16.mxu0 %v938
        %1049 = vmatmul.mubr.bf16.gmra.mrb[0].mxu0 %v937
        %v1050 = vpop.f32.mrb[0].mxu0
        %v1051 = vadd.f32 0.0, %v1050
        %v1052 = vpop.f32.mrb[0].mxu0
        %v1053 = vadd.f32 0.0, %v1052
        %v1054 = vpop.f32.mrb[0].mxu0
        %v1055 = vadd.f32 0.0, %v1054
        %v1056 = vpop.f32.mrb[0].mxu0
        %v1057 = vadd.f32 0.0, %v1056
        %1058 = vmatprep.mubr.bf16.mxu0 %v941
        %1059 = vmatmul.mubr.bf16.gmra.mrb[0].mxu0 %v940
        %v1060 = vpop.f32.mrb[0].mxu0
        %v1061 = vadd.f32 0.0, %v1060
        %v1062 = vpop.f32.mrb[0].mxu0
        %v1063 = vadd.f32 0.0, %v1062
        %v1064 = vpop.f32.mrb[0].mxu0
        %v1065 = vadd.f32 0.0, %v1064
        %v1066 = vpop.f32.mrb[0].mxu0
        %v1067 = vadd.f32 0.0, %v1066
        %1068 = vmatprep.mubr.bf16.mxu0 %v944
        %1069 = vmatmul.mubr.bf16.gmra.mrb[0].mxu0 %v943
        %v1070 = vpop.f32.mrb[0].mxu0
        %v1071 = vadd.f32 0.0, %v1070
        %v1072 = vpop.f32.mrb[0].mxu0
        %v1073 = vadd.f32 0.0, %v1072
        %v1074 = vpop.f32.mrb[0].mxu0
        %v1075 = vadd.f32 0.0, %v1074
        %v1076 = vpop.f32.mrb[0].mxu0
        %v1077 = vadd.f32 0.0, %v1076
        %1078 = vmatprep.mubr.bf16.mxu0 %v947
        %1079 = vmatmul.mubr.bf16.gmra.mrb[0].mxu0 %v946
        %v1080 = vpop.f32.mrb[0].mxu0
        %v1081 = vadd.f32 0.0, %v1080
        %v1082 = vpop.f32.mrb[0].mxu0
        %v1083 = vadd.f32 0.0, %v1082
        %v1084 = vpop.f32.mrb[0].mxu0
        %v1085 = vadd.f32 0.0, %v1084
        %v1086 = vpop.f32.mrb[0].mxu0
        %v1087 = vadd.f32 0.0, %v1086
        %1088 = vmatprep.mubr.bf16.mxu0 %v950
        %1089 = vmatmul.mubr.bf16.gmra.mrb[0].mxu0 %v949
        %v1090 = vpop.f32.mrb[0].mxu0
        %v1091 = vadd.f32 0.0, %v1090
        %v1092 = vpop.f32.mrb[0].mxu0
        %v1093 = vadd.f32 0.0, %v1092
        %v1094 = vpop.f32.mrb[0].mxu0
        %v1095 = vadd.f32 0.0, %v1094
        %v1096 = vpop.f32.mrb[0].mxu0
        %v1097 = vadd.f32 0.0, %v1096
        %1098 = vmatprep.mubr.bf16.mxu0 %v953
        %1099 = vmatmul.mubr.bf16.gmra.mrb[0].mxu0 %v952
        %v1100 = vpop.f32.mrb[0].mxu0
        %v1101 = vadd.f32 0.0, %v1100
        %v1102 = vpop.f32.mrb[0].mxu0
        %v1103 = vadd.f32 0.0, %v1102
        %v1104 = vpop.f32.mrb[0].mxu0
        %v1105 = vadd.f32 0.0, %v1104
        %v1106 = vpop.f32.mrb[0].mxu0
        %v1107 = vadd.f32 0.0, %v1106
        %1108 = vdwg.mxu0
        %1109 = vmatprep.subr.bf16.mxu0 %v784
        %1110 = vmatpush1.bf16.msra.mxu0 %v783
        %1111 = vmatprep.subr.bf16.mxu0 %v786
        %1112 = vmatpush1.bf16.msra.mxu0 %v785
        %1113 = vmatprep.subr.bf16.mxu0 0
        %1114 = vmatpush1.bf16.msra.mxu0 0
        %1115 = vmatprep.subr.bf16.mxu0 0
        %1116 = vmatpush1.bf16.msra.mxu0 0
        %1117 = vmatprep.subr.bf16.mxu0 0
        %1118 = vmatpush1.bf16.msra.mxu0 0
        %1119 = vmatprep.subr.bf16.mxu0 0
        %1120 = vmatpush1.bf16.msra.mxu0 0
        %1121 = vmatprep.subr.bf16.mxu0 0
        %1122 = vmatpush1.bf16.msra.mxu0 0
        %1123 = vmatprep.subr.bf16.mxu0 0
        %1124 = vmatpush1.bf16.msra.mxu0 0
        %1125 = vmatprep.subr.bf16.mxu0 0
        %1126 = vmatpush1.bf16.msra.mxu0 0
        %1127 = vmatprep.subr.bf16.mxu0 0
        %1128 = vmatpush1.bf16.msra.mxu0 0
        %1129 = vmatprep.subr.bf16.mxu0 0
        %1130 = vmatpush1.bf16.msra.mxu0 0
        %1131 = vmatprep.subr.bf16.mxu0 0
        %1132 = vmatpush1.bf16.msra.mxu0 0
        %1133 = vmatprep.subr.bf16.mxu0 0
        %1134 = vmatpush1.bf16.msra.mxu0 0
        %1135 = vmatprep.subr.bf16.mxu0 0
        %1136 = vmatpush1.bf16.msra.mxu0 0
        %1137 = vmatprep.subr.bf16.mxu0 0
        %1138 = vmatpush1.bf16.msra.mxu0 0
        %1139 = vmatprep.subr.bf16.mxu0 0
        %1140 = vmatpush1.bf16.msra.mxu0 0
        %1141 = vmatprep.mubr.bf16.mxu0 0
        %1142 = vmatmul.mubr.bf16.gmra.mrb[0].mxu0 %v973
        %v1143 = vpop.f32.mrb[0].mxu0
        %v1144 = vadd.f32 %v1031, %v1143
        %v1145 = vpop.f32.mrb[0].mxu0
        %v1146 = vadd.f32 %v1033, %v1145
        %v1147 = vpop.f32.mrb[0].mxu0
        %v1148 = vadd.f32 %v1035, %v1147
        %v1149 = vpop.f32.mrb[0].mxu0
        %v1150 = vadd.f32 %v1037, %v1149
        %1151 = vmatprep.mubr.bf16.mxu0 0
        %1152 = vmatmul.mubr.bf16.gmra.mrb[0].mxu0 %v976
        %v1153 = vpop.f32.mrb[0].mxu0
        %v1154 = vadd.f32 %v1041, %v1153
        %v1155 = vpop.f32.mrb[0].mxu0
        %v1156 = vadd.f32 %v1043, %v1155
        %v1157 = vpop.f32.mrb[0].mxu0
        %v1158 = vadd.f32 %v1045, %v1157
        %v1159 = vpop.f32.mrb[0].mxu0
        %v1160 = vadd.f32 %v1047, %v1159
        %1161 = vmatprep.mubr.bf16.mxu0 0
        %1162 = vmatmul.mubr.bf16.gmra.mrb[0].mxu0 %v979
        %v1163 = vpop.f32.mrb[0].mxu0
        %v1164 = vadd.f32 %v1051, %v1163
        %v1165 = vpop.f32.mrb[0].mxu0
        %v1166 = vadd.f32 %v1053, %v1165
        %v1167 = vpop.f32.mrb[0].mxu0
        %v1168 = vadd.f32 %v1055, %v1167
        %v1169 = vpop.f32.mrb[0].mxu0
        %v1170 = vadd.f32 %v1057, %v1169
        %1171 = vmatprep.mubr.bf16.mxu0 0
        %1172 = vmatmul.mubr.bf16.gmra.mrb[0].mxu0 %v982
        %v1173 = vpop.f32.mrb[0].mxu0
        %v1174 = vadd.f32 %v1061, %v1173
        %v1175 = vpop.f32.mrb[0].mxu0
        %v1176 = vadd.f32 %v1063, %v1175
        %v1177 = vpop.f32.mrb[0].mxu0
        %v1178 = vadd.f32 %v1065, %v1177
        %v1179 = vpop.f32.mrb[0].mxu0
        %v1180 = vadd.f32 %v1067, %v1179
        %1181 = vmatprep.mubr.bf16.mxu0 0
        %1182 = vmatmul.mubr.bf16.gmra.mrb[0].mxu0 %v985
        %v1183 = vpop.f32.mrb[0].mxu0
        %v1184 = vadd.f32 %v1071, %v1183
        %v1185 = vpop.f32.mrb[0].mxu0
        %v1186 = vadd.f32 %v1073, %v1185
        %v1187 = vpop.f32.mrb[0].mxu0
        %v1188 = vadd.f32 %v1075, %v1187
        %v1189 = vpop.f32.mrb[0].mxu0
        %v1190 = vadd.f32 %v1077, %v1189
        %1191 = vmatprep.mubr.bf16.mxu0 0
        %1192 = vmatmul.mubr.bf16.gmra.mrb[0].mxu0 %v988
        %v1193 = vpop.f32.mrb[0].mxu0
        %v1194 = vadd.f32 %v1081, %v1193
        %v1195 = vpop.f32.mrb[0].mxu0
        %v1196 = vadd.f32 %v1083, %v1195
        %v1197 = vpop.f32.mrb[0].mxu0
        %v1198 = vadd.f32 %v1085, %v1197
        %v1199 = vpop.f32.mrb[0].mxu0
        %v1200 = vadd.f32 %v1087, %v1199
        %1201 = vmatprep.mubr.bf16.mxu0 0
        %1202 = vmatmul.mubr.bf16.gmra.mrb[0].mxu0 %v991
        %v1203 = vpop.f32.mrb[0].mxu0
        %v1204 = vadd.f32 %v1091, %v1203
        %v1205 = vpop.f32.mrb[0].mxu0
        %v1206 = vadd.f32 %v1093, %v1205
        %v1207 = vpop.f32.mrb[0].mxu0
        %v1208 = vadd.f32 %v1095, %v1207
        %v1209 = vpop.f32.mrb[0].mxu0
        %v1210 = vadd.f32 %v1097, %v1209
        %1211 = vmatprep.mubr.bf16.mxu0 0
        %1212 = vmatmul.mubr.bf16.gmra.mrb[0].mxu0 %v994
        %v1213 = vpop.f32.mrb[0].mxu0
        %v1214 = vadd.f32 %v1101, %v1213
        %v1215 = vpop.f32.mrb[0].mxu0
        %v1216 = vadd.f32 %v1103, %v1215
        %v1217 = vpop.f32.mrb[0].mxu0
        %v1218 = vadd.f32 %v1105, %v1217
        %v1219 = vpop.f32.mrb[0].mxu0
        %v1220 = vadd.f32 %v1107, %v1219
        %1221 = vdwg.mxu0
        %v1222 = vadd.f32 %v787, %v1144
        %v1223 = vadd.f32 %v788, %v1146
        %v1224 = vadd.f32 %v789, %v1148
        %v1225 = vadd.f32 %v790, %v1150
        %v1226 = vadd.f32 %v791, %v1154
        %v1227 = vadd.f32 %v792, %v1156
        %v1228 = vadd.f32 %v793, %v1158
        %v1229 = vadd.f32 %v794, %v1160
        %v1230 = vadd.f32 %v795, %v1164
        %v1231 = vadd.f32 %v796, %v1166
        %v1232 = vadd.f32 %v797, %v1168
        %v1233 = vadd.f32 %v798, %v1170
        %v1234 = vadd.f32 %v799, %v1174
        %v1235 = vadd.f32 %v800, %v1176
        %v1236 = vadd.f32 %v801, %v1178
        %v1237 = vadd.f32 %v802, %v1180
        %v1238 = vadd.f32 %v803, %v1184
        %v1239 = vadd.f32 %v804, %v1186
        %v1240 = vadd.f32 %v805, %v1188
        %v1241 = vadd.f32 %v806, %v1190
        %v1242 = vadd.f32 %v807, %v1194
        %v1243 = vadd.f32 %v808, %v1196
        %v1244 = vadd.f32 %v809, %v1198
        %v1245 = vadd.f32 %v810, %v1200
        %v1246 = vadd.f32 %v811, %v1204
        %v1247 = vadd.f32 %v812, %v1206
        %v1248 = vadd.f32 %v813, %v1208
        %v1249 = vadd.f32 %v814, %v1210
        %v1250 = vadd.f32 %v815, %v1214
        %v1251 = vadd.f32 %v816, %v1216
        %v1252 = vadd.f32 %v817, %v1218
        %v1253 = vadd.f32 %v818, %v1220
        %v1254 = vld [vmem:[#allocation9] sm:$0xff]
        %v1255 = vld [vmem:[#allocation9 + $0x8] sm:$0xff]
        %v1256 = vld [vmem:[#allocation9 + $0x10] sm:$0xff]
        %v1257 = vld [vmem:[#allocation9 + $0x18] sm:$0xff]
        %v1258 = vld [vmem:[#allocation9 + $0x20] sm:$0xff]
        %v1259 = vld [vmem:[#allocation9 + $0x28] sm:$0xff]
        %v1260 = vld [vmem:[#allocation9 + $0x30] sm:$0xff]
        %v1261 = vld [vmem:[#allocation9 + $0x38] sm:$0xff]
        %v1262 = vld [vmem:[#allocation9 + $0x40] sm:$0xff]
        %v1263 = vld [vmem:[#allocation9 + $0x48] sm:$0xff]
        %v1264 = vld [vmem:[#allocation9 + $0x50] sm:$0xff]
        %v1265 = vld [vmem:[#allocation9 + $0x58] sm:$0xff]
        %v1266 = vld [vmem:[#allocation9 + $0x60] sm:$0xff]
        %v1267 = vld [vmem:[#allocation9 + $0x68] sm:$0xff]
        %v1268 = vld [vmem:[#allocation9 + $0x70] sm:$0xff]
        %v1269 = vld [vmem:[#allocation9 + $0x78] sm:$0xff]
        %v1270 = vld [vmem:[#allocation9 + $0x80] sm:$0xff]
        %v1271 = vld [vmem:[#allocation9 + $0x88] sm:$0xff]
        %v1272 = vld [vmem:[#allocation9 + $0x90] sm:$0xff]
        %v1273 = vld [vmem:[#allocation9 + $0x98] sm:$0xff]
        %v1274 = vld [vmem:[#allocation9 + $0xa0] sm:$0xff]
        %v1275 = vld [vmem:[#allocation9 + $0xa8] sm:$0xff]
        %v1276 = vld [vmem:[#allocation9 + $0xb0] sm:$0xff]
        %v1277 = vld [vmem:[#allocation9 + $0xb8] sm:$0xff]
        %v1278 = vmul.f32 %v1254, %v295
        %v1279 = vmul.f32 %v1255, %v296
        %v1280 = vmul.f32 %v1256, %v297
        %v1281 = vmul.f32 %v1257, %v298
        %v1282 = vmul.f32 %v1258, %v299
        %v1283 = vmul.f32 %v1259, %v300
        %v1284 = vmul.f32 %v1260, %v301
        %v1285 = vmul.f32 %v1261, %v302
        %v1286 = vadd.f32 %v1222, %v1278
        %v1287 = vadd.f32 %v1223, %v1279
        %v1288 = vadd.f32 %v1224, %v1280
        %v1289 = vadd.f32 %v1225, %v1281
        %v1290 = vadd.f32 %v1226, %v1282
        %v1291 = vadd.f32 %v1227, %v1283
        %v1292 = vadd.f32 %v1228, %v1284
        %v1293 = vadd.f32 %v1229, %v1285
        %v1294 = vmul.f32 %v1286, 0.5
        %v1295 = vmul.f32 %v1287, 0.5
        %v1296 = vmul.f32 %v1288, 0.5
        %v1297 = vmul.f32 %v1289, 0.5
        %v1298 = vmul.f32 %v1290, 0.5
        %v1299 = vmul.f32 %v1291, 0.5
        %v1300 = vmul.f32 %v1292, 0.5
        %v1301 = vmul.f32 %v1293, 0.5
        %v1302 = vtanh.pop %v1294
        %v1303 = vtanh.pop %v1295
        %v1304 = vtanh.pop %v1296
        %v1305 = vtanh.pop %v1297
        %v1306 = vtanh.pop %v1298
        %v1307 = vtanh.pop %v1299
        %v1308 = vtanh.pop %v1300
        %v1309 = vtanh.pop %v1301
        %v1310 = vmul.f32 %v1302, 0.5
        %v1311 = vmul.f32 %v1303, 0.5
        %v1312 = vmul.f32 %v1304, 0.5
        %v1313 = vmul.f32 %v1305, 0.5
        %v1314 = vmul.f32 %v1306, 0.5
        %v1315 = vmul.f32 %v1307, 0.5
        %v1316 = vmul.f32 %v1308, 0.5
        %v1317 = vmul.f32 %v1309, 0.5
        %v1318 = vadd.f32 %v1310, 0.5
        %v1319 = vadd.f32 %v1311, 0.5
        %v1320 = vadd.f32 %v1312, 0.5
        %v1321 = vadd.f32 %v1313, 0.5
        %v1322 = vadd.f32 %v1314, 0.5
        %v1323 = vadd.f32 %v1315, 0.5
        %v1324 = vadd.f32 %v1316, 0.5
        %v1325 = vadd.f32 %v1317, 0.5
        %v1326 = vmul.f32 %v1262, %v295
        %v1327 = vmul.f32 %v1263, %v296
        %v1328 = vmul.f32 %v1264, %v297
        %v1329 = vmul.f32 %v1265, %v298
        %v1330 = vmul.f32 %v1266, %v299
        %v1331 = vmul.f32 %v1267, %v300
        %v1332 = vmul.f32 %v1268, %v301
        %v1333 = vmul.f32 %v1269, %v302
        %v1334 = vadd.f32 %v1230, %v1326
        %v1335 = vadd.f32 %v1231, %v1327
        %v1336 = vadd.f32 %v1232, %v1328
        %v1337 = vadd.f32 %v1233, %v1329
        %v1338 = vadd.f32 %v1234, %v1330
        %v1339 = vadd.f32 %v1235, %v1331
        %v1340 = vadd.f32 %v1236, %v1332
        %v1341 = vadd.f32 %v1237, %v1333
        %v1342 = vmul.f32 %v1334, 0.5
        %v1343 = vmul.f32 %v1335, 0.5
        %v1344 = vmul.f32 %v1336, 0.5
        %v1345 = vmul.f32 %v1337, 0.5
        %v1346 = vmul.f32 %v1338, 0.5
        %v1347 = vmul.f32 %v1339, 0.5
        %v1348 = vmul.f32 %v1340, 0.5
        %v1349 = vmul.f32 %v1341, 0.5
        %v1350 = vtanh.pop %v1342
        %v1351 = vtanh.pop %v1343
        %v1352 = vtanh.pop %v1344
        %v1353 = vtanh.pop %v1345
        %v1354 = vtanh.pop %v1346
        %v1355 = vtanh.pop %v1347
        %v1356 = vtanh.pop %v1348
        %v1357 = vtanh.pop %v1349
        %v1358 = vmul.f32 %v1350, 0.5
        %v1359 = vmul.f32 %v1351, 0.5
        %v1360 = vmul.f32 %v1352, 0.5
        %v1361 = vmul.f32 %v1353, 0.5
        %v1362 = vmul.f32 %v1354, 0.5
        %v1363 = vmul.f32 %v1355, 0.5
        %v1364 = vmul.f32 %v1356, 0.5
        %v1365 = vmul.f32 %v1357, 0.5
        %v1366 = vadd.f32 %v1358, 0.5
        %v1367 = vadd.f32 %v1359, 0.5
        %v1368 = vadd.f32 %v1360, 0.5
        %v1369 = vadd.f32 %v1361, 0.5
        %v1370 = vadd.f32 %v1362, 0.5
        %v1371 = vadd.f32 %v1363, 0.5
        %v1372 = vadd.f32 %v1364, 0.5
        %v1373 = vadd.f32 %v1365, 0.5
        %v1374 = vmul.f32 %v1366, %v295
        %v1375 = vmul.f32 %v1367, %v296
        %v1376 = vmul.f32 %v1368, %v297
        %v1377 = vmul.f32 %v1369, %v298
        %v1378 = vmul.f32 %v1370, %v299
        %v1379 = vmul.f32 %v1371, %v300
        %v1380 = vmul.f32 %v1372, %v301
        %v1381 = vmul.f32 %v1373, %v302
        %v1382 = vtanh.pop %v1238
        %v1383 = vtanh.pop %v1239
        %v1384 = vtanh.pop %v1240
        %v1385 = vtanh.pop %v1241
        %v1386 = vtanh.pop %v1242
        %v1387 = vtanh.pop %v1243
        %v1388 = vtanh.pop %v1244
        %v1389 = vtanh.pop %v1245
        %v1390 = vmul.f32 %v1318, %v1382
        %v1391 = vmul.f32 %v1319, %v1383
        %v1392 = vmul.f32 %v1320, %v1384
        %v1393 = vmul.f32 %v1321, %v1385
        %v1394 = vmul.f32 %v1322, %v1386
        %v1395 = vmul.f32 %v1323, %v1387
        %v1396 = vmul.f32 %v1324, %v1388
        %v1397 = vmul.f32 %v1325, %v1389
        %v1398 = vadd.f32 %v1374, %v1390
        %v1399 = vadd.f32 %v1375, %v1391
        %v1400 = vadd.f32 %v1376, %v1392
        %v1401 = vadd.f32 %v1377, %v1393
        %v1402 = vadd.f32 %v1378, %v1394
        %v1403 = vadd.f32 %v1379, %v1395
        %v1404 = vadd.f32 %v1380, %v1396
        %v1405 = vadd.f32 %v1381, %v1397
        %v1406 = vmul.f32 %v1270, %v1398
        %v1407 = vmul.f32 %v1271, %v1399
        %v1408 = vmul.f32 %v1272, %v1400
        %v1409 = vmul.f32 %v1273, %v1401
        %v1410 = vmul.f32 %v1274, %v1402
        %v1411 = vmul.f32 %v1275, %v1403
        %v1412 = vmul.f32 %v1276, %v1404
        %v1413 = vmul.f32 %v1277, %v1405
        %v1414 = vadd.f32 %v1246, %v1406
        %v1415 = vadd.f32 %v1247, %v1407
        %v1416 = vadd.f32 %v1248, %v1408
        %v1417 = vadd.f32 %v1249, %v1409
        %v1418 = vadd.f32 %v1250, %v1410
        %v1419 = vadd.f32 %v1251, %v1411
        %v1420 = vadd.f32 %v1252, %v1412
        %v1421 = vadd.f32 %v1253, %v1413
        %v1422 = vmul.f32 %v1414, 0.5
        %v1423 = vmul.f32 %v1415, 0.5
        %v1424 = vmul.f32 %v1416, 0.5
        %v1425 = vmul.f32 %v1417, 0.5
        %v1426 = vmul.f32 %v1418, 0.5
        %v1427 = vmul.f32 %v1419, 0.5
        %v1428 = vmul.f32 %v1420, 0.5
        %v1429 = vmul.f32 %v1421, 0.5
        %v1430 = vtanh.pop %v1422
        %v1431 = vtanh.pop %v1423
        %v1432 = vtanh.pop %v1424
        %v1433 = vtanh.pop %v1425
        %v1434 = vtanh.pop %v1426
        %v1435 = vtanh.pop %v1427
        %v1436 = vtanh.pop %v1428
        %v1437 = vtanh.pop %v1429
        %v1438 = vmul.f32 %v1430, 0.5
        %v1439 = vmul.f32 %v1431, 0.5
        %v1440 = vmul.f32 %v1432, 0.5
        %v1441 = vmul.f32 %v1433, 0.5
        %v1442 = vmul.f32 %v1434, 0.5
        %v1443 = vmul.f32 %v1435, 0.5
        %v1444 = vmul.f32 %v1436, 0.5
        %v1445 = vmul.f32 %v1437, 0.5
        %v1446 = vadd.f32 %v1438, 0.5
        %v1447 = vadd.f32 %v1439, 0.5
        %v1448 = vadd.f32 %v1440, 0.5
        %v1449 = vadd.f32 %v1441, 0.5
        %v1450 = vadd.f32 %v1442, 0.5
        %v1451 = vadd.f32 %v1443, 0.5
        %v1452 = vadd.f32 %v1444, 0.5
        %v1453 = vadd.f32 %v1445, 0.5
        %v1454 = vtanh.pop %v1398
        %v1455 = vtanh.pop %v1399
        %v1456 = vtanh.pop %v1400
        %v1457 = vtanh.pop %v1401
        %v1458 = vtanh.pop %v1402
        %v1459 = vtanh.pop %v1403
        %v1460 = vtanh.pop %v1404
        %v1461 = vtanh.pop %v1405
        %v1462 = vmul.f32 %v1446, %v1454
        %v1463 = vmul.f32 %v1447, %v1455
        %v1464 = vmul.f32 %v1448, %v1456
        %v1465 = vmul.f32 %v1449, %v1457
        %v1466 = vmul.f32 %v1450, %v1458
        %v1467 = vmul.f32 %v1451, %v1459
        %v1468 = vmul.f32 %v1452, %v1460
        %v1469 = vmul.f32 %v1453, %v1461
        %1470 = vst [vmem:[%s263] sm:$0xff] %v1462
        %1471 = vst [vmem:[%s263 + $0x8] sm:$0xff] %v1463
        %1472 = vst [vmem:[%s263 + $0x10] sm:$0xff] %v1464
        %1473 = vst [vmem:[%s263 + $0x18] sm:$0xff] %v1465
        %1474 = vst [vmem:[%s263 + $0x20] sm:$0xff] %v1466
        %1475 = vst [vmem:[%s263 + $0x28] sm:$0xff] %v1467
        %1476 = vst [vmem:[%s263 + $0x30] sm:$0xff] %v1468
        %1477 = vst [vmem:[%s263 + $0x38] sm:$0xff] %v1469
        %1482 = vrot.lane.b32.xlu0 %v1463, 17
        %v1483 = vpop.permute.xlu0 %1482
        %1484 = vrot.lane.b32.xlu0 %v1465, 17
        %v1485 = vpop.permute.xlu0 %1484
        %1486 = vrot.lane.b32.xlu0 %v1467, 17
        %v1487 = vpop.permute.xlu0 %1486
        %1488 = vrot.lane.b32.xlu0 %v1469, 17
        %v1489 = vpop.permute.xlu0 %1488
        %1498 = vrot.lane.b32.xlu0 %v1462, 17
        %v1499 = vpop.permute.xlu0 %1498
        %1500 = vrot.lane.b32.xlu0 %v1464, 17
        %v1501 = vpop.permute.xlu0 %1500
        %1502 = vrot.lane.b32.xlu0 %v1466, 17
        %v1503 = vpop.permute.xlu0 %1502
        %1504 = vrot.lane.b32.xlu0 %v1468, 17
        %v1505 = vpop.permute.xlu0 %1504
        %v1506 = vsel %vm331, %v1499, %v1483
        %v1507 = vsel %vm331, %v1501, %v1485
        %v1508 = vsel %vm331, %v1503, %v1487
        %v1509 = vsel %vm331, %v1505, %v1489
        %v1518 = vsel %vm331, %v1483, %v1499
        %v1519 = vsel %vm331, %v1485, %v1501
        %v1520 = vsel %vm331, %v1487, %v1503
        %v1521 = vsel %vm331, %v1489, %v1505
        %v1522 = vld [vmem:[#allocation7] sm:$0xff]
        %v1523 = vld [vmem:[#allocation7 + $0x8] sm:$0xff]
        %v1524 = vld [vmem:[#allocation7 + $0x10] sm:$0xff]
        %v1525 = vld [vmem:[#allocation7 + $0x18] sm:$0xff]
        %v1526 = vld [vmem:[#allocation7 + $0x20] sm:$0xff]
        %v1527 = vld [vmem:[#allocation7 + $0x28] sm:$0xff]
        %v1528 = vld [vmem:[#allocation7 + $0x30] sm:$0xff]
        %v1529 = vld [vmem:[#allocation7 + $0x38] sm:$0xff]
        %v1530 = vmul.f32 %v1518, %v1522
        %v1531 = vmul.f32 %v1506, %v1523
        %v1532 = vmul.f32 %v1519, %v1524
        %v1533 = vmul.f32 %v1507, %v1525
        %v1534 = vmul.f32 %v1520, %v1526
        %v1535 = vmul.f32 %v1508, %v1527
        %v1536 = vmul.f32 %v1521, %v1528
        %v1537 = vmul.f32 %v1509, %v1529
        %v1538 = vpack.c.bf16 %v1532, %v1530
        %v1539 = vpack.c.bf16 %v1533, %v1531
        %v1540 = vpack.c.bf16 %v1536, %v1534
        %v1541 = vpack.c.bf16 %v1537, %v1535
        %1542 = vrot.lane.b32.xlu0 %v1463, 16
        %v1543 = vpop.permute.xlu0 %1542
        %1544 = vrot.lane.b32.xlu0 %v1465, 16
        %v1545 = vpop.permute.xlu0 %1544
        %1546 = vrot.lane.b32.xlu0 %v1467, 16
        %v1547 = vpop.permute.xlu0 %1546
        %1548 = vrot.lane.b32.xlu0 %v1469, 16
        %v1549 = vpop.permute.xlu0 %1548
        %1554 = vrot.lane.b32.xlu0 %v1462, 16
        %v1555 = vpop.permute.xlu0 %1554
        %1556 = vrot.lane.b32.xlu0 %v1464, 16
        %v1557 = vpop.permute.xlu0 %1556
        %1558 = vrot.lane.b32.xlu0 %v1466, 16
        %v1559 = vpop.permute.xlu0 %1558
        %1560 = vrot.lane.b32.xlu0 %v1468, 16
        %v1561 = vpop.permute.xlu0 %1560
        %v1562 = vsel %vm388, %v1555, %v1543
        %v1563 = vsel %vm388, %v1557, %v1545
        %v1564 = vsel %vm388, %v1559, %v1547
        %v1565 = vsel %vm388, %v1561, %v1549
        %v1574 = vsel %vm388, %v1543, %v1555
        %v1575 = vsel %vm388, %v1545, %v1557
        %v1576 = vsel %vm388, %v1547, %v1559
        %v1577 = vsel %vm388, %v1549, %v1561
        %v1578 = vld [vmem:[#allocation7 + $0x40] sm:$0xff]
        %v1579 = vld [vmem:[#allocation7 + $0x48] sm:$0xff]
        %v1580 = vld [vmem:[#allocation7 + $0x50] sm:$0xff]
        %v1581 = vld [vmem:[#allocation7 + $0x58] sm:$0xff]
        %v1582 = vld [vmem:[#allocation7 + $0x60] sm:$0xff]
        %v1583 = vld [vmem:[#allocation7 + $0x68] sm:$0xff]
        %v1584 = vld [vmem:[#allocation7 + $0x70] sm:$0xff]
        %v1585 = vld [vmem:[#allocation7 + $0x78] sm:$0xff]
        %v1586 = vmul.f32 %v1574, %v1578
        %v1587 = vmul.f32 %v1562, %v1579
        %v1588 = vmul.f32 %v1575, %v1580
        %v1589 = vmul.f32 %v1563, %v1581
        %v1590 = vmul.f32 %v1576, %v1582
        %v1591 = vmul.f32 %v1564, %v1583
        %v1592 = vmul.f32 %v1577, %v1584
        %v1593 = vmul.f32 %v1565, %v1585
        %v1594 = vpack.c.bf16 %v1588, %v1586
        %v1595 = vpack.c.bf16 %v1589, %v1587
        %v1596 = vpack.c.bf16 %v1592, %v1590
        %v1597 = vpack.c.bf16 %v1593, %v1591
        %1598 = vrot.lane.b32.xlu0 %v1463, 15
        %v1599 = vpop.permute.xlu0 %1598
        %1600 = vrot.lane.b32.xlu0 %v1465, 15
        %v1601 = vpop.permute.xlu0 %1600
        %1602 = vrot.lane.b32.xlu0 %v1467, 15
        %v1603 = vpop.permute.xlu0 %1602
        %1604 = vrot.lane.b32.xlu0 %v1469, 15
        %v1605 = vpop.permute.xlu0 %1604
        %1610 = vrot.lane.b32.xlu0 %v1462, 15
        %v1611 = vpop.permute.xlu0 %1610
        %1612 = vrot.lane.b32.xlu0 %v1464, 15
        %v1613 = vpop.permute.xlu0 %1612
        %1614 = vrot.lane.b32.xlu0 %v1466, 15
        %v1615 = vpop.permute.xlu0 %1614
        %1616 = vrot.lane.b32.xlu0 %v1468, 15
        %v1617 = vpop.permute.xlu0 %1616
        %v1618 = vsel %vm445, %v1611, %v1599
        %v1619 = vsel %vm445, %v1613, %v1601
        %v1620 = vsel %vm445, %v1615, %v1603
        %v1621 = vsel %vm445, %v1617, %v1605
        %v1630 = vsel %vm445, %v1599, %v1611
        %v1631 = vsel %vm445, %v1601, %v1613
        %v1632 = vsel %vm445, %v1603, %v1615
        %v1633 = vsel %vm445, %v1605, %v1617
        %v1634 = vld [vmem:[#allocation7 + $0x80] sm:$0xff]
        %v1635 = vld [vmem:[#allocation7 + $0x88] sm:$0xff]
        %v1636 = vld [vmem:[#allocation7 + $0x90] sm:$0xff]
        %v1637 = vld [vmem:[#allocation7 + $0x98] sm:$0xff]
        %v1638 = vld [vmem:[#allocation7 + $0xa0] sm:$0xff]
        %v1639 = vld [vmem:[#allocation7 + $0xa8] sm:$0xff]
        %v1640 = vld [vmem:[#allocation7 + $0xb0] sm:$0xff]
        %v1641 = vld [vmem:[#allocation7 + $0xb8] sm:$0xff]
        %v1642 = vmul.f32 %v1630, %v1634
        %v1643 = vmul.f32 %v1618, %v1635
        %v1644 = vmul.f32 %v1631, %v1636
        %v1645 = vmul.f32 %v1619, %v1637
        %v1646 = vmul.f32 %v1632, %v1638
        %v1647 = vmul.f32 %v1620, %v1639
        %v1648 = vmul.f32 %v1633, %v1640
        %v1649 = vmul.f32 %v1621, %v1641
        %v1650 = vpack.c.bf16 %v1644, %v1642
        %v1651 = vpack.c.bf16 %v1645, %v1643
        %v1652 = vpack.c.bf16 %v1648, %v1646
        %v1653 = vpack.c.bf16 %v1649, %v1647
        %1654 = vrot.lane.b32.xlu0 %v1463, 1
        %v1655 = vpop.permute.xlu0 %1654
        %1656 = vrot.lane.b32.xlu0 %v1465, 1
        %v1657 = vpop.permute.xlu0 %1656
        %1658 = vrot.lane.b32.xlu0 %v1467, 1
        %v1659 = vpop.permute.xlu0 %1658
        %1660 = vrot.lane.b32.xlu0 %v1469, 1
        %v1661 = vpop.permute.xlu0 %1660
        %1666 = vrot.lane.b32.xlu0 %v1462, 1
        %v1667 = vpop.permute.xlu0 %1666
        %1668 = vrot.lane.b32.xlu0 %v1464, 1
        %v1669 = vpop.permute.xlu0 %1668
        %1670 = vrot.lane.b32.xlu0 %v1466, 1
        %v1671 = vpop.permute.xlu0 %1670
        %1672 = vrot.lane.b32.xlu0 %v1468, 1
        %v1673 = vpop.permute.xlu0 %1672
        %v1674 = vsel %vm502, %v1667, %v1655
        %v1675 = vsel %vm502, %v1669, %v1657
        %v1676 = vsel %vm502, %v1671, %v1659
        %v1677 = vsel %vm502, %v1673, %v1661
        %v1686 = vsel %vm502, %v1655, %v1667
        %v1687 = vsel %vm502, %v1657, %v1669
        %v1688 = vsel %vm502, %v1659, %v1671
        %v1689 = vsel %vm502, %v1661, %v1673
        %v1690 = vld [vmem:[#allocation7 + $0xc0] sm:$0xff]
        %v1691 = vld [vmem:[#allocation7 + $0xc8] sm:$0xff]
        %v1692 = vld [vmem:[#allocation7 + $0xd0] sm:$0xff]
        %v1693 = vld [vmem:[#allocation7 + $0xd8] sm:$0xff]
        %v1694 = vld [vmem:[#allocation7 + $0xe0] sm:$0xff]
        %v1695 = vld [vmem:[#allocation7 + $0xe8] sm:$0xff]
        %v1696 = vld [vmem:[#allocation7 + $0xf0] sm:$0xff]
        %v1697 = vld [vmem:[#allocation7 + $0xf8] sm:$0xff]
        %v1698 = vmul.f32 %v1686, %v1690
        %v1699 = vmul.f32 %v1674, %v1691
        %v1700 = vmul.f32 %v1687, %v1692
        %v1701 = vmul.f32 %v1675, %v1693
        %v1702 = vmul.f32 %v1688, %v1694
        %v1703 = vmul.f32 %v1676, %v1695
        %v1704 = vmul.f32 %v1689, %v1696
        %v1705 = vmul.f32 %v1677, %v1697
        %v1706 = vpack.c.bf16 %v1700, %v1698
        %v1707 = vpack.c.bf16 %v1701, %v1699
        %v1708 = vpack.c.bf16 %v1704, %v1702
        %v1709 = vpack.c.bf16 %v1705, %v1703
        %v1710 = vld [vmem:[#allocation7 + $0x100] sm:$0xff]
        %v1711 = vld [vmem:[#allocation7 + $0x108] sm:$0xff]
        %v1712 = vld [vmem:[#allocation7 + $0x110] sm:$0xff]
        %v1713 = vld [vmem:[#allocation7 + $0x118] sm:$0xff]
        %v1714 = vld [vmem:[#allocation7 + $0x120] sm:$0xff]
        %v1715 = vld [vmem:[#allocation7 + $0x128] sm:$0xff]
        %v1716 = vld [vmem:[#allocation7 + $0x130] sm:$0xff]
        %v1717 = vld [vmem:[#allocation7 + $0x138] sm:$0xff]
        %v1718 = vmul.f32 %v1462, %v1710
        %v1719 = vmul.f32 %v1463, %v1711
        %v1720 = vmul.f32 %v1464, %v1712
        %v1721 = vmul.f32 %v1465, %v1713
        %v1722 = vmul.f32 %v1466, %v1714
        %v1723 = vmul.f32 %v1467, %v1715
        %v1724 = vmul.f32 %v1468, %v1716
        %v1725 = vmul.f32 %v1469, %v1717
        %v1726 = vpack.c.bf16 %v1720, %v1718
        %v1727 = vpack.c.bf16 %v1721, %v1719
        %v1728 = vpack.c.bf16 %v1724, %v1722
        %v1729 = vpack.c.bf16 %v1725, %v1723
        %1730 = vrot.lane.b32.xlu0 %v1462, 127
        %v1731 = vpop.permute.xlu0 %1730
        %1732 = vrot.lane.b32.xlu0 %v1463, 127
        %v1733 = vpop.permute.xlu0 %1732
        %1734 = vrot.lane.b32.xlu0 %v1464, 127
        %v1735 = vpop.permute.xlu0 %1734
        %1736 = vrot.lane.b32.xlu0 %v1465, 127
        %v1737 = vpop.permute.xlu0 %1736
        %1738 = vrot.lane.b32.xlu0 %v1466, 127
        %v1739 = vpop.permute.xlu0 %1738
        %1740 = vrot.lane.b32.xlu0 %v1467, 127
        %v1741 = vpop.permute.xlu0 %1740
        %1742 = vrot.lane.b32.xlu0 %v1468, 127
        %v1743 = vpop.permute.xlu0 %1742
        %1744 = vrot.lane.b32.xlu0 %v1469, 127
        %v1745 = vpop.permute.xlu0 %1744
        %v1746 = vsel %vm575, %v1731, %v1733
        %v1747 = vsel %vm575, %v1735, %v1737
        %v1748 = vsel %vm575, %v1739, %v1741
        %v1749 = vsel %vm575, %v1743, %v1745
        %v1762 = vsel %vm575, %v1733, %v1731
        %v1763 = vsel %vm575, %v1737, %v1735
        %v1764 = vsel %vm575, %v1741, %v1739
        %v1765 = vsel %vm575, %v1745, %v1743
        %v1766 = vld [vmem:[#allocation7 + $0x140] sm:$0xff]
        %v1767 = vld [vmem:[#allocation7 + $0x148] sm:$0xff]
        %v1768 = vld [vmem:[#allocation7 + $0x150] sm:$0xff]
        %v1769 = vld [vmem:[#allocation7 + $0x158] sm:$0xff]
        %v1770 = vld [vmem:[#allocation7 + $0x160] sm:$0xff]
        %v1771 = vld [vmem:[#allocation7 + $0x168] sm:$0xff]
        %v1772 = vld [vmem:[#allocation7 + $0x170] sm:$0xff]
        %v1773 = vld [vmem:[#allocation7 + $0x178] sm:$0xff]
        %v1774 = vmul.f32 %v1746, %v1766
        %v1775 = vmul.f32 %v1762, %v1767
        %v1776 = vmul.f32 %v1747, %v1768
        %v1777 = vmul.f32 %v1763, %v1769
        %v1778 = vmul.f32 %v1748, %v1770
        %v1779 = vmul.f32 %v1764, %v1771
        %v1780 = vmul.f32 %v1749, %v1772
        %v1781 = vmul.f32 %v1765, %v1773
        %v1782 = vpack.c.bf16 %v1776, %v1774
        %v1783 = vpack.c.bf16 %v1777, %v1775
        %v1784 = vpack.c.bf16 %v1780, %v1778
        %v1785 = vpack.c.bf16 %v1781, %v1779
        %1786 = vrot.lane.b32.xlu0 %v1462, 113
        %v1787 = vpop.permute.xlu0 %1786
        %1788 = vrot.lane.b32.xlu0 %v1463, 113
        %v1789 = vpop.permute.xlu0 %1788
        %1790 = vrot.lane.b32.xlu0 %v1464, 113
        %v1791 = vpop.permute.xlu0 %1790
        %1792 = vrot.lane.b32.xlu0 %v1465, 113
        %v1793 = vpop.permute.xlu0 %1792
        %1794 = vrot.lane.b32.xlu0 %v1466, 113
        %v1795 = vpop.permute.xlu0 %1794
        %1796 = vrot.lane.b32.xlu0 %v1467, 113
        %v1797 = vpop.permute.xlu0 %1796
        %1798 = vrot.lane.b32.xlu0 %v1468, 113
        %v1799 = vpop.permute.xlu0 %1798
        %1800 = vrot.lane.b32.xlu0 %v1469, 113
        %v1801 = vpop.permute.xlu0 %1800
        %v1802 = vsel %vm632, %v1787, %v1789
        %v1803 = vsel %vm632, %v1791, %v1793
        %v1804 = vsel %vm632, %v1795, %v1797
        %v1805 = vsel %vm632, %v1799, %v1801
        %v1818 = vsel %vm632, %v1789, %v1787
        %v1819 = vsel %vm632, %v1793, %v1791
        %v1820 = vsel %vm632, %v1797, %v1795
        %v1821 = vsel %vm632, %v1801, %v1799
        %v1822 = vld [vmem:[#allocation7 + $0x180] sm:$0xff]
        %v1823 = vld [vmem:[#allocation7 + $0x188] sm:$0xff]
        %v1824 = vld [vmem:[#allocation7 + $0x190] sm:$0xff]
        %v1825 = vld [vmem:[#allocation7 + $0x198] sm:$0xff]
        %v1826 = vld [vmem:[#allocation7 + $0x1a0] sm:$0xff]
        %v1827 = vld [vmem:[#allocation7 + $0x1a8] sm:$0xff]
        %v1828 = vld [vmem:[#allocation7 + $0x1b0] sm:$0xff]
        %v1829 = vld [vmem:[#allocation7 + $0x1b8] sm:$0xff]
        %v1830 = vmul.f32 %v1802, %v1822
        %v1831 = vmul.f32 %v1818, %v1823
        %v1832 = vmul.f32 %v1803, %v1824
        %v1833 = vmul.f32 %v1819, %v1825
        %v1834 = vmul.f32 %v1804, %v1826
        %v1835 = vmul.f32 %v1820, %v1827
        %v1836 = vmul.f32 %v1805, %v1828
        %v1837 = vmul.f32 %v1821, %v1829
        %v1838 = vpack.c.bf16 %v1832, %v1830
        %v1839 = vpack.c.bf16 %v1833, %v1831
        %v1840 = vpack.c.bf16 %v1836, %v1834
        %v1841 = vpack.c.bf16 %v1837, %v1835
        %1842 = vrot.lane.b32.xlu0 %v1462, 112
        %v1843 = vpop.permute.xlu0 %1842
        %1844 = vrot.lane.b32.xlu0 %v1463, 112
        %v1845 = vpop.permute.xlu0 %1844
        %1846 = vrot.lane.b32.xlu0 %v1464, 112
        %v1847 = vpop.permute.xlu0 %1846
        %1848 = vrot.lane.b32.xlu0 %v1465, 112
        %v1849 = vpop.permute.xlu0 %1848
        %1850 = vrot.lane.b32.xlu0 %v1466, 112
        %v1851 = vpop.permute.xlu0 %1850
        %1852 = vrot.lane.b32.xlu0 %v1467, 112
        %v1853 = vpop.permute.xlu0 %1852
        %1854 = vrot.lane.b32.xlu0 %v1468, 112
        %v1855 = vpop.permute.xlu0 %1854
        %1856 = vrot.lane.b32.xlu0 %v1469, 112
        %v1857 = vpop.permute.xlu0 %1856
        %v1858 = vsel %vm689, %v1843, %v1845
        %v1859 = vsel %vm689, %v1847, %v1849
        %v1860 = vsel %vm689, %v1851, %v1853
        %v1861 = vsel %vm689, %v1855, %v1857
        %v1874 = vsel %vm689, %v1845, %v1843
        %v1875 = vsel %vm689, %v1849, %v1847
        %v1876 = vsel %vm689, %v1853, %v1851
        %v1877 = vsel %vm689, %v1857, %v1855
        %v1878 = vld [vmem:[#allocation7 + $0x1c0] sm:$0xff]
        %v1879 = vld [vmem:[#allocation7 + $0x1c8] sm:$0xff]
        %v1880 = vld [vmem:[#allocation7 + $0x1d0] sm:$0xff]
        %v1881 = vld [vmem:[#allocation7 + $0x1d8] sm:$0xff]
        %v1882 = vld [vmem:[#allocation7 + $0x1e0] sm:$0xff]
        %v1883 = vld [vmem:[#allocation7 + $0x1e8] sm:$0xff]
        %v1884 = vld [vmem:[#allocation7 + $0x1f0] sm:$0xff]
        %v1885 = vld [vmem:[#allocation7 + $0x1f8] sm:$0xff]
        %v1886 = vmul.f32 %v1858, %v1878
        %v1887 = vmul.f32 %v1874, %v1879
        %v1888 = vmul.f32 %v1859, %v1880
        %v1889 = vmul.f32 %v1875, %v1881
        %v1890 = vmul.f32 %v1860, %v1882
        %v1891 = vmul.f32 %v1876, %v1883
        %v1892 = vmul.f32 %v1861, %v1884
        %v1893 = vmul.f32 %v1877, %v1885
        %v1894 = vpack.c.bf16 %v1888, %v1886
        %v1895 = vpack.c.bf16 %v1889, %v1887
        %v1896 = vpack.c.bf16 %v1892, %v1890
        %v1897 = vpack.c.bf16 %v1893, %v1891
        %1898 = vrot.lane.b32.xlu0 %v1462, 111
        %v1899 = vpop.permute.xlu0 %1898
        %1900 = vrot.lane.b32.xlu0 %v1463, 111
        %v1901 = vpop.permute.xlu0 %1900
        %1902 = vrot.lane.b32.xlu0 %v1464, 111
        %v1903 = vpop.permute.xlu0 %1902
        %1904 = vrot.lane.b32.xlu0 %v1465, 111
        %v1905 = vpop.permute.xlu0 %1904
        %1906 = vrot.lane.b32.xlu0 %v1466, 111
        %v1907 = vpop.permute.xlu0 %1906
        %1908 = vrot.lane.b32.xlu0 %v1467, 111
        %v1909 = vpop.permute.xlu0 %1908
        %1910 = vrot.lane.b32.xlu0 %v1468, 111
        %v1911 = vpop.permute.xlu0 %1910
        %1912 = vrot.lane.b32.xlu0 %v1469, 111
        %v1913 = vpop.permute.xlu0 %1912
        %v1914 = vsel %vm746, %v1899, %v1901
        %v1915 = vsel %vm746, %v1903, %v1905
        %v1916 = vsel %vm746, %v1907, %v1909
        %v1917 = vsel %vm746, %v1911, %v1913
        %v1930 = vsel %vm746, %v1901, %v1899
        %v1931 = vsel %vm746, %v1905, %v1903
        %v1932 = vsel %vm746, %v1909, %v1907
        %v1933 = vsel %vm746, %v1913, %v1911
        %v1934 = vld [vmem:[#allocation7 + $0x200] sm:$0xff]
        %v1935 = vld [vmem:[#allocation7 + $0x208] sm:$0xff]
        %v1936 = vld [vmem:[#allocation7 + $0x210] sm:$0xff]
        %v1937 = vld [vmem:[#allocation7 + $0x218] sm:$0xff]
        %v1938 = vld [vmem:[#allocation7 + $0x220] sm:$0xff]
        %v1939 = vld [vmem:[#allocation7 + $0x228] sm:$0xff]
        %v1940 = vld [vmem:[#allocation7 + $0x230] sm:$0xff]
        %v1941 = vld [vmem:[#allocation7 + $0x238] sm:$0xff]
        %v1942 = vmul.f32 %v1914, %v1934
        %v1943 = vmul.f32 %v1930, %v1935
        %v1944 = vmul.f32 %v1915, %v1936
        %v1945 = vmul.f32 %v1931, %v1937
        %v1946 = vmul.f32 %v1916, %v1938
        %v1947 = vmul.f32 %v1932, %v1939
        %v1948 = vmul.f32 %v1917, %v1940
        %v1949 = vmul.f32 %v1933, %v1941
        %v1950 = vpack.c.bf16 %v1944, %v1942
        %v1951 = vpack.c.bf16 %v1945, %v1943
        %v1952 = vpack.c.bf16 %v1948, %v1946
        %v1953 = vpack.c.bf16 %v1949, %v1947
        %s1954 = scalar_lea.vmem %s231, 256 [#allocation4]
        %v1955 = vld [vmem:[%s1954] sm:$0xff]
        %v1956 = vld [vmem:[%s1954 + $0x8] sm:$0xff]
        %v1957 = vld [vmem:[%s1954 + $0x10] sm:$0xff]
        %v1958 = vld [vmem:[%s1954 + $0x18] sm:$0xff]
        %v1959 = vld [vmem:[%s1954 + $0x20] sm:$0xff]
        %v1960 = vld [vmem:[%s1954 + $0x28] sm:$0xff]
        %v1961 = vld [vmem:[%s1954 + $0x30] sm:$0xff]
        %v1962 = vld [vmem:[%s1954 + $0x38] sm:$0xff]
        %v1963 = vld [vmem:[%s1954 + $0x40] sm:$0xff]
        %v1964 = vld [vmem:[%s1954 + $0x48] sm:$0xff]
        %v1965 = vld [vmem:[%s1954 + $0x50] sm:$0xff]
        %v1966 = vld [vmem:[%s1954 + $0x58] sm:$0xff]
        %v1967 = vld [vmem:[%s1954 + $0x60] sm:$0xff]
        %v1968 = vld [vmem:[%s1954 + $0x68] sm:$0xff]
        %v1969 = vld [vmem:[%s1954 + $0x70] sm:$0xff]
        %v1970 = vld [vmem:[%s1954 + $0x78] sm:$0xff]
        %v1971 = vld [vmem:[%s1954 + $0x80] sm:$0xff]
        %v1972 = vld [vmem:[%s1954 + $0x88] sm:$0xff]
        %v1973 = vld [vmem:[%s1954 + $0x90] sm:$0xff]
        %v1974 = vld [vmem:[%s1954 + $0x98] sm:$0xff]
        %v1975 = vld [vmem:[%s1954 + $0xa0] sm:$0xff]
        %v1976 = vld [vmem:[%s1954 + $0xa8] sm:$0xff]
        %v1977 = vld [vmem:[%s1954 + $0xb0] sm:$0xff]
        %v1978 = vld [vmem:[%s1954 + $0xb8] sm:$0xff]
        %v1979 = vld [vmem:[%s1954 + $0xc0] sm:$0xff]
        %v1980 = vld [vmem:[%s1954 + $0xc8] sm:$0xff]
        %v1981 = vld [vmem:[%s1954 + $0xd0] sm:$0xff]
        %v1982 = vld [vmem:[%s1954 + $0xd8] sm:$0xff]
        %v1983 = vld [vmem:[%s1954 + $0xe0] sm:$0xff]
        %v1984 = vld [vmem:[%s1954 + $0xe8] sm:$0xff]
        %v1985 = vld [vmem:[%s1954 + $0xf0] sm:$0xff]
        %v1986 = vld [vmem:[%s1954 + $0xf8] sm:$0xff]
        %v1987 = vld [vmem:[%s1] sm:$0xff]
        %v1988 = vld [vmem:[%s1 + $0x8] sm:$0xf]
        %v1989 = vld [vmem:[%s1 + $0xc] sm:$0xff]
        %v1990 = vld [vmem:[%s1 + $0x14] sm:$0xf]
        %v1991 = vld [vmem:[%s1 + $0x18] sm:$0xff]
        %v1992 = vld [vmem:[%s1 + $0x20] sm:$0xf]
        %v1993 = vld [vmem:[%s1 + $0x24] sm:$0xff]
        %v1994 = vld [vmem:[%s1 + $0x2c] sm:$0xf]
        %v1995 = vld [vmem:[%s1 + $0x30] sm:$0xff]
        %v1996 = vld [vmem:[%s1 + $0x38] sm:$0xf]
        %v1997 = vld [vmem:[%s1 + $0x3c] sm:$0xff]
        %v1998 = vld [vmem:[%s1 + $0x44] sm:$0xf]
        %v1999 = vld [vmem:[%s1 + $0x48] sm:$0xff]
        %v2000 = vld [vmem:[%s1 + $0x50] sm:$0xf]
        %v2001 = vld [vmem:[%s1 + $0x54] sm:$0xff]
        %v2002 = vld [vmem:[%s1 + $0x5c] sm:$0xf]
        %v2003 = vld [vmem:[%s1 + $0x60] sm:$0xff]
        %v2004 = vld [vmem:[%s1 + $0x68] sm:$0xf]
        %v2005 = vld [vmem:[%s1 + $0x6c] sm:$0xff]
        %v2006 = vld [vmem:[%s1 + $0x74] sm:$0xf]
        %v2007 = vld [vmem:[%s1 + $0x78] sm:$0xff]
        %v2008 = vld [vmem:[%s1 + $0x80] sm:$0xf]
        %v2009 = vld [vmem:[%s1 + $0x84] sm:$0xff]
        %v2010 = vld [vmem:[%s1 + $0x8c] sm:$0xf]
        %v2011 = vld [vmem:[%s1 + $0x90] sm:$0xff]
        %v2012 = vld [vmem:[%s1 + $0x98] sm:$0xf]
        %v2013 = vld [vmem:[%s1 + $0x9c] sm:$0xff]
        %v2014 = vld [vmem:[%s1 + $0xa4] sm:$0xf]
        %v2015 = vld [vmem:[%s1 + $0xa8] sm:$0xff]
        %v2016 = vld [vmem:[%s1 + $0xb0] sm:$0xf]
        %v2017 = vld [vmem:[%s1 + $0xb4] sm:$0xff]
        %v2018 = vld [vmem:[%s1 + $0xbc] sm:$0xf]
        %v2051 = vunpack.c.l.b16 %v1987
        %v2052 = vunpack.c.h.b16 %v1987
        %v2053 = vunpack.c.l.b16 %v1988
        %v2054 = vunpack.c.l.b16 %v1989
        %v2055 = vunpack.c.h.b16 %v1989
        %v2056 = vunpack.c.l.b16 %v1990
        %v2057 = vunpack.c.l.b16 %v1991
        %v2058 = vunpack.c.h.b16 %v1991
        %v2059 = vunpack.c.l.b16 %v1992
        %v2060 = vunpack.c.l.b16 %v1993
        %v2061 = vunpack.c.h.b16 %v1993
        %v2062 = vunpack.c.l.b16 %v1994
        %v2063 = vunpack.c.l.b16 %v1995
        %v2064 = vunpack.c.h.b16 %v1995
        %v2065 = vunpack.c.l.b16 %v1996
        %v2066 = vunpack.c.l.b16 %v1997
        %v2067 = vunpack.c.h.b16 %v1997
        %v2068 = vunpack.c.l.b16 %v1998
        %v2069 = vunpack.c.l.b16 %v1999
        %v2070 = vunpack.c.h.b16 %v1999
        %v2071 = vunpack.c.l.b16 %v2000
        %v2072 = vunpack.c.l.b16 %v2001
        %v2073 = vunpack.c.h.b16 %v2001
        %v2074 = vunpack.c.l.b16 %v2002
        %v2075 = vunpack.c.l.b16 %v2003
        %v2076 = vunpack.c.h.b16 %v2003
        %v2077 = vunpack.c.l.b16 %v2004
        %v2078 = vunpack.c.l.b16 %v2005
        %v2079 = vunpack.c.h.b16 %v2005
        %v2080 = vunpack.c.l.b16 %v2006
        %v2081 = vunpack.c.l.b16 %v2007
        %v2082 = vunpack.c.h.b16 %v2007
        %v2083 = vunpack.c.l.b16 %v2008
        %v2084 = vunpack.c.l.b16 %v2009
        %v2085 = vunpack.c.h.b16 %v2009
        %v2086 = vunpack.c.l.b16 %v2010
        %v2087 = vunpack.c.l.b16 %v2011
        %v2088 = vunpack.c.h.b16 %v2011
        %v2089 = vunpack.c.l.b16 %v2012
        %v2090 = vunpack.c.l.b16 %v2013
        %v2091 = vunpack.c.h.b16 %v2013
        %v2092 = vunpack.c.l.b16 %v2014
        %v2093 = vunpack.c.l.b16 %v2015
        %v2094 = vunpack.c.h.b16 %v2015
        %v2095 = vunpack.c.l.b16 %v2016
        %v2096 = vunpack.c.l.b16 %v2017
        %v2097 = vunpack.c.h.b16 %v2017
        %v2098 = vunpack.c.l.b16 %v2018
        %v2099 = vpack.c.b16 %v2054, %v2051
        %v2100 = vpack.c.b16 %v2055, %v2052
        %v2101 = vpack.c.b16 %v2056, %v2053
        %v2102 = vpack.c.b16 %v2060, %v2057
        %v2103 = vpack.c.b16 %v2061, %v2058
        %v2104 = vpack.c.b16 %v2062, %v2059
        %v2105 = vpack.c.b16 %v2066, %v2063
        %v2106 = vpack.c.b16 %v2067, %v2064
        %v2107 = vpack.c.b16 %v2068, %v2065
        %v2108 = vpack.c.b16 %v2072, %v2069
        %v2109 = vpack.c.b16 %v2073, %v2070
        %v2110 = vpack.c.b16 %v2074, %v2071
        %v2111 = vpack.c.b16 %v2078, %v2075
        %v2112 = vpack.c.b16 %v2079, %v2076
        %v2113 = vpack.c.b16 %v2080, %v2077
        %v2114 = vpack.c.b16 %v2084, %v2081
        %v2115 = vpack.c.b16 %v2085, %v2082
        %v2116 = vpack.c.b16 %v2086, %v2083
        %v2117 = vpack.c.b16 %v2090, %v2087
        %v2118 = vpack.c.b16 %v2091, %v2088
        %v2119 = vpack.c.b16 %v2092, %v2089
        %v2120 = vpack.c.b16 %v2096, %v2093
        %v2121 = vpack.c.b16 %v2097, %v2094
        %v2122 = vpack.c.b16 %v2098, %v2095
        %v2140 = vsel %vm971, %v2101, 0
        %v2143 = vsel %vm971, %v2104, 0
        %v2146 = vsel %vm971, %v2107, 0
        %v2149 = vsel %vm971, %v2110, 0
        %v2152 = vsel %vm971, %v2113, 0
        %v2155 = vsel %vm971, %v2116, 0
        %v2158 = vsel %vm971, %v2119, 0
        %v2161 = vsel %vm971, %v2122, 0
        %2163 = vmatprep.subr.bf16.mxu0 %v1539
        %2164 = vmatpush1.bf16.msra.mxu0 %v1538
        %2165 = vmatprep.subr.bf16.mxu0 %v1541
        %2166 = vmatpush1.bf16.msra.mxu0 %v1540
        %2167 = vmatprep.subr.bf16.mxu0 %v1595
        %2168 = vmatpush1.bf16.msra.mxu0 %v1594
        %2169 = vmatprep.subr.bf16.mxu0 %v1597
        %2170 = vmatpush1.bf16.msra.mxu0 %v1596
        %2171 = vmatprep.subr.bf16.mxu0 %v1651
        %2172 = vmatpush1.bf16.msra.mxu0 %v1650
        %2173 = vmatprep.subr.bf16.mxu0 %v1653
        %2174 = vmatpush1.bf16.msra.mxu0 %v1652
        %2175 = vmatprep.subr.bf16.mxu0 %v1707
        %2176 = vmatpush1.bf16.msra.mxu0 %v1706
        %2177 = vmatprep.subr.bf16.mxu0 %v1709
        %2178 = vmatpush1.bf16.msra.mxu0 %v1708
        %2179 = vmatprep.subr.bf16.mxu0 %v1727
        %2180 = vmatpush1.bf16.msra.mxu0 %v1726
        %2181 = vmatprep.subr.bf16.mxu0 %v1729
        %2182 = vmatpush1.bf16.msra.mxu0 %v1728
        %2183 = vmatprep.subr.bf16.mxu0 %v1783
        %2184 = vmatpush1.bf16.msra.mxu0 %v1782
        %2185 = vmatprep.subr.bf16.mxu0 %v1785
        %2186 = vmatpush1.bf16.msra.mxu0 %v1784
        %2187 = vmatprep.subr.bf16.mxu0 %v1839
        %2188 = vmatpush1.bf16.msra.mxu0 %v1838
        %2189 = vmatprep.subr.bf16.mxu0 %v1841
        %2190 = vmatpush1.bf16.msra.mxu0 %v1840
        %2191 = vmatprep.subr.bf16.mxu0 %v1895
        %2192 = vmatpush1.bf16.msra.mxu0 %v1894
        %2193 = vmatprep.subr.bf16.mxu0 %v1897
        %2194 = vmatpush1.bf16.msra.mxu0 %v1896
        %2195 = vmatprep.mubr.bf16.mxu0 %v2100
        %2196 = vmatmul.mubr.bf16.gmra.mrb[0].mxu0 %v2099
        %v2197 = vpop.f32.mrb[0].mxu0
        %v2198 = vadd.f32 0.0, %v2197
        %v2199 = vpop.f32.mrb[0].mxu0
        %v2200 = vadd.f32 0.0, %v2199
        %v2201 = vpop.f32.mrb[0].mxu0
        %v2202 = vadd.f32 0.0, %v2201
        %v2203 = vpop.f32.mrb[0].mxu0
        %v2204 = vadd.f32 0.0, %v2203
        %2205 = vmatprep.mubr.bf16.mxu0 %v2103
        %2206 = vmatmul.mubr.bf16.gmra.mrb[0].mxu0 %v2102
        %v2207 = vpop.f32.mrb[0].mxu0
        %v2208 = vadd.f32 0.0, %v2207
        %v2209 = vpop.f32.mrb[0].mxu0
        %v2210 = vadd.f32 0.0, %v2209
        %v2211 = vpop.f32.mrb[0].mxu0
        %v2212 = vadd.f32 0.0, %v2211
        %v2213 = vpop.f32.mrb[0].mxu0
        %v2214 = vadd.f32 0.0, %v2213
        %2215 = vmatprep.mubr.bf16.mxu0 %v2106
        %2216 = vmatmul.mubr.bf16.gmra.mrb[0].mxu0 %v2105
        %v2217 = vpop.f32.mrb[0].mxu0
        %v2218 = vadd.f32 0.0, %v2217
        %v2219 = vpop.f32.mrb[0].mxu0
        %v2220 = vadd.f32 0.0, %v2219
        %v2221 = vpop.f32.mrb[0].mxu0
        %v2222 = vadd.f32 0.0, %v2221
        %v2223 = vpop.f32.mrb[0].mxu0
        %v2224 = vadd.f32 0.0, %v2223
        %2225 = vmatprep.mubr.bf16.mxu0 %v2109
        %2226 = vmatmul.mubr.bf16.gmra.mrb[0].mxu0 %v2108
        %v2227 = vpop.f32.mrb[0].mxu0
        %v2228 = vadd.f32 0.0, %v2227
        %v2229 = vpop.f32.mrb[0].mxu0
        %v2230 = vadd.f32 0.0, %v2229
        %v2231 = vpop.f32.mrb[0].mxu0
        %v2232 = vadd.f32 0.0, %v2231
        %v2233 = vpop.f32.mrb[0].mxu0
        %v2234 = vadd.f32 0.0, %v2233
        %2235 = vmatprep.mubr.bf16.mxu0 %v2112
        %2236 = vmatmul.mubr.bf16.gmra.mrb[0].mxu0 %v2111
        %v2237 = vpop.f32.mrb[0].mxu0
        %v2238 = vadd.f32 0.0, %v2237
        %v2239 = vpop.f32.mrb[0].mxu0
        %v2240 = vadd.f32 0.0, %v2239
        %v2241 = vpop.f32.mrb[0].mxu0
        %v2242 = vadd.f32 0.0, %v2241
        %v2243 = vpop.f32.mrb[0].mxu0
        %v2244 = vadd.f32 0.0, %v2243
        %2245 = vmatprep.mubr.bf16.mxu0 %v2115
        %2246 = vmatmul.mubr.bf16.gmra.mrb[0].mxu0 %v2114
        %v2247 = vpop.f32.mrb[0].mxu0
        %v2248 = vadd.f32 0.0, %v2247
        %v2249 = vpop.f32.mrb[0].mxu0
        %v2250 = vadd.f32 0.0, %v2249
        %v2251 = vpop.f32.mrb[0].mxu0
        %v2252 = vadd.f32 0.0, %v2251
        %v2253 = vpop.f32.mrb[0].mxu0
        %v2254 = vadd.f32 0.0, %v2253
        %2255 = vmatprep.mubr.bf16.mxu0 %v2118
        %2256 = vmatmul.mubr.bf16.gmra.mrb[0].mxu0 %v2117
        %v2257 = vpop.f32.mrb[0].mxu0
        %v2258 = vadd.f32 0.0, %v2257
        %v2259 = vpop.f32.mrb[0].mxu0
        %v2260 = vadd.f32 0.0, %v2259
        %v2261 = vpop.f32.mrb[0].mxu0
        %v2262 = vadd.f32 0.0, %v2261
        %v2263 = vpop.f32.mrb[0].mxu0
        %v2264 = vadd.f32 0.0, %v2263
        %2265 = vmatprep.mubr.bf16.mxu0 %v2121
        %2266 = vmatmul.mubr.bf16.gmra.mrb[0].mxu0 %v2120
        %v2267 = vpop.f32.mrb[0].mxu0
        %v2268 = vadd.f32 0.0, %v2267
        %v2269 = vpop.f32.mrb[0].mxu0
        %v2270 = vadd.f32 0.0, %v2269
        %v2271 = vpop.f32.mrb[0].mxu0
        %v2272 = vadd.f32 0.0, %v2271
        %v2273 = vpop.f32.mrb[0].mxu0
        %v2274 = vadd.f32 0.0, %v2273
        %2275 = vdwg.mxu0
        %2276 = vmatprep.subr.bf16.mxu0 %v1951
        %2277 = vmatpush1.bf16.msra.mxu0 %v1950
        %2278 = vmatprep.subr.bf16.mxu0 %v1953
        %2279 = vmatpush1.bf16.msra.mxu0 %v1952
        %2280 = vmatprep.subr.bf16.mxu0 0
        %2281 = vmatpush1.bf16.msra.mxu0 0
        %2282 = vmatprep.subr.bf16.mxu0 0
        %2283 = vmatpush1.bf16.msra.mxu0 0
        %2284 = vmatprep.subr.bf16.mxu0 0
        %2285 = vmatpush1.bf16.msra.mxu0 0
        %2286 = vmatprep.subr.bf16.mxu0 0
        %2287 = vmatpush1.bf16.msra.mxu0 0
        %2288 = vmatprep.subr.bf16.mxu0 0
        %2289 = vmatpush1.bf16.msra.mxu0 0
        %2290 = vmatprep.subr.bf16.mxu0 0
        %2291 = vmatpush1.bf16.msra.mxu0 0
        %2292 = vmatprep.subr.bf16.mxu0 0
        %2293 = vmatpush1.bf16.msra.mxu0 0
        %2294 = vmatprep.subr.bf16.mxu0 0
        %2295 = vmatpush1.bf16.msra.mxu0 0
        %2296 = vmatprep.subr.bf16.mxu0 0
        %2297 = vmatpush1.bf16.msra.mxu0 0
        %2298 = vmatprep.subr.bf16.mxu0 0
        %2299 = vmatpush1.bf16.msra.mxu0 0
        %2300 = vmatprep.subr.bf16.mxu0 0
        %2301 = vmatpush1.bf16.msra.mxu0 0
        %2302 = vmatprep.subr.bf16.mxu0 0
        %2303 = vmatpush1.bf16.msra.mxu0 0
        %2304 = vmatprep.subr.bf16.mxu0 0
        %2305 = vmatpush1.bf16.msra.mxu0 0
        %2306 = vmatprep.subr.bf16.mxu0 0
        %2307 = vmatpush1.bf16.msra.mxu0 0
        %2308 = vmatprep.mubr.bf16.mxu0 0
        %2309 = vmatmul.mubr.bf16.gmra.mrb[0].mxu0 %v2140
        %v2310 = vpop.f32.mrb[0].mxu0
        %v2311 = vadd.f32 %v2198, %v2310
        %v2312 = vpop.f32.mrb[0].mxu0
        %v2313 = vadd.f32 %v2200, %v2312
        %v2314 = vpop.f32.mrb[0].mxu0
        %v2315 = vadd.f32 %v2202, %v2314
        %v2316 = vpop.f32.mrb[0].mxu0
        %v2317 = vadd.f32 %v2204, %v2316
        %2318 = vmatprep.mubr.bf16.mxu0 0
        %2319 = vmatmul.mubr.bf16.gmra.mrb[0].mxu0 %v2143
        %v2320 = vpop.f32.mrb[0].mxu0
        %v2321 = vadd.f32 %v2208, %v2320
        %v2322 = vpop.f32.mrb[0].mxu0
        %v2323 = vadd.f32 %v2210, %v2322
        %v2324 = vpop.f32.mrb[0].mxu0
        %v2325 = vadd.f32 %v2212, %v2324
        %v2326 = vpop.f32.mrb[0].mxu0
        %v2327 = vadd.f32 %v2214, %v2326
        %2328 = vmatprep.mubr.bf16.mxu0 0
        %2329 = vmatmul.mubr.bf16.gmra.mrb[0].mxu0 %v2146
        %v2330 = vpop.f32.mrb[0].mxu0
        %v2331 = vadd.f32 %v2218, %v2330
        %v2332 = vpop.f32.mrb[0].mxu0
        %v2333 = vadd.f32 %v2220, %v2332
        %v2334 = vpop.f32.mrb[0].mxu0
        %v2335 = vadd.f32 %v2222, %v2334
        %v2336 = vpop.f32.mrb[0].mxu0
        %v2337 = vadd.f32 %v2224, %v2336
        %2338 = vmatprep.mubr.bf16.mxu0 0
        %2339 = vmatmul.mubr.bf16.gmra.mrb[0].mxu0 %v2149
        %v2340 = vpop.f32.mrb[0].mxu0
        %v2341 = vadd.f32 %v2228, %v2340
        %v2342 = vpop.f32.mrb[0].mxu0
        %v2343 = vadd.f32 %v2230, %v2342
        %v2344 = vpop.f32.mrb[0].mxu0
        %v2345 = vadd.f32 %v2232, %v2344
        %v2346 = vpop.f32.mrb[0].mxu0
        %v2347 = vadd.f32 %v2234, %v2346
        %2348 = vmatprep.mubr.bf16.mxu0 0
        %2349 = vmatmul.mubr.bf16.gmra.mrb[0].mxu0 %v2152
        %v2350 = vpop.f32.mrb[0].mxu0
        %v2351 = vadd.f32 %v2238, %v2350
        %v2352 = vpop.f32.mrb[0].mxu0
        %v2353 = vadd.f32 %v2240, %v2352
        %v2354 = vpop.f32.mrb[0].mxu0
        %v2355 = vadd.f32 %v2242, %v2354
        %v2356 = vpop.f32.mrb[0].mxu0
        %v2357 = vadd.f32 %v2244, %v2356
        %2358 = vmatprep.mubr.bf16.mxu0 0
        %2359 = vmatmul.mubr.bf16.gmra.mrb[0].mxu0 %v2155
        %v2360 = vpop.f32.mrb[0].mxu0
        %v2361 = vadd.f32 %v2248, %v2360
        %v2362 = vpop.f32.mrb[0].mxu0
        %v2363 = vadd.f32 %v2250, %v2362
        %v2364 = vpop.f32.mrb[0].mxu0
        %v2365 = vadd.f32 %v2252, %v2364
        %v2366 = vpop.f32.mrb[0].mxu0
        %v2367 = vadd.f32 %v2254, %v2366
        %2368 = vmatprep.mubr.bf16.mxu0 0
        %2369 = vmatmul.mubr.bf16.gmra.mrb[0].mxu0 %v2158
        %v2370 = vpop.f32.mrb[0].mxu0
        %v2371 = vadd.f32 %v2258, %v2370
        %v2372 = vpop.f32.mrb[0].mxu0
        %v2373 = vadd.f32 %v2260, %v2372
        %v2374 = vpop.f32.mrb[0].mxu0
        %v2375 = vadd.f32 %v2262, %v2374
        %v2376 = vpop.f32.mrb[0].mxu0
        %v2377 = vadd.f32 %v2264, %v2376
        %2378 = vmatprep.mubr.bf16.mxu0 0
        %2379 = vmatmul.mubr.bf16.gmra.mrb[0].mxu0 %v2161
        %v2380 = vpop.f32.mrb[0].mxu0
        %v2381 = vadd.f32 %v2268, %v2380
        %v2382 = vpop.f32.mrb[0].mxu0
        %v2383 = vadd.f32 %v2270, %v2382
        %v2384 = vpop.f32.mrb[0].mxu0
        %v2385 = vadd.f32 %v2272, %v2384
        %v2386 = vpop.f32.mrb[0].mxu0
        %v2387 = vadd.f32 %v2274, %v2386
        %2388 = vdwg.mxu0
        %v2389 = vadd.f32 %v1955, %v2311
        %v2390 = vadd.f32 %v1956, %v2313
        %v2391 = vadd.f32 %v1957, %v2315
        %v2392 = vadd.f32 %v1958, %v2317
        %v2393 = vadd.f32 %v1959, %v2321
        %v2394 = vadd.f32 %v1960, %v2323
        %v2395 = vadd.f32 %v1961, %v2325
        %v2396 = vadd.f32 %v1962, %v2327
        %v2397 = vadd.f32 %v1963, %v2331
        %v2398 = vadd.f32 %v1964, %v2333
        %v2399 = vadd.f32 %v1965, %v2335
        %v2400 = vadd.f32 %v1966, %v2337
        %v2401 = vadd.f32 %v1967, %v2341
        %v2402 = vadd.f32 %v1968, %v2343
        %v2403 = vadd.f32 %v1969, %v2345
        %v2404 = vadd.f32 %v1970, %v2347
        %v2405 = vadd.f32 %v1971, %v2351
        %v2406 = vadd.f32 %v1972, %v2353
        %v2407 = vadd.f32 %v1973, %v2355
        %v2408 = vadd.f32 %v1974, %v2357
        %v2409 = vadd.f32 %v1975, %v2361
        %v2410 = vadd.f32 %v1976, %v2363
        %v2411 = vadd.f32 %v1977, %v2365
        %v2412 = vadd.f32 %v1978, %v2367
        %v2413 = vadd.f32 %v1979, %v2371
        %v2414 = vadd.f32 %v1980, %v2373
        %v2415 = vadd.f32 %v1981, %v2375
        %v2416 = vadd.f32 %v1982, %v2377
        %v2417 = vadd.f32 %v1983, %v2381
        %v2418 = vadd.f32 %v1984, %v2383
        %v2419 = vadd.f32 %v1985, %v2385
        %v2420 = vadd.f32 %v1986, %v2387
        %v2421 = vld [vmem:[#allocation9] sm:$0xff]
        %v2422 = vld [vmem:[#allocation9 + $0x8] sm:$0xff]
        %v2423 = vld [vmem:[#allocation9 + $0x10] sm:$0xff]
        %v2424 = vld [vmem:[#allocation9 + $0x18] sm:$0xff]
        %v2425 = vld [vmem:[#allocation9 + $0x20] sm:$0xff]
        %v2426 = vld [vmem:[#allocation9 + $0x28] sm:$0xff]
        %v2427 = vld [vmem:[#allocation9 + $0x30] sm:$0xff]
        %v2428 = vld [vmem:[#allocation9 + $0x38] sm:$0xff]
        %v2429 = vld [vmem:[#allocation9 + $0x40] sm:$0xff]
        %v2430 = vld [vmem:[#allocation9 + $0x48] sm:$0xff]
        %v2431 = vld [vmem:[#allocation9 + $0x50] sm:$0xff]
        %v2432 = vld [vmem:[#allocation9 + $0x58] sm:$0xff]
        %v2433 = vld [vmem:[#allocation9 + $0x60] sm:$0xff]
        %v2434 = vld [vmem:[#allocation9 + $0x68] sm:$0xff]
        %v2435 = vld [vmem:[#allocation9 + $0x70] sm:$0xff]
        %v2436 = vld [vmem:[#allocation9 + $0x78] sm:$0xff]
        %v2437 = vld [vmem:[#allocation9 + $0x80] sm:$0xff]
        %v2438 = vld [vmem:[#allocation9 + $0x88] sm:$0xff]
        %v2439 = vld [vmem:[#allocation9 + $0x90] sm:$0xff]
        %v2440 = vld [vmem:[#allocation9 + $0x98] sm:$0xff]
        %v2441 = vld [vmem:[#allocation9 + $0xa0] sm:$0xff]
        %v2442 = vld [vmem:[#allocation9 + $0xa8] sm:$0xff]
        %v2443 = vld [vmem:[#allocation9 + $0xb0] sm:$0xff]
        %v2444 = vld [vmem:[#allocation9 + $0xb8] sm:$0xff]
        %v2445 = vmul.f32 %v2421, %v1398
        %v2446 = vmul.f32 %v2422, %v1399
        %v2447 = vmul.f32 %v2423, %v1400
        %v2448 = vmul.f32 %v2424, %v1401
        %v2449 = vmul.f32 %v2425, %v1402
        %v2450 = vmul.f32 %v2426, %v1403
        %v2451 = vmul.f32 %v2427, %v1404
        %v2452 = vmul.f32 %v2428, %v1405
        %v2453 = vadd.f32 %v2389, %v2445
        %v2454 = vadd.f32 %v2390, %v2446
        %v2455 = vadd.f32 %v2391, %v2447
        %v2456 = vadd.f32 %v2392, %v2448
        %v2457 = vadd.f32 %v2393, %v2449
        %v2458 = vadd.f32 %v2394, %v2450
        %v2459 = vadd.f32 %v2395, %v2451
        %v2460 = vadd.f32 %v2396, %v2452
        %v2461 = vmul.f32 %v2453, 0.5
        %v2462 = vmul.f32 %v2454, 0.5
        %v2463 = vmul.f32 %v2455, 0.5
        %v2464 = vmul.f32 %v2456, 0.5
        %v2465 = vmul.f32 %v2457, 0.5
        %v2466 = vmul.f32 %v2458, 0.5
        %v2467 = vmul.f32 %v2459, 0.5
        %v2468 = vmul.f32 %v2460, 0.5
        %v2469 = vtanh.pop %v2461
        %v2470 = vtanh.pop %v2462
        %v2471 = vtanh.pop %v2463
        %v2472 = vtanh.pop %v2464
        %v2473 = vtanh.pop %v2465
        %v2474 = vtanh.pop %v2466
        %v2475 = vtanh.pop %v2467
        %v2476 = vtanh.pop %v2468
        %v2477 = vmul.f32 %v2469, 0.5
        %v2478 = vmul.f32 %v2470, 0.5
        %v2479 = vmul.f32 %v2471, 0.5
        %v2480 = vmul.f32 %v2472, 0.5
        %v2481 = vmul.f32 %v2473, 0.5
        %v2482 = vmul.f32 %v2474, 0.5
        %v2483 = vmul.f32 %v2475, 0.5
        %v2484 = vmul.f32 %v2476, 0.5
        %v2485 = vadd.f32 %v2477, 0.5
        %v2486 = vadd.f32 %v2478, 0.5
        %v2487 = vadd.f32 %v2479, 0.5
        %v2488 = vadd.f32 %v2480, 0.5
        %v2489 = vadd.f32 %v2481, 0.5
        %v2490 = vadd.f32 %v2482, 0.5
        %v2491 = vadd.f32 %v2483, 0.5
        %v2492 = vadd.f32 %v2484, 0.5
        %v2493 = vmul.f32 %v2429, %v1398
        %v2494 = vmul.f32 %v2430, %v1399
        %v2495 = vmul.f32 %v2431, %v1400
        %v2496 = vmul.f32 %v2432, %v1401
        %v2497 = vmul.f32 %v2433, %v1402
        %v2498 = vmul.f32 %v2434, %v1403
        %v2499 = vmul.f32 %v2435, %v1404
        %v2500 = vmul.f32 %v2436, %v1405
        %v2501 = vadd.f32 %v2397, %v2493
        %v2502 = vadd.f32 %v2398, %v2494
        %v2503 = vadd.f32 %v2399, %v2495
        %v2504 = vadd.f32 %v2400, %v2496
        %v2505 = vadd.f32 %v2401, %v2497
        %v2506 = vadd.f32 %v2402, %v2498
        %v2507 = vadd.f32 %v2403, %v2499
        %v2508 = vadd.f32 %v2404, %v2500
        %v2509 = vmul.f32 %v2501, 0.5
        %v2510 = vmul.f32 %v2502, 0.5
        %v2511 = vmul.f32 %v2503, 0.5
        %v2512 = vmul.f32 %v2504, 0.5
        %v2513 = vmul.f32 %v2505, 0.5
        %v2514 = vmul.f32 %v2506, 0.5
        %v2515 = vmul.f32 %v2507, 0.5
        %v2516 = vmul.f32 %v2508, 0.5
        %v2517 = vtanh.pop %v2509
        %v2518 = vtanh.pop %v2510
        %v2519 = vtanh.pop %v2511
        %v2520 = vtanh.pop %v2512
        %v2521 = vtanh.pop %v2513
        %v2522 = vtanh.pop %v2514
        %v2523 = vtanh.pop %v2515
        %v2524 = vtanh.pop %v2516
        %v2525 = vmul.f32 %v2517, 0.5
        %v2526 = vmul.f32 %v2518, 0.5
        %v2527 = vmul.f32 %v2519, 0.5
        %v2528 = vmul.f32 %v2520, 0.5
        %v2529 = vmul.f32 %v2521, 0.5
        %v2530 = vmul.f32 %v2522, 0.5
        %v2531 = vmul.f32 %v2523, 0.5
        %v2532 = vmul.f32 %v2524, 0.5
        %v2533 = vadd.f32 %v2525, 0.5
        %v2534 = vadd.f32 %v2526, 0.5
        %v2535 = vadd.f32 %v2527, 0.5
        %v2536 = vadd.f32 %v2528, 0.5
        %v2537 = vadd.f32 %v2529, 0.5
        %v2538 = vadd.f32 %v2530, 0.5
        %v2539 = vadd.f32 %v2531, 0.5
        %v2540 = vadd.f32 %v2532, 0.5
        %v2541 = vmul.f32 %v2533, %v1398
        %v2542 = vmul.f32 %v2534, %v1399
        %v2543 = vmul.f32 %v2535, %v1400
        %v2544 = vmul.f32 %v2536, %v1401
        %v2545 = vmul.f32 %v2537, %v1402
        %v2546 = vmul.f32 %v2538, %v1403
        %v2547 = vmul.f32 %v2539, %v1404
        %v2548 = vmul.f32 %v2540, %v1405
        %v2549 = vtanh.pop %v2405
        %v2550 = vtanh.pop %v2406
        %v2551 = vtanh.pop %v2407
        %v2552 = vtanh.pop %v2408
        %v2553 = vtanh.pop %v2409
        %v2554 = vtanh.pop %v2410
        %v2555 = vtanh.pop %v2411
        %v2556 = vtanh.pop %v2412
        %v2557 = vmul.f32 %v2485, %v2549
        %v2558 = vmul.f32 %v2486, %v2550
        %v2559 = vmul.f32 %v2487, %v2551
        %v2560 = vmul.f32 %v2488, %v2552
        %v2561 = vmul.f32 %v2489, %v2553
        %v2562 = vmul.f32 %v2490, %v2554
        %v2563 = vmul.f32 %v2491, %v2555
        %v2564 = vmul.f32 %v2492, %v2556
        %v2565 = vadd.f32 %v2541, %v2557
        %v2566 = vadd.f32 %v2542, %v2558
        %v2567 = vadd.f32 %v2543, %v2559
        %v2568 = vadd.f32 %v2544, %v2560
        %v2569 = vadd.f32 %v2545, %v2561
        %v2570 = vadd.f32 %v2546, %v2562
        %v2571 = vadd.f32 %v2547, %v2563
        %v2572 = vadd.f32 %v2548, %v2564
        %v2573 = vmul.f32 %v2437, %v2565
        %v2574 = vmul.f32 %v2438, %v2566
        %v2575 = vmul.f32 %v2439, %v2567
        %v2576 = vmul.f32 %v2440, %v2568
        %v2577 = vmul.f32 %v2441, %v2569
        %v2578 = vmul.f32 %v2442, %v2570
        %v2579 = vmul.f32 %v2443, %v2571
        %v2580 = vmul.f32 %v2444, %v2572
        %v2581 = vadd.f32 %v2413, %v2573
        %v2582 = vadd.f32 %v2414, %v2574
        %v2583 = vadd.f32 %v2415, %v2575
        %v2584 = vadd.f32 %v2416, %v2576
        %v2585 = vadd.f32 %v2417, %v2577
        %v2586 = vadd.f32 %v2418, %v2578
        %v2587 = vadd.f32 %v2419, %v2579
        %v2588 = vadd.f32 %v2420, %v2580
        %v2589 = vmul.f32 %v2581, 0.5
        %v2590 = vmul.f32 %v2582, 0.5
        %v2591 = vmul.f32 %v2583, 0.5
        %v2592 = vmul.f32 %v2584, 0.5
        %v2593 = vmul.f32 %v2585, 0.5
        %v2594 = vmul.f32 %v2586, 0.5
        %v2595 = vmul.f32 %v2587, 0.5
        %v2596 = vmul.f32 %v2588, 0.5
        %v2597 = vtanh.pop %v2589
        %v2598 = vtanh.pop %v2590
        %v2599 = vtanh.pop %v2591
        %v2600 = vtanh.pop %v2592
        %v2601 = vtanh.pop %v2593
        %v2602 = vtanh.pop %v2594
        %v2603 = vtanh.pop %v2595
        %v2604 = vtanh.pop %v2596
        %v2605 = vmul.f32 %v2597, 0.5
        %v2606 = vmul.f32 %v2598, 0.5
        %v2607 = vmul.f32 %v2599, 0.5
        %v2608 = vmul.f32 %v2600, 0.5
        %v2609 = vmul.f32 %v2601, 0.5
        %v2610 = vmul.f32 %v2602, 0.5
        %v2611 = vmul.f32 %v2603, 0.5
        %v2612 = vmul.f32 %v2604, 0.5
        %v2613 = vadd.f32 %v2605, 0.5
        %v2614 = vadd.f32 %v2606, 0.5
        %v2615 = vadd.f32 %v2607, 0.5
        %v2616 = vadd.f32 %v2608, 0.5
        %v2617 = vadd.f32 %v2609, 0.5
        %v2618 = vadd.f32 %v2610, 0.5
        %v2619 = vadd.f32 %v2611, 0.5
        %v2620 = vadd.f32 %v2612, 0.5
        %v2621 = vtanh.pop %v2565
        %v2622 = vtanh.pop %v2566
        %v2623 = vtanh.pop %v2567
        %v2624 = vtanh.pop %v2568
        %v2625 = vtanh.pop %v2569
        %v2626 = vtanh.pop %v2570
        %v2627 = vtanh.pop %v2571
        %v2628 = vtanh.pop %v2572
        %v2629 = vmul.f32 %v2613, %v2621
        %v2630 = vmul.f32 %v2614, %v2622
        %v2631 = vmul.f32 %v2615, %v2623
        %v2632 = vmul.f32 %v2616, %v2624
        %v2633 = vmul.f32 %v2617, %v2625
        %v2634 = vmul.f32 %v2618, %v2626
        %v2635 = vmul.f32 %v2619, %v2627
        %v2636 = vmul.f32 %v2620, %v2628
        %s2637 = scalar_lea.vmem %s263, 64 [#allocation10]
        %2638 = vst [vmem:[%s2637] sm:$0xff] %v2629
        %2639 = vst [vmem:[%s2637 + $0x8] sm:$0xff] %v2630
        %2640 = vst [vmem:[%s2637 + $0x10] sm:$0xff] %v2631
        %2641 = vst [vmem:[%s2637 + $0x18] sm:$0xff] %v2632
        %2642 = vst [vmem:[%s2637 + $0x20] sm:$0xff] %v2633
        %2643 = vst [vmem:[%s2637 + $0x28] sm:$0xff] %v2634
        %2644 = vst [vmem:[%s2637 + $0x30] sm:$0xff] %v2635
        %2645 = vst [vmem:[%s2637 + $0x38] sm:$0xff] %v2636
        %2650 = vrot.lane.b32.xlu0 %v2630, 17
        %v2651 = vpop.permute.xlu0 %2650
        %2652 = vrot.lane.b32.xlu0 %v2632, 17
        %v2653 = vpop.permute.xlu0 %2652
        %2654 = vrot.lane.b32.xlu0 %v2634, 17
        %v2655 = vpop.permute.xlu0 %2654
        %2656 = vrot.lane.b32.xlu0 %v2636, 17
        %v2657 = vpop.permute.xlu0 %2656
        %2666 = vrot.lane.b32.xlu0 %v2629, 17
        %v2667 = vpop.permute.xlu0 %2666
        %2668 = vrot.lane.b32.xlu0 %v2631, 17
        %v2669 = vpop.permute.xlu0 %2668
        %2670 = vrot.lane.b32.xlu0 %v2633, 17
        %v2671 = vpop.permute.xlu0 %2670
        %2672 = vrot.lane.b32.xlu0 %v2635, 17
        %v2673 = vpop.permute.xlu0 %2672
        %v2674 = vsel %vm331, %v2667, %v2651
        %v2675 = vsel %vm331, %v2669, %v2653
        %v2676 = vsel %vm331, %v2671, %v2655
        %v2677 = vsel %vm331, %v2673, %v2657
        %v2686 = vsel %vm331, %v2651, %v2667
        %v2687 = vsel %vm331, %v2653, %v2669
        %v2688 = vsel %vm331, %v2655, %v2671
        %v2689 = vsel %vm331, %v2657, %v2673
        %v2690 = vld [vmem:[#allocation7] sm:$0xff]
        %v2691 = vld [vmem:[#allocation7 + $0x8] sm:$0xff]
        %v2692 = vld [vmem:[#allocation7 + $0x10] sm:$0xff]
        %v2693 = vld [vmem:[#allocation7 + $0x18] sm:$0xff]
        %v2694 = vld [vmem:[#allocation7 + $0x20] sm:$0xff]
        %v2695 = vld [vmem:[#allocation7 + $0x28] sm:$0xff]
        %v2696 = vld [vmem:[#allocation7 + $0x30] sm:$0xff]
        %v2697 = vld [vmem:[#allocation7 + $0x38] sm:$0xff]
        %v2698 = vmul.f32 %v2686, %v2690
        %v2699 = vmul.f32 %v2674, %v2691
        %v2700 = vmul.f32 %v2687, %v2692
        %v2701 = vmul.f32 %v2675, %v2693
        %v2702 = vmul.f32 %v2688, %v2694
        %v2703 = vmul.f32 %v2676, %v2695
        %v2704 = vmul.f32 %v2689, %v2696
        %v2705 = vmul.f32 %v2677, %v2697
        %v2706 = vpack.c.bf16 %v2700, %v2698
        %v2707 = vpack.c.bf16 %v2701, %v2699
        %v2708 = vpack.c.bf16 %v2704, %v2702
        %v2709 = vpack.c.bf16 %v2705, %v2703
        %2710 = vrot.lane.b32.xlu0 %v2630, 16
        %v2711 = vpop.permute.xlu0 %2710
        %2712 = vrot.lane.b32.xlu0 %v2632, 16
        %v2713 = vpop.permute.xlu0 %2712
        %2714 = vrot.lane.b32.xlu0 %v2634, 16
        %v2715 = vpop.permute.xlu0 %2714
        %2716 = vrot.lane.b32.xlu0 %v2636, 16
        %v2717 = vpop.permute.xlu0 %2716
        %2722 = vrot.lane.b32.xlu0 %v2629, 16
        %v2723 = vpop.permute.xlu0 %2722
        %2724 = vrot.lane.b32.xlu0 %v2631, 16
        %v2725 = vpop.permute.xlu0 %2724
        %2726 = vrot.lane.b32.xlu0 %v2633, 16
        %v2727 = vpop.permute.xlu0 %2726
        %2728 = vrot.lane.b32.xlu0 %v2635, 16
        %v2729 = vpop.permute.xlu0 %2728
        %v2730 = vsel %vm388, %v2723, %v2711
        %v2731 = vsel %vm388, %v2725, %v2713
        %v2732 = vsel %vm388, %v2727, %v2715
        %v2733 = vsel %vm388, %v2729, %v2717
        %v2742 = vsel %vm388, %v2711, %v2723
        %v2743 = vsel %vm388, %v2713, %v2725
        %v2744 = vsel %vm388, %v2715, %v2727
        %v2745 = vsel %vm388, %v2717, %v2729
        %v2746 = vld [vmem:[#allocation7 + $0x40] sm:$0xff]
        %v2747 = vld [vmem:[#allocation7 + $0x48] sm:$0xff]
        %v2748 = vld [vmem:[#allocation7 + $0x50] sm:$0xff]
        %v2749 = vld [vmem:[#allocation7 + $0x58] sm:$0xff]
        %v2750 = vld [vmem:[#allocation7 + $0x60] sm:$0xff]
        %v2751 = vld [vmem:[#allocation7 + $0x68] sm:$0xff]
        %v2752 = vld [vmem:[#allocation7 + $0x70] sm:$0xff]
        %v2753 = vld [vmem:[#allocation7 + $0x78] sm:$0xff]
        %v2754 = vmul.f32 %v2742, %v2746
        %v2755 = vmul.f32 %v2730, %v2747
        %v2756 = vmul.f32 %v2743, %v2748
        %v2757 = vmul.f32 %v2731, %v2749
        %v2758 = vmul.f32 %v2744, %v2750
        %v2759 = vmul.f32 %v2732, %v2751
        %v2760 = vmul.f32 %v2745, %v2752
        %v2761 = vmul.f32 %v2733, %v2753
        %v2762 = vpack.c.bf16 %v2756, %v2754
        %v2763 = vpack.c.bf16 %v2757, %v2755
        %v2764 = vpack.c.bf16 %v2760, %v2758
        %v2765 = vpack.c.bf16 %v2761, %v2759
        %2766 = vrot.lane.b32.xlu0 %v2630, 15
        %v2767 = vpop.permute.xlu0 %2766
        %2768 = vrot.lane.b32.xlu0 %v2632, 15
        %v2769 = vpop.permute.xlu0 %2768
        %2770 = vrot.lane.b32.xlu0 %v2634, 15
        %v2771 = vpop.permute.xlu0 %2770
        %2772 = vrot.lane.b32.xlu0 %v2636, 15
        %v2773 = vpop.permute.xlu0 %2772
        %2778 = vrot.lane.b32.xlu0 %v2629, 15
        %v2779 = vpop.permute.xlu0 %2778
        %2780 = vrot.lane.b32.xlu0 %v2631, 15
        %v2781 = vpop.permute.xlu0 %2780
        %2782 = vrot.lane.b32.xlu0 %v2633, 15
        %v2783 = vpop.permute.xlu0 %2782
        %2784 = vrot.lane.b32.xlu0 %v2635, 15
        %v2785 = vpop.permute.xlu0 %2784
        %v2786 = vsel %vm445, %v2779, %v2767
        %v2787 = vsel %vm445, %v2781, %v2769
        %v2788 = vsel %vm445, %v2783, %v2771
        %v2789 = vsel %vm445, %v2785, %v2773
        %v2798 = vsel %vm445, %v2767, %v2779
        %v2799 = vsel %vm445, %v2769, %v2781
        %v2800 = vsel %vm445, %v2771, %v2783
        %v2801 = vsel %vm445, %v2773, %v2785
        %v2802 = vld [vmem:[#allocation7 + $0x80] sm:$0xff]
        %v2803 = vld [vmem:[#allocation7 + $0x88] sm:$0xff]
        %v2804 = vld [vmem:[#allocation7 + $0x90] sm:$0xff]
        %v2805 = vld [vmem:[#allocation7 + $0x98] sm:$0xff]
        %v2806 = vld [vmem:[#allocation7 + $0xa0] sm:$0xff]
        %v2807 = vld [vmem:[#allocation7 + $0xa8] sm:$0xff]
        %v2808 = vld [vmem:[#allocation7 + $0xb0] sm:$0xff]
        %v2809 = vld [vmem:[#allocation7 + $0xb8] sm:$0xff]
        %v2810 = vmul.f32 %v2798, %v2802
        %v2811 = vmul.f32 %v2786, %v2803
        %v2812 = vmul.f32 %v2799, %v2804
        %v2813 = vmul.f32 %v2787, %v2805
        %v2814 = vmul.f32 %v2800, %v2806
        %v2815 = vmul.f32 %v2788, %v2807
        %v2816 = vmul.f32 %v2801, %v2808
        %v2817 = vmul.f32 %v2789, %v2809
        %v2818 = vpack.c.bf16 %v2812, %v2810
        %v2819 = vpack.c.bf16 %v2813, %v2811
        %v2820 = vpack.c.bf16 %v2816, %v2814
        %v2821 = vpack.c.bf16 %v2817, %v2815
        %2822 = vrot.lane.b32.xlu0 %v2630, 1
        %v2823 = vpop.permute.xlu0 %2822
        %2824 = vrot.lane.b32.xlu0 %v2632, 1
        %v2825 = vpop.permute.xlu0 %2824
        %2826 = vrot.lane.b32.xlu0 %v2634, 1
        %v2827 = vpop.permute.xlu0 %2826
        %2828 = vrot.lane.b32.xlu0 %v2636, 1
        %v2829 = vpop.permute.xlu0 %2828
        %2834 = vrot.lane.b32.xlu0 %v2629, 1
        %v2835 = vpop.permute.xlu0 %2834
        %2836 = vrot.lane.b32.xlu0 %v2631, 1
        %v2837 = vpop.permute.xlu0 %2836
        %2838 = vrot.lane.b32.xlu0 %v2633, 1
        %v2839 = vpop.permute.xlu0 %2838
        %2840 = vrot.lane.b32.xlu0 %v2635, 1
        %v2841 = vpop.permute.xlu0 %2840
        %v2842 = vsel %vm502, %v2835, %v2823
        %v2843 = vsel %vm502, %v2837, %v2825
        %v2844 = vsel %vm502, %v2839, %v2827
        %v2845 = vsel %vm502, %v2841, %v2829
        %v2854 = vsel %vm502, %v2823, %v2835
        %v2855 = vsel %vm502, %v2825, %v2837
        %v2856 = vsel %vm502, %v2827, %v2839
        %v2857 = vsel %vm502, %v2829, %v2841
        %v2858 = vld [vmem:[#allocation7 + $0xc0] sm:$0xff]
        %v2859 = vld [vmem:[#allocation7 + $0xc8] sm:$0xff]
        %v2860 = vld [vmem:[#allocation7 + $0xd0] sm:$0xff]
        %v2861 = vld [vmem:[#allocation7 + $0xd8] sm:$0xff]
        %v2862 = vld [vmem:[#allocation7 + $0xe0] sm:$0xff]
        %v2863 = vld [vmem:[#allocation7 + $0xe8] sm:$0xff]
        %v2864 = vld [vmem:[#allocation7 + $0xf0] sm:$0xff]
        %v2865 = vld [vmem:[#allocation7 + $0xf8] sm:$0xff]
        %v2866 = vmul.f32 %v2854, %v2858
        %v2867 = vmul.f32 %v2842, %v2859
        %v2868 = vmul.f32 %v2855, %v2860
        %v2869 = vmul.f32 %v2843, %v2861
        %v2870 = vmul.f32 %v2856, %v2862
        %v2871 = vmul.f32 %v2844, %v2863
        %v2872 = vmul.f32 %v2857, %v2864
        %v2873 = vmul.f32 %v2845, %v2865
        %v2874 = vpack.c.bf16 %v2868, %v2866
        %v2875 = vpack.c.bf16 %v2869, %v2867
        %v2876 = vpack.c.bf16 %v2872, %v2870
        %v2877 = vpack.c.bf16 %v2873, %v2871
        %v2878 = vld [vmem:[#allocation7 + $0x100] sm:$0xff]
        %v2879 = vld [vmem:[#allocation7 + $0x108] sm:$0xff]
        %v2880 = vld [vmem:[#allocation7 + $0x110] sm:$0xff]
        %v2881 = vld [vmem:[#allocation7 + $0x118] sm:$0xff]
        %v2882 = vld [vmem:[#allocation7 + $0x120] sm:$0xff]
        %v2883 = vld [vmem:[#allocation7 + $0x128] sm:$0xff]
        %v2884 = vld [vmem:[#allocation7 + $0x130] sm:$0xff]
        %v2885 = vld [vmem:[#allocation7 + $0x138] sm:$0xff]
        %v2886 = vmul.f32 %v2629, %v2878
        %v2887 = vmul.f32 %v2630, %v2879
        %v2888 = vmul.f32 %v2631, %v2880
        %v2889 = vmul.f32 %v2632, %v2881
        %v2890 = vmul.f32 %v2633, %v2882
        %v2891 = vmul.f32 %v2634, %v2883
        %v2892 = vmul.f32 %v2635, %v2884
        %v2893 = vmul.f32 %v2636, %v2885
        %v2894 = vpack.c.bf16 %v2888, %v2886
        %v2895 = vpack.c.bf16 %v2889, %v2887
        %v2896 = vpack.c.bf16 %v2892, %v2890
        %v2897 = vpack.c.bf16 %v2893, %v2891
        %2898 = vrot.lane.b32.xlu0 %v2629, 127
        %v2899 = vpop.permute.xlu0 %2898
        %2900 = vrot.lane.b32.xlu0 %v2630, 127
        %v2901 = vpop.permute.xlu0 %2900
        %2902 = vrot.lane.b32.xlu0 %v2631, 127
        %v2903 = vpop.permute.xlu0 %2902
        %2904 = vrot.lane.b32.xlu0 %v2632, 127
        %v2905 = vpop.permute.xlu0 %2904
        %2906 = vrot.lane.b32.xlu0 %v2633, 127
        %v2907 = vpop.permute.xlu0 %2906
        %2908 = vrot.lane.b32.xlu0 %v2634, 127
        %v2909 = vpop.permute.xlu0 %2908
        %2910 = vrot.lane.b32.xlu0 %v2635, 127
        %v2911 = vpop.permute.xlu0 %2910
        %2912 = vrot.lane.b32.xlu0 %v2636, 127
        %v2913 = vpop.permute.xlu0 %2912
        %v2914 = vsel %vm575, %v2899, %v2901
        %v2915 = vsel %vm575, %v2903, %v2905
        %v2916 = vsel %vm575, %v2907, %v2909
        %v2917 = vsel %vm575, %v2911, %v2913
        %v2930 = vsel %vm575, %v2901, %v2899
        %v2931 = vsel %vm575, %v2905, %v2903
        %v2932 = vsel %vm575, %v2909, %v2907
        %v2933 = vsel %vm575, %v2913, %v2911
        %v2934 = vld [vmem:[#allocation7 + $0x140] sm:$0xff]
        %v2935 = vld [vmem:[#allocation7 + $0x148] sm:$0xff]
        %v2936 = vld [vmem:[#allocation7 + $0x150] sm:$0xff]
        %v2937 = vld [vmem:[#allocation7 + $0x158] sm:$0xff]
        %v2938 = vld [vmem:[#allocation7 + $0x160] sm:$0xff]
        %v2939 = vld [vmem:[#allocation7 + $0x168] sm:$0xff]
        %v2940 = vld [vmem:[#allocation7 + $0x170] sm:$0xff]
        %v2941 = vld [vmem:[#allocation7 + $0x178] sm:$0xff]
        %v2942 = vmul.f32 %v2914, %v2934
        %v2943 = vmul.f32 %v2930, %v2935
        %v2944 = vmul.f32 %v2915, %v2936
        %v2945 = vmul.f32 %v2931, %v2937
        %v2946 = vmul.f32 %v2916, %v2938
        %v2947 = vmul.f32 %v2932, %v2939
        %v2948 = vmul.f32 %v2917, %v2940
        %v2949 = vmul.f32 %v2933, %v2941
        %v2950 = vpack.c.bf16 %v2944, %v2942
        %v2951 = vpack.c.bf16 %v2945, %v2943
        %v2952 = vpack.c.bf16 %v2948, %v2946
        %v2953 = vpack.c.bf16 %v2949, %v2947
        %2954 = vrot.lane.b32.xlu0 %v2629, 113
        %v2955 = vpop.permute.xlu0 %2954
        %2956 = vrot.lane.b32.xlu0 %v2630, 113
        %v2957 = vpop.permute.xlu0 %2956
        %2958 = vrot.lane.b32.xlu0 %v2631, 113
        %v2959 = vpop.permute.xlu0 %2958
        %2960 = vrot.lane.b32.xlu0 %v2632, 113
        %v2961 = vpop.permute.xlu0 %2960
        %2962 = vrot.lane.b32.xlu0 %v2633, 113
        %v2963 = vpop.permute.xlu0 %2962
        %2964 = vrot.lane.b32.xlu0 %v2634, 113
        %v2965 = vpop.permute.xlu0 %2964
        %2966 = vrot.lane.b32.xlu0 %v2635, 113
        %v2967 = vpop.permute.xlu0 %2966
        %2968 = vrot.lane.b32.xlu0 %v2636, 113
        %v2969 = vpop.permute.xlu0 %2968
        %v2970 = vsel %vm632, %v2955, %v2957
        %v2971 = vsel %vm632, %v2959, %v2961
        %v2972 = vsel %vm632, %v2963, %v2965
        %v2973 = vsel %vm632, %v2967, %v2969
        %v2986 = vsel %vm632, %v2957, %v2955
        %v2987 = vsel %vm632, %v2961, %v2959
        %v2988 = vsel %vm632, %v2965, %v2963
        %v2989 = vsel %vm632, %v2969, %v2967
        %v2990 = vld [vmem:[#allocation7 + $0x180] sm:$0xff]
        %v2991 = vld [vmem:[#allocation7 + $0x188] sm:$0xff]
        %v2992 = vld [vmem:[#allocation7 + $0x190] sm:$0xff]
        %v2993 = vld [vmem:[#allocation7 + $0x198] sm:$0xff]
        %v2994 = vld [vmem:[#allocation7 + $0x1a0] sm:$0xff]
        %v2995 = vld [vmem:[#allocation7 + $0x1a8] sm:$0xff]
        %v2996 = vld [vmem:[#allocation7 + $0x1b0] sm:$0xff]
        %v2997 = vld [vmem:[#allocation7 + $0x1b8] sm:$0xff]
        %v2998 = vmul.f32 %v2970, %v2990
        %v2999 = vmul.f32 %v2986, %v2991
        %v3000 = vmul.f32 %v2971, %v2992
        %v3001 = vmul.f32 %v2987, %v2993
        %v3002 = vmul.f32 %v2972, %v2994
        %v3003 = vmul.f32 %v2988, %v2995
        %v3004 = vmul.f32 %v2973, %v2996
        %v3005 = vmul.f32 %v2989, %v2997
        %v3006 = vpack.c.bf16 %v3000, %v2998
        %v3007 = vpack.c.bf16 %v3001, %v2999
        %v3008 = vpack.c.bf16 %v3004, %v3002
        %v3009 = vpack.c.bf16 %v3005, %v3003
        %3010 = vrot.lane.b32.xlu0 %v2629, 112
        %v3011 = vpop.permute.xlu0 %3010
        %3012 = vrot.lane.b32.xlu0 %v2630, 112
        %v3013 = vpop.permute.xlu0 %3012
        %3014 = vrot.lane.b32.xlu0 %v2631, 112
        %v3015 = vpop.permute.xlu0 %3014
        %3016 = vrot.lane.b32.xlu0 %v2632, 112
        %v3017 = vpop.permute.xlu0 %3016
        %3018 = vrot.lane.b32.xlu0 %v2633, 112
        %v3019 = vpop.permute.xlu0 %3018
        %3020 = vrot.lane.b32.xlu0 %v2634, 112
        %v3021 = vpop.permute.xlu0 %3020
        %3022 = vrot.lane.b32.xlu0 %v2635, 112
        %v3023 = vpop.permute.xlu0 %3022
        %3024 = vrot.lane.b32.xlu0 %v2636, 112
        %v3025 = vpop.permute.xlu0 %3024
        %v3026 = vsel %vm689, %v3011, %v3013
        %v3027 = vsel %vm689, %v3015, %v3017
        %v3028 = vsel %vm689, %v3019, %v3021
        %v3029 = vsel %vm689, %v3023, %v3025
        %v3042 = vsel %vm689, %v3013, %v3011
        %v3043 = vsel %vm689, %v3017, %v3015
        %v3044 = vsel %vm689, %v3021, %v3019
        %v3045 = vsel %vm689, %v3025, %v3023
        %v3046 = vld [vmem:[#allocation7 + $0x1c0] sm:$0xff]
        %v3047 = vld [vmem:[#allocation7 + $0x1c8] sm:$0xff]
        %v3048 = vld [vmem:[#allocation7 + $0x1d0] sm:$0xff]
        %v3049 = vld [vmem:[#allocation7 + $0x1d8] sm:$0xff]
        %v3050 = vld [vmem:[#allocation7 + $0x1e0] sm:$0xff]
        %v3051 = vld [vmem:[#allocation7 + $0x1e8] sm:$0xff]
        %v3052 = vld [vmem:[#allocation7 + $0x1f0] sm:$0xff]
        %v3053 = vld [vmem:[#allocation7 + $0x1f8] sm:$0xff]
        %v3054 = vmul.f32 %v3026, %v3046
        %v3055 = vmul.f32 %v3042, %v3047
        %v3056 = vmul.f32 %v3027, %v3048
        %v3057 = vmul.f32 %v3043, %v3049
        %v3058 = vmul.f32 %v3028, %v3050
        %v3059 = vmul.f32 %v3044, %v3051
        %v3060 = vmul.f32 %v3029, %v3052
        %v3061 = vmul.f32 %v3045, %v3053
        %v3062 = vpack.c.bf16 %v3056, %v3054
        %v3063 = vpack.c.bf16 %v3057, %v3055
        %v3064 = vpack.c.bf16 %v3060, %v3058
        %v3065 = vpack.c.bf16 %v3061, %v3059
        %3066 = vrot.lane.b32.xlu0 %v2629, 111
        %v3067 = vpop.permute.xlu0 %3066
        %3068 = vrot.lane.b32.xlu0 %v2630, 111
        %v3069 = vpop.permute.xlu0 %3068
        %3070 = vrot.lane.b32.xlu0 %v2631, 111
        %v3071 = vpop.permute.xlu0 %3070
        %3072 = vrot.lane.b32.xlu0 %v2632, 111
        %v3073 = vpop.permute.xlu0 %3072
        %3074 = vrot.lane.b32.xlu0 %v2633, 111
        %v3075 = vpop.permute.xlu0 %3074
        %3076 = vrot.lane.b32.xlu0 %v2634, 111
        %v3077 = vpop.permute.xlu0 %3076
        %3078 = vrot.lane.b32.xlu0 %v2635, 111
        %v3079 = vpop.permute.xlu0 %3078
        %3080 = vrot.lane.b32.xlu0 %v2636, 111
        %v3081 = vpop.permute.xlu0 %3080
        %v3082 = vsel %vm746, %v3067, %v3069
        %v3083 = vsel %vm746, %v3071, %v3073
        %v3084 = vsel %vm746, %v3075, %v3077
        %v3085 = vsel %vm746, %v3079, %v3081
        %v3098 = vsel %vm746, %v3069, %v3067
        %v3099 = vsel %vm746, %v3073, %v3071
        %v3100 = vsel %vm746, %v3077, %v3075
        %v3101 = vsel %vm746, %v3081, %v3079
        %v3102 = vld [vmem:[#allocation7 + $0x200] sm:$0xff]
        %v3103 = vld [vmem:[#allocation7 + $0x208] sm:$0xff]
        %v3104 = vld [vmem:[#allocation7 + $0x210] sm:$0xff]
        %v3105 = vld [vmem:[#allocation7 + $0x218] sm:$0xff]
        %v3106 = vld [vmem:[#allocation7 + $0x220] sm:$0xff]
        %v3107 = vld [vmem:[#allocation7 + $0x228] sm:$0xff]
        %v3108 = vld [vmem:[#allocation7 + $0x230] sm:$0xff]
        %v3109 = vld [vmem:[#allocation7 + $0x238] sm:$0xff]
        %v3110 = vmul.f32 %v3082, %v3102
        %v3111 = vmul.f32 %v3098, %v3103
        %v3112 = vmul.f32 %v3083, %v3104
        %v3113 = vmul.f32 %v3099, %v3105
        %v3114 = vmul.f32 %v3084, %v3106
        %v3115 = vmul.f32 %v3100, %v3107
        %v3116 = vmul.f32 %v3085, %v3108
        %v3117 = vmul.f32 %v3101, %v3109
        %v3118 = vpack.c.bf16 %v3112, %v3110
        %v3119 = vpack.c.bf16 %v3113, %v3111
        %v3120 = vpack.c.bf16 %v3116, %v3114
        %v3121 = vpack.c.bf16 %v3117, %v3115
        %s3122 = scalar_lea.vmem %s231, 512 [#allocation4]
        %v3123 = vld [vmem:[%s3122] sm:$0xff]
        %v3124 = vld [vmem:[%s3122 + $0x8] sm:$0xff]
        %v3125 = vld [vmem:[%s3122 + $0x10] sm:$0xff]
        %v3126 = vld [vmem:[%s3122 + $0x18] sm:$0xff]
        %v3127 = vld [vmem:[%s3122 + $0x20] sm:$0xff]
        %v3128 = vld [vmem:[%s3122 + $0x28] sm:$0xff]
        %v3129 = vld [vmem:[%s3122 + $0x30] sm:$0xff]
        %v3130 = vld [vmem:[%s3122 + $0x38] sm:$0xff]
        %v3131 = vld [vmem:[%s3122 + $0x40] sm:$0xff]
        %v3132 = vld [vmem:[%s3122 + $0x48] sm:$0xff]
        %v3133 = vld [vmem:[%s3122 + $0x50] sm:$0xff]
        %v3134 = vld [vmem:[%s3122 + $0x58] sm:$0xff]
        %v3135 = vld [vmem:[%s3122 + $0x60] sm:$0xff]
        %v3136 = vld [vmem:[%s3122 + $0x68] sm:$0xff]
        %v3137 = vld [vmem:[%s3122 + $0x70] sm:$0xff]
        %v3138 = vld [vmem:[%s3122 + $0x78] sm:$0xff]
        %v3139 = vld [vmem:[%s3122 + $0x80] sm:$0xff]
        %v3140 = vld [vmem:[%s3122 + $0x88] sm:$0xff]
        %v3141 = vld [vmem:[%s3122 + $0x90] sm:$0xff]
        %v3142 = vld [vmem:[%s3122 + $0x98] sm:$0xff]
        %v3143 = vld [vmem:[%s3122 + $0xa0] sm:$0xff]
        %v3144 = vld [vmem:[%s3122 + $0xa8] sm:$0xff]
        %v3145 = vld [vmem:[%s3122 + $0xb0] sm:$0xff]
        %v3146 = vld [vmem:[%s3122 + $0xb8] sm:$0xff]
        %v3147 = vld [vmem:[%s3122 + $0xc0] sm:$0xff]
        %v3148 = vld [vmem:[%s3122 + $0xc8] sm:$0xff]
        %v3149 = vld [vmem:[%s3122 + $0xd0] sm:$0xff]
        %v3150 = vld [vmem:[%s3122 + $0xd8] sm:$0xff]
        %v3151 = vld [vmem:[%s3122 + $0xe0] sm:$0xff]
        %v3152 = vld [vmem:[%s3122 + $0xe8] sm:$0xff]
        %v3153 = vld [vmem:[%s3122 + $0xf0] sm:$0xff]
        %v3154 = vld [vmem:[%s3122 + $0xf8] sm:$0xff]
        %v3155 = vld [vmem:[%s1] sm:$0xff]
        %v3156 = vld [vmem:[%s1 + $0x8] sm:$0xf]
        %v3157 = vld [vmem:[%s1 + $0xc] sm:$0xff]
        %v3158 = vld [vmem:[%s1 + $0x14] sm:$0xf]
        %v3159 = vld [vmem:[%s1 + $0x18] sm:$0xff]
        %v3160 = vld [vmem:[%s1 + $0x20] sm:$0xf]
        %v3161 = vld [vmem:[%s1 + $0x24] sm:$0xff]
        %v3162 = vld [vmem:[%s1 + $0x2c] sm:$0xf]
        %v3163 = vld [vmem:[%s1 + $0x30] sm:$0xff]
        %v3164 = vld [vmem:[%s1 + $0x38] sm:$0xf]
        %v3165 = vld [vmem:[%s1 + $0x3c] sm:$0xff]
        %v3166 = vld [vmem:[%s1 + $0x44] sm:$0xf]
        %v3167 = vld [vmem:[%s1 + $0x48] sm:$0xff]
        %v3168 = vld [vmem:[%s1 + $0x50] sm:$0xf]
        %v3169 = vld [vmem:[%s1 + $0x54] sm:$0xff]
        %v3170 = vld [vmem:[%s1 + $0x5c] sm:$0xf]
        %v3171 = vld [vmem:[%s1 + $0x60] sm:$0xff]
        %v3172 = vld [vmem:[%s1 + $0x68] sm:$0xf]
        %v3173 = vld [vmem:[%s1 + $0x6c] sm:$0xff]
        %v3174 = vld [vmem:[%s1 + $0x74] sm:$0xf]
        %v3175 = vld [vmem:[%s1 + $0x78] sm:$0xff]
        %v3176 = vld [vmem:[%s1 + $0x80] sm:$0xf]
        %v3177 = vld [vmem:[%s1 + $0x84] sm:$0xff]
        %v3178 = vld [vmem:[%s1 + $0x8c] sm:$0xf]
        %v3179 = vld [vmem:[%s1 + $0x90] sm:$0xff]
        %v3180 = vld [vmem:[%s1 + $0x98] sm:$0xf]
        %v3181 = vld [vmem:[%s1 + $0x9c] sm:$0xff]
        %v3182 = vld [vmem:[%s1 + $0xa4] sm:$0xf]
        %v3183 = vld [vmem:[%s1 + $0xa8] sm:$0xff]
        %v3184 = vld [vmem:[%s1 + $0xb0] sm:$0xf]
        %v3185 = vld [vmem:[%s1 + $0xb4] sm:$0xff]
        %v3186 = vld [vmem:[%s1 + $0xbc] sm:$0xf]
        %v3219 = vunpack.c.l.b16 %v3155
        %v3220 = vunpack.c.h.b16 %v3155
        %v3221 = vunpack.c.l.b16 %v3156
        %v3222 = vunpack.c.l.b16 %v3157
        %v3223 = vunpack.c.h.b16 %v3157
        %v3224 = vunpack.c.l.b16 %v3158
        %v3225 = vunpack.c.l.b16 %v3159
        %v3226 = vunpack.c.h.b16 %v3159
        %v3227 = vunpack.c.l.b16 %v3160
        %v3228 = vunpack.c.l.b16 %v3161
        %v3229 = vunpack.c.h.b16 %v3161
        %v3230 = vunpack.c.l.b16 %v3162
        %v3231 = vunpack.c.l.b16 %v3163
        %v3232 = vunpack.c.h.b16 %v3163
        %v3233 = vunpack.c.l.b16 %v3164
        %v3234 = vunpack.c.l.b16 %v3165
        %v3235 = vunpack.c.h.b16 %v3165
        %v3236 = vunpack.c.l.b16 %v3166
        %v3237 = vunpack.c.l.b16 %v3167
        %v3238 = vunpack.c.h.b16 %v3167
        %v3239 = vunpack.c.l.b16 %v3168
        %v3240 = vunpack.c.l.b16 %v3169
        %v3241 = vunpack.c.h.b16 %v3169
        %v3242 = vunpack.c.l.b16 %v3170
        %v3243 = vunpack.c.l.b16 %v3171
        %v3244 = vunpack.c.h.b16 %v3171
        %v3245 = vunpack.c.l.b16 %v3172
        %v3246 = vunpack.c.l.b16 %v3173
        %v3247 = vunpack.c.h.b16 %v3173
        %v3248 = vunpack.c.l.b16 %v3174
        %v3249 = vunpack.c.l.b16 %v3175
        %v3250 = vunpack.c.h.b16 %v3175
        %v3251 = vunpack.c.l.b16 %v3176
        %v3252 = vunpack.c.l.b16 %v3177
        %v3253 = vunpack.c.h.b16 %v3177
        %v3254 = vunpack.c.l.b16 %v3178
        %v3255 = vunpack.c.l.b16 %v3179
        %v3256 = vunpack.c.h.b16 %v3179
        %v3257 = vunpack.c.l.b16 %v3180
        %v3258 = vunpack.c.l.b16 %v3181
        %v3259 = vunpack.c.h.b16 %v3181
        %v3260 = vunpack.c.l.b16 %v3182
        %v3261 = vunpack.c.l.b16 %v3183
        %v3262 = vunpack.c.h.b16 %v3183
        %v3263 = vunpack.c.l.b16 %v3184
        %v3264 = vunpack.c.l.b16 %v3185
        %v3265 = vunpack.c.h.b16 %v3185
        %v3266 = vunpack.c.l.b16 %v3186
        %v3267 = vpack.c.b16 %v3222, %v3219
        %v3268 = vpack.c.b16 %v3223, %v3220
        %v3269 = vpack.c.b16 %v3224, %v3221
        %v3270 = vpack.c.b16 %v3228, %v3225
        %v3271 = vpack.c.b16 %v3229, %v3226
        %v3272 = vpack.c.b16 %v3230, %v3227
        %v3273 = vpack.c.b16 %v3234, %v3231
        %v3274 = vpack.c.b16 %v3235, %v3232
        %v3275 = vpack.c.b16 %v3236, %v3233
        %v3276 = vpack.c.b16 %v3240, %v3237
        %v3277 = vpack.c.b16 %v3241, %v3238
        %v3278 = vpack.c.b16 %v3242, %v3239
        %v3279 = vpack.c.b16 %v3246, %v3243
        %v3280 = vpack.c.b16 %v3247, %v3244
        %v3281 = vpack.c.b16 %v3248, %v3245
        %v3282 = vpack.c.b16 %v3252, %v3249
        %v3283 = vpack.c.b16 %v3253, %v3250
        %v3284 = vpack.c.b16 %v3254, %v3251
        %v3285 = vpack.c.b16 %v3258, %v3255
        %v3286 = vpack.c.b16 %v3259, %v3256
        %v3287 = vpack.c.b16 %v3260, %v3257
        %v3288 = vpack.c.b16 %v3264, %v3261
        %v3289 = vpack.c.b16 %v3265, %v3262
        %v3290 = vpack.c.b16 %v3266, %v3263
        %v3308 = vsel %vm971, %v3269, 0
        %v3311 = vsel %vm971, %v3272, 0
        %v3314 = vsel %vm971, %v3275, 0
        %v3317 = vsel %vm971, %v3278, 0
        %v3320 = vsel %vm971, %v3281, 0
        %v3323 = vsel %vm971, %v3284, 0
        %v3326 = vsel %vm971, %v3287, 0
        %v3329 = vsel %vm971, %v3290, 0
        %3331 = vmatprep.subr.bf16.mxu0 %v2707
        %3332 = vmatpush1.bf16.msra.mxu0 %v2706
        %3333 = vmatprep.subr.bf16.mxu0 %v2709
        %3334 = vmatpush1.bf16.msra.mxu0 %v2708
        %3335 = vmatprep.subr.bf16.mxu0 %v2763
        %3336 = vmatpush1.bf16.msra.mxu0 %v2762
        %3337 = vmatprep.subr.bf16.mxu0 %v2765
        %3338 = vmatpush1.bf16.msra.mxu0 %v2764
        %3339 = vmatprep.subr.bf16.mxu0 %v2819
        %3340 = vmatpush1.bf16.msra.mxu0 %v2818
        %3341 = vmatprep.subr.bf16.mxu0 %v2821
        %3342 = vmatpush1.bf16.msra.mxu0 %v2820
        %3343 = vmatprep.subr.bf16.mxu0 %v2875
        %3344 = vmatpush1.bf16.msra.mxu0 %v2874
        %3345 = vmatprep.subr.bf16.mxu0 %v2877
        %3346 = vmatpush1.bf16.msra.mxu0 %v2876
        %3347 = vmatprep.subr.bf16.mxu0 %v2895
        %3348 = vmatpush1.bf16.msra.mxu0 %v2894
        %3349 = vmatprep.subr.bf16.mxu0 %v2897
        %3350 = vmatpush1.bf16.msra.mxu0 %v2896
        %3351 = vmatprep.subr.bf16.mxu0 %v2951
        %3352 = vmatpush1.bf16.msra.mxu0 %v2950
        %3353 = vmatprep.subr.bf16.mxu0 %v2953
        %3354 = vmatpush1.bf16.msra.mxu0 %v2952
        %3355 = vmatprep.subr.bf16.mxu0 %v3007
        %3356 = vmatpush1.bf16.msra.mxu0 %v3006
        %3357 = vmatprep.subr.bf16.mxu0 %v3009
        %3358 = vmatpush1.bf16.msra.mxu0 %v3008
        %3359 = vmatprep.subr.bf16.mxu0 %v3063
        %3360 = vmatpush1.bf16.msra.mxu0 %v3062
        %3361 = vmatprep.subr.bf16.mxu0 %v3065
        %3362 = vmatpush1.bf16.msra.mxu0 %v3064
        %3363 = vmatprep.mubr.bf16.mxu0 %v3268
        %3364 = vmatmul.mubr.bf16.gmra.mrb[0].mxu0 %v3267
        %v3365 = vpop.f32.mrb[0].mxu0
        %v3366 = vadd.f32 0.0, %v3365
        %v3367 = vpop.f32.mrb[0].mxu0
        %v3368 = vadd.f32 0.0, %v3367
        %v3369 = vpop.f32.mrb[0].mxu0
        %v3370 = vadd.f32 0.0, %v3369
        %v3371 = vpop.f32.mrb[0].mxu0
        %v3372 = vadd.f32 0.0, %v3371
        %3373 = vmatprep.mubr.bf16.mxu0 %v3271
        %3374 = vmatmul.mubr.bf16.gmra.mrb[0].mxu0 %v3270
        %v3375 = vpop.f32.mrb[0].mxu0
        %v3376 = vadd.f32 0.0, %v3375
        %v3377 = vpop.f32.mrb[0].mxu0
        %v3378 = vadd.f32 0.0, %v3377
        %v3379 = vpop.f32.mrb[0].mxu0
        %v3380 = vadd.f32 0.0, %v3379
        %v3381 = vpop.f32.mrb[0].mxu0
        %v3382 = vadd.f32 0.0, %v3381
        %3383 = vmatprep.mubr.bf16.mxu0 %v3274
        %3384 = vmatmul.mubr.bf16.gmra.mrb[0].mxu0 %v3273
        %v3385 = vpop.f32.mrb[0].mxu0
        %v3386 = vadd.f32 0.0, %v3385
        %v3387 = vpop.f32.mrb[0].mxu0
        %v3388 = vadd.f32 0.0, %v3387
        %v3389 = vpop.f32.mrb[0].mxu0
        %v3390 = vadd.f32 0.0, %v3389
        %v3391 = vpop.f32.mrb[0].mxu0
        %v3392 = vadd.f32 0.0, %v3391
        %3393 = vmatprep.mubr.bf16.mxu0 %v3277
        %3394 = vmatmul.mubr.bf16.gmra.mrb[0].mxu0 %v3276
        %v3395 = vpop.f32.mrb[0].mxu0
        %v3396 = vadd.f32 0.0, %v3395
        %v3397 = vpop.f32.mrb[0].mxu0
        %v3398 = vadd.f32 0.0, %v3397
        %v3399 = vpop.f32.mrb[0].mxu0
        %v3400 = vadd.f32 0.0, %v3399
        %v3401 = vpop.f32.mrb[0].mxu0
        %v3402 = vadd.f32 0.0, %v3401
        %3403 = vmatprep.mubr.bf16.mxu0 %v3280
        %3404 = vmatmul.mubr.bf16.gmra.mrb[0].mxu0 %v3279
        %v3405 = vpop.f32.mrb[0].mxu0
        %v3406 = vadd.f32 0.0, %v3405
        %v3407 = vpop.f32.mrb[0].mxu0
        %v3408 = vadd.f32 0.0, %v3407
        %v3409 = vpop.f32.mrb[0].mxu0
        %v3410 = vadd.f32 0.0, %v3409
        %v3411 = vpop.f32.mrb[0].mxu0
        %v3412 = vadd.f32 0.0, %v3411
        %3413 = vmatprep.mubr.bf16.mxu0 %v3283
        %3414 = vmatmul.mubr.bf16.gmra.mrb[0].mxu0 %v3282
        %v3415 = vpop.f32.mrb[0].mxu0
        %v3416 = vadd.f32 0.0, %v3415
        %v3417 = vpop.f32.mrb[0].mxu0
        %v3418 = vadd.f32 0.0, %v3417
        %v3419 = vpop.f32.mrb[0].mxu0
        %v3420 = vadd.f32 0.0, %v3419
        %v3421 = vpop.f32.mrb[0].mxu0
        %v3422 = vadd.f32 0.0, %v3421
        %3423 = vmatprep.mubr.bf16.mxu0 %v3286
        %3424 = vmatmul.mubr.bf16.gmra.mrb[0].mxu0 %v3285
        %v3425 = vpop.f32.mrb[0].mxu0
        %v3426 = vadd.f32 0.0, %v3425
        %v3427 = vpop.f32.mrb[0].mxu0
        %v3428 = vadd.f32 0.0, %v3427
        %v3429 = vpop.f32.mrb[0].mxu0
        %v3430 = vadd.f32 0.0, %v3429
        %v3431 = vpop.f32.mrb[0].mxu0
        %v3432 = vadd.f32 0.0, %v3431
        %3433 = vmatprep.mubr.bf16.mxu0 %v3289
        %3434 = vmatmul.mubr.bf16.gmra.mrb[0].mxu0 %v3288
        %v3435 = vpop.f32.mrb[0].mxu0
        %v3436 = vadd.f32 0.0, %v3435
        %v3437 = vpop.f32.mrb[0].mxu0
        %v3438 = vadd.f32 0.0, %v3437
        %v3439 = vpop.f32.mrb[0].mxu0
        %v3440 = vadd.f32 0.0, %v3439
        %v3441 = vpop.f32.mrb[0].mxu0
        %v3442 = vadd.f32 0.0, %v3441
        %3443 = vdwg.mxu0
        %3444 = vmatprep.subr.bf16.mxu0 %v3119
        %3445 = vmatpush1.bf16.msra.mxu0 %v3118
        %3446 = vmatprep.subr.bf16.mxu0 %v3121
        %3447 = vmatpush1.bf16.msra.mxu0 %v3120
        %3448 = vmatprep.subr.bf16.mxu0 0
        %3449 = vmatpush1.bf16.msra.mxu0 0
        %3450 = vmatprep.subr.bf16.mxu0 0
        %3451 = vmatpush1.bf16.msra.mxu0 0
        %3452 = vmatprep.subr.bf16.mxu0 0
        %3453 = vmatpush1.bf16.msra.mxu0 0
        %3454 = vmatprep.subr.bf16.mxu0 0
        %3455 = vmatpush1.bf16.msra.mxu0 0
        %3456 = vmatprep.subr.bf16.mxu0 0
        %3457 = vmatpush1.bf16.msra.mxu0 0
        %3458 = vmatprep.subr.bf16.mxu0 0
        %3459 = vmatpush1.bf16.msra.mxu0 0
        %3460 = vmatprep.subr.bf16.mxu0 0
        %3461 = vmatpush1.bf16.msra.mxu0 0
        %3462 = vmatprep.subr.bf16.mxu0 0
        %3463 = vmatpush1.bf16.msra.mxu0 0
        %3464 = vmatprep.subr.bf16.mxu0 0
        %3465 = vmatpush1.bf16.msra.mxu0 0
        %3466 = vmatprep.subr.bf16.mxu0 0
        %3467 = vmatpush1.bf16.msra.mxu0 0
        %3468 = vmatprep.subr.bf16.mxu0 0
        %3469 = vmatpush1.bf16.msra.mxu0 0
        %3470 = vmatprep.subr.bf16.mxu0 0
        %3471 = vmatpush1.bf16.msra.mxu0 0
        %3472 = vmatprep.subr.bf16.mxu0 0
        %3473 = vmatpush1.bf16.msra.mxu0 0
        %3474 = vmatprep.subr.bf16.mxu0 0
        %3475 = vmatpush1.bf16.msra.mxu0 0
        %3476 = vmatprep.mubr.bf16.mxu0 0
        %3477 = vmatmul.mubr.bf16.gmra.mrb[0].mxu0 %v3308
        %v3478 = vpop.f32.mrb[0].mxu0
        %v3479 = vadd.f32 %v3366, %v3478
        %v3480 = vpop.f32.mrb[0].mxu0
        %v3481 = vadd.f32 %v3368, %v3480
        %v3482 = vpop.f32.mrb[0].mxu0
        %v3483 = vadd.f32 %v3370, %v3482
        %v3484 = vpop.f32.mrb[0].mxu0
        %v3485 = vadd.f32 %v3372, %v3484
        %3486 = vmatprep.mubr.bf16.mxu0 0
        %3487 = vmatmul.mubr.bf16.gmra.mrb[0].mxu0 %v3311
        %v3488 = vpop.f32.mrb[0].mxu0
        %v3489 = vadd.f32 %v3376, %v3488
        %v3490 = vpop.f32.mrb[0].mxu0
        %v3491 = vadd.f32 %v3378, %v3490
        %v3492 = vpop.f32.mrb[0].mxu0
        %v3493 = vadd.f32 %v3380, %v3492
        %v3494 = vpop.f32.mrb[0].mxu0
        %v3495 = vadd.f32 %v3382, %v3494
        %3496 = vmatprep.mubr.bf16.mxu0 0
        %3497 = vmatmul.mubr.bf16.gmra.mrb[0].mxu0 %v3314
        %v3498 = vpop.f32.mrb[0].mxu0
        %v3499 = vadd.f32 %v3386, %v3498
        %v3500 = vpop.f32.mrb[0].mxu0
        %v3501 = vadd.f32 %v3388, %v3500
        %v3502 = vpop.f32.mrb[0].mxu0
        %v3503 = vadd.f32 %v3390, %v3502
        %v3504 = vpop.f32.mrb[0].mxu0
        %v3505 = vadd.f32 %v3392, %v3504
        %3506 = vmatprep.mubr.bf16.mxu0 0
        %3507 = vmatmul.mubr.bf16.gmra.mrb[0].mxu0 %v3317
        %v3508 = vpop.f32.mrb[0].mxu0
        %v3509 = vadd.f32 %v3396, %v3508
        %v3510 = vpop.f32.mrb[0].mxu0
        %v3511 = vadd.f32 %v3398, %v3510
        %v3512 = vpop.f32.mrb[0].mxu0
        %v3513 = vadd.f32 %v3400, %v3512
        %v3514 = vpop.f32.mrb[0].mxu0
        %v3515 = vadd.f32 %v3402, %v3514
        %3516 = vmatprep.mubr.bf16.mxu0 0
        %3517 = vmatmul.mubr.bf16.gmra.mrb[0].mxu0 %v3320
        %v3518 = vpop.f32.mrb[0].mxu0
        %v3519 = vadd.f32 %v3406, %v3518
        %v3520 = vpop.f32.mrb[0].mxu0
        %v3521 = vadd.f32 %v3408, %v3520
        %v3522 = vpop.f32.mrb[0].mxu0
        %v3523 = vadd.f32 %v3410, %v3522
        %v3524 = vpop.f32.mrb[0].mxu0
        %v3525 = vadd.f32 %v3412, %v3524
        %3526 = vmatprep.mubr.bf16.mxu0 0
        %3527 = vmatmul.mubr.bf16.gmra.mrb[0].mxu0 %v3323
        %v3528 = vpop.f32.mrb[0].mxu0
        %v3529 = vadd.f32 %v3416, %v3528
        %v3530 = vpop.f32.mrb[0].mxu0
        %v3531 = vadd.f32 %v3418, %v3530
        %v3532 = vpop.f32.mrb[0].mxu0
        %v3533 = vadd.f32 %v3420, %v3532
        %v3534 = vpop.f32.mrb[0].mxu0
        %v3535 = vadd.f32 %v3422, %v3534
        %3536 = vmatprep.mubr.bf16.mxu0 0
        %3537 = vmatmul.mubr.bf16.gmra.mrb[0].mxu0 %v3326
        %v3538 = vpop.f32.mrb[0].mxu0
        %v3539 = vadd.f32 %v3426, %v3538
        %v3540 = vpop.f32.mrb[0].mxu0
        %v3541 = vadd.f32 %v3428, %v3540
        %v3542 = vpop.f32.mrb[0].mxu0
        %v3543 = vadd.f32 %v3430, %v3542
        %v3544 = vpop.f32.mrb[0].mxu0
        %v3545 = vadd.f32 %v3432, %v3544
        %3546 = vmatprep.mubr.bf16.mxu0 0
        %3547 = vmatmul.mubr.bf16.gmra.mrb[0].mxu0 %v3329
        %v3548 = vpop.f32.mrb[0].mxu0
        %v3549 = vadd.f32 %v3436, %v3548
        %v3550 = vpop.f32.mrb[0].mxu0
        %v3551 = vadd.f32 %v3438, %v3550
        %v3552 = vpop.f32.mrb[0].mxu0
        %v3553 = vadd.f32 %v3440, %v3552
        %v3554 = vpop.f32.mrb[0].mxu0
        %v3555 = vadd.f32 %v3442, %v3554
        %3556 = vdwg.mxu0
        %v3557 = vadd.f32 %v3123, %v3479
        %v3558 = vadd.f32 %v3124, %v3481
        %v3559 = vadd.f32 %v3125, %v3483
        %v3560 = vadd.f32 %v3126, %v3485
        %v3561 = vadd.f32 %v3127, %v3489
        %v3562 = vadd.f32 %v3128, %v3491
        %v3563 = vadd.f32 %v3129, %v3493
        %v3564 = vadd.f32 %v3130, %v3495
        %v3565 = vadd.f32 %v3131, %v3499
        %v3566 = vadd.f32 %v3132, %v3501
        %v3567 = vadd.f32 %v3133, %v3503
        %v3568 = vadd.f32 %v3134, %v3505
        %v3569 = vadd.f32 %v3135, %v3509
        %v3570 = vadd.f32 %v3136, %v3511
        %v3571 = vadd.f32 %v3137, %v3513
        %v3572 = vadd.f32 %v3138, %v3515
        %v3573 = vadd.f32 %v3139, %v3519
        %v3574 = vadd.f32 %v3140, %v3521
        %v3575 = vadd.f32 %v3141, %v3523
        %v3576 = vadd.f32 %v3142, %v3525
        %v3577 = vadd.f32 %v3143, %v3529
        %v3578 = vadd.f32 %v3144, %v3531
        %v3579 = vadd.f32 %v3145, %v3533
        %v3580 = vadd.f32 %v3146, %v3535
        %v3581 = vadd.f32 %v3147, %v3539
        %v3582 = vadd.f32 %v3148, %v3541
        %v3583 = vadd.f32 %v3149, %v3543
        %v3584 = vadd.f32 %v3150, %v3545
        %v3585 = vadd.f32 %v3151, %v3549
        %v3586 = vadd.f32 %v3152, %v3551
        %v3587 = vadd.f32 %v3153, %v3553
        %v3588 = vadd.f32 %v3154, %v3555
        %v3589 = vld [vmem:[#allocation9] sm:$0xff]
        %v3590 = vld [vmem:[#allocation9 + $0x8] sm:$0xff]
        %v3591 = vld [vmem:[#allocation9 + $0x10] sm:$0xff]
        %v3592 = vld [vmem:[#allocation9 + $0x18] sm:$0xff]
        %v3593 = vld [vmem:[#allocation9 + $0x20] sm:$0xff]
        %v3594 = vld [vmem:[#allocation9 + $0x28] sm:$0xff]
        %v3595 = vld [vmem:[#allocation9 + $0x30] sm:$0xff]
        %v3596 = vld [vmem:[#allocation9 + $0x38] sm:$0xff]
        %v3597 = vld [vmem:[#allocation9 + $0x40] sm:$0xff]
        %v3598 = vld [vmem:[#allocation9 + $0x48] sm:$0xff]
        %v3599 = vld [vmem:[#allocation9 + $0x50] sm:$0xff]
        %v3600 = vld [vmem:[#allocation9 + $0x58] sm:$0xff]
        %v3601 = vld [vmem:[#allocation9 + $0x60] sm:$0xff]
        %v3602 = vld [vmem:[#allocation9 + $0x68] sm:$0xff]
        %v3603 = vld [vmem:[#allocation9 + $0x70] sm:$0xff]
        %v3604 = vld [vmem:[#allocation9 + $0x78] sm:$0xff]
        %v3605 = vld [vmem:[#allocation9 + $0x80] sm:$0xff]
        %v3606 = vld [vmem:[#allocation9 + $0x88] sm:$0xff]
        %v3607 = vld [vmem:[#allocation9 + $0x90] sm:$0xff]
        %v3608 = vld [vmem:[#allocation9 + $0x98] sm:$0xff]
        %v3609 = vld [vmem:[#allocation9 + $0xa0] sm:$0xff]
        %v3610 = vld [vmem:[#allocation9 + $0xa8] sm:$0xff]
        %v3611 = vld [vmem:[#allocation9 + $0xb0] sm:$0xff]
        %v3612 = vld [vmem:[#allocation9 + $0xb8] sm:$0xff]
        %v3613 = vmul.f32 %v3589, %v2565
        %v3614 = vmul.f32 %v3590, %v2566
        %v3615 = vmul.f32 %v3591, %v2567
        %v3616 = vmul.f32 %v3592, %v2568
        %v3617 = vmul.f32 %v3593, %v2569
        %v3618 = vmul.f32 %v3594, %v2570
        %v3619 = vmul.f32 %v3595, %v2571
        %v3620 = vmul.f32 %v3596, %v2572
        %v3621 = vadd.f32 %v3557, %v3613
        %v3622 = vadd.f32 %v3558, %v3614
        %v3623 = vadd.f32 %v3559, %v3615
        %v3624 = vadd.f32 %v3560, %v3616
        %v3625 = vadd.f32 %v3561, %v3617
        %v3626 = vadd.f32 %v3562, %v3618
        %v3627 = vadd.f32 %v3563, %v3619
        %v3628 = vadd.f32 %v3564, %v3620
        %v3629 = vmul.f32 %v3621, 0.5
        %v3630 = vmul.f32 %v3622, 0.5
        %v3631 = vmul.f32 %v3623, 0.5
        %v3632 = vmul.f32 %v3624, 0.5
        %v3633 = vmul.f32 %v3625, 0.5
        %v3634 = vmul.f32 %v3626, 0.5
        %v3635 = vmul.f32 %v3627, 0.5
        %v3636 = vmul.f32 %v3628, 0.5
        %v3637 = vtanh.pop %v3629
        %v3638 = vtanh.pop %v3630
        %v3639 = vtanh.pop %v3631
        %v3640 = vtanh.pop %v3632
        %v3641 = vtanh.pop %v3633
        %v3642 = vtanh.pop %v3634
        %v3643 = vtanh.pop %v3635
        %v3644 = vtanh.pop %v3636
        %v3645 = vmul.f32 %v3637, 0.5
        %v3646 = vmul.f32 %v3638, 0.5
        %v3647 = vmul.f32 %v3639, 0.5
        %v3648 = vmul.f32 %v3640, 0.5
        %v3649 = vmul.f32 %v3641, 0.5
        %v3650 = vmul.f32 %v3642, 0.5
        %v3651 = vmul.f32 %v3643, 0.5
        %v3652 = vmul.f32 %v3644, 0.5
        %v3653 = vadd.f32 %v3645, 0.5
        %v3654 = vadd.f32 %v3646, 0.5
        %v3655 = vadd.f32 %v3647, 0.5
        %v3656 = vadd.f32 %v3648, 0.5
        %v3657 = vadd.f32 %v3649, 0.5
        %v3658 = vadd.f32 %v3650, 0.5
        %v3659 = vadd.f32 %v3651, 0.5
        %v3660 = vadd.f32 %v3652, 0.5
        %v3661 = vmul.f32 %v3597, %v2565
        %v3662 = vmul.f32 %v3598, %v2566
        %v3663 = vmul.f32 %v3599, %v2567
        %v3664 = vmul.f32 %v3600, %v2568
        %v3665 = vmul.f32 %v3601, %v2569
        %v3666 = vmul.f32 %v3602, %v2570
        %v3667 = vmul.f32 %v3603, %v2571
        %v3668 = vmul.f32 %v3604, %v2572
        %v3669 = vadd.f32 %v3565, %v3661
        %v3670 = vadd.f32 %v3566, %v3662
        %v3671 = vadd.f32 %v3567, %v3663
        %v3672 = vadd.f32 %v3568, %v3664
        %v3673 = vadd.f32 %v3569, %v3665
        %v3674 = vadd.f32 %v3570, %v3666
        %v3675 = vadd.f32 %v3571, %v3667
        %v3676 = vadd.f32 %v3572, %v3668
        %v3677 = vmul.f32 %v3669, 0.5
        %v3678 = vmul.f32 %v3670, 0.5
        %v3679 = vmul.f32 %v3671, 0.5
        %v3680 = vmul.f32 %v3672, 0.5
        %v3681 = vmul.f32 %v3673, 0.5
        %v3682 = vmul.f32 %v3674, 0.5
        %v3683 = vmul.f32 %v3675, 0.5
        %v3684 = vmul.f32 %v3676, 0.5
        %v3685 = vtanh.pop %v3677
        %v3686 = vtanh.pop %v3678
        %v3687 = vtanh.pop %v3679
        %v3688 = vtanh.pop %v3680
        %v3689 = vtanh.pop %v3681
        %v3690 = vtanh.pop %v3682
        %v3691 = vtanh.pop %v3683
        %v3692 = vtanh.pop %v3684
        %v3693 = vmul.f32 %v3685, 0.5
        %v3694 = vmul.f32 %v3686, 0.5
        %v3695 = vmul.f32 %v3687, 0.5
        %v3696 = vmul.f32 %v3688, 0.5
        %v3697 = vmul.f32 %v3689, 0.5
        %v3698 = vmul.f32 %v3690, 0.5
        %v3699 = vmul.f32 %v3691, 0.5
        %v3700 = vmul.f32 %v3692, 0.5
        %v3701 = vadd.f32 %v3693, 0.5
        %v3702 = vadd.f32 %v3694, 0.5
        %v3703 = vadd.f32 %v3695, 0.5
        %v3704 = vadd.f32 %v3696, 0.5
        %v3705 = vadd.f32 %v3697, 0.5
        %v3706 = vadd.f32 %v3698, 0.5
        %v3707 = vadd.f32 %v3699, 0.5
        %v3708 = vadd.f32 %v3700, 0.5
        %v3709 = vmul.f32 %v3701, %v2565
        %v3710 = vmul.f32 %v3702, %v2566
        %v3711 = vmul.f32 %v3703, %v2567
        %v3712 = vmul.f32 %v3704, %v2568
        %v3713 = vmul.f32 %v3705, %v2569
        %v3714 = vmul.f32 %v3706, %v2570
        %v3715 = vmul.f32 %v3707, %v2571
        %v3716 = vmul.f32 %v3708, %v2572
        %v3717 = vtanh.pop %v3573
        %v3718 = vtanh.pop %v3574
        %v3719 = vtanh.pop %v3575
        %v3720 = vtanh.pop %v3576
        %v3721 = vtanh.pop %v3577
        %v3722 = vtanh.pop %v3578
        %v3723 = vtanh.pop %v3579
        %v3724 = vtanh.pop %v3580
        %v3725 = vmul.f32 %v3653, %v3717
        %v3726 = vmul.f32 %v3654, %v3718
        %v3727 = vmul.f32 %v3655, %v3719
        %v3728 = vmul.f32 %v3656, %v3720
        %v3729 = vmul.f32 %v3657, %v3721
        %v3730 = vmul.f32 %v3658, %v3722
        %v3731 = vmul.f32 %v3659, %v3723
        %v3732 = vmul.f32 %v3660, %v3724
        %v3733 = vadd.f32 %v3709, %v3725
        %v3734 = vadd.f32 %v3710, %v3726
        %v3735 = vadd.f32 %v3711, %v3727
        %v3736 = vadd.f32 %v3712, %v3728
        %v3737 = vadd.f32 %v3713, %v3729
        %v3738 = vadd.f32 %v3714, %v3730
        %v3739 = vadd.f32 %v3715, %v3731
        %v3740 = vadd.f32 %v3716, %v3732
        %v3741 = vmul.f32 %v3605, %v3733
        %v3742 = vmul.f32 %v3606, %v3734
        %v3743 = vmul.f32 %v3607, %v3735
        %v3744 = vmul.f32 %v3608, %v3736
        %v3745 = vmul.f32 %v3609, %v3737
        %v3746 = vmul.f32 %v3610, %v3738
        %v3747 = vmul.f32 %v3611, %v3739
        %v3748 = vmul.f32 %v3612, %v3740
        %v3749 = vadd.f32 %v3581, %v3741
        %v3750 = vadd.f32 %v3582, %v3742
        %v3751 = vadd.f32 %v3583, %v3743
        %v3752 = vadd.f32 %v3584, %v3744
        %v3753 = vadd.f32 %v3585, %v3745
        %v3754 = vadd.f32 %v3586, %v3746
        %v3755 = vadd.f32 %v3587, %v3747
        %v3756 = vadd.f32 %v3588, %v3748
        %v3757 = vmul.f32 %v3749, 0.5
        %v3758 = vmul.f32 %v3750, 0.5
        %v3759 = vmul.f32 %v3751, 0.5
        %v3760 = vmul.f32 %v3752, 0.5
        %v3761 = vmul.f32 %v3753, 0.5
        %v3762 = vmul.f32 %v3754, 0.5
        %v3763 = vmul.f32 %v3755, 0.5
        %v3764 = vmul.f32 %v3756, 0.5
        %v3765 = vtanh.pop %v3757
        %v3766 = vtanh.pop %v3758
        %v3767 = vtanh.pop %v3759
        %v3768 = vtanh.pop %v3760
        %v3769 = vtanh.pop %v3761
        %v3770 = vtanh.pop %v3762
        %v3771 = vtanh.pop %v3763
        %v3772 = vtanh.pop %v3764
        %v3773 = vmul.f32 %v3765, 0.5
        %v3774 = vmul.f32 %v3766, 0.5
        %v3775 = vmul.f32 %v3767, 0.5
        %v3776 = vmul.f32 %v3768, 0.5
        %v3777 = vmul.f32 %v3769, 0.5
        %v3778 = vmul.f32 %v3770, 0.5
        %v3779 = vmul.f32 %v3771, 0.5
        %v3780 = vmul.f32 %v3772, 0.5
        %v3781 = vadd.f32 %v3773, 0.5
        %v3782 = vadd.f32 %v3774, 0.5
        %v3783 = vadd.f32 %v3775, 0.5
        %v3784 = vadd.f32 %v3776, 0.5
        %v3785 = vadd.f32 %v3777, 0.5
        %v3786 = vadd.f32 %v3778, 0.5
        %v3787 = vadd.f32 %v3779, 0.5
        %v3788 = vadd.f32 %v3780, 0.5
        %v3789 = vtanh.pop %v3733
        %v3790 = vtanh.pop %v3734
        %v3791 = vtanh.pop %v3735
        %v3792 = vtanh.pop %v3736
        %v3793 = vtanh.pop %v3737
        %v3794 = vtanh.pop %v3738
        %v3795 = vtanh.pop %v3739
        %v3796 = vtanh.pop %v3740
        %v3797 = vmul.f32 %v3781, %v3789
        %v3798 = vmul.f32 %v3782, %v3790
        %v3799 = vmul.f32 %v3783, %v3791
        %v3800 = vmul.f32 %v3784, %v3792
        %v3801 = vmul.f32 %v3785, %v3793
        %v3802 = vmul.f32 %v3786, %v3794
        %v3803 = vmul.f32 %v3787, %v3795
        %v3804 = vmul.f32 %v3788, %v3796
        %s3805 = scalar_lea.vmem %s263, 128 [#allocation10]
        %3806 = vst [vmem:[%s3805] sm:$0xff] %v3797
        %3807 = vst [vmem:[%s3805 + $0x8] sm:$0xff] %v3798
        %3808 = vst [vmem:[%s3805 + $0x10] sm:$0xff] %v3799
        %3809 = vst [vmem:[%s3805 + $0x18] sm:$0xff] %v3800
        %3810 = vst [vmem:[%s3805 + $0x20] sm:$0xff] %v3801
        %3811 = vst [vmem:[%s3805 + $0x28] sm:$0xff] %v3802
        %3812 = vst [vmem:[%s3805 + $0x30] sm:$0xff] %v3803
        %3813 = vst [vmem:[%s3805 + $0x38] sm:$0xff] %v3804
        %3818 = vrot.lane.b32.xlu0 %v3798, 17
        %v3819 = vpop.permute.xlu0 %3818
        %3820 = vrot.lane.b32.xlu0 %v3800, 17
        %v3821 = vpop.permute.xlu0 %3820
        %3822 = vrot.lane.b32.xlu0 %v3802, 17
        %v3823 = vpop.permute.xlu0 %3822
        %3824 = vrot.lane.b32.xlu0 %v3804, 17
        %v3825 = vpop.permute.xlu0 %3824
        %3834 = vrot.lane.b32.xlu0 %v3797, 17
        %v3835 = vpop.permute.xlu0 %3834
        %3836 = vrot.lane.b32.xlu0 %v3799, 17
        %v3837 = vpop.permute.xlu0 %3836
        %3838 = vrot.lane.b32.xlu0 %v3801, 17
        %v3839 = vpop.permute.xlu0 %3838
        %3840 = vrot.lane.b32.xlu0 %v3803, 17
        %v3841 = vpop.permute.xlu0 %3840
        %v3842 = vsel %vm331, %v3835, %v3819
        %v3843 = vsel %vm331, %v3837, %v3821
        %v3844 = vsel %vm331, %v3839, %v3823
        %v3845 = vsel %vm331, %v3841, %v3825
        %v3854 = vsel %vm331, %v3819, %v3835
        %v3855 = vsel %vm331, %v3821, %v3837
        %v3856 = vsel %vm331, %v3823, %v3839
        %v3857 = vsel %vm331, %v3825, %v3841
        %v3858 = vld [vmem:[#allocation7] sm:$0xff]
        %v3859 = vld [vmem:[#allocation7 + $0x8] sm:$0xff]
        %v3860 = vld [vmem:[#allocation7 + $0x10] sm:$0xff]
        %v3861 = vld [vmem:[#allocation7 + $0x18] sm:$0xff]
        %v3862 = vld [vmem:[#allocation7 + $0x20] sm:$0xff]
        %v3863 = vld [vmem:[#allocation7 + $0x28] sm:$0xff]
        %v3864 = vld [vmem:[#allocation7 + $0x30] sm:$0xff]
        %v3865 = vld [vmem:[#allocation7 + $0x38] sm:$0xff]
        %v3866 = vmul.f32 %v3854, %v3858
        %v3867 = vmul.f32 %v3842, %v3859
        %v3868 = vmul.f32 %v3855, %v3860
        %v3869 = vmul.f32 %v3843, %v3861
        %v3870 = vmul.f32 %v3856, %v3862
        %v3871 = vmul.f32 %v3844, %v3863
        %v3872 = vmul.f32 %v3857, %v3864
        %v3873 = vmul.f32 %v3845, %v3865
        %v3874 = vpack.c.bf16 %v3868, %v3866
        %v3875 = vpack.c.bf16 %v3869, %v3867
        %v3876 = vpack.c.bf16 %v3872, %v3870
        %v3877 = vpack.c.bf16 %v3873, %v3871
        %3878 = vrot.lane.b32.xlu0 %v3798, 16
        %v3879 = vpop.permute.xlu0 %3878
        %3880 = vrot.lane.b32.xlu0 %v3800, 16
        %v3881 = vpop.permute.xlu0 %3880
        %3882 = vrot.lane.b32.xlu0 %v3802, 16
        %v3883 = vpop.permute.xlu0 %3882
        %3884 = vrot.lane.b32.xlu0 %v3804, 16
        %v3885 = vpop.permute.xlu0 %3884
        %3890 = vrot.lane.b32.xlu0 %v3797, 16
        %v3891 = vpop.permute.xlu0 %3890
        %3892 = vrot.lane.b32.xlu0 %v3799, 16
        %v3893 = vpop.permute.xlu0 %3892
        %3894 = vrot.lane.b32.xlu0 %v3801, 16
        %v3895 = vpop.permute.xlu0 %3894
        %3896 = vrot.lane.b32.xlu0 %v3803, 16
        %v3897 = vpop.permute.xlu0 %3896
        %v3898 = vsel %vm388, %v3891, %v3879
        %v3899 = vsel %vm388, %v3893, %v3881
        %v3900 = vsel %vm388, %v3895, %v3883
        %v3901 = vsel %vm388, %v3897, %v3885
        %v3910 = vsel %vm388, %v3879, %v3891
        %v3911 = vsel %vm388, %v3881, %v3893
        %v3912 = vsel %vm388, %v3883, %v3895
        %v3913 = vsel %vm388, %v3885, %v3897
        %v3914 = vld [vmem:[#allocation7 + $0x40] sm:$0xff]
        %v3915 = vld [vmem:[#allocation7 + $0x48] sm:$0xff]
        %v3916 = vld [vmem:[#allocation7 + $0x50] sm:$0xff]
        %v3917 = vld [vmem:[#allocation7 + $0x58] sm:$0xff]
        %v3918 = vld [vmem:[#allocation7 + $0x60] sm:$0xff]
        %v3919 = vld [vmem:[#allocation7 + $0x68] sm:$0xff]
        %v3920 = vld [vmem:[#allocation7 + $0x70] sm:$0xff]
        %v3921 = vld [vmem:[#allocation7 + $0x78] sm:$0xff]
        %v3922 = vmul.f32 %v3910, %v3914
        %v3923 = vmul.f32 %v3898, %v3915
        %v3924 = vmul.f32 %v3911, %v3916
        %v3925 = vmul.f32 %v3899, %v3917
        %v3926 = vmul.f32 %v3912, %v3918
        %v3927 = vmul.f32 %v3900, %v3919
        %v3928 = vmul.f32 %v3913, %v3920
        %v3929 = vmul.f32 %v3901, %v3921
        %v3930 = vpack.c.bf16 %v3924, %v3922
        %v3931 = vpack.c.bf16 %v3925, %v3923
        %v3932 = vpack.c.bf16 %v3928, %v3926
        %v3933 = vpack.c.bf16 %v3929, %v3927
        %3934 = vrot.lane.b32.xlu0 %v3798, 15
        %v3935 = vpop.permute.xlu0 %3934
        %3936 = vrot.lane.b32.xlu0 %v3800, 15
        %v3937 = vpop.permute.xlu0 %3936
        %3938 = vrot.lane.b32.xlu0 %v3802, 15
        %v3939 = vpop.permute.xlu0 %3938
        %3940 = vrot.lane.b32.xlu0 %v3804, 15
        %v3941 = vpop.permute.xlu0 %3940
        %3946 = vrot.lane.b32.xlu0 %v3797, 15
        %v3947 = vpop.permute.xlu0 %3946
        %3948 = vrot.lane.b32.xlu0 %v3799, 15
        %v3949 = vpop.permute.xlu0 %3948
        %3950 = vrot.lane.b32.xlu0 %v3801, 15
        %v3951 = vpop.permute.xlu0 %3950
        %3952 = vrot.lane.b32.xlu0 %v3803, 15
        %v3953 = vpop.permute.xlu0 %3952
        %v3954 = vsel %vm445, %v3947, %v3935
        %v3955 = vsel %vm445, %v3949, %v3937
        %v3956 = vsel %vm445, %v3951, %v3939
        %v3957 = vsel %vm445, %v3953, %v3941
        %v3966 = vsel %vm445, %v3935, %v3947
        %v3967 = vsel %vm445, %v3937, %v3949
        %v3968 = vsel %vm445, %v3939, %v3951
        %v3969 = vsel %vm445, %v3941, %v3953
        %v3970 = vld [vmem:[#allocation7 + $0x80] sm:$0xff]
        %v3971 = vld [vmem:[#allocation7 + $0x88] sm:$0xff]
        %v3972 = vld [vmem:[#allocation7 + $0x90] sm:$0xff]
        %v3973 = vld [vmem:[#allocation7 + $0x98] sm:$0xff]
        %v3974 = vld [vmem:[#allocation7 + $0xa0] sm:$0xff]
        %v3975 = vld [vmem:[#allocation7 + $0xa8] sm:$0xff]
        %v3976 = vld [vmem:[#allocation7 + $0xb0] sm:$0xff]
        %v3977 = vld [vmem:[#allocation7 + $0xb8] sm:$0xff]
        %v3978 = vmul.f32 %v3966, %v3970
        %v3979 = vmul.f32 %v3954, %v3971
        %v3980 = vmul.f32 %v3967, %v3972
        %v3981 = vmul.f32 %v3955, %v3973
        %v3982 = vmul.f32 %v3968, %v3974
        %v3983 = vmul.f32 %v3956, %v3975
        %v3984 = vmul.f32 %v3969, %v3976
        %v3985 = vmul.f32 %v3957, %v3977
        %v3986 = vpack.c.bf16 %v3980, %v3978
        %v3987 = vpack.c.bf16 %v3981, %v3979
        %v3988 = vpack.c.bf16 %v3984, %v3982
        %v3989 = vpack.c.bf16 %v3985, %v3983
        %3990 = vrot.lane.b32.xlu0 %v3798, 1
        %v3991 = vpop.permute.xlu0 %3990
        %3992 = vrot.lane.b32.xlu0 %v3800, 1
        %v3993 = vpop.permute.xlu0 %3992
        %3994 = vrot.lane.b32.xlu0 %v3802, 1
        %v3995 = vpop.permute.xlu0 %3994
        %3996 = vrot.lane.b32.xlu0 %v3804, 1
        %v3997 = vpop.permute.xlu0 %3996
        %4002 = vrot.lane.b32.xlu0 %v3797, 1
        %v4003 = vpop.permute.xlu0 %4002
        %4004 = vrot.lane.b32.xlu0 %v3799, 1
        %v4005 = vpop.permute.xlu0 %4004
        %4006 = vrot.lane.b32.xlu0 %v3801, 1
        %v4007 = vpop.permute.xlu0 %4006
        %4008 = vrot.lane.b32.xlu0 %v3803, 1
        %v4009 = vpop.permute.xlu0 %4008
        %v4010 = vsel %vm502, %v4003, %v3991
        %v4011 = vsel %vm502, %v4005, %v3993
        %v4012 = vsel %vm502, %v4007, %v3995
        %v4013 = vsel %vm502, %v4009, %v3997
        %v4022 = vsel %vm502, %v3991, %v4003
        %v4023 = vsel %vm502, %v3993, %v4005
        %v4024 = vsel %vm502, %v3995, %v4007
        %v4025 = vsel %vm502, %v3997, %v4009
        %v4026 = vld [vmem:[#allocation7 + $0xc0] sm:$0xff]
        %v4027 = vld [vmem:[#allocation7 + $0xc8] sm:$0xff]
        %v4028 = vld [vmem:[#allocation7 + $0xd0] sm:$0xff]
        %v4029 = vld [vmem:[#allocation7 + $0xd8] sm:$0xff]
        %v4030 = vld [vmem:[#allocation7 + $0xe0] sm:$0xff]
        %v4031 = vld [vmem:[#allocation7 + $0xe8] sm:$0xff]
        %v4032 = vld [vmem:[#allocation7 + $0xf0] sm:$0xff]
        %v4033 = vld [vmem:[#allocation7 + $0xf8] sm:$0xff]
        %v4034 = vmul.f32 %v4022, %v4026
        %v4035 = vmul.f32 %v4010, %v4027
        %v4036 = vmul.f32 %v4023, %v4028
        %v4037 = vmul.f32 %v4011, %v4029
        %v4038 = vmul.f32 %v4024, %v4030
        %v4039 = vmul.f32 %v4012, %v4031
        %v4040 = vmul.f32 %v4025, %v4032
        %v4041 = vmul.f32 %v4013, %v4033
        %v4042 = vpack.c.bf16 %v4036, %v4034
        %v4043 = vpack.c.bf16 %v4037, %v4035
        %v4044 = vpack.c.bf16 %v4040, %v4038
        %v4045 = vpack.c.bf16 %v4041, %v4039
        %v4046 = vld [vmem:[#allocation7 + $0x100] sm:$0xff]
        %v4047 = vld [vmem:[#allocation7 + $0x108] sm:$0xff]
        %v4048 = vld [vmem:[#allocation7 + $0x110] sm:$0xff]
        %v4049 = vld [vmem:[#allocation7 + $0x118] sm:$0xff]
        %v4050 = vld [vmem:[#allocation7 + $0x120] sm:$0xff]
        %v4051 = vld [vmem:[#allocation7 + $0x128] sm:$0xff]
        %v4052 = vld [vmem:[#allocation7 + $0x130] sm:$0xff]
        %v4053 = vld [vmem:[#allocation7 + $0x138] sm:$0xff]
        %v4054 = vmul.f32 %v3797, %v4046
        %v4055 = vmul.f32 %v3798, %v4047
        %v4056 = vmul.f32 %v3799, %v4048
        %v4057 = vmul.f32 %v3800, %v4049
        %v4058 = vmul.f32 %v3801, %v4050
        %v4059 = vmul.f32 %v3802, %v4051
        %v4060 = vmul.f32 %v3803, %v4052
        %v4061 = vmul.f32 %v3804, %v4053
        %v4062 = vpack.c.bf16 %v4056, %v4054
        %v4063 = vpack.c.bf16 %v4057, %v4055
        %v4064 = vpack.c.bf16 %v4060, %v4058
        %v4065 = vpack.c.bf16 %v4061, %v4059
        %4066 = vrot.lane.b32.xlu0 %v3797, 127
        %v4067 = vpop.permute.xlu0 %4066
        %4068 = vrot.lane.b32.xlu0 %v3798, 127
        %v4069 = vpop.permute.xlu0 %4068
        %4070 = vrot.lane.b32.xlu0 %v3799, 127
        %v4071 = vpop.permute.xlu0 %4070
        %4072 = vrot.lane.b32.xlu0 %v3800, 127
        %v4073 = vpop.permute.xlu0 %4072
        %4074 = vrot.lane.b32.xlu0 %v3801, 127
        %v4075 = vpop.permute.xlu0 %4074
        %4076 = vrot.lane.b32.xlu0 %v3802, 127
        %v4077 = vpop.permute.xlu0 %4076
        %4078 = vrot.lane.b32.xlu0 %v3803, 127
        %v4079 = vpop.permute.xlu0 %4078
        %4080 = vrot.lane.b32.xlu0 %v3804, 127
        %v4081 = vpop.permute.xlu0 %4080
        %v4082 = vsel %vm575, %v4067, %v4069
        %v4083 = vsel %vm575, %v4071, %v4073
        %v4084 = vsel %vm575, %v4075, %v4077
        %v4085 = vsel %vm575, %v4079, %v4081
        %v4098 = vsel %vm575, %v4069, %v4067
        %v4099 = vsel %vm575, %v4073, %v4071
        %v4100 = vsel %vm575, %v4077, %v4075
        %v4101 = vsel %vm575, %v4081, %v4079
        %v4102 = vld [vmem:[#allocation7 + $0x140] sm:$0xff]
        %v4103 = vld [vmem:[#allocation7 + $0x148] sm:$0xff]
        %v4104 = vld [vmem:[#allocation7 + $0x150] sm:$0xff]
        %v4105 = vld [vmem:[#allocation7 + $0x158] sm:$0xff]
        %v4106 = vld [vmem:[#allocation7 + $0x160] sm:$0xff]
        %v4107 = vld [vmem:[#allocation7 + $0x168] sm:$0xff]
        %v4108 = vld [vmem:[#allocation7 + $0x170] sm:$0xff]
        %v4109 = vld [vmem:[#allocation7 + $0x178] sm:$0xff]
        %v4110 = vmul.f32 %v4082, %v4102
        %v4111 = vmul.f32 %v4098, %v4103
        %v4112 = vmul.f32 %v4083, %v4104
        %v4113 = vmul.f32 %v4099, %v4105
        %v4114 = vmul.f32 %v4084, %v4106
        %v4115 = vmul.f32 %v4100, %v4107
        %v4116 = vmul.f32 %v4085, %v4108
        %v4117 = vmul.f32 %v4101, %v4109
        %v4118 = vpack.c.bf16 %v4112, %v4110
        %v4119 = vpack.c.bf16 %v4113, %v4111
        %v4120 = vpack.c.bf16 %v4116, %v4114
        %v4121 = vpack.c.bf16 %v4117, %v4115
        %4122 = vrot.lane.b32.xlu0 %v3797, 113
        %v4123 = vpop.permute.xlu0 %4122
        %4124 = vrot.lane.b32.xlu0 %v3798, 113
        %v4125 = vpop.permute.xlu0 %4124
        %4126 = vrot.lane.b32.xlu0 %v3799, 113
        %v4127 = vpop.permute.xlu0 %4126
        %4128 = vrot.lane.b32.xlu0 %v3800, 113
        %v4129 = vpop.permute.xlu0 %4128
        %4130 = vrot.lane.b32.xlu0 %v3801, 113
        %v4131 = vpop.permute.xlu0 %4130
        %4132 = vrot.lane.b32.xlu0 %v3802, 113
        %v4133 = vpop.permute.xlu0 %4132
        %4134 = vrot.lane.b32.xlu0 %v3803, 113
        %v4135 = vpop.permute.xlu0 %4134
        %4136 = vrot.lane.b32.xlu0 %v3804, 113
        %v4137 = vpop.permute.xlu0 %4136
        %v4138 = vsel %vm632, %v4123, %v4125
        %v4139 = vsel %vm632, %v4127, %v4129
        %v4140 = vsel %vm632, %v4131, %v4133
        %v4141 = vsel %vm632, %v4135, %v4137
        %v4154 = vsel %vm632, %v4125, %v4123
        %v4155 = vsel %vm632, %v4129, %v4127
        %v4156 = vsel %vm632, %v4133, %v4131
        %v4157 = vsel %vm632, %v4137, %v4135
        %v4158 = vld [vmem:[#allocation7 + $0x180] sm:$0xff]
        %v4159 = vld [vmem:[#allocation7 + $0x188] sm:$0xff]
        %v4160 = vld [vmem:[#allocation7 + $0x190] sm:$0xff]
        %v4161 = vld [vmem:[#allocation7 + $0x198] sm:$0xff]
        %v4162 = vld [vmem:[#allocation7 + $0x1a0] sm:$0xff]
        %v4163 = vld [vmem:[#allocation7 + $0x1a8] sm:$0xff]
        %v4164 = vld [vmem:[#allocation7 + $0x1b0] sm:$0xff]
        %v4165 = vld [vmem:[#allocation7 + $0x1b8] sm:$0xff]
        %v4166 = vmul.f32 %v4138, %v4158
        %v4167 = vmul.f32 %v4154, %v4159
        %v4168 = vmul.f32 %v4139, %v4160
        %v4169 = vmul.f32 %v4155, %v4161
        %v4170 = vmul.f32 %v4140, %v4162
        %v4171 = vmul.f32 %v4156, %v4163
        %v4172 = vmul.f32 %v4141, %v4164
        %v4173 = vmul.f32 %v4157, %v4165
        %v4174 = vpack.c.bf16 %v4168, %v4166
        %v4175 = vpack.c.bf16 %v4169, %v4167
        %v4176 = vpack.c.bf16 %v4172, %v4170
        %v4177 = vpack.c.bf16 %v4173, %v4171
        %4178 = vrot.lane.b32.xlu0 %v3797, 112
        %v4179 = vpop.permute.xlu0 %4178
        %4180 = vrot.lane.b32.xlu0 %v3798, 112
        %v4181 = vpop.permute.xlu0 %4180
        %4182 = vrot.lane.b32.xlu0 %v3799, 112
        %v4183 = vpop.permute.xlu0 %4182
        %4184 = vrot.lane.b32.xlu0 %v3800, 112
        %v4185 = vpop.permute.xlu0 %4184
        %4186 = vrot.lane.b32.xlu0 %v3801, 112
        %v4187 = vpop.permute.xlu0 %4186
        %4188 = vrot.lane.b32.xlu0 %v3802, 112
        %v4189 = vpop.permute.xlu0 %4188
        %4190 = vrot.lane.b32.xlu0 %v3803, 112
        %v4191 = vpop.permute.xlu0 %4190
        %4192 = vrot.lane.b32.xlu0 %v3804, 112
        %v4193 = vpop.permute.xlu0 %4192
        %v4194 = vsel %vm689, %v4179, %v4181
        %v4195 = vsel %vm689, %v4183, %v4185
        %v4196 = vsel %vm689, %v4187, %v4189
        %v4197 = vsel %vm689, %v4191, %v4193
        %v4210 = vsel %vm689, %v4181, %v4179
        %v4211 = vsel %vm689, %v4185, %v4183
        %v4212 = vsel %vm689, %v4189, %v4187
        %v4213 = vsel %vm689, %v4193, %v4191
        %v4214 = vld [vmem:[#allocation7 + $0x1c0] sm:$0xff]
        %v4215 = vld [vmem:[#allocation7 + $0x1c8] sm:$0xff]
        %v4216 = vld [vmem:[#allocation7 + $0x1d0] sm:$0xff]
        %v4217 = vld [vmem:[#allocation7 + $0x1d8] sm:$0xff]
        %v4218 = vld [vmem:[#allocation7 + $0x1e0] sm:$0xff]
        %v4219 = vld [vmem:[#allocation7 + $0x1e8] sm:$0xff]
        %v4220 = vld [vmem:[#allocation7 + $0x1f0] sm:$0xff]
        %v4221 = vld [vmem:[#allocation7 + $0x1f8] sm:$0xff]
        %v4222 = vmul.f32 %v4194, %v4214
        %v4223 = vmul.f32 %v4210, %v4215
        %v4224 = vmul.f32 %v4195, %v4216
        %v4225 = vmul.f32 %v4211, %v4217
        %v4226 = vmul.f32 %v4196, %v4218
        %v4227 = vmul.f32 %v4212, %v4219
        %v4228 = vmul.f32 %v4197, %v4220
        %v4229 = vmul.f32 %v4213, %v4221
        %v4230 = vpack.c.bf16 %v4224, %v4222
        %v4231 = vpack.c.bf16 %v4225, %v4223
        %v4232 = vpack.c.bf16 %v4228, %v4226
        %v4233 = vpack.c.bf16 %v4229, %v4227
        %4234 = vrot.lane.b32.xlu0 %v3797, 111
        %v4235 = vpop.permute.xlu0 %4234
        %4236 = vrot.lane.b32.xlu0 %v3798, 111
        %v4237 = vpop.permute.xlu0 %4236
        %4238 = vrot.lane.b32.xlu0 %v3799, 111
        %v4239 = vpop.permute.xlu0 %4238
        %4240 = vrot.lane.b32.xlu0 %v3800, 111
        %v4241 = vpop.permute.xlu0 %4240
        %4242 = vrot.lane.b32.xlu0 %v3801, 111
        %v4243 = vpop.permute.xlu0 %4242
        %4244 = vrot.lane.b32.xlu0 %v3802, 111
        %v4245 = vpop.permute.xlu0 %4244
        %4246 = vrot.lane.b32.xlu0 %v3803, 111
        %v4247 = vpop.permute.xlu0 %4246
        %4248 = vrot.lane.b32.xlu0 %v3804, 111
        %v4249 = vpop.permute.xlu0 %4248
        %v4250 = vsel %vm746, %v4235, %v4237
        %v4251 = vsel %vm746, %v4239, %v4241
        %v4252 = vsel %vm746, %v4243, %v4245
        %v4253 = vsel %vm746, %v4247, %v4249
        %v4266 = vsel %vm746, %v4237, %v4235
        %v4267 = vsel %vm746, %v4241, %v4239
        %v4268 = vsel %vm746, %v4245, %v4243
        %v4269 = vsel %vm746, %v4249, %v4247
        %v4270 = vld [vmem:[#allocation7 + $0x200] sm:$0xff]
        %v4271 = vld [vmem:[#allocation7 + $0x208] sm:$0xff]
        %v4272 = vld [vmem:[#allocation7 + $0x210] sm:$0xff]
        %v4273 = vld [vmem:[#allocation7 + $0x218] sm:$0xff]
        %v4274 = vld [vmem:[#allocation7 + $0x220] sm:$0xff]
        %v4275 = vld [vmem:[#allocation7 + $0x228] sm:$0xff]
        %v4276 = vld [vmem:[#allocation7 + $0x230] sm:$0xff]
        %v4277 = vld [vmem:[#allocation7 + $0x238] sm:$0xff]
        %v4278 = vmul.f32 %v4250, %v4270
        %v4279 = vmul.f32 %v4266, %v4271
        %v4280 = vmul.f32 %v4251, %v4272
        %v4281 = vmul.f32 %v4267, %v4273
        %v4282 = vmul.f32 %v4252, %v4274
        %v4283 = vmul.f32 %v4268, %v4275
        %v4284 = vmul.f32 %v4253, %v4276
        %v4285 = vmul.f32 %v4269, %v4277
        %v4286 = vpack.c.bf16 %v4280, %v4278
        %v4287 = vpack.c.bf16 %v4281, %v4279
        %v4288 = vpack.c.bf16 %v4284, %v4282
        %v4289 = vpack.c.bf16 %v4285, %v4283
        %s4290 = scalar_lea.vmem %s231, 768 [#allocation4]
        %v4291 = vld [vmem:[%s4290] sm:$0xff]
        %v4292 = vld [vmem:[%s4290 + $0x8] sm:$0xff]
        %v4293 = vld [vmem:[%s4290 + $0x10] sm:$0xff]
        %v4294 = vld [vmem:[%s4290 + $0x18] sm:$0xff]
        %v4295 = vld [vmem:[%s4290 + $0x20] sm:$0xff]
        %v4296 = vld [vmem:[%s4290 + $0x28] sm:$0xff]
        %v4297 = vld [vmem:[%s4290 + $0x30] sm:$0xff]
        %v4298 = vld [vmem:[%s4290 + $0x38] sm:$0xff]
        %v4299 = vld [vmem:[%s4290 + $0x40] sm:$0xff]
        %v4300 = vld [vmem:[%s4290 + $0x48] sm:$0xff]
        %v4301 = vld [vmem:[%s4290 + $0x50] sm:$0xff]
        %v4302 = vld [vmem:[%s4290 + $0x58] sm:$0xff]
        %v4303 = vld [vmem:[%s4290 + $0x60] sm:$0xff]
        %v4304 = vld [vmem:[%s4290 + $0x68] sm:$0xff]
        %v4305 = vld [vmem:[%s4290 + $0x70] sm:$0xff]
        %v4306 = vld [vmem:[%s4290 + $0x78] sm:$0xff]
        %v4307 = vld [vmem:[%s4290 + $0x80] sm:$0xff]
        %v4308 = vld [vmem:[%s4290 + $0x88] sm:$0xff]
        %v4309 = vld [vmem:[%s4290 + $0x90] sm:$0xff]
        %v4310 = vld [vmem:[%s4290 + $0x98] sm:$0xff]
        %v4311 = vld [vmem:[%s4290 + $0xa0] sm:$0xff]
        %v4312 = vld [vmem:[%s4290 + $0xa8] sm:$0xff]
        %v4313 = vld [vmem:[%s4290 + $0xb0] sm:$0xff]
        %v4314 = vld [vmem:[%s4290 + $0xb8] sm:$0xff]
        %v4315 = vld [vmem:[%s4290 + $0xc0] sm:$0xff]
        %v4316 = vld [vmem:[%s4290 + $0xc8] sm:$0xff]
        %v4317 = vld [vmem:[%s4290 + $0xd0] sm:$0xff]
        %v4318 = vld [vmem:[%s4290 + $0xd8] sm:$0xff]
        %v4319 = vld [vmem:[%s4290 + $0xe0] sm:$0xff]
        %v4320 = vld [vmem:[%s4290 + $0xe8] sm:$0xff]
        %v4321 = vld [vmem:[%s4290 + $0xf0] sm:$0xff]
        %v4322 = vld [vmem:[%s4290 + $0xf8] sm:$0xff]
        %v4323 = vld [vmem:[%s1] sm:$0xff]
        %v4324 = vld [vmem:[%s1 + $0x8] sm:$0xf]
        %v4325 = vld [vmem:[%s1 + $0xc] sm:$0xff]
        %v4326 = vld [vmem:[%s1 + $0x14] sm:$0xf]
        %v4327 = vld [vmem:[%s1 + $0x18] sm:$0xff]
        %v4328 = vld [vmem:[%s1 + $0x20] sm:$0xf]
        %v4329 = vld [vmem:[%s1 + $0x24] sm:$0xff]
        %v4330 = vld [vmem:[%s1 + $0x2c] sm:$0xf]
        %v4331 = vld [vmem:[%s1 + $0x30] sm:$0xff]
        %v4332 = vld [vmem:[%s1 + $0x38] sm:$0xf]
        %v4333 = vld [vmem:[%s1 + $0x3c] sm:$0xff]
        %v4334 = vld [vmem:[%s1 + $0x44] sm:$0xf]
        %v4335 = vld [vmem:[%s1 + $0x48] sm:$0xff]
        %v4336 = vld [vmem:[%s1 + $0x50] sm:$0xf]
        %v4337 = vld [vmem:[%s1 + $0x54] sm:$0xff]
        %v4338 = vld [vmem:[%s1 + $0x5c] sm:$0xf]
        %v4339 = vld [vmem:[%s1 + $0x60] sm:$0xff]
        %v4340 = vld [vmem:[%s1 + $0x68] sm:$0xf]
        %v4341 = vld [vmem:[%s1 + $0x6c] sm:$0xff]
        %v4342 = vld [vmem:[%s1 + $0x74] sm:$0xf]
        %v4343 = vld [vmem:[%s1 + $0x78] sm:$0xff]
        %v4344 = vld [vmem:[%s1 + $0x80] sm:$0xf]
        %v4345 = vld [vmem:[%s1 + $0x84] sm:$0xff]
        %v4346 = vld [vmem:[%s1 + $0x8c] sm:$0xf]
        %v4347 = vld [vmem:[%s1 + $0x90] sm:$0xff]
        %v4348 = vld [vmem:[%s1 + $0x98] sm:$0xf]
        %v4349 = vld [vmem:[%s1 + $0x9c] sm:$0xff]
        %v4350 = vld [vmem:[%s1 + $0xa4] sm:$0xf]
        %v4351 = vld [vmem:[%s1 + $0xa8] sm:$0xff]
        %v4352 = vld [vmem:[%s1 + $0xb0] sm:$0xf]
        %v4353 = vld [vmem:[%s1 + $0xb4] sm:$0xff]
        %v4354 = vld [vmem:[%s1 + $0xbc] sm:$0xf]
        %v4387 = vunpack.c.l.b16 %v4323
        %v4388 = vunpack.c.h.b16 %v4323
        %v4389 = vunpack.c.l.b16 %v4324
        %v4390 = vunpack.c.l.b16 %v4325
        %v4391 = vunpack.c.h.b16 %v4325
        %v4392 = vunpack.c.l.b16 %v4326
        %v4393 = vunpack.c.l.b16 %v4327
        %v4394 = vunpack.c.h.b16 %v4327
        %v4395 = vunpack.c.l.b16 %v4328
        %v4396 = vunpack.c.l.b16 %v4329
        %v4397 = vunpack.c.h.b16 %v4329
        %v4398 = vunpack.c.l.b16 %v4330
        %v4399 = vunpack.c.l.b16 %v4331
        %v4400 = vunpack.c.h.b16 %v4331
        %v4401 = vunpack.c.l.b16 %v4332
        %v4402 = vunpack.c.l.b16 %v4333
        %v4403 = vunpack.c.h.b16 %v4333
        %v4404 = vunpack.c.l.b16 %v4334
        %v4405 = vunpack.c.l.b16 %v4335
        %v4406 = vunpack.c.h.b16 %v4335
        %v4407 = vunpack.c.l.b16 %v4336
        %v4408 = vunpack.c.l.b16 %v4337
        %v4409 = vunpack.c.h.b16 %v4337
        %v4410 = vunpack.c.l.b16 %v4338
        %v4411 = vunpack.c.l.b16 %v4339
        %v4412 = vunpack.c.h.b16 %v4339
        %v4413 = vunpack.c.l.b16 %v4340
        %v4414 = vunpack.c.l.b16 %v4341
        %v4415 = vunpack.c.h.b16 %v4341
        %v4416 = vunpack.c.l.b16 %v4342
        %v4417 = vunpack.c.l.b16 %v4343
        %v4418 = vunpack.c.h.b16 %v4343
        %v4419 = vunpack.c.l.b16 %v4344
        %v4420 = vunpack.c.l.b16 %v4345
        %v4421 = vunpack.c.h.b16 %v4345
        %v4422 = vunpack.c.l.b16 %v4346
        %v4423 = vunpack.c.l.b16 %v4347
        %v4424 = vunpack.c.h.b16 %v4347
        %v4425 = vunpack.c.l.b16 %v4348
        %v4426 = vunpack.c.l.b16 %v4349
        %v4427 = vunpack.c.h.b16 %v4349
        %v4428 = vunpack.c.l.b16 %v4350
        %v4429 = vunpack.c.l.b16 %v4351
        %v4430 = vunpack.c.h.b16 %v4351
        %v4431 = vunpack.c.l.b16 %v4352
        %v4432 = vunpack.c.l.b16 %v4353
        %v4433 = vunpack.c.h.b16 %v4353
        %v4434 = vunpack.c.l.b16 %v4354
        %v4435 = vpack.c.b16 %v4390, %v4387
        %v4436 = vpack.c.b16 %v4391, %v4388
        %v4437 = vpack.c.b16 %v4392, %v4389
        %v4438 = vpack.c.b16 %v4396, %v4393
        %v4439 = vpack.c.b16 %v4397, %v4394
        %v4440 = vpack.c.b16 %v4398, %v4395
        %v4441 = vpack.c.b16 %v4402, %v4399
        %v4442 = vpack.c.b16 %v4403, %v4400
        %v4443 = vpack.c.b16 %v4404, %v4401
        %v4444 = vpack.c.b16 %v4408, %v4405
        %v4445 = vpack.c.b16 %v4409, %v4406
        %v4446 = vpack.c.b16 %v4410, %v4407
        %v4447 = vpack.c.b16 %v4414, %v4411
        %v4448 = vpack.c.b16 %v4415, %v4412
        %v4449 = vpack.c.b16 %v4416, %v4413
        %v4450 = vpack.c.b16 %v4420, %v4417
        %v4451 = vpack.c.b16 %v4421, %v4418
        %v4452 = vpack.c.b16 %v4422, %v4419
        %v4453 = vpack.c.b16 %v4426, %v4423
        %v4454 = vpack.c.b16 %v4427, %v4424
        %v4455 = vpack.c.b16 %v4428, %v4425
        %v4456 = vpack.c.b16 %v4432, %v4429
        %v4457 = vpack.c.b16 %v4433, %v4430
        %v4458 = vpack.c.b16 %v4434, %v4431
        %v4476 = vsel %vm971, %v4437, 0
        %v4479 = vsel %vm971, %v4440, 0
        %v4482 = vsel %vm971, %v4443, 0
        %v4485 = vsel %vm971, %v4446, 0
        %v4488 = vsel %vm971, %v4449, 0
        %v4491 = vsel %vm971, %v4452, 0
        %v4494 = vsel %vm971, %v4455, 0
        %v4497 = vsel %vm971, %v4458, 0
        %4499 = vmatprep.subr.bf16.mxu0 %v3875
        %4500 = vmatpush1.bf16.msra.mxu0 %v3874
        %4501 = vmatprep.subr.bf16.mxu0 %v3877
        %4502 = vmatpush1.bf16.msra.mxu0 %v3876
        %4503 = vmatprep.subr.bf16.mxu0 %v3931
        %4504 = vmatpush1.bf16.msra.mxu0 %v3930
        %4505 = vmatprep.subr.bf16.mxu0 %v3933
        %4506 = vmatpush1.bf16.msra.mxu0 %v3932
        %4507 = vmatprep.subr.bf16.mxu0 %v3987
        %4508 = vmatpush1.bf16.msra.mxu0 %v3986
        %4509 = vmatprep.subr.bf16.mxu0 %v3989
        %4510 = vmatpush1.bf16.msra.mxu0 %v3988
        %4511 = vmatprep.subr.bf16.mxu0 %v4043
        %4512 = vmatpush1.bf16.msra.mxu0 %v4042
        %4513 = vmatprep.subr.bf16.mxu0 %v4045
        %4514 = vmatpush1.bf16.msra.mxu0 %v4044
        %4515 = vmatprep.subr.bf16.mxu0 %v4063
        %4516 = vmatpush1.bf16.msra.mxu0 %v4062
        %4517 = vmatprep.subr.bf16.mxu0 %v4065
        %4518 = vmatpush1.bf16.msra.mxu0 %v4064
        %4519 = vmatprep.subr.bf16.mxu0 %v4119
        %4520 = vmatpush1.bf16.msra.mxu0 %v4118
        %4521 = vmatprep.subr.bf16.mxu0 %v4121
        %4522 = vmatpush1.bf16.msra.mxu0 %v4120
        %4523 = vmatprep.subr.bf16.mxu0 %v4175
        %4524 = vmatpush1.bf16.msra.mxu0 %v4174
        %4525 = vmatprep.subr.bf16.mxu0 %v4177
        %4526 = vmatpush1.bf16.msra.mxu0 %v4176
        %4527 = vmatprep.subr.bf16.mxu0 %v4231
        %4528 = vmatpush1.bf16.msra.mxu0 %v4230
        %4529 = vmatprep.subr.bf16.mxu0 %v4233
        %4530 = vmatpush1.bf16.msra.mxu0 %v4232
        %4531 = vmatprep.mubr.bf16.mxu0 %v4436
        %4532 = vmatmul.mubr.bf16.gmra.mrb[0].mxu0 %v4435
        %v4533 = vpop.f32.mrb[0].mxu0
        %v4534 = vadd.f32 0.0, %v4533
        %v4535 = vpop.f32.mrb[0].mxu0
        %v4536 = vadd.f32 0.0, %v4535
        %v4537 = vpop.f32.mrb[0].mxu0
        %v4538 = vadd.f32 0.0, %v4537
        %v4539 = vpop.f32.mrb[0].mxu0
        %v4540 = vadd.f32 0.0, %v4539
        %4541 = vmatprep.mubr.bf16.mxu0 %v4439
        %4542 = vmatmul.mubr.bf16.gmra.mrb[0].mxu0 %v4438
        %v4543 = vpop.f32.mrb[0].mxu0
        %v4544 = vadd.f32 0.0, %v4543
        %v4545 = vpop.f32.mrb[0].mxu0
        %v4546 = vadd.f32 0.0, %v4545
        %v4547 = vpop.f32.mrb[0].mxu0
        %v4548 = vadd.f32 0.0, %v4547
        %v4549 = vpop.f32.mrb[0].mxu0
        %v4550 = vadd.f32 0.0, %v4549
        %4551 = vmatprep.mubr.bf16.mxu0 %v4442
        %4552 = vmatmul.mubr.bf16.gmra.mrb[0].mxu0 %v4441
        %v4553 = vpop.f32.mrb[0].mxu0
        %v4554 = vadd.f32 0.0, %v4553
        %v4555 = vpop.f32.mrb[0].mxu0
        %v4556 = vadd.f32 0.0, %v4555
        %v4557 = vpop.f32.mrb[0].mxu0
        %v4558 = vadd.f32 0.0, %v4557
        %v4559 = vpop.f32.mrb[0].mxu0
        %v4560 = vadd.f32 0.0, %v4559
        %4561 = vmatprep.mubr.bf16.mxu0 %v4445
        %4562 = vmatmul.mubr.bf16.gmra.mrb[0].mxu0 %v4444
        %v4563 = vpop.f32.mrb[0].mxu0
        %v4564 = vadd.f32 0.0, %v4563
        %v4565 = vpop.f32.mrb[0].mxu0
        %v4566 = vadd.f32 0.0, %v4565
        %v4567 = vpop.f32.mrb[0].mxu0
        %v4568 = vadd.f32 0.0, %v4567
        %v4569 = vpop.f32.mrb[0].mxu0
        %v4570 = vadd.f32 0.0, %v4569
        %4571 = vmatprep.mubr.bf16.mxu0 %v4448
        %4572 = vmatmul.mubr.bf16.gmra.mrb[0].mxu0 %v4447
        %v4573 = vpop.f32.mrb[0].mxu0
        %v4574 = vadd.f32 0.0, %v4573
        %v4575 = vpop.f32.mrb[0].mxu0
        %v4576 = vadd.f32 0.0, %v4575
        %v4577 = vpop.f32.mrb[0].mxu0
        %v4578 = vadd.f32 0.0, %v4577
        %v4579 = vpop.f32.mrb[0].mxu0
        %v4580 = vadd.f32 0.0, %v4579
        %4581 = vmatprep.mubr.bf16.mxu0 %v4451
        %4582 = vmatmul.mubr.bf16.gmra.mrb[0].mxu0 %v4450
        %v4583 = vpop.f32.mrb[0].mxu0
        %v4584 = vadd.f32 0.0, %v4583
        %v4585 = vpop.f32.mrb[0].mxu0
        %v4586 = vadd.f32 0.0, %v4585
        %v4587 = vpop.f32.mrb[0].mxu0
        %v4588 = vadd.f32 0.0, %v4587
        %v4589 = vpop.f32.mrb[0].mxu0
        %v4590 = vadd.f32 0.0, %v4589
        %4591 = vmatprep.mubr.bf16.mxu0 %v4454
        %4592 = vmatmul.mubr.bf16.gmra.mrb[0].mxu0 %v4453
        %v4593 = vpop.f32.mrb[0].mxu0
        %v4594 = vadd.f32 0.0, %v4593
        %v4595 = vpop.f32.mrb[0].mxu0
        %v4596 = vadd.f32 0.0, %v4595
        %v4597 = vpop.f32.mrb[0].mxu0
        %v4598 = vadd.f32 0.0, %v4597
        %v4599 = vpop.f32.mrb[0].mxu0
        %v4600 = vadd.f32 0.0, %v4599
        %4601 = vmatprep.mubr.bf16.mxu0 %v4457
        %4602 = vmatmul.mubr.bf16.gmra.mrb[0].mxu0 %v4456
        %v4603 = vpop.f32.mrb[0].mxu0
        %v4604 = vadd.f32 0.0, %v4603
        %v4605 = vpop.f32.mrb[0].mxu0
        %v4606 = vadd.f32 0.0, %v4605
        %v4607 = vpop.f32.mrb[0].mxu0
        %v4608 = vadd.f32 0.0, %v4607
        %v4609 = vpop.f32.mrb[0].mxu0
        %v4610 = vadd.f32 0.0, %v4609
        %4611 = vdwg.mxu0
        %4612 = vmatprep.subr.bf16.mxu0 %v4287
        %4613 = vmatpush1.bf16.msra.mxu0 %v4286
        %4614 = vmatprep.subr.bf16.mxu0 %v4289
        %4615 = vmatpush1.bf16.msra.mxu0 %v4288
        %4616 = vmatprep.subr.bf16.mxu0 0
        %4617 = vmatpush1.bf16.msra.mxu0 0
        %4618 = vmatprep.subr.bf16.mxu0 0
        %4619 = vmatpush1.bf16.msra.mxu0 0
        %4620 = vmatprep.subr.bf16.mxu0 0
        %4621 = vmatpush1.bf16.msra.mxu0 0
        %4622 = vmatprep.subr.bf16.mxu0 0
        %4623 = vmatpush1.bf16.msra.mxu0 0
        %4624 = vmatprep.subr.bf16.mxu0 0
        %4625 = vmatpush1.bf16.msra.mxu0 0
        %4626 = vmatprep.subr.bf16.mxu0 0
        %4627 = vmatpush1.bf16.msra.mxu0 0
        %4628 = vmatprep.subr.bf16.mxu0 0
        %4629 = vmatpush1.bf16.msra.mxu0 0
        %4630 = vmatprep.subr.bf16.mxu0 0
        %4631 = vmatpush1.bf16.msra.mxu0 0
        %4632 = vmatprep.subr.bf16.mxu0 0
        %4633 = vmatpush1.bf16.msra.mxu0 0
        %4634 = vmatprep.subr.bf16.mxu0 0
        %4635 = vmatpush1.bf16.msra.mxu0 0
        %4636 = vmatprep.subr.bf16.mxu0 0
        %4637 = vmatpush1.bf16.msra.mxu0 0
        %4638 = vmatprep.subr.bf16.mxu0 0
        %4639 = vmatpush1.bf16.msra.mxu0 0
        %4640 = vmatprep.subr.bf16.mxu0 0
        %4641 = vmatpush1.bf16.msra.mxu0 0
        %4642 = vmatprep.subr.bf16.mxu0 0
        %4643 = vmatpush1.bf16.msra.mxu0 0
        %4644 = vmatprep.mubr.bf16.mxu0 0
        %4645 = vmatmul.mubr.bf16.gmra.mrb[0].mxu0 %v4476
        %v4646 = vpop.f32.mrb[0].mxu0
        %v4647 = vadd.f32 %v4534, %v4646
        %v4648 = vpop.f32.mrb[0].mxu0
        %v4649 = vadd.f32 %v4536, %v4648
        %v4650 = vpop.f32.mrb[0].mxu0
        %v4651 = vadd.f32 %v4538, %v4650
        %v4652 = vpop.f32.mrb[0].mxu0
        %v4653 = vadd.f32 %v4540, %v4652
        %4654 = vmatprep.mubr.bf16.mxu0 0
        %4655 = vmatmul.mubr.bf16.gmra.mrb[0].mxu0 %v4479
        %v4656 = vpop.f32.mrb[0].mxu0
        %v4657 = vadd.f32 %v4544, %v4656
        %v4658 = vpop.f32.mrb[0].mxu0
        %v4659 = vadd.f32 %v4546, %v4658
        %v4660 = vpop.f32.mrb[0].mxu0
        %v4661 = vadd.f32 %v4548, %v4660
        %v4662 = vpop.f32.mrb[0].mxu0
        %v4663 = vadd.f32 %v4550, %v4662
        %4664 = vmatprep.mubr.bf16.mxu0 0
        %4665 = vmatmul.mubr.bf16.gmra.mrb[0].mxu0 %v4482
        %v4666 = vpop.f32.mrb[0].mxu0
        %v4667 = vadd.f32 %v4554, %v4666
        %v4668 = vpop.f32.mrb[0].mxu0
        %v4669 = vadd.f32 %v4556, %v4668
        %v4670 = vpop.f32.mrb[0].mxu0
        %v4671 = vadd.f32 %v4558, %v4670
        %v4672 = vpop.f32.mrb[0].mxu0
        %v4673 = vadd.f32 %v4560, %v4672
        %4674 = vmatprep.mubr.bf16.mxu0 0
        %4675 = vmatmul.mubr.bf16.gmra.mrb[0].mxu0 %v4485
        %v4676 = vpop.f32.mrb[0].mxu0
        %v4677 = vadd.f32 %v4564, %v4676
        %v4678 = vpop.f32.mrb[0].mxu0
        %v4679 = vadd.f32 %v4566, %v4678
        %v4680 = vpop.f32.mrb[0].mxu0
        %v4681 = vadd.f32 %v4568, %v4680
        %v4682 = vpop.f32.mrb[0].mxu0
        %v4683 = vadd.f32 %v4570, %v4682
        %4684 = vmatprep.mubr.bf16.mxu0 0
        %4685 = vmatmul.mubr.bf16.gmra.mrb[0].mxu0 %v4488
        %v4686 = vpop.f32.mrb[0].mxu0
        %v4687 = vadd.f32 %v4574, %v4686
        %v4688 = vpop.f32.mrb[0].mxu0
        %v4689 = vadd.f32 %v4576, %v4688
        %v4690 = vpop.f32.mrb[0].mxu0
        %v4691 = vadd.f32 %v4578, %v4690
        %v4692 = vpop.f32.mrb[0].mxu0
        %v4693 = vadd.f32 %v4580, %v4692
        %4694 = vmatprep.mubr.bf16.mxu0 0
        %4695 = vmatmul.mubr.bf16.gmra.mrb[0].mxu0 %v4491
        %v4696 = vpop.f32.mrb[0].mxu0
        %v4697 = vadd.f32 %v4584, %v4696
        %v4698 = vpop.f32.mrb[0].mxu0
        %v4699 = vadd.f32 %v4586, %v4698
        %v4700 = vpop.f32.mrb[0].mxu0
        %v4701 = vadd.f32 %v4588, %v4700
        %v4702 = vpop.f32.mrb[0].mxu0
        %v4703 = vadd.f32 %v4590, %v4702
        %4704 = vmatprep.mubr.bf16.mxu0 0
        %4705 = vmatmul.mubr.bf16.gmra.mrb[0].mxu0 %v4494
        %v4706 = vpop.f32.mrb[0].mxu0
        %v4707 = vadd.f32 %v4594, %v4706
        %v4708 = vpop.f32.mrb[0].mxu0
        %v4709 = vadd.f32 %v4596, %v4708
        %v4710 = vpop.f32.mrb[0].mxu0
        %v4711 = vadd.f32 %v4598, %v4710
        %v4712 = vpop.f32.mrb[0].mxu0
        %v4713 = vadd.f32 %v4600, %v4712
        %4714 = vmatprep.mubr.bf16.mxu0 0
        %4715 = vmatmul.mubr.bf16.gmra.mrb[0].mxu0 %v4497
        %v4716 = vpop.f32.mrb[0].mxu0
        %v4717 = vadd.f32 %v4604, %v4716
        %v4718 = vpop.f32.mrb[0].mxu0
        %v4719 = vadd.f32 %v4606, %v4718
        %v4720 = vpop.f32.mrb[0].mxu0
        %v4721 = vadd.f32 %v4608, %v4720
        %v4722 = vpop.f32.mrb[0].mxu0
        %v4723 = vadd.f32 %v4610, %v4722
        %4724 = vdwg.mxu0
        %v4725 = vadd.f32 %v4291, %v4647
        %v4726 = vadd.f32 %v4292, %v4649
        %v4727 = vadd.f32 %v4293, %v4651
        %v4728 = vadd.f32 %v4294, %v4653
        %v4729 = vadd.f32 %v4295, %v4657
        %v4730 = vadd.f32 %v4296, %v4659
        %v4731 = vadd.f32 %v4297, %v4661
        %v4732 = vadd.f32 %v4298, %v4663
        %v4733 = vadd.f32 %v4299, %v4667
        %v4734 = vadd.f32 %v4300, %v4669
        %v4735 = vadd.f32 %v4301, %v4671
        %v4736 = vadd.f32 %v4302, %v4673
        %v4737 = vadd.f32 %v4303, %v4677
        %v4738 = vadd.f32 %v4304, %v4679
        %v4739 = vadd.f32 %v4305, %v4681
        %v4740 = vadd.f32 %v4306, %v4683
        %v4741 = vadd.f32 %v4307, %v4687
        %v4742 = vadd.f32 %v4308, %v4689
        %v4743 = vadd.f32 %v4309, %v4691
        %v4744 = vadd.f32 %v4310, %v4693
        %v4745 = vadd.f32 %v4311, %v4697
        %v4746 = vadd.f32 %v4312, %v4699
        %v4747 = vadd.f32 %v4313, %v4701
        %v4748 = vadd.f32 %v4314, %v4703
        %v4749 = vadd.f32 %v4315, %v4707
        %v4750 = vadd.f32 %v4316, %v4709
        %v4751 = vadd.f32 %v4317, %v4711
        %v4752 = vadd.f32 %v4318, %v4713
        %v4753 = vadd.f32 %v4319, %v4717
        %v4754 = vadd.f32 %v4320, %v4719
        %v4755 = vadd.f32 %v4321, %v4721
        %v4756 = vadd.f32 %v4322, %v4723
        %v4757 = vld [vmem:[#allocation9] sm:$0xff]
        %v4758 = vld [vmem:[#allocation9 + $0x8] sm:$0xff]
        %v4759 = vld [vmem:[#allocation9 + $0x10] sm:$0xff]
        %v4760 = vld [vmem:[#allocation9 + $0x18] sm:$0xff]
        %v4761 = vld [vmem:[#allocation9 + $0x20] sm:$0xff]
        %v4762 = vld [vmem:[#allocation9 + $0x28] sm:$0xff]
        %v4763 = vld [vmem:[#allocation9 + $0x30] sm:$0xff]
        %v4764 = vld [vmem:[#allocation9 + $0x38] sm:$0xff]
        %v4765 = vld [vmem:[#allocation9 + $0x40] sm:$0xff]
        %v4766 = vld [vmem:[#allocation9 + $0x48] sm:$0xff]
        %v4767 = vld [vmem:[#allocation9 + $0x50] sm:$0xff]
        %v4768 = vld [vmem:[#allocation9 + $0x58] sm:$0xff]
        %v4769 = vld [vmem:[#allocation9 + $0x60] sm:$0xff]
        %v4770 = vld [vmem:[#allocation9 + $0x68] sm:$0xff]
        %v4771 = vld [vmem:[#allocation9 + $0x70] sm:$0xff]
        %v4772 = vld [vmem:[#allocation9 + $0x78] sm:$0xff]
        %v4773 = vld [vmem:[#allocation9 + $0x80] sm:$0xff]
        %v4774 = vld [vmem:[#allocation9 + $0x88] sm:$0xff]
        %v4775 = vld [vmem:[#allocation9 + $0x90] sm:$0xff]
        %v4776 = vld [vmem:[#allocation9 + $0x98] sm:$0xff]
        %v4777 = vld [vmem:[#allocation9 + $0xa0] sm:$0xff]
        %v4778 = vld [vmem:[#allocation9 + $0xa8] sm:$0xff]
        %v4779 = vld [vmem:[#allocation9 + $0xb0] sm:$0xff]
        %v4780 = vld [vmem:[#allocation9 + $0xb8] sm:$0xff]
        %v4781 = vmul.f32 %v4757, %v3733
        %v4782 = vmul.f32 %v4758, %v3734
        %v4783 = vmul.f32 %v4759, %v3735
        %v4784 = vmul.f32 %v4760, %v3736
        %v4785 = vmul.f32 %v4761, %v3737
        %v4786 = vmul.f32 %v4762, %v3738
        %v4787 = vmul.f32 %v4763, %v3739
        %v4788 = vmul.f32 %v4764, %v3740
        %v4789 = vadd.f32 %v4725, %v4781
        %v4790 = vadd.f32 %v4726, %v4782
        %v4791 = vadd.f32 %v4727, %v4783
        %v4792 = vadd.f32 %v4728, %v4784
        %v4793 = vadd.f32 %v4729, %v4785
        %v4794 = vadd.f32 %v4730, %v4786
        %v4795 = vadd.f32 %v4731, %v4787
        %v4796 = vadd.f32 %v4732, %v4788
        %v4797 = vmul.f32 %v4789, 0.5
        %v4798 = vmul.f32 %v4790, 0.5
        %v4799 = vmul.f32 %v4791, 0.5
        %v4800 = vmul.f32 %v4792, 0.5
        %v4801 = vmul.f32 %v4793, 0.5
        %v4802 = vmul.f32 %v4794, 0.5
        %v4803 = vmul.f32 %v4795, 0.5
        %v4804 = vmul.f32 %v4796, 0.5
        %v4805 = vtanh.pop %v4797
        %v4806 = vtanh.pop %v4798
        %v4807 = vtanh.pop %v4799
        %v4808 = vtanh.pop %v4800
        %v4809 = vtanh.pop %v4801
        %v4810 = vtanh.pop %v4802
        %v4811 = vtanh.pop %v4803
        %v4812 = vtanh.pop %v4804
        %v4813 = vmul.f32 %v4805, 0.5
        %v4814 = vmul.f32 %v4806, 0.5
        %v4815 = vmul.f32 %v4807, 0.5
        %v4816 = vmul.f32 %v4808, 0.5
        %v4817 = vmul.f32 %v4809, 0.5
        %v4818 = vmul.f32 %v4810, 0.5
        %v4819 = vmul.f32 %v4811, 0.5
        %v4820 = vmul.f32 %v4812, 0.5
        %v4821 = vadd.f32 %v4813, 0.5
        %v4822 = vadd.f32 %v4814, 0.5
        %v4823 = vadd.f32 %v4815, 0.5
        %v4824 = vadd.f32 %v4816, 0.5
        %v4825 = vadd.f32 %v4817, 0.5
        %v4826 = vadd.f32 %v4818, 0.5
        %v4827 = vadd.f32 %v4819, 0.5
        %v4828 = vadd.f32 %v4820, 0.5
        %v4829 = vmul.f32 %v4765, %v3733
        %v4830 = vmul.f32 %v4766, %v3734
        %v4831 = vmul.f32 %v4767, %v3735
        %v4832 = vmul.f32 %v4768, %v3736
        %v4833 = vmul.f32 %v4769, %v3737
        %v4834 = vmul.f32 %v4770, %v3738
        %v4835 = vmul.f32 %v4771, %v3739
        %v4836 = vmul.f32 %v4772, %v3740
        %v4837 = vadd.f32 %v4733, %v4829
        %v4838 = vadd.f32 %v4734, %v4830
        %v4839 = vadd.f32 %v4735, %v4831
        %v4840 = vadd.f32 %v4736, %v4832
        %v4841 = vadd.f32 %v4737, %v4833
        %v4842 = vadd.f32 %v4738, %v4834
        %v4843 = vadd.f32 %v4739, %v4835
        %v4844 = vadd.f32 %v4740, %v4836
        %v4845 = vmul.f32 %v4837, 0.5
        %v4846 = vmul.f32 %v4838, 0.5
        %v4847 = vmul.f32 %v4839, 0.5
        %v4848 = vmul.f32 %v4840, 0.5
        %v4849 = vmul.f32 %v4841, 0.5
        %v4850 = vmul.f32 %v4842, 0.5
        %v4851 = vmul.f32 %v4843, 0.5
        %v4852 = vmul.f32 %v4844, 0.5
        %v4853 = vtanh.pop %v4845
        %v4854 = vtanh.pop %v4846
        %v4855 = vtanh.pop %v4847
        %v4856 = vtanh.pop %v4848
        %v4857 = vtanh.pop %v4849
        %v4858 = vtanh.pop %v4850
        %v4859 = vtanh.pop %v4851
        %v4860 = vtanh.pop %v4852
        %v4861 = vmul.f32 %v4853, 0.5
        %v4862 = vmul.f32 %v4854, 0.5
        %v4863 = vmul.f32 %v4855, 0.5
        %v4864 = vmul.f32 %v4856, 0.5
        %v4865 = vmul.f32 %v4857, 0.5
        %v4866 = vmul.f32 %v4858, 0.5
        %v4867 = vmul.f32 %v4859, 0.5
        %v4868 = vmul.f32 %v4860, 0.5
        %v4869 = vadd.f32 %v4861, 0.5
        %v4870 = vadd.f32 %v4862, 0.5
        %v4871 = vadd.f32 %v4863, 0.5
        %v4872 = vadd.f32 %v4864, 0.5
        %v4873 = vadd.f32 %v4865, 0.5
        %v4874 = vadd.f32 %v4866, 0.5
        %v4875 = vadd.f32 %v4867, 0.5
        %v4876 = vadd.f32 %v4868, 0.5
        %v4877 = vmul.f32 %v4869, %v3733
        %v4878 = vmul.f32 %v4870, %v3734
        %v4879 = vmul.f32 %v4871, %v3735
        %v4880 = vmul.f32 %v4872, %v3736
        %v4881 = vmul.f32 %v4873, %v3737
        %v4882 = vmul.f32 %v4874, %v3738
        %v4883 = vmul.f32 %v4875, %v3739
        %v4884 = vmul.f32 %v4876, %v3740
        %v4885 = vtanh.pop %v4741
        %v4886 = vtanh.pop %v4742
        %v4887 = vtanh.pop %v4743
        %v4888 = vtanh.pop %v4744
        %v4889 = vtanh.pop %v4745
        %v4890 = vtanh.pop %v4746
        %v4891 = vtanh.pop %v4747
        %v4892 = vtanh.pop %v4748
        %v4893 = vmul.f32 %v4821, %v4885
        %v4894 = vmul.f32 %v4822, %v4886
        %v4895 = vmul.f32 %v4823, %v4887
        %v4896 = vmul.f32 %v4824, %v4888
        %v4897 = vmul.f32 %v4825, %v4889
        %v4898 = vmul.f32 %v4826, %v4890
        %v4899 = vmul.f32 %v4827, %v4891
        %v4900 = vmul.f32 %v4828, %v4892
        %v4901 = vadd.f32 %v4877, %v4893
        %v4902 = vadd.f32 %v4878, %v4894
        %v4903 = vadd.f32 %v4879, %v4895
        %v4904 = vadd.f32 %v4880, %v4896
        %v4905 = vadd.f32 %v4881, %v4897
        %v4906 = vadd.f32 %v4882, %v4898
        %v4907 = vadd.f32 %v4883, %v4899
        %v4908 = vadd.f32 %v4884, %v4900
        %v4909 = vmul.f32 %v4773, %v4901
        %v4910 = vmul.f32 %v4774, %v4902
        %v4911 = vmul.f32 %v4775, %v4903
        %v4912 = vmul.f32 %v4776, %v4904
        %v4913 = vmul.f32 %v4777, %v4905
        %v4914 = vmul.f32 %v4778, %v4906
        %v4915 = vmul.f32 %v4779, %v4907
        %v4916 = vmul.f32 %v4780, %v4908
        %v4917 = vadd.f32 %v4749, %v4909
        %v4918 = vadd.f32 %v4750, %v4910
        %v4919 = vadd.f32 %v4751, %v4911
        %v4920 = vadd.f32 %v4752, %v4912
        %v4921 = vadd.f32 %v4753, %v4913
        %v4922 = vadd.f32 %v4754, %v4914
        %v4923 = vadd.f32 %v4755, %v4915
        %v4924 = vadd.f32 %v4756, %v4916
        %v4925 = vmul.f32 %v4917, 0.5
        %v4926 = vmul.f32 %v4918, 0.5
        %v4927 = vmul.f32 %v4919, 0.5
        %v4928 = vmul.f32 %v4920, 0.5
        %v4929 = vmul.f32 %v4921, 0.5
        %v4930 = vmul.f32 %v4922, 0.5
        %v4931 = vmul.f32 %v4923, 0.5
        %v4932 = vmul.f32 %v4924, 0.5
        %v4933 = vtanh.pop %v4925
        %v4934 = vtanh.pop %v4926
        %v4935 = vtanh.pop %v4927
        %v4936 = vtanh.pop %v4928
        %v4937 = vtanh.pop %v4929
        %v4938 = vtanh.pop %v4930
        %v4939 = vtanh.pop %v4931
        %v4940 = vtanh.pop %v4932
        %v4941 = vmul.f32 %v4933, 0.5
        %v4942 = vmul.f32 %v4934, 0.5
        %v4943 = vmul.f32 %v4935, 0.5
        %v4944 = vmul.f32 %v4936, 0.5
        %v4945 = vmul.f32 %v4937, 0.5
        %v4946 = vmul.f32 %v4938, 0.5
        %v4947 = vmul.f32 %v4939, 0.5
        %v4948 = vmul.f32 %v4940, 0.5
        %v4949 = vadd.f32 %v4941, 0.5
        %v4950 = vadd.f32 %v4942, 0.5
        %v4951 = vadd.f32 %v4943, 0.5
        %v4952 = vadd.f32 %v4944, 0.5
        %v4953 = vadd.f32 %v4945, 0.5
        %v4954 = vadd.f32 %v4946, 0.5
        %v4955 = vadd.f32 %v4947, 0.5
        %v4956 = vadd.f32 %v4948, 0.5
        %v4957 = vtanh.pop %v4901
        %v4958 = vtanh.pop %v4902
        %v4959 = vtanh.pop %v4903
        %v4960 = vtanh.pop %v4904
        %v4961 = vtanh.pop %v4905
        %v4962 = vtanh.pop %v4906
        %v4963 = vtanh.pop %v4907
        %v4964 = vtanh.pop %v4908
        %v4965 = vmul.f32 %v4949, %v4957
        %v4966 = vmul.f32 %v4950, %v4958
        %v4967 = vmul.f32 %v4951, %v4959
        %v4968 = vmul.f32 %v4952, %v4960
        %v4969 = vmul.f32 %v4953, %v4961
        %v4970 = vmul.f32 %v4954, %v4962
        %v4971 = vmul.f32 %v4955, %v4963
        %v4972 = vmul.f32 %v4956, %v4964
        %s4973 = scalar_lea.vmem %s263, 192 [#allocation10]
        %4974 = vst [vmem:[%s4973] sm:$0xff] %v4965
        %4975 = vst [vmem:[%s4973 + $0x8] sm:$0xff] %v4966
        %4976 = vst [vmem:[%s4973 + $0x10] sm:$0xff] %v4967
        %4977 = vst [vmem:[%s4973 + $0x18] sm:$0xff] %v4968
        %4978 = vst [vmem:[%s4973 + $0x20] sm:$0xff] %v4969
        %4979 = vst [vmem:[%s4973 + $0x28] sm:$0xff] %v4970
        %4980 = vst [vmem:[%s4973 + $0x30] sm:$0xff] %v4971
        %4981 = vst [vmem:[%s4973 + $0x38] sm:$0xff] %v4972
        %4986 = vrot.lane.b32.xlu0 %v4966, 17
        %v4987 = vpop.permute.xlu0 %4986
        %4988 = vrot.lane.b32.xlu0 %v4968, 17
        %v4989 = vpop.permute.xlu0 %4988
        %4990 = vrot.lane.b32.xlu0 %v4970, 17
        %v4991 = vpop.permute.xlu0 %4990
        %4992 = vrot.lane.b32.xlu0 %v4972, 17
        %v4993 = vpop.permute.xlu0 %4992
        %5002 = vrot.lane.b32.xlu0 %v4965, 17
        %v5003 = vpop.permute.xlu0 %5002
        %5004 = vrot.lane.b32.xlu0 %v4967, 17
        %v5005 = vpop.permute.xlu0 %5004
        %5006 = vrot.lane.b32.xlu0 %v4969, 17
        %v5007 = vpop.permute.xlu0 %5006
        %5008 = vrot.lane.b32.xlu0 %v4971, 17
        %v5009 = vpop.permute.xlu0 %5008
        %v5010 = vsel %vm331, %v5003, %v4987
        %v5011 = vsel %vm331, %v5005, %v4989
        %v5012 = vsel %vm331, %v5007, %v4991
        %v5013 = vsel %vm331, %v5009, %v4993
        %v5022 = vsel %vm331, %v4987, %v5003
        %v5023 = vsel %vm331, %v4989, %v5005
        %v5024 = vsel %vm331, %v4991, %v5007
        %v5025 = vsel %vm331, %v4993, %v5009
        %v5026 = vld [vmem:[#allocation7] sm:$0xff]
        %v5027 = vld [vmem:[#allocation7 + $0x8] sm:$0xff]
        %v5028 = vld [vmem:[#allocation7 + $0x10] sm:$0xff]
        %v5029 = vld [vmem:[#allocation7 + $0x18] sm:$0xff]
        %v5030 = vld [vmem:[#allocation7 + $0x20] sm:$0xff]
        %v5031 = vld [vmem:[#allocation7 + $0x28] sm:$0xff]
        %v5032 = vld [vmem:[#allocation7 + $0x30] sm:$0xff]
        %v5033 = vld [vmem:[#allocation7 + $0x38] sm:$0xff]
        %v5034 = vmul.f32 %v5022, %v5026
        %v5035 = vmul.f32 %v5010, %v5027
        %v5036 = vmul.f32 %v5023, %v5028
        %v5037 = vmul.f32 %v5011, %v5029
        %v5038 = vmul.f32 %v5024, %v5030
        %v5039 = vmul.f32 %v5012, %v5031
        %v5040 = vmul.f32 %v5025, %v5032
        %v5041 = vmul.f32 %v5013, %v5033
        %v5042 = vpack.c.bf16 %v5036, %v5034
        %v5043 = vpack.c.bf16 %v5037, %v5035
        %v5044 = vpack.c.bf16 %v5040, %v5038
        %v5045 = vpack.c.bf16 %v5041, %v5039
        %5046 = vrot.lane.b32.xlu0 %v4966, 16
        %v5047 = vpop.permute.xlu0 %5046
        %5048 = vrot.lane.b32.xlu0 %v4968, 16
        %v5049 = vpop.permute.xlu0 %5048
        %5050 = vrot.lane.b32.xlu0 %v4970, 16
        %v5051 = vpop.permute.xlu0 %5050
        %5052 = vrot.lane.b32.xlu0 %v4972, 16
        %v5053 = vpop.permute.xlu0 %5052
        %5058 = vrot.lane.b32.xlu0 %v4965, 16
        %v5059 = vpop.permute.xlu0 %5058
        %5060 = vrot.lane.b32.xlu0 %v4967, 16
        %v5061 = vpop.permute.xlu0 %5060
        %5062 = vrot.lane.b32.xlu0 %v4969, 16
        %v5063 = vpop.permute.xlu0 %5062
        %5064 = vrot.lane.b32.xlu0 %v4971, 16
        %v5065 = vpop.permute.xlu0 %5064
        %v5066 = vsel %vm388, %v5059, %v5047
        %v5067 = vsel %vm388, %v5061, %v5049
        %v5068 = vsel %vm388, %v5063, %v5051
        %v5069 = vsel %vm388, %v5065, %v5053
        %v5078 = vsel %vm388, %v5047, %v5059
        %v5079 = vsel %vm388, %v5049, %v5061
        %v5080 = vsel %vm388, %v5051, %v5063
        %v5081 = vsel %vm388, %v5053, %v5065
        %v5082 = vld [vmem:[#allocation7 + $0x40] sm:$0xff]
        %v5083 = vld [vmem:[#allocation7 + $0x48] sm:$0xff]
        %v5084 = vld [vmem:[#allocation7 + $0x50] sm:$0xff]
        %v5085 = vld [vmem:[#allocation7 + $0x58] sm:$0xff]
        %v5086 = vld [vmem:[#allocation7 + $0x60] sm:$0xff]
        %v5087 = vld [vmem:[#allocation7 + $0x68] sm:$0xff]
        %v5088 = vld [vmem:[#allocation7 + $0x70] sm:$0xff]
        %v5089 = vld [vmem:[#allocation7 + $0x78] sm:$0xff]
        %v5090 = vmul.f32 %v5078, %v5082
        %v5091 = vmul.f32 %v5066, %v5083
        %v5092 = vmul.f32 %v5079, %v5084
        %v5093 = vmul.f32 %v5067, %v5085
        %v5094 = vmul.f32 %v5080, %v5086
        %v5095 = vmul.f32 %v5068, %v5087
        %v5096 = vmul.f32 %v5081, %v5088
        %v5097 = vmul.f32 %v5069, %v5089
        %v5098 = vpack.c.bf16 %v5092, %v5090
        %v5099 = vpack.c.bf16 %v5093, %v5091
        %v5100 = vpack.c.bf16 %v5096, %v5094
        %v5101 = vpack.c.bf16 %v5097, %v5095
        %5102 = vrot.lane.b32.xlu0 %v4966, 15
        %v5103 = vpop.permute.xlu0 %5102
        %5104 = vrot.lane.b32.xlu0 %v4968, 15
        %v5105 = vpop.permute.xlu0 %5104
        %5106 = vrot.lane.b32.xlu0 %v4970, 15
        %v5107 = vpop.permute.xlu0 %5106
        %5108 = vrot.lane.b32.xlu0 %v4972, 15
        %v5109 = vpop.permute.xlu0 %5108
        %5114 = vrot.lane.b32.xlu0 %v4965, 15
        %v5115 = vpop.permute.xlu0 %5114
        %5116 = vrot.lane.b32.xlu0 %v4967, 15
        %v5117 = vpop.permute.xlu0 %5116
        %5118 = vrot.lane.b32.xlu0 %v4969, 15
        %v5119 = vpop.permute.xlu0 %5118
        %5120 = vrot.lane.b32.xlu0 %v4971, 15
        %v5121 = vpop.permute.xlu0 %5120
        %v5122 = vsel %vm445, %v5115, %v5103
        %v5123 = vsel %vm445, %v5117, %v5105
        %v5124 = vsel %vm445, %v5119, %v5107
        %v5125 = vsel %vm445, %v5121, %v5109
        %v5134 = vsel %vm445, %v5103, %v5115
        %v5135 = vsel %vm445, %v5105, %v5117
        %v5136 = vsel %vm445, %v5107, %v5119
        %v5137 = vsel %vm445, %v5109, %v5121
        %v5138 = vld [vmem:[#allocation7 + $0x80] sm:$0xff]
        %v5139 = vld [vmem:[#allocation7 + $0x88] sm:$0xff]
        %v5140 = vld [vmem:[#allocation7 + $0x90] sm:$0xff]
        %v5141 = vld [vmem:[#allocation7 + $0x98] sm:$0xff]
        %v5142 = vld [vmem:[#allocation7 + $0xa0] sm:$0xff]
        %v5143 = vld [vmem:[#allocation7 + $0xa8] sm:$0xff]
        %v5144 = vld [vmem:[#allocation7 + $0xb0] sm:$0xff]
        %v5145 = vld [vmem:[#allocation7 + $0xb8] sm:$0xff]
        %v5146 = vmul.f32 %v5134, %v5138
        %v5147 = vmul.f32 %v5122, %v5139
        %v5148 = vmul.f32 %v5135, %v5140
        %v5149 = vmul.f32 %v5123, %v5141
        %v5150 = vmul.f32 %v5136, %v5142
        %v5151 = vmul.f32 %v5124, %v5143
        %v5152 = vmul.f32 %v5137, %v5144
        %v5153 = vmul.f32 %v5125, %v5145
        %v5154 = vpack.c.bf16 %v5148, %v5146
        %v5155 = vpack.c.bf16 %v5149, %v5147
        %v5156 = vpack.c.bf16 %v5152, %v5150
        %v5157 = vpack.c.bf16 %v5153, %v5151
        %5158 = vrot.lane.b32.xlu0 %v4966, 1
        %v5159 = vpop.permute.xlu0 %5158
        %5160 = vrot.lane.b32.xlu0 %v4968, 1
        %v5161 = vpop.permute.xlu0 %5160
        %5162 = vrot.lane.b32.xlu0 %v4970, 1
        %v5163 = vpop.permute.xlu0 %5162
        %5164 = vrot.lane.b32.xlu0 %v4972, 1
        %v5165 = vpop.permute.xlu0 %5164
        %5170 = vrot.lane.b32.xlu0 %v4965, 1
        %v5171 = vpop.permute.xlu0 %5170
        %5172 = vrot.lane.b32.xlu0 %v4967, 1
        %v5173 = vpop.permute.xlu0 %5172
        %5174 = vrot.lane.b32.xlu0 %v4969, 1
        %v5175 = vpop.permute.xlu0 %5174
        %5176 = vrot.lane.b32.xlu0 %v4971, 1
        %v5177 = vpop.permute.xlu0 %5176
        %v5178 = vsel %vm502, %v5171, %v5159
        %v5179 = vsel %vm502, %v5173, %v5161
        %v5180 = vsel %vm502, %v5175, %v5163
        %v5181 = vsel %vm502, %v5177, %v5165
        %v5190 = vsel %vm502, %v5159, %v5171
        %v5191 = vsel %vm502, %v5161, %v5173
        %v5192 = vsel %vm502, %v5163, %v5175
        %v5193 = vsel %vm502, %v5165, %v5177
        %v5194 = vld [vmem:[#allocation7 + $0xc0] sm:$0xff]
        %v5195 = vld [vmem:[#allocation7 + $0xc8] sm:$0xff]
        %v5196 = vld [vmem:[#allocation7 + $0xd0] sm:$0xff]
        %v5197 = vld [vmem:[#allocation7 + $0xd8] sm:$0xff]
        %v5198 = vld [vmem:[#allocation7 + $0xe0] sm:$0xff]
        %v5199 = vld [vmem:[#allocation7 + $0xe8] sm:$0xff]
        %v5200 = vld [vmem:[#allocation7 + $0xf0] sm:$0xff]
        %v5201 = vld [vmem:[#allocation7 + $0xf8] sm:$0xff]
        %v5202 = vmul.f32 %v5190, %v5194
        %v5203 = vmul.f32 %v5178, %v5195
        %v5204 = vmul.f32 %v5191, %v5196
        %v5205 = vmul.f32 %v5179, %v5197
        %v5206 = vmul.f32 %v5192, %v5198
        %v5207 = vmul.f32 %v5180, %v5199
        %v5208 = vmul.f32 %v5193, %v5200
        %v5209 = vmul.f32 %v5181, %v5201
        %v5210 = vpack.c.bf16 %v5204, %v5202
        %v5211 = vpack.c.bf16 %v5205, %v5203
        %v5212 = vpack.c.bf16 %v5208, %v5206
        %v5213 = vpack.c.bf16 %v5209, %v5207
        %v5214 = vld [vmem:[#allocation7 + $0x100] sm:$0xff]
        %v5215 = vld [vmem:[#allocation7 + $0x108] sm:$0xff]
        %v5216 = vld [vmem:[#allocation7 + $0x110] sm:$0xff]
        %v5217 = vld [vmem:[#allocation7 + $0x118] sm:$0xff]
        %v5218 = vld [vmem:[#allocation7 + $0x120] sm:$0xff]
        %v5219 = vld [vmem:[#allocation7 + $0x128] sm:$0xff]
        %v5220 = vld [vmem:[#allocation7 + $0x130] sm:$0xff]
        %v5221 = vld [vmem:[#allocation7 + $0x138] sm:$0xff]
        %v5222 = vmul.f32 %v4965, %v5214
        %v5223 = vmul.f32 %v4966, %v5215
        %v5224 = vmul.f32 %v4967, %v5216
        %v5225 = vmul.f32 %v4968, %v5217
        %v5226 = vmul.f32 %v4969, %v5218
        %v5227 = vmul.f32 %v4970, %v5219
        %v5228 = vmul.f32 %v4971, %v5220
        %v5229 = vmul.f32 %v4972, %v5221
        %v5230 = vpack.c.bf16 %v5224, %v5222
        %v5231 = vpack.c.bf16 %v5225, %v5223
        %v5232 = vpack.c.bf16 %v5228, %v5226
        %v5233 = vpack.c.bf16 %v5229, %v5227
        %5234 = vrot.lane.b32.xlu0 %v4965, 127
        %v5235 = vpop.permute.xlu0 %5234
        %5236 = vrot.lane.b32.xlu0 %v4966, 127
        %v5237 = vpop.permute.xlu0 %5236
        %5238 = vrot.lane.b32.xlu0 %v4967, 127
        %v5239 = vpop.permute.xlu0 %5238
        %5240 = vrot.lane.b32.xlu0 %v4968, 127
        %v5241 = vpop.permute.xlu0 %5240
        %5242 = vrot.lane.b32.xlu0 %v4969, 127
        %v5243 = vpop.permute.xlu0 %5242
        %5244 = vrot.lane.b32.xlu0 %v4970, 127
        %v5245 = vpop.permute.xlu0 %5244
        %5246 = vrot.lane.b32.xlu0 %v4971, 127
        %v5247 = vpop.permute.xlu0 %5246
        %5248 = vrot.lane.b32.xlu0 %v4972, 127
        %v5249 = vpop.permute.xlu0 %5248
        %v5250 = vsel %vm575, %v5235, %v5237
        %v5251 = vsel %vm575, %v5239, %v5241
        %v5252 = vsel %vm575, %v5243, %v5245
        %v5253 = vsel %vm575, %v5247, %v5249
        %v5266 = vsel %vm575, %v5237, %v5235
        %v5267 = vsel %vm575, %v5241, %v5239
        %v5268 = vsel %vm575, %v5245, %v5243
        %v5269 = vsel %vm575, %v5249, %v5247
        %v5270 = vld [vmem:[#allocation7 + $0x140] sm:$0xff]
        %v5271 = vld [vmem:[#allocation7 + $0x148] sm:$0xff]
        %v5272 = vld [vmem:[#allocation7 + $0x150] sm:$0xff]
        %v5273 = vld [vmem:[#allocation7 + $0x158] sm:$0xff]
        %v5274 = vld [vmem:[#allocation7 + $0x160] sm:$0xff]
        %v5275 = vld [vmem:[#allocation7 + $0x168] sm:$0xff]
        %v5276 = vld [vmem:[#allocation7 + $0x170] sm:$0xff]
        %v5277 = vld [vmem:[#allocation7 + $0x178] sm:$0xff]
        %v5278 = vmul.f32 %v5250, %v5270
        %v5279 = vmul.f32 %v5266, %v5271
        %v5280 = vmul.f32 %v5251, %v5272
        %v5281 = vmul.f32 %v5267, %v5273
        %v5282 = vmul.f32 %v5252, %v5274
        %v5283 = vmul.f32 %v5268, %v5275
        %v5284 = vmul.f32 %v5253, %v5276
        %v5285 = vmul.f32 %v5269, %v5277
        %v5286 = vpack.c.bf16 %v5280, %v5278
        %v5287 = vpack.c.bf16 %v5281, %v5279
        %v5288 = vpack.c.bf16 %v5284, %v5282
        %v5289 = vpack.c.bf16 %v5285, %v5283
        %5290 = vrot.lane.b32.xlu0 %v4965, 113
        %v5291 = vpop.permute.xlu0 %5290
        %5292 = vrot.lane.b32.xlu0 %v4966, 113
        %v5293 = vpop.permute.xlu0 %5292
        %5294 = vrot.lane.b32.xlu0 %v4967, 113
        %v5295 = vpop.permute.xlu0 %5294
        %5296 = vrot.lane.b32.xlu0 %v4968, 113
        %v5297 = vpop.permute.xlu0 %5296
        %5298 = vrot.lane.b32.xlu0 %v4969, 113
        %v5299 = vpop.permute.xlu0 %5298
        %5300 = vrot.lane.b32.xlu0 %v4970, 113
        %v5301 = vpop.permute.xlu0 %5300
        %5302 = vrot.lane.b32.xlu0 %v4971, 113
        %v5303 = vpop.permute.xlu0 %5302
        %5304 = vrot.lane.b32.xlu0 %v4972, 113
        %v5305 = vpop.permute.xlu0 %5304
        %v5306 = vsel %vm632, %v5291, %v5293
        %v5307 = vsel %vm632, %v5295, %v5297
        %v5308 = vsel %vm632, %v5299, %v5301
        %v5309 = vsel %vm632, %v5303, %v5305
        %v5322 = vsel %vm632, %v5293, %v5291
        %v5323 = vsel %vm632, %v5297, %v5295
        %v5324 = vsel %vm632, %v5301, %v5299
        %v5325 = vsel %vm632, %v5305, %v5303
        %v5326 = vld [vmem:[#allocation7 + $0x180] sm:$0xff]
        %v5327 = vld [vmem:[#allocation7 + $0x188] sm:$0xff]
        %v5328 = vld [vmem:[#allocation7 + $0x190] sm:$0xff]
        %v5329 = vld [vmem:[#allocation7 + $0x198] sm:$0xff]
        %v5330 = vld [vmem:[#allocation7 + $0x1a0] sm:$0xff]
        %v5331 = vld [vmem:[#allocation7 + $0x1a8] sm:$0xff]
        %v5332 = vld [vmem:[#allocation7 + $0x1b0] sm:$0xff]
        %v5333 = vld [vmem:[#allocation7 + $0x1b8] sm:$0xff]
        %v5334 = vmul.f32 %v5306, %v5326
        %v5335 = vmul.f32 %v5322, %v5327
        %v5336 = vmul.f32 %v5307, %v5328
        %v5337 = vmul.f32 %v5323, %v5329
        %v5338 = vmul.f32 %v5308, %v5330
        %v5339 = vmul.f32 %v5324, %v5331
        %v5340 = vmul.f32 %v5309, %v5332
        %v5341 = vmul.f32 %v5325, %v5333
        %v5342 = vpack.c.bf16 %v5336, %v5334
        %v5343 = vpack.c.bf16 %v5337, %v5335
        %v5344 = vpack.c.bf16 %v5340, %v5338
        %v5345 = vpack.c.bf16 %v5341, %v5339
        %5346 = vrot.lane.b32.xlu0 %v4965, 112
        %v5347 = vpop.permute.xlu0 %5346
        %5348 = vrot.lane.b32.xlu0 %v4966, 112
        %v5349 = vpop.permute.xlu0 %5348
        %5350 = vrot.lane.b32.xlu0 %v4967, 112
        %v5351 = vpop.permute.xlu0 %5350
        %5352 = vrot.lane.b32.xlu0 %v4968, 112
        %v5353 = vpop.permute.xlu0 %5352
        %5354 = vrot.lane.b32.xlu0 %v4969, 112
        %v5355 = vpop.permute.xlu0 %5354
        %5356 = vrot.lane.b32.xlu0 %v4970, 112
        %v5357 = vpop.permute.xlu0 %5356
        %5358 = vrot.lane.b32.xlu0 %v4971, 112
        %v5359 = vpop.permute.xlu0 %5358
        %5360 = vrot.lane.b32.xlu0 %v4972, 112
        %v5361 = vpop.permute.xlu0 %5360
        %v5362 = vsel %vm689, %v5347, %v5349
        %v5363 = vsel %vm689, %v5351, %v5353
        %v5364 = vsel %vm689, %v5355, %v5357
        %v5365 = vsel %vm689, %v5359, %v5361
        %v5378 = vsel %vm689, %v5349, %v5347
        %v5379 = vsel %vm689, %v5353, %v5351
        %v5380 = vsel %vm689, %v5357, %v5355
        %v5381 = vsel %vm689, %v5361, %v5359
        %v5382 = vld [vmem:[#allocation7 + $0x1c0] sm:$0xff]
        %v5383 = vld [vmem:[#allocation7 + $0x1c8] sm:$0xff]
        %v5384 = vld [vmem:[#allocation7 + $0x1d0] sm:$0xff]
        %v5385 = vld [vmem:[#allocation7 + $0x1d8] sm:$0xff]
        %v5386 = vld [vmem:[#allocation7 + $0x1e0] sm:$0xff]
        %v5387 = vld [vmem:[#allocation7 + $0x1e8] sm:$0xff]
        %v5388 = vld [vmem:[#allocation7 + $0x1f0] sm:$0xff]
        %v5389 = vld [vmem:[#allocation7 + $0x1f8] sm:$0xff]
        %v5390 = vmul.f32 %v5362, %v5382
        %v5391 = vmul.f32 %v5378, %v5383
        %v5392 = vmul.f32 %v5363, %v5384
        %v5393 = vmul.f32 %v5379, %v5385
        %v5394 = vmul.f32 %v5364, %v5386
        %v5395 = vmul.f32 %v5380, %v5387
        %v5396 = vmul.f32 %v5365, %v5388
        %v5397 = vmul.f32 %v5381, %v5389
        %v5398 = vpack.c.bf16 %v5392, %v5390
        %v5399 = vpack.c.bf16 %v5393, %v5391
        %v5400 = vpack.c.bf16 %v5396, %v5394
        %v5401 = vpack.c.bf16 %v5397, %v5395
        %5402 = vrot.lane.b32.xlu0 %v4965, 111
        %v5403 = vpop.permute.xlu0 %5402
        %5404 = vrot.lane.b32.xlu0 %v4966, 111
        %v5405 = vpop.permute.xlu0 %5404
        %5406 = vrot.lane.b32.xlu0 %v4967, 111
        %v5407 = vpop.permute.xlu0 %5406
        %5408 = vrot.lane.b32.xlu0 %v4968, 111
        %v5409 = vpop.permute.xlu0 %5408
        %5410 = vrot.lane.b32.xlu0 %v4969, 111
        %v5411 = vpop.permute.xlu0 %5410
        %5412 = vrot.lane.b32.xlu0 %v4970, 111
        %v5413 = vpop.permute.xlu0 %5412
        %5414 = vrot.lane.b32.xlu0 %v4971, 111
        %v5415 = vpop.permute.xlu0 %5414
        %5416 = vrot.lane.b32.xlu0 %v4972, 111
        %v5417 = vpop.permute.xlu0 %5416
        %v5418 = vsel %vm746, %v5403, %v5405
        %v5419 = vsel %vm746, %v5407, %v5409
        %v5420 = vsel %vm746, %v5411, %v5413
        %v5421 = vsel %vm746, %v5415, %v5417
        %v5434 = vsel %vm746, %v5405, %v5403
        %v5435 = vsel %vm746, %v5409, %v5407
        %v5436 = vsel %vm746, %v5413, %v5411
        %v5437 = vsel %vm746, %v5417, %v5415
        %v5438 = vld [vmem:[#allocation7 + $0x200] sm:$0xff]
        %v5439 = vld [vmem:[#allocation7 + $0x208] sm:$0xff]
        %v5440 = vld [vmem:[#allocation7 + $0x210] sm:$0xff]
        %v5441 = vld [vmem:[#allocation7 + $0x218] sm:$0xff]
        %v5442 = vld [vmem:[#allocation7 + $0x220] sm:$0xff]
        %v5443 = vld [vmem:[#allocation7 + $0x228] sm:$0xff]
        %v5444 = vld [vmem:[#allocation7 + $0x230] sm:$0xff]
        %v5445 = vld [vmem:[#allocation7 + $0x238] sm:$0xff]
        %v5446 = vmul.f32 %v5418, %v5438
        %v5447 = vmul.f32 %v5434, %v5439
        %v5448 = vmul.f32 %v5419, %v5440
        %v5449 = vmul.f32 %v5435, %v5441
        %v5450 = vmul.f32 %v5420, %v5442
        %v5451 = vmul.f32 %v5436, %v5443
        %v5452 = vmul.f32 %v5421, %v5444
        %v5453 = vmul.f32 %v5437, %v5445
        %v5454 = vpack.c.bf16 %v5448, %v5446
        %v5455 = vpack.c.bf16 %v5449, %v5447
        %v5456 = vpack.c.bf16 %v5452, %v5450
        %v5457 = vpack.c.bf16 %v5453, %v5451
        %s5458 = scalar_lea.vmem %s231, 1024 [#allocation4]
        %v5459 = vld [vmem:[%s5458] sm:$0xff]
        %v5460 = vld [vmem:[%s5458 + $0x8] sm:$0xff]
        %v5461 = vld [vmem:[%s5458 + $0x10] sm:$0xff]
        %v5462 = vld [vmem:[%s5458 + $0x18] sm:$0xff]
        %v5463 = vld [vmem:[%s5458 + $0x20] sm:$0xff]
        %v5464 = vld [vmem:[%s5458 + $0x28] sm:$0xff]
        %v5465 = vld [vmem:[%s5458 + $0x30] sm:$0xff]
        %v5466 = vld [vmem:[%s5458 + $0x38] sm:$0xff]
        %v5467 = vld [vmem:[%s5458 + $0x40] sm:$0xff]
        %v5468 = vld [vmem:[%s5458 + $0x48] sm:$0xff]
        %v5469 = vld [vmem:[%s5458 + $0x50] sm:$0xff]
        %v5470 = vld [vmem:[%s5458 + $0x58] sm:$0xff]
        %v5471 = vld [vmem:[%s5458 + $0x60] sm:$0xff]
        %v5472 = vld [vmem:[%s5458 + $0x68] sm:$0xff]
        %v5473 = vld [vmem:[%s5458 + $0x70] sm:$0xff]
        %v5474 = vld [vmem:[%s5458 + $0x78] sm:$0xff]
        %v5475 = vld [vmem:[%s5458 + $0x80] sm:$0xff]
        %v5476 = vld [vmem:[%s5458 + $0x88] sm:$0xff]
        %v5477 = vld [vmem:[%s5458 + $0x90] sm:$0xff]
        %v5478 = vld [vmem:[%s5458 + $0x98] sm:$0xff]
        %v5479 = vld [vmem:[%s5458 + $0xa0] sm:$0xff]
        %v5480 = vld [vmem:[%s5458 + $0xa8] sm:$0xff]
        %v5481 = vld [vmem:[%s5458 + $0xb0] sm:$0xff]
        %v5482 = vld [vmem:[%s5458 + $0xb8] sm:$0xff]
        %v5483 = vld [vmem:[%s5458 + $0xc0] sm:$0xff]
        %v5484 = vld [vmem:[%s5458 + $0xc8] sm:$0xff]
        %v5485 = vld [vmem:[%s5458 + $0xd0] sm:$0xff]
        %v5486 = vld [vmem:[%s5458 + $0xd8] sm:$0xff]
        %v5487 = vld [vmem:[%s5458 + $0xe0] sm:$0xff]
        %v5488 = vld [vmem:[%s5458 + $0xe8] sm:$0xff]
        %v5489 = vld [vmem:[%s5458 + $0xf0] sm:$0xff]
        %v5490 = vld [vmem:[%s5458 + $0xf8] sm:$0xff]
        %v5491 = vld [vmem:[%s1] sm:$0xff]
        %v5492 = vld [vmem:[%s1 + $0x8] sm:$0xf]
        %v5493 = vld [vmem:[%s1 + $0xc] sm:$0xff]
        %v5494 = vld [vmem:[%s1 + $0x14] sm:$0xf]
        %v5495 = vld [vmem:[%s1 + $0x18] sm:$0xff]
        %v5496 = vld [vmem:[%s1 + $0x20] sm:$0xf]
        %v5497 = vld [vmem:[%s1 + $0x24] sm:$0xff]
        %v5498 = vld [vmem:[%s1 + $0x2c] sm:$0xf]
        %v5499 = vld [vmem:[%s1 + $0x30] sm:$0xff]
        %v5500 = vld [vmem:[%s1 + $0x38] sm:$0xf]
        %v5501 = vld [vmem:[%s1 + $0x3c] sm:$0xff]
        %v5502 = vld [vmem:[%s1 + $0x44] sm:$0xf]
        %v5503 = vld [vmem:[%s1 + $0x48] sm:$0xff]
        %v5504 = vld [vmem:[%s1 + $0x50] sm:$0xf]
        %v5505 = vld [vmem:[%s1 + $0x54] sm:$0xff]
        %v5506 = vld [vmem:[%s1 + $0x5c] sm:$0xf]
        %v5507 = vld [vmem:[%s1 + $0x60] sm:$0xff]
        %v5508 = vld [vmem:[%s1 + $0x68] sm:$0xf]
        %v5509 = vld [vmem:[%s1 + $0x6c] sm:$0xff]
        %v5510 = vld [vmem:[%s1 + $0x74] sm:$0xf]
        %v5511 = vld [vmem:[%s1 + $0x78] sm:$0xff]
        %v5512 = vld [vmem:[%s1 + $0x80] sm:$0xf]
        %v5513 = vld [vmem:[%s1 + $0x84] sm:$0xff]
        %v5514 = vld [vmem:[%s1 + $0x8c] sm:$0xf]
        %v5515 = vld [vmem:[%s1 + $0x90] sm:$0xff]
        %v5516 = vld [vmem:[%s1 + $0x98] sm:$0xf]
        %v5517 = vld [vmem:[%s1 + $0x9c] sm:$0xff]
        %v5518 = vld [vmem:[%s1 + $0xa4] sm:$0xf]
        %v5519 = vld [vmem:[%s1 + $0xa8] sm:$0xff]
        %v5520 = vld [vmem:[%s1 + $0xb0] sm:$0xf]
        %v5521 = vld [vmem:[%s1 + $0xb4] sm:$0xff]
        %v5522 = vld [vmem:[%s1 + $0xbc] sm:$0xf]
        %v5555 = vunpack.c.l.b16 %v5491
        %v5556 = vunpack.c.h.b16 %v5491
        %v5557 = vunpack.c.l.b16 %v5492
        %v5558 = vunpack.c.l.b16 %v5493
        %v5559 = vunpack.c.h.b16 %v5493
        %v5560 = vunpack.c.l.b16 %v5494
        %v5561 = vunpack.c.l.b16 %v5495
        %v5562 = vunpack.c.h.b16 %v5495
        %v5563 = vunpack.c.l.b16 %v5496
        %v5564 = vunpack.c.l.b16 %v5497
        %v5565 = vunpack.c.h.b16 %v5497
        %v5566 = vunpack.c.l.b16 %v5498
        %v5567 = vunpack.c.l.b16 %v5499
        %v5568 = vunpack.c.h.b16 %v5499
        %v5569 = vunpack.c.l.b16 %v5500
        %v5570 = vunpack.c.l.b16 %v5501
        %v5571 = vunpack.c.h.b16 %v5501
        %v5572 = vunpack.c.l.b16 %v5502
        %v5573 = vunpack.c.l.b16 %v5503
        %v5574 = vunpack.c.h.b16 %v5503
        %v5575 = vunpack.c.l.b16 %v5504
        %v5576 = vunpack.c.l.b16 %v5505
        %v5577 = vunpack.c.h.b16 %v5505
        %v5578 = vunpack.c.l.b16 %v5506
        %v5579 = vunpack.c.l.b16 %v5507
        %v5580 = vunpack.c.h.b16 %v5507
        %v5581 = vunpack.c.l.b16 %v5508
        %v5582 = vunpack.c.l.b16 %v5509
        %v5583 = vunpack.c.h.b16 %v5509
        %v5584 = vunpack.c.l.b16 %v5510
        %v5585 = vunpack.c.l.b16 %v5511
        %v5586 = vunpack.c.h.b16 %v5511
        %v5587 = vunpack.c.l.b16 %v5512
        %v5588 = vunpack.c.l.b16 %v5513
        %v5589 = vunpack.c.h.b16 %v5513
        %v5590 = vunpack.c.l.b16 %v5514
        %v5591 = vunpack.c.l.b16 %v5515
        %v5592 = vunpack.c.h.b16 %v5515
        %v5593 = vunpack.c.l.b16 %v5516
        %v5594 = vunpack.c.l.b16 %v5517
        %v5595 = vunpack.c.h.b16 %v5517
        %v5596 = vunpack.c.l.b16 %v5518
        %v5597 = vunpack.c.l.b16 %v5519
        %v5598 = vunpack.c.h.b16 %v5519
        %v5599 = vunpack.c.l.b16 %v5520
        %v5600 = vunpack.c.l.b16 %v5521
        %v5601 = vunpack.c.h.b16 %v5521
        %v5602 = vunpack.c.l.b16 %v5522
        %v5603 = vpack.c.b16 %v5558, %v5555
        %v5604 = vpack.c.b16 %v5559, %v5556
        %v5605 = vpack.c.b16 %v5560, %v5557
        %v5606 = vpack.c.b16 %v5564, %v5561
        %v5607 = vpack.c.b16 %v5565, %v5562
        %v5608 = vpack.c.b16 %v5566, %v5563
        %v5609 = vpack.c.b16 %v5570, %v5567
        %v5610 = vpack.c.b16 %v5571, %v5568
        %v5611 = vpack.c.b16 %v5572, %v5569
        %v5612 = vpack.c.b16 %v5576, %v5573
        %v5613 = vpack.c.b16 %v5577, %v5574
        %v5614 = vpack.c.b16 %v5578, %v5575
        %v5615 = vpack.c.b16 %v5582, %v5579
        %v5616 = vpack.c.b16 %v5583, %v5580
        %v5617 = vpack.c.b16 %v5584, %v5581
        %v5618 = vpack.c.b16 %v5588, %v5585
        %v5619 = vpack.c.b16 %v5589, %v5586
        %v5620 = vpack.c.b16 %v5590, %v5587
        %v5621 = vpack.c.b16 %v5594, %v5591
        %v5622 = vpack.c.b16 %v5595, %v5592
        %v5623 = vpack.c.b16 %v5596, %v5593
        %v5624 = vpack.c.b16 %v5600, %v5597
        %v5625 = vpack.c.b16 %v5601, %v5598
        %v5626 = vpack.c.b16 %v5602, %v5599
        %v5644 = vsel %vm971, %v5605, 0
        %v5647 = vsel %vm971, %v5608, 0
        %v5650 = vsel %vm971, %v5611, 0
        %v5653 = vsel %vm971, %v5614, 0
        %v5656 = vsel %vm971, %v5617, 0
        %v5659 = vsel %vm971, %v5620, 0
        %v5662 = vsel %vm971, %v5623, 0
        %v5665 = vsel %vm971, %v5626, 0
        %5667 = vmatprep.subr.bf16.mxu0 %v5043
        %5668 = vmatpush1.bf16.msra.mxu0 %v5042
        %5669 = vmatprep.subr.bf16.mxu0 %v5045
        %5670 = vmatpush1.bf16.msra.mxu0 %v5044
        %5671 = vmatprep.subr.bf16.mxu0 %v5099
        %5672 = vmatpush1.bf16.msra.mxu0 %v5098
        %5673 = vmatprep.subr.bf16.mxu0 %v5101
        %5674 = vmatpush1.bf16.msra.mxu0 %v5100
        %5675 = vmatprep.subr.bf16.mxu0 %v5155
        %5676 = vmatpush1.bf16.msra.mxu0 %v5154
        %5677 = vmatprep.subr.bf16.mxu0 %v5157
        %5678 = vmatpush1.bf16.msra.mxu0 %v5156
        %5679 = vmatprep.subr.bf16.mxu0 %v5211
        %5680 = vmatpush1.bf16.msra.mxu0 %v5210
        %5681 = vmatprep.subr.bf16.mxu0 %v5213
        %5682 = vmatpush1.bf16.msra.mxu0 %v5212
        %5683 = vmatprep.subr.bf16.mxu0 %v5231
        %5684 = vmatpush1.bf16.msra.mxu0 %v5230
        %5685 = vmatprep.subr.bf16.mxu0 %v5233
        %5686 = vmatpush1.bf16.msra.mxu0 %v5232
        %5687 = vmatprep.subr.bf16.mxu0 %v5287
        %5688 = vmatpush1.bf16.msra.mxu0 %v5286
        %5689 = vmatprep.subr.bf16.mxu0 %v5289
        %5690 = vmatpush1.bf16.msra.mxu0 %v5288
        %5691 = vmatprep.subr.bf16.mxu0 %v5343
        %5692 = vmatpush1.bf16.msra.mxu0 %v5342
        %5693 = vmatprep.subr.bf16.mxu0 %v5345
        %5694 = vmatpush1.bf16.msra.mxu0 %v5344
        %5695 = vmatprep.subr.bf16.mxu0 %v5399
        %5696 = vmatpush1.bf16.msra.mxu0 %v5398
        %5697 = vmatprep.subr.bf16.mxu0 %v5401
        %5698 = vmatpush1.bf16.msra.mxu0 %v5400
        %5699 = vmatprep.mubr.bf16.mxu0 %v5604
        %5700 = vmatmul.mubr.bf16.gmra.mrb[0].mxu0 %v5603
        %v5701 = vpop.f32.mrb[0].mxu0
        %v5702 = vadd.f32 0.0, %v5701
        %v5703 = vpop.f32.mrb[0].mxu0
        %v5704 = vadd.f32 0.0, %v5703
        %v5705 = vpop.f32.mrb[0].mxu0
        %v5706 = vadd.f32 0.0, %v5705
        %v5707 = vpop.f32.mrb[0].mxu0
        %v5708 = vadd.f32 0.0, %v5707
        %5709 = vmatprep.mubr.bf16.mxu0 %v5607
        %5710 = vmatmul.mubr.bf16.gmra.mrb[0].mxu0 %v5606
        %v5711 = vpop.f32.mrb[0].mxu0
        %v5712 = vadd.f32 0.0, %v5711
        %v5713 = vpop.f32.mrb[0].mxu0
        %v5714 = vadd.f32 0.0, %v5713
        %v5715 = vpop.f32.mrb[0].mxu0
        %v5716 = vadd.f32 0.0, %v5715
        %v5717 = vpop.f32.mrb[0].mxu0
        %v5718 = vadd.f32 0.0, %v5717
        %5719 = vmatprep.mubr.bf16.mxu0 %v5610
        %5720 = vmatmul.mubr.bf16.gmra.mrb[0].mxu0 %v5609
        %v5721 = vpop.f32.mrb[0].mxu0
        %v5722 = vadd.f32 0.0, %v5721
        %v5723 = vpop.f32.mrb[0].mxu0
        %v5724 = vadd.f32 0.0, %v5723
        %v5725 = vpop.f32.mrb[0].mxu0
        %v5726 = vadd.f32 0.0, %v5725
        %v5727 = vpop.f32.mrb[0].mxu0
        %v5728 = vadd.f32 0.0, %v5727
        %5729 = vmatprep.mubr.bf16.mxu0 %v5613
        %5730 = vmatmul.mubr.bf16.gmra.mrb[0].mxu0 %v5612
        %v5731 = vpop.f32.mrb[0].mxu0
        %v5732 = vadd.f32 0.0, %v5731
        %v5733 = vpop.f32.mrb[0].mxu0
        %v5734 = vadd.f32 0.0, %v5733
        %v5735 = vpop.f32.mrb[0].mxu0
        %v5736 = vadd.f32 0.0, %v5735
        %v5737 = vpop.f32.mrb[0].mxu0
        %v5738 = vadd.f32 0.0, %v5737
        %5739 = vmatprep.mubr.bf16.mxu0 %v5616
        %5740 = vmatmul.mubr.bf16.gmra.mrb[0].mxu0 %v5615
        %v5741 = vpop.f32.mrb[0].mxu0
        %v5742 = vadd.f32 0.0, %v5741
        %v5743 = vpop.f32.mrb[0].mxu0
        %v5744 = vadd.f32 0.0, %v5743
        %v5745 = vpop.f32.mrb[0].mxu0
        %v5746 = vadd.f32 0.0, %v5745
        %v5747 = vpop.f32.mrb[0].mxu0
        %v5748 = vadd.f32 0.0, %v5747
        %5749 = vmatprep.mubr.bf16.mxu0 %v5619
        %5750 = vmatmul.mubr.bf16.gmra.mrb[0].mxu0 %v5618
        %v5751 = vpop.f32.mrb[0].mxu0
        %v5752 = vadd.f32 0.0, %v5751
        %v5753 = vpop.f32.mrb[0].mxu0
        %v5754 = vadd.f32 0.0, %v5753
        %v5755 = vpop.f32.mrb[0].mxu0
        %v5756 = vadd.f32 0.0, %v5755
        %v5757 = vpop.f32.mrb[0].mxu0
        %v5758 = vadd.f32 0.0, %v5757
        %5759 = vmatprep.mubr.bf16.mxu0 %v5622
        %5760 = vmatmul.mubr.bf16.gmra.mrb[0].mxu0 %v5621
        %v5761 = vpop.f32.mrb[0].mxu0
        %v5762 = vadd.f32 0.0, %v5761
        %v5763 = vpop.f32.mrb[0].mxu0
        %v5764 = vadd.f32 0.0, %v5763
        %v5765 = vpop.f32.mrb[0].mxu0
        %v5766 = vadd.f32 0.0, %v5765
        %v5767 = vpop.f32.mrb[0].mxu0
        %v5768 = vadd.f32 0.0, %v5767
        %5769 = vmatprep.mubr.bf16.mxu0 %v5625
        %5770 = vmatmul.mubr.bf16.gmra.mrb[0].mxu0 %v5624
        %v5771 = vpop.f32.mrb[0].mxu0
        %v5772 = vadd.f32 0.0, %v5771
        %v5773 = vpop.f32.mrb[0].mxu0
        %v5774 = vadd.f32 0.0, %v5773
        %v5775 = vpop.f32.mrb[0].mxu0
        %v5776 = vadd.f32 0.0, %v5775
        %v5777 = vpop.f32.mrb[0].mxu0
        %v5778 = vadd.f32 0.0, %v5777
        %5779 = vdwg.mxu0
        %5780 = vmatprep.subr.bf16.mxu0 %v5455
        %5781 = vmatpush1.bf16.msra.mxu0 %v5454
        %5782 = vmatprep.subr.bf16.mxu0 %v5457
        %5783 = vmatpush1.bf16.msra.mxu0 %v5456
        %5784 = vmatprep.subr.bf16.mxu0 0
        %5785 = vmatpush1.bf16.msra.mxu0 0
        %5786 = vmatprep.subr.bf16.mxu0 0
        %5787 = vmatpush1.bf16.msra.mxu0 0
        %5788 = vmatprep.subr.bf16.mxu0 0
        %5789 = vmatpush1.bf16.msra.mxu0 0
        %5790 = vmatprep.subr.bf16.mxu0 0
        %5791 = vmatpush1.bf16.msra.mxu0 0
        %5792 = vmatprep.subr.bf16.mxu0 0
        %5793 = vmatpush1.bf16.msra.mxu0 0
        %5794 = vmatprep.subr.bf16.mxu0 0
        %5795 = vmatpush1.bf16.msra.mxu0 0
        %5796 = vmatprep.subr.bf16.mxu0 0
        %5797 = vmatpush1.bf16.msra.mxu0 0
        %5798 = vmatprep.subr.bf16.mxu0 0
        %5799 = vmatpush1.bf16.msra.mxu0 0
        %5800 = vmatprep.subr.bf16.mxu0 0
        %5801 = vmatpush1.bf16.msra.mxu0 0
        %5802 = vmatprep.subr.bf16.mxu0 0
        %5803 = vmatpush1.bf16.msra.mxu0 0
        %5804 = vmatprep.subr.bf16.mxu0 0
        %5805 = vmatpush1.bf16.msra.mxu0 0
        %5806 = vmatprep.subr.bf16.mxu0 0
        %5807 = vmatpush1.bf16.msra.mxu0 0
        %5808 = vmatprep.subr.bf16.mxu0 0
        %5809 = vmatpush1.bf16.msra.mxu0 0
        %5810 = vmatprep.subr.bf16.mxu0 0
        %5811 = vmatpush1.bf16.msra.mxu0 0
        %5812 = vmatprep.mubr.bf16.mxu0 0
        %5813 = vmatmul.mubr.bf16.gmra.mrb[0].mxu0 %v5644
        %v5814 = vpop.f32.mrb[0].mxu0
        %v5815 = vadd.f32 %v5702, %v5814
        %v5816 = vpop.f32.mrb[0].mxu0
        %v5817 = vadd.f32 %v5704, %v5816
        %v5818 = vpop.f32.mrb[0].mxu0
        %v5819 = vadd.f32 %v5706, %v5818
        %v5820 = vpop.f32.mrb[0].mxu0
        %v5821 = vadd.f32 %v5708, %v5820
        %5822 = vmatprep.mubr.bf16.mxu0 0
        %5823 = vmatmul.mubr.bf16.gmra.mrb[0].mxu0 %v5647
        %v5824 = vpop.f32.mrb[0].mxu0
        %v5825 = vadd.f32 %v5712, %v5824
        %v5826 = vpop.f32.mrb[0].mxu0
        %v5827 = vadd.f32 %v5714, %v5826
        %v5828 = vpop.f32.mrb[0].mxu0
        %v5829 = vadd.f32 %v5716, %v5828
        %v5830 = vpop.f32.mrb[0].mxu0
        %v5831 = vadd.f32 %v5718, %v5830
        %5832 = vmatprep.mubr.bf16.mxu0 0
        %5833 = vmatmul.mubr.bf16.gmra.mrb[0].mxu0 %v5650
        %v5834 = vpop.f32.mrb[0].mxu0
        %v5835 = vadd.f32 %v5722, %v5834
        %v5836 = vpop.f32.mrb[0].mxu0
        %v5837 = vadd.f32 %v5724, %v5836
        %v5838 = vpop.f32.mrb[0].mxu0
        %v5839 = vadd.f32 %v5726, %v5838
        %v5840 = vpop.f32.mrb[0].mxu0
        %v5841 = vadd.f32 %v5728, %v5840
        %5842 = vmatprep.mubr.bf16.mxu0 0
        %5843 = vmatmul.mubr.bf16.gmra.mrb[0].mxu0 %v5653
        %v5844 = vpop.f32.mrb[0].mxu0
        %v5845 = vadd.f32 %v5732, %v5844
        %v5846 = vpop.f32.mrb[0].mxu0
        %v5847 = vadd.f32 %v5734, %v5846
        %v5848 = vpop.f32.mrb[0].mxu0
        %v5849 = vadd.f32 %v5736, %v5848
        %v5850 = vpop.f32.mrb[0].mxu0
        %v5851 = vadd.f32 %v5738, %v5850
        %5852 = vmatprep.mubr.bf16.mxu0 0
        %5853 = vmatmul.mubr.bf16.gmra.mrb[0].mxu0 %v5656
        %v5854 = vpop.f32.mrb[0].mxu0
        %v5855 = vadd.f32 %v5742, %v5854
        %v5856 = vpop.f32.mrb[0].mxu0
        %v5857 = vadd.f32 %v5744, %v5856
        %v5858 = vpop.f32.mrb[0].mxu0
        %v5859 = vadd.f32 %v5746, %v5858
        %v5860 = vpop.f32.mrb[0].mxu0
        %v5861 = vadd.f32 %v5748, %v5860
        %5862 = vmatprep.mubr.bf16.mxu0 0
        %5863 = vmatmul.mubr.bf16.gmra.mrb[0].mxu0 %v5659
        %v5864 = vpop.f32.mrb[0].mxu0
        %v5865 = vadd.f32 %v5752, %v5864
        %v5866 = vpop.f32.mrb[0].mxu0
        %v5867 = vadd.f32 %v5754, %v5866
        %v5868 = vpop.f32.mrb[0].mxu0
        %v5869 = vadd.f32 %v5756, %v5868
        %v5870 = vpop.f32.mrb[0].mxu0
        %v5871 = vadd.f32 %v5758, %v5870
        %5872 = vmatprep.mubr.bf16.mxu0 0
        %5873 = vmatmul.mubr.bf16.gmra.mrb[0].mxu0 %v5662
        %v5874 = vpop.f32.mrb[0].mxu0
        %v5875 = vadd.f32 %v5762, %v5874
        %v5876 = vpop.f32.mrb[0].mxu0
        %v5877 = vadd.f32 %v5764, %v5876
        %v5878 = vpop.f32.mrb[0].mxu0
        %v5879 = vadd.f32 %v5766, %v5878
        %v5880 = vpop.f32.mrb[0].mxu0
        %v5881 = vadd.f32 %v5768, %v5880
        %5882 = vmatprep.mubr.bf16.mxu0 0
        %5883 = vmatmul.mubr.bf16.gmra.mrb[0].mxu0 %v5665
        %v5884 = vpop.f32.mrb[0].mxu0
        %v5885 = vadd.f32 %v5772, %v5884
        %v5886 = vpop.f32.mrb[0].mxu0
        %v5887 = vadd.f32 %v5774, %v5886
        %v5888 = vpop.f32.mrb[0].mxu0
        %v5889 = vadd.f32 %v5776, %v5888
        %v5890 = vpop.f32.mrb[0].mxu0
        %v5891 = vadd.f32 %v5778, %v5890
        %5892 = vdwg.mxu0
        %v5893 = vadd.f32 %v5459, %v5815
        %v5894 = vadd.f32 %v5460, %v5817
        %v5895 = vadd.f32 %v5461, %v5819
        %v5896 = vadd.f32 %v5462, %v5821
        %v5897 = vadd.f32 %v5463, %v5825
        %v5898 = vadd.f32 %v5464, %v5827
        %v5899 = vadd.f32 %v5465, %v5829
        %v5900 = vadd.f32 %v5466, %v5831
        %v5901 = vadd.f32 %v5467, %v5835
        %v5902 = vadd.f32 %v5468, %v5837
        %v5903 = vadd.f32 %v5469, %v5839
        %v5904 = vadd.f32 %v5470, %v5841
        %v5905 = vadd.f32 %v5471, %v5845
        %v5906 = vadd.f32 %v5472, %v5847
        %v5907 = vadd.f32 %v5473, %v5849
        %v5908 = vadd.f32 %v5474, %v5851
        %v5909 = vadd.f32 %v5475, %v5855
        %v5910 = vadd.f32 %v5476, %v5857
        %v5911 = vadd.f32 %v5477, %v5859
        %v5912 = vadd.f32 %v5478, %v5861
        %v5913 = vadd.f32 %v5479, %v5865
        %v5914 = vadd.f32 %v5480, %v5867
        %v5915 = vadd.f32 %v5481, %v5869
        %v5916 = vadd.f32 %v5482, %v5871
        %v5917 = vadd.f32 %v5483, %v5875
        %v5918 = vadd.f32 %v5484, %v5877
        %v5919 = vadd.f32 %v5485, %v5879
        %v5920 = vadd.f32 %v5486, %v5881
        %v5921 = vadd.f32 %v5487, %v5885
        %v5922 = vadd.f32 %v5488, %v5887
        %v5923 = vadd.f32 %v5489, %v5889
        %v5924 = vadd.f32 %v5490, %v5891
        %v5925 = vld [vmem:[#allocation9] sm:$0xff]
        %v5926 = vld [vmem:[#allocation9 + $0x8] sm:$0xff]
        %v5927 = vld [vmem:[#allocation9 + $0x10] sm:$0xff]
        %v5928 = vld [vmem:[#allocation9 + $0x18] sm:$0xff]
        %v5929 = vld [vmem:[#allocation9 + $0x20] sm:$0xff]
        %v5930 = vld [vmem:[#allocation9 + $0x28] sm:$0xff]
        %v5931 = vld [vmem:[#allocation9 + $0x30] sm:$0xff]
        %v5932 = vld [vmem:[#allocation9 + $0x38] sm:$0xff]
        %v5933 = vld [vmem:[#allocation9 + $0x40] sm:$0xff]
        %v5934 = vld [vmem:[#allocation9 + $0x48] sm:$0xff]
        %v5935 = vld [vmem:[#allocation9 + $0x50] sm:$0xff]
        %v5936 = vld [vmem:[#allocation9 + $0x58] sm:$0xff]
        %v5937 = vld [vmem:[#allocation9 + $0x60] sm:$0xff]
        %v5938 = vld [vmem:[#allocation9 + $0x68] sm:$0xff]
        %v5939 = vld [vmem:[#allocation9 + $0x70] sm:$0xff]
        %v5940 = vld [vmem:[#allocation9 + $0x78] sm:$0xff]
        %v5941 = vld [vmem:[#allocation9 + $0x80] sm:$0xff]
        %v5942 = vld [vmem:[#allocation9 + $0x88] sm:$0xff]
        %v5943 = vld [vmem:[#allocation9 + $0x90] sm:$0xff]
        %v5944 = vld [vmem:[#allocation9 + $0x98] sm:$0xff]
        %v5945 = vld [vmem:[#allocation9 + $0xa0] sm:$0xff]
        %v5946 = vld [vmem:[#allocation9 + $0xa8] sm:$0xff]
        %v5947 = vld [vmem:[#allocation9 + $0xb0] sm:$0xff]
        %v5948 = vld [vmem:[#allocation9 + $0xb8] sm:$0xff]
        %v5949 = vmul.f32 %v5925, %v4901
        %v5950 = vmul.f32 %v5926, %v4902
        %v5951 = vmul.f32 %v5927, %v4903
        %v5952 = vmul.f32 %v5928, %v4904
        %v5953 = vmul.f32 %v5929, %v4905
        %v5954 = vmul.f32 %v5930, %v4906
        %v5955 = vmul.f32 %v5931, %v4907
        %v5956 = vmul.f32 %v5932, %v4908
        %v5957 = vadd.f32 %v5893, %v5949
        %v5958 = vadd.f32 %v5894, %v5950
        %v5959 = vadd.f32 %v5895, %v5951
        %v5960 = vadd.f32 %v5896, %v5952
        %v5961 = vadd.f32 %v5897, %v5953
        %v5962 = vadd.f32 %v5898, %v5954
        %v5963 = vadd.f32 %v5899, %v5955
        %v5964 = vadd.f32 %v5900, %v5956
        %v5965 = vmul.f32 %v5957, 0.5
        %v5966 = vmul.f32 %v5958, 0.5
        %v5967 = vmul.f32 %v5959, 0.5
        %v5968 = vmul.f32 %v5960, 0.5
        %v5969 = vmul.f32 %v5961, 0.5
        %v5970 = vmul.f32 %v5962, 0.5
        %v5971 = vmul.f32 %v5963, 0.5
        %v5972 = vmul.f32 %v5964, 0.5
        %v5973 = vtanh.pop %v5965
        %v5974 = vtanh.pop %v5966
        %v5975 = vtanh.pop %v5967
        %v5976 = vtanh.pop %v5968
        %v5977 = vtanh.pop %v5969
        %v5978 = vtanh.pop %v5970
        %v5979 = vtanh.pop %v5971
        %v5980 = vtanh.pop %v5972
        %v5981 = vmul.f32 %v5973, 0.5
        %v5982 = vmul.f32 %v5974, 0.5
        %v5983 = vmul.f32 %v5975, 0.5
        %v5984 = vmul.f32 %v5976, 0.5
        %v5985 = vmul.f32 %v5977, 0.5
        %v5986 = vmul.f32 %v5978, 0.5
        %v5987 = vmul.f32 %v5979, 0.5
        %v5988 = vmul.f32 %v5980, 0.5
        %v5989 = vadd.f32 %v5981, 0.5
        %v5990 = vadd.f32 %v5982, 0.5
        %v5991 = vadd.f32 %v5983, 0.5
        %v5992 = vadd.f32 %v5984, 0.5
        %v5993 = vadd.f32 %v5985, 0.5
        %v5994 = vadd.f32 %v5986, 0.5
        %v5995 = vadd.f32 %v5987, 0.5
        %v5996 = vadd.f32 %v5988, 0.5
        %v5997 = vmul.f32 %v5933, %v4901
        %v5998 = vmul.f32 %v5934, %v4902
        %v5999 = vmul.f32 %v5935, %v4903
        %v6000 = vmul.f32 %v5936, %v4904
        %v6001 = vmul.f32 %v5937, %v4905
        %v6002 = vmul.f32 %v5938, %v4906
        %v6003 = vmul.f32 %v5939, %v4907
        %v6004 = vmul.f32 %v5940, %v4908
        %v6005 = vadd.f32 %v5901, %v5997
        %v6006 = vadd.f32 %v5902, %v5998
        %v6007 = vadd.f32 %v5903, %v5999
        %v6008 = vadd.f32 %v5904, %v6000
        %v6009 = vadd.f32 %v5905, %v6001
        %v6010 = vadd.f32 %v5906, %v6002
        %v6011 = vadd.f32 %v5907, %v6003
        %v6012 = vadd.f32 %v5908, %v6004
        %v6013 = vmul.f32 %v6005, 0.5
        %v6014 = vmul.f32 %v6006, 0.5
        %v6015 = vmul.f32 %v6007, 0.5
        %v6016 = vmul.f32 %v6008, 0.5
        %v6017 = vmul.f32 %v6009, 0.5
        %v6018 = vmul.f32 %v6010, 0.5
        %v6019 = vmul.f32 %v6011, 0.5
        %v6020 = vmul.f32 %v6012, 0.5
        %v6021 = vtanh.pop %v6013
        %v6022 = vtanh.pop %v6014
        %v6023 = vtanh.pop %v6015
        %v6024 = vtanh.pop %v6016
        %v6025 = vtanh.pop %v6017
        %v6026 = vtanh.pop %v6018
        %v6027 = vtanh.pop %v6019
        %v6028 = vtanh.pop %v6020
        %v6029 = vmul.f32 %v6021, 0.5
        %v6030 = vmul.f32 %v6022, 0.5
        %v6031 = vmul.f32 %v6023, 0.5
        %v6032 = vmul.f32 %v6024, 0.5
        %v6033 = vmul.f32 %v6025, 0.5
        %v6034 = vmul.f32 %v6026, 0.5
        %v6035 = vmul.f32 %v6027, 0.5
        %v6036 = vmul.f32 %v6028, 0.5
        %v6037 = vadd.f32 %v6029, 0.5
        %v6038 = vadd.f32 %v6030, 0.5
        %v6039 = vadd.f32 %v6031, 0.5
        %v6040 = vadd.f32 %v6032, 0.5
        %v6041 = vadd.f32 %v6033, 0.5
        %v6042 = vadd.f32 %v6034, 0.5
        %v6043 = vadd.f32 %v6035, 0.5
        %v6044 = vadd.f32 %v6036, 0.5
        %v6045 = vmul.f32 %v6037, %v4901
        %v6046 = vmul.f32 %v6038, %v4902
        %v6047 = vmul.f32 %v6039, %v4903
        %v6048 = vmul.f32 %v6040, %v4904
        %v6049 = vmul.f32 %v6041, %v4905
        %v6050 = vmul.f32 %v6042, %v4906
        %v6051 = vmul.f32 %v6043, %v4907
        %v6052 = vmul.f32 %v6044, %v4908
        %v6053 = vtanh.pop %v5909
        %v6054 = vtanh.pop %v5910
        %v6055 = vtanh.pop %v5911
        %v6056 = vtanh.pop %v5912
        %v6057 = vtanh.pop %v5913
        %v6058 = vtanh.pop %v5914
        %v6059 = vtanh.pop %v5915
        %v6060 = vtanh.pop %v5916
        %v6061 = vmul.f32 %v5989, %v6053
        %v6062 = vmul.f32 %v5990, %v6054
        %v6063 = vmul.f32 %v5991, %v6055
        %v6064 = vmul.f32 %v5992, %v6056
        %v6065 = vmul.f32 %v5993, %v6057
        %v6066 = vmul.f32 %v5994, %v6058
        %v6067 = vmul.f32 %v5995, %v6059
        %v6068 = vmul.f32 %v5996, %v6060
        %v6069 = vadd.f32 %v6045, %v6061
        %v6070 = vadd.f32 %v6046, %v6062
        %v6071 = vadd.f32 %v6047, %v6063
        %v6072 = vadd.f32 %v6048, %v6064
        %v6073 = vadd.f32 %v6049, %v6065
        %v6074 = vadd.f32 %v6050, %v6066
        %v6075 = vadd.f32 %v6051, %v6067
        %v6076 = vadd.f32 %v6052, %v6068
        %v6077 = vmul.f32 %v5941, %v6069
        %v6078 = vmul.f32 %v5942, %v6070
        %v6079 = vmul.f32 %v5943, %v6071
        %v6080 = vmul.f32 %v5944, %v6072
        %v6081 = vmul.f32 %v5945, %v6073
        %v6082 = vmul.f32 %v5946, %v6074
        %v6083 = vmul.f32 %v5947, %v6075
        %v6084 = vmul.f32 %v5948, %v6076
        %v6085 = vadd.f32 %v5917, %v6077
        %v6086 = vadd.f32 %v5918, %v6078
        %v6087 = vadd.f32 %v5919, %v6079
        %v6088 = vadd.f32 %v5920, %v6080
        %v6089 = vadd.f32 %v5921, %v6081
        %v6090 = vadd.f32 %v5922, %v6082
        %v6091 = vadd.f32 %v5923, %v6083
        %v6092 = vadd.f32 %v5924, %v6084
        %v6093 = vmul.f32 %v6085, 0.5
        %v6094 = vmul.f32 %v6086, 0.5
        %v6095 = vmul.f32 %v6087, 0.5
        %v6096 = vmul.f32 %v6088, 0.5
        %v6097 = vmul.f32 %v6089, 0.5
        %v6098 = vmul.f32 %v6090, 0.5
        %v6099 = vmul.f32 %v6091, 0.5
        %v6100 = vmul.f32 %v6092, 0.5
        %v6101 = vtanh.pop %v6093
        %v6102 = vtanh.pop %v6094
        %v6103 = vtanh.pop %v6095
        %v6104 = vtanh.pop %v6096
        %v6105 = vtanh.pop %v6097
        %v6106 = vtanh.pop %v6098
        %v6107 = vtanh.pop %v6099
        %v6108 = vtanh.pop %v6100
        %v6109 = vmul.f32 %v6101, 0.5
        %v6110 = vmul.f32 %v6102, 0.5
        %v6111 = vmul.f32 %v6103, 0.5
        %v6112 = vmul.f32 %v6104, 0.5
        %v6113 = vmul.f32 %v6105, 0.5
        %v6114 = vmul.f32 %v6106, 0.5
        %v6115 = vmul.f32 %v6107, 0.5
        %v6116 = vmul.f32 %v6108, 0.5
        %v6117 = vadd.f32 %v6109, 0.5
        %v6118 = vadd.f32 %v6110, 0.5
        %v6119 = vadd.f32 %v6111, 0.5
        %v6120 = vadd.f32 %v6112, 0.5
        %v6121 = vadd.f32 %v6113, 0.5
        %v6122 = vadd.f32 %v6114, 0.5
        %v6123 = vadd.f32 %v6115, 0.5
        %v6124 = vadd.f32 %v6116, 0.5
        %v6125 = vtanh.pop %v6069
        %v6126 = vtanh.pop %v6070
        %v6127 = vtanh.pop %v6071
        %v6128 = vtanh.pop %v6072
        %v6129 = vtanh.pop %v6073
        %v6130 = vtanh.pop %v6074
        %v6131 = vtanh.pop %v6075
        %v6132 = vtanh.pop %v6076
        %v6133 = vmul.f32 %v6117, %v6125
        %v6134 = vmul.f32 %v6118, %v6126
        %v6135 = vmul.f32 %v6119, %v6127
        %v6136 = vmul.f32 %v6120, %v6128
        %v6137 = vmul.f32 %v6121, %v6129
        %v6138 = vmul.f32 %v6122, %v6130
        %v6139 = vmul.f32 %v6123, %v6131
        %v6140 = vmul.f32 %v6124, %v6132
        %s6141 = scalar_lea.vmem %s263, 256 [#allocation10]
        %6142 = vst [vmem:[%s6141] sm:$0xff] %v6133
        %6143 = vst [vmem:[%s6141 + $0x8] sm:$0xff] %v6134
        %6144 = vst [vmem:[%s6141 + $0x10] sm:$0xff] %v6135
        %6145 = vst [vmem:[%s6141 + $0x18] sm:$0xff] %v6136
        %6146 = vst [vmem:[%s6141 + $0x20] sm:$0xff] %v6137
        %6147 = vst [vmem:[%s6141 + $0x28] sm:$0xff] %v6138
        %6148 = vst [vmem:[%s6141 + $0x30] sm:$0xff] %v6139
        %6149 = vst [vmem:[%s6141 + $0x38] sm:$0xff] %v6140
        %6154 = vrot.lane.b32.xlu0 %v6134, 17
        %v6155 = vpop.permute.xlu0 %6154
        %6156 = vrot.lane.b32.xlu0 %v6136, 17
        %v6157 = vpop.permute.xlu0 %6156
        %6158 = vrot.lane.b32.xlu0 %v6138, 17
        %v6159 = vpop.permute.xlu0 %6158
        %6160 = vrot.lane.b32.xlu0 %v6140, 17
        %v6161 = vpop.permute.xlu0 %6160
        %6170 = vrot.lane.b32.xlu0 %v6133, 17
        %v6171 = vpop.permute.xlu0 %6170
        %6172 = vrot.lane.b32.xlu0 %v6135, 17
        %v6173 = vpop.permute.xlu0 %6172
        %6174 = vrot.lane.b32.xlu0 %v6137, 17
        %v6175 = vpop.permute.xlu0 %6174
        %6176 = vrot.lane.b32.xlu0 %v6139, 17
        %v6177 = vpop.permute.xlu0 %6176
        %v6178 = vsel %vm331, %v6171, %v6155
        %v6179 = vsel %vm331, %v6173, %v6157
        %v6180 = vsel %vm331, %v6175, %v6159
        %v6181 = vsel %vm331, %v6177, %v6161
        %v6190 = vsel %vm331, %v6155, %v6171
        %v6191 = vsel %vm331, %v6157, %v6173
        %v6192 = vsel %vm331, %v6159, %v6175
        %v6193 = vsel %vm331, %v6161, %v6177
        %v6194 = vld [vmem:[#allocation7] sm:$0xff]
        %v6195 = vld [vmem:[#allocation7 + $0x8] sm:$0xff]
        %v6196 = vld [vmem:[#allocation7 + $0x10] sm:$0xff]
        %v6197 = vld [vmem:[#allocation7 + $0x18] sm:$0xff]
        %v6198 = vld [vmem:[#allocation7 + $0x20] sm:$0xff]
        %v6199 = vld [vmem:[#allocation7 + $0x28] sm:$0xff]
        %v6200 = vld [vmem:[#allocation7 + $0x30] sm:$0xff]
        %v6201 = vld [vmem:[#allocation7 + $0x38] sm:$0xff]
        %v6202 = vmul.f32 %v6190, %v6194
        %v6203 = vmul.f32 %v6178, %v6195
        %v6204 = vmul.f32 %v6191, %v6196
        %v6205 = vmul.f32 %v6179, %v6197
        %v6206 = vmul.f32 %v6192, %v6198
        %v6207 = vmul.f32 %v6180, %v6199
        %v6208 = vmul.f32 %v6193, %v6200
        %v6209 = vmul.f32 %v6181, %v6201
        %v6210 = vpack.c.bf16 %v6204, %v6202
        %v6211 = vpack.c.bf16 %v6205, %v6203
        %v6212 = vpack.c.bf16 %v6208, %v6206
        %v6213 = vpack.c.bf16 %v6209, %v6207
        %6214 = vrot.lane.b32.xlu0 %v6134, 16
        %v6215 = vpop.permute.xlu0 %6214
        %6216 = vrot.lane.b32.xlu0 %v6136, 16
        %v6217 = vpop.permute.xlu0 %6216
        %6218 = vrot.lane.b32.xlu0 %v6138, 16
        %v6219 = vpop.permute.xlu0 %6218
        %6220 = vrot.lane.b32.xlu0 %v6140, 16
        %v6221 = vpop.permute.xlu0 %6220
        %6226 = vrot.lane.b32.xlu0 %v6133, 16
        %v6227 = vpop.permute.xlu0 %6226
        %6228 = vrot.lane.b32.xlu0 %v6135, 16
        %v6229 = vpop.permute.xlu0 %6228
        %6230 = vrot.lane.b32.xlu0 %v6137, 16
        %v6231 = vpop.permute.xlu0 %6230
        %6232 = vrot.lane.b32.xlu0 %v6139, 16
        %v6233 = vpop.permute.xlu0 %6232
        %v6234 = vsel %vm388, %v6227, %v6215
        %v6235 = vsel %vm388, %v6229, %v6217
        %v6236 = vsel %vm388, %v6231, %v6219
        %v6237 = vsel %vm388, %v6233, %v6221
        %v6246 = vsel %vm388, %v6215, %v6227
        %v6247 = vsel %vm388, %v6217, %v6229
        %v6248 = vsel %vm388, %v6219, %v6231
        %v6249 = vsel %vm388, %v6221, %v6233
        %v6250 = vld [vmem:[#allocation7 + $0x40] sm:$0xff]
        %v6251 = vld [vmem:[#allocation7 + $0x48] sm:$0xff]
        %v6252 = vld [vmem:[#allocation7 + $0x50] sm:$0xff]
        %v6253 = vld [vmem:[#allocation7 + $0x58] sm:$0xff]
        %v6254 = vld [vmem:[#allocation7 + $0x60] sm:$0xff]
        %v6255 = vld [vmem:[#allocation7 + $0x68] sm:$0xff]
        %v6256 = vld [vmem:[#allocation7 + $0x70] sm:$0xff]
        %v6257 = vld [vmem:[#allocation7 + $0x78] sm:$0xff]
        %v6258 = vmul.f32 %v6246, %v6250
        %v6259 = vmul.f32 %v6234, %v6251
        %v6260 = vmul.f32 %v6247, %v6252
        %v6261 = vmul.f32 %v6235, %v6253
        %v6262 = vmul.f32 %v6248, %v6254
        %v6263 = vmul.f32 %v6236, %v6255
        %v6264 = vmul.f32 %v6249, %v6256
        %v6265 = vmul.f32 %v6237, %v6257
        %v6266 = vpack.c.bf16 %v6260, %v6258
        %v6267 = vpack.c.bf16 %v6261, %v6259
        %v6268 = vpack.c.bf16 %v6264, %v6262
        %v6269 = vpack.c.bf16 %v6265, %v6263
        %6270 = vrot.lane.b32.xlu0 %v6134, 15
        %v6271 = vpop.permute.xlu0 %6270
        %6272 = vrot.lane.b32.xlu0 %v6136, 15
        %v6273 = vpop.permute.xlu0 %6272
        %6274 = vrot.lane.b32.xlu0 %v6138, 15
        %v6275 = vpop.permute.xlu0 %6274
        %6276 = vrot.lane.b32.xlu0 %v6140, 15
        %v6277 = vpop.permute.xlu0 %6276
        %6282 = vrot.lane.b32.xlu0 %v6133, 15
        %v6283 = vpop.permute.xlu0 %6282
        %6284 = vrot.lane.b32.xlu0 %v6135, 15
        %v6285 = vpop.permute.xlu0 %6284
        %6286 = vrot.lane.b32.xlu0 %v6137, 15
        %v6287 = vpop.permute.xlu0 %6286
        %6288 = vrot.lane.b32.xlu0 %v6139, 15
        %v6289 = vpop.permute.xlu0 %6288
        %v6290 = vsel %vm445, %v6283, %v6271
        %v6291 = vsel %vm445, %v6285, %v6273
        %v6292 = vsel %vm445, %v6287, %v6275
        %v6293 = vsel %vm445, %v6289, %v6277
        %v6302 = vsel %vm445, %v6271, %v6283
        %v6303 = vsel %vm445, %v6273, %v6285
        %v6304 = vsel %vm445, %v6275, %v6287
        %v6305 = vsel %vm445, %v6277, %v6289
        %v6306 = vld [vmem:[#allocation7 + $0x80] sm:$0xff]
        %v6307 = vld [vmem:[#allocation7 + $0x88] sm:$0xff]
        %v6308 = vld [vmem:[#allocation7 + $0x90] sm:$0xff]
        %v6309 = vld [vmem:[#allocation7 + $0x98] sm:$0xff]
        %v6310 = vld [vmem:[#allocation7 + $0xa0] sm:$0xff]
        %v6311 = vld [vmem:[#allocation7 + $0xa8] sm:$0xff]
        %v6312 = vld [vmem:[#allocation7 + $0xb0] sm:$0xff]
        %v6313 = vld [vmem:[#allocation7 + $0xb8] sm:$0xff]
        %v6314 = vmul.f32 %v6302, %v6306
        %v6315 = vmul.f32 %v6290, %v6307
        %v6316 = vmul.f32 %v6303, %v6308
        %v6317 = vmul.f32 %v6291, %v6309
        %v6318 = vmul.f32 %v6304, %v6310
        %v6319 = vmul.f32 %v6292, %v6311
        %v6320 = vmul.f32 %v6305, %v6312
        %v6321 = vmul.f32 %v6293, %v6313
        %v6322 = vpack.c.bf16 %v6316, %v6314
        %v6323 = vpack.c.bf16 %v6317, %v6315
        %v6324 = vpack.c.bf16 %v6320, %v6318
        %v6325 = vpack.c.bf16 %v6321, %v6319
        %6326 = vrot.lane.b32.xlu0 %v6134, 1
        %v6327 = vpop.permute.xlu0 %6326
        %6328 = vrot.lane.b32.xlu0 %v6136, 1
        %v6329 = vpop.permute.xlu0 %6328
        %6330 = vrot.lane.b32.xlu0 %v6138, 1
        %v6331 = vpop.permute.xlu0 %6330
        %6332 = vrot.lane.b32.xlu0 %v6140, 1
        %v6333 = vpop.permute.xlu0 %6332
        %6338 = vrot.lane.b32.xlu0 %v6133, 1
        %v6339 = vpop.permute.xlu0 %6338
        %6340 = vrot.lane.b32.xlu0 %v6135, 1
        %v6341 = vpop.permute.xlu0 %6340
        %6342 = vrot.lane.b32.xlu0 %v6137, 1
        %v6343 = vpop.permute.xlu0 %6342
        %6344 = vrot.lane.b32.xlu0 %v6139, 1
        %v6345 = vpop.permute.xlu0 %6344
        %v6346 = vsel %vm502, %v6339, %v6327
        %v6347 = vsel %vm502, %v6341, %v6329
        %v6348 = vsel %vm502, %v6343, %v6331
        %v6349 = vsel %vm502, %v6345, %v6333
        %v6358 = vsel %vm502, %v6327, %v6339
        %v6359 = vsel %vm502, %v6329, %v6341
        %v6360 = vsel %vm502, %v6331, %v6343
        %v6361 = vsel %vm502, %v6333, %v6345
        %v6362 = vld [vmem:[#allocation7 + $0xc0] sm:$0xff]
        %v6363 = vld [vmem:[#allocation7 + $0xc8] sm:$0xff]
        %v6364 = vld [vmem:[#allocation7 + $0xd0] sm:$0xff]
        %v6365 = vld [vmem:[#allocation7 + $0xd8] sm:$0xff]
        %v6366 = vld [vmem:[#allocation7 + $0xe0] sm:$0xff]
        %v6367 = vld [vmem:[#allocation7 + $0xe8] sm:$0xff]
        %v6368 = vld [vmem:[#allocation7 + $0xf0] sm:$0xff]
        %v6369 = vld [vmem:[#allocation7 + $0xf8] sm:$0xff]
        %v6370 = vmul.f32 %v6358, %v6362
        %v6371 = vmul.f32 %v6346, %v6363
        %v6372 = vmul.f32 %v6359, %v6364
        %v6373 = vmul.f32 %v6347, %v6365
        %v6374 = vmul.f32 %v6360, %v6366
        %v6375 = vmul.f32 %v6348, %v6367
        %v6376 = vmul.f32 %v6361, %v6368
        %v6377 = vmul.f32 %v6349, %v6369
        %v6378 = vpack.c.bf16 %v6372, %v6370
        %v6379 = vpack.c.bf16 %v6373, %v6371
        %v6380 = vpack.c.bf16 %v6376, %v6374
        %v6381 = vpack.c.bf16 %v6377, %v6375
        %v6382 = vld [vmem:[#allocation7 + $0x100] sm:$0xff]
        %v6383 = vld [vmem:[#allocation7 + $0x108] sm:$0xff]
        %v6384 = vld [vmem:[#allocation7 + $0x110] sm:$0xff]
        %v6385 = vld [vmem:[#allocation7 + $0x118] sm:$0xff]
        %v6386 = vld [vmem:[#allocation7 + $0x120] sm:$0xff]
        %v6387 = vld [vmem:[#allocation7 + $0x128] sm:$0xff]
        %v6388 = vld [vmem:[#allocation7 + $0x130] sm:$0xff]
        %v6389 = vld [vmem:[#allocation7 + $0x138] sm:$0xff]
        %v6390 = vmul.f32 %v6133, %v6382
        %v6391 = vmul.f32 %v6134, %v6383
        %v6392 = vmul.f32 %v6135, %v6384
        %v6393 = vmul.f32 %v6136, %v6385
        %v6394 = vmul.f32 %v6137, %v6386
        %v6395 = vmul.f32 %v6138, %v6387
        %v6396 = vmul.f32 %v6139, %v6388
        %v6397 = vmul.f32 %v6140, %v6389
        %v6398 = vpack.c.bf16 %v6392, %v6390
        %v6399 = vpack.c.bf16 %v6393, %v6391
        %v6400 = vpack.c.bf16 %v6396, %v6394
        %v6401 = vpack.c.bf16 %v6397, %v6395
        %6402 = vrot.lane.b32.xlu0 %v6133, 127
        %v6403 = vpop.permute.xlu0 %6402
        %6404 = vrot.lane.b32.xlu0 %v6134, 127
        %v6405 = vpop.permute.xlu0 %6404
        %6406 = vrot.lane.b32.xlu0 %v6135, 127
        %v6407 = vpop.permute.xlu0 %6406
        %6408 = vrot.lane.b32.xlu0 %v6136, 127
        %v6409 = vpop.permute.xlu0 %6408
        %6410 = vrot.lane.b32.xlu0 %v6137, 127
        %v6411 = vpop.permute.xlu0 %6410
        %6412 = vrot.lane.b32.xlu0 %v6138, 127
        %v6413 = vpop.permute.xlu0 %6412
        %6414 = vrot.lane.b32.xlu0 %v6139, 127
        %v6415 = vpop.permute.xlu0 %6414
        %6416 = vrot.lane.b32.xlu0 %v6140, 127
        %v6417 = vpop.permute.xlu0 %6416
        %v6418 = vsel %vm575, %v6403, %v6405
        %v6419 = vsel %vm575, %v6407, %v6409
        %v6420 = vsel %vm575, %v6411, %v6413
        %v6421 = vsel %vm575, %v6415, %v6417
        %v6434 = vsel %vm575, %v6405, %v6403
        %v6435 = vsel %vm575, %v6409, %v6407
        %v6436 = vsel %vm575, %v6413, %v6411
        %v6437 = vsel %vm575, %v6417, %v6415
        %v6438 = vld [vmem:[#allocation7 + $0x140] sm:$0xff]
        %v6439 = vld [vmem:[#allocation7 + $0x148] sm:$0xff]
        %v6440 = vld [vmem:[#allocation7 + $0x150] sm:$0xff]
        %v6441 = vld [vmem:[#allocation7 + $0x158] sm:$0xff]
        %v6442 = vld [vmem:[#allocation7 + $0x160] sm:$0xff]
        %v6443 = vld [vmem:[#allocation7 + $0x168] sm:$0xff]
        %v6444 = vld [vmem:[#allocation7 + $0x170] sm:$0xff]
        %v6445 = vld [vmem:[#allocation7 + $0x178] sm:$0xff]
        %v6446 = vmul.f32 %v6418, %v6438
        %v6447 = vmul.f32 %v6434, %v6439
        %v6448 = vmul.f32 %v6419, %v6440
        %v6449 = vmul.f32 %v6435, %v6441
        %v6450 = vmul.f32 %v6420, %v6442
        %v6451 = vmul.f32 %v6436, %v6443
        %v6452 = vmul.f32 %v6421, %v6444
        %v6453 = vmul.f32 %v6437, %v6445
        %v6454 = vpack.c.bf16 %v6448, %v6446
        %v6455 = vpack.c.bf16 %v6449, %v6447
        %v6456 = vpack.c.bf16 %v6452, %v6450
        %v6457 = vpack.c.bf16 %v6453, %v6451
        %6458 = vrot.lane.b32.xlu0 %v6133, 113
        %v6459 = vpop.permute.xlu0 %6458
        %6460 = vrot.lane.b32.xlu0 %v6134, 113
        %v6461 = vpop.permute.xlu0 %6460
        %6462 = vrot.lane.b32.xlu0 %v6135, 113
        %v6463 = vpop.permute.xlu0 %6462
        %6464 = vrot.lane.b32.xlu0 %v6136, 113
        %v6465 = vpop.permute.xlu0 %6464
        %6466 = vrot.lane.b32.xlu0 %v6137, 113
        %v6467 = vpop.permute.xlu0 %6466
        %6468 = vrot.lane.b32.xlu0 %v6138, 113
        %v6469 = vpop.permute.xlu0 %6468
        %6470 = vrot.lane.b32.xlu0 %v6139, 113
        %v6471 = vpop.permute.xlu0 %6470
        %6472 = vrot.lane.b32.xlu0 %v6140, 113
        %v6473 = vpop.permute.xlu0 %6472
        %v6474 = vsel %vm632, %v6459, %v6461
        %v6475 = vsel %vm632, %v6463, %v6465
        %v6476 = vsel %vm632, %v6467, %v6469
        %v6477 = vsel %vm632, %v6471, %v6473
        %v6490 = vsel %vm632, %v6461, %v6459
        %v6491 = vsel %vm632, %v6465, %v6463
        %v6492 = vsel %vm632, %v6469, %v6467
        %v6493 = vsel %vm632, %v6473, %v6471
        %v6494 = vld [vmem:[#allocation7 + $0x180] sm:$0xff]
        %v6495 = vld [vmem:[#allocation7 + $0x188] sm:$0xff]
        %v6496 = vld [vmem:[#allocation7 + $0x190] sm:$0xff]
        %v6497 = vld [vmem:[#allocation7 + $0x198] sm:$0xff]
        %v6498 = vld [vmem:[#allocation7 + $0x1a0] sm:$0xff]
        %v6499 = vld [vmem:[#allocation7 + $0x1a8] sm:$0xff]
        %v6500 = vld [vmem:[#allocation7 + $0x1b0] sm:$0xff]
        %v6501 = vld [vmem:[#allocation7 + $0x1b8] sm:$0xff]
        %v6502 = vmul.f32 %v6474, %v6494
        %v6503 = vmul.f32 %v6490, %v6495
        %v6504 = vmul.f32 %v6475, %v6496
        %v6505 = vmul.f32 %v6491, %v6497
        %v6506 = vmul.f32 %v6476, %v6498
        %v6507 = vmul.f32 %v6492, %v6499
        %v6508 = vmul.f32 %v6477, %v6500
        %v6509 = vmul.f32 %v6493, %v6501
        %v6510 = vpack.c.bf16 %v6504, %v6502
        %v6511 = vpack.c.bf16 %v6505, %v6503
        %v6512 = vpack.c.bf16 %v6508, %v6506
        %v6513 = vpack.c.bf16 %v6509, %v6507
        %6514 = vrot.lane.b32.xlu0 %v6133, 112
        %v6515 = vpop.permute.xlu0 %6514
        %6516 = vrot.lane.b32.xlu0 %v6134, 112
        %v6517 = vpop.permute.xlu0 %6516
        %6518 = vrot.lane.b32.xlu0 %v6135, 112
        %v6519 = vpop.permute.xlu0 %6518
        %6520 = vrot.lane.b32.xlu0 %v6136, 112
        %v6521 = vpop.permute.xlu0 %6520
        %6522 = vrot.lane.b32.xlu0 %v6137, 112
        %v6523 = vpop.permute.xlu0 %6522
        %6524 = vrot.lane.b32.xlu0 %v6138, 112
        %v6525 = vpop.permute.xlu0 %6524
        %6526 = vrot.lane.b32.xlu0 %v6139, 112
        %v6527 = vpop.permute.xlu0 %6526
        %6528 = vrot.lane.b32.xlu0 %v6140, 112
        %v6529 = vpop.permute.xlu0 %6528
        %v6530 = vsel %vm689, %v6515, %v6517
        %v6531 = vsel %vm689, %v6519, %v6521
        %v6532 = vsel %vm689, %v6523, %v6525
        %v6533 = vsel %vm689, %v6527, %v6529
        %v6546 = vsel %vm689, %v6517, %v6515
        %v6547 = vsel %vm689, %v6521, %v6519
        %v6548 = vsel %vm689, %v6525, %v6523
        %v6549 = vsel %vm689, %v6529, %v6527
        %v6550 = vld [vmem:[#allocation7 + $0x1c0] sm:$0xff]
        %v6551 = vld [vmem:[#allocation7 + $0x1c8] sm:$0xff]
        %v6552 = vld [vmem:[#allocation7 + $0x1d0] sm:$0xff]
        %v6553 = vld [vmem:[#allocation7 + $0x1d8] sm:$0xff]
        %v6554 = vld [vmem:[#allocation7 + $0x1e0] sm:$0xff]
        %v6555 = vld [vmem:[#allocation7 + $0x1e8] sm:$0xff]
        %v6556 = vld [vmem:[#allocation7 + $0x1f0] sm:$0xff]
        %v6557 = vld [vmem:[#allocation7 + $0x1f8] sm:$0xff]
        %v6558 = vmul.f32 %v6530, %v6550
        %v6559 = vmul.f32 %v6546, %v6551
        %v6560 = vmul.f32 %v6531, %v6552
        %v6561 = vmul.f32 %v6547, %v6553
        %v6562 = vmul.f32 %v6532, %v6554
        %v6563 = vmul.f32 %v6548, %v6555
        %v6564 = vmul.f32 %v6533, %v6556
        %v6565 = vmul.f32 %v6549, %v6557
        %v6566 = vpack.c.bf16 %v6560, %v6558
        %v6567 = vpack.c.bf16 %v6561, %v6559
        %v6568 = vpack.c.bf16 %v6564, %v6562
        %v6569 = vpack.c.bf16 %v6565, %v6563
        %6570 = vrot.lane.b32.xlu0 %v6133, 111
        %v6571 = vpop.permute.xlu0 %6570
        %6572 = vrot.lane.b32.xlu0 %v6134, 111
        %v6573 = vpop.permute.xlu0 %6572
        %6574 = vrot.lane.b32.xlu0 %v6135, 111
        %v6575 = vpop.permute.xlu0 %6574
        %6576 = vrot.lane.b32.xlu0 %v6136, 111
        %v6577 = vpop.permute.xlu0 %6576
        %6578 = vrot.lane.b32.xlu0 %v6137, 111
        %v6579 = vpop.permute.xlu0 %6578
        %6580 = vrot.lane.b32.xlu0 %v6138, 111
        %v6581 = vpop.permute.xlu0 %6580
        %6582 = vrot.lane.b32.xlu0 %v6139, 111
        %v6583 = vpop.permute.xlu0 %6582
        %6584 = vrot.lane.b32.xlu0 %v6140, 111
        %v6585 = vpop.permute.xlu0 %6584
        %v6586 = vsel %vm746, %v6571, %v6573
        %v6587 = vsel %vm746, %v6575, %v6577
        %v6588 = vsel %vm746, %v6579, %v6581
        %v6589 = vsel %vm746, %v6583, %v6585
        %v6602 = vsel %vm746, %v6573, %v6571
        %v6603 = vsel %vm746, %v6577, %v6575
        %v6604 = vsel %vm746, %v6581, %v6579
        %v6605 = vsel %vm746, %v6585, %v6583
        %v6606 = vld [vmem:[#allocation7 + $0x200] sm:$0xff]
        %v6607 = vld [vmem:[#allocation7 + $0x208] sm:$0xff]
        %v6608 = vld [vmem:[#allocation7 + $0x210] sm:$0xff]
        %v6609 = vld [vmem:[#allocation7 + $0x218] sm:$0xff]
        %v6610 = vld [vmem:[#allocation7 + $0x220] sm:$0xff]
        %v6611 = vld [vmem:[#allocation7 + $0x228] sm:$0xff]
        %v6612 = vld [vmem:[#allocation7 + $0x230] sm:$0xff]
        %v6613 = vld [vmem:[#allocation7 + $0x238] sm:$0xff]
        %v6614 = vmul.f32 %v6586, %v6606
        %v6615 = vmul.f32 %v6602, %v6607
        %v6616 = vmul.f32 %v6587, %v6608
        %v6617 = vmul.f32 %v6603, %v6609
        %v6618 = vmul.f32 %v6588, %v6610
        %v6619 = vmul.f32 %v6604, %v6611
        %v6620 = vmul.f32 %v6589, %v6612
        %v6621 = vmul.f32 %v6605, %v6613
        %v6622 = vpack.c.bf16 %v6616, %v6614
        %v6623 = vpack.c.bf16 %v6617, %v6615
        %v6624 = vpack.c.bf16 %v6620, %v6618
        %v6625 = vpack.c.bf16 %v6621, %v6619
        %s6626 = scalar_lea.vmem %s231, 1280 [#allocation4]
        %v6627 = vld [vmem:[%s6626] sm:$0xff]
        %v6628 = vld [vmem:[%s6626 + $0x8] sm:$0xff]
        %v6629 = vld [vmem:[%s6626 + $0x10] sm:$0xff]
        %v6630 = vld [vmem:[%s6626 + $0x18] sm:$0xff]
        %v6631 = vld [vmem:[%s6626 + $0x20] sm:$0xff]
        %v6632 = vld [vmem:[%s6626 + $0x28] sm:$0xff]
        %v6633 = vld [vmem:[%s6626 + $0x30] sm:$0xff]
        %v6634 = vld [vmem:[%s6626 + $0x38] sm:$0xff]
        %v6635 = vld [vmem:[%s6626 + $0x40] sm:$0xff]
        %v6636 = vld [vmem:[%s6626 + $0x48] sm:$0xff]
        %v6637 = vld [vmem:[%s6626 + $0x50] sm:$0xff]
        %v6638 = vld [vmem:[%s6626 + $0x58] sm:$0xff]
        %v6639 = vld [vmem:[%s6626 + $0x60] sm:$0xff]
        %v6640 = vld [vmem:[%s6626 + $0x68] sm:$0xff]
        %v6641 = vld [vmem:[%s6626 + $0x70] sm:$0xff]
        %v6642 = vld [vmem:[%s6626 + $0x78] sm:$0xff]
        %v6643 = vld [vmem:[%s6626 + $0x80] sm:$0xff]
        %v6644 = vld [vmem:[%s6626 + $0x88] sm:$0xff]
        %v6645 = vld [vmem:[%s6626 + $0x90] sm:$0xff]
        %v6646 = vld [vmem:[%s6626 + $0x98] sm:$0xff]
        %v6647 = vld [vmem:[%s6626 + $0xa0] sm:$0xff]
        %v6648 = vld [vmem:[%s6626 + $0xa8] sm:$0xff]
        %v6649 = vld [vmem:[%s6626 + $0xb0] sm:$0xff]
        %v6650 = vld [vmem:[%s6626 + $0xb8] sm:$0xff]
        %v6651 = vld [vmem:[%s6626 + $0xc0] sm:$0xff]
        %v6652 = vld [vmem:[%s6626 + $0xc8] sm:$0xff]
        %v6653 = vld [vmem:[%s6626 + $0xd0] sm:$0xff]
        %v6654 = vld [vmem:[%s6626 + $0xd8] sm:$0xff]
        %v6655 = vld [vmem:[%s6626 + $0xe0] sm:$0xff]
        %v6656 = vld [vmem:[%s6626 + $0xe8] sm:$0xff]
        %v6657 = vld [vmem:[%s6626 + $0xf0] sm:$0xff]
        %v6658 = vld [vmem:[%s6626 + $0xf8] sm:$0xff]
        %v6659 = vld [vmem:[%s1] sm:$0xff]
        %v6660 = vld [vmem:[%s1 + $0x8] sm:$0xf]
        %v6661 = vld [vmem:[%s1 + $0xc] sm:$0xff]
        %v6662 = vld [vmem:[%s1 + $0x14] sm:$0xf]
        %v6663 = vld [vmem:[%s1 + $0x18] sm:$0xff]
        %v6664 = vld [vmem:[%s1 + $0x20] sm:$0xf]
        %v6665 = vld [vmem:[%s1 + $0x24] sm:$0xff]
        %v6666 = vld [vmem:[%s1 + $0x2c] sm:$0xf]
        %v6667 = vld [vmem:[%s1 + $0x30] sm:$0xff]
        %v6668 = vld [vmem:[%s1 + $0x38] sm:$0xf]
        %v6669 = vld [vmem:[%s1 + $0x3c] sm:$0xff]
        %v6670 = vld [vmem:[%s1 + $0x44] sm:$0xf]
        %v6671 = vld [vmem:[%s1 + $0x48] sm:$0xff]
        %v6672 = vld [vmem:[%s1 + $0x50] sm:$0xf]
        %v6673 = vld [vmem:[%s1 + $0x54] sm:$0xff]
        %v6674 = vld [vmem:[%s1 + $0x5c] sm:$0xf]
        %v6675 = vld [vmem:[%s1 + $0x60] sm:$0xff]
        %v6676 = vld [vmem:[%s1 + $0x68] sm:$0xf]
        %v6677 = vld [vmem:[%s1 + $0x6c] sm:$0xff]
        %v6678 = vld [vmem:[%s1 + $0x74] sm:$0xf]
        %v6679 = vld [vmem:[%s1 + $0x78] sm:$0xff]
        %v6680 = vld [vmem:[%s1 + $0x80] sm:$0xf]
        %v6681 = vld [vmem:[%s1 + $0x84] sm:$0xff]
        %v6682 = vld [vmem:[%s1 + $0x8c] sm:$0xf]
        %v6683 = vld [vmem:[%s1 + $0x90] sm:$0xff]
        %v6684 = vld [vmem:[%s1 + $0x98] sm:$0xf]
        %v6685 = vld [vmem:[%s1 + $0x9c] sm:$0xff]
        %v6686 = vld [vmem:[%s1 + $0xa4] sm:$0xf]
        %v6687 = vld [vmem:[%s1 + $0xa8] sm:$0xff]
        %v6688 = vld [vmem:[%s1 + $0xb0] sm:$0xf]
        %v6689 = vld [vmem:[%s1 + $0xb4] sm:$0xff]
        %v6690 = vld [vmem:[%s1 + $0xbc] sm:$0xf]
        %v6723 = vunpack.c.l.b16 %v6659
        %v6724 = vunpack.c.h.b16 %v6659
        %v6725 = vunpack.c.l.b16 %v6660
        %v6726 = vunpack.c.l.b16 %v6661
        %v6727 = vunpack.c.h.b16 %v6661
        %v6728 = vunpack.c.l.b16 %v6662
        %v6729 = vunpack.c.l.b16 %v6663
        %v6730 = vunpack.c.h.b16 %v6663
        %v6731 = vunpack.c.l.b16 %v6664
        %v6732 = vunpack.c.l.b16 %v6665
        %v6733 = vunpack.c.h.b16 %v6665
        %v6734 = vunpack.c.l.b16 %v6666
        %v6735 = vunpack.c.l.b16 %v6667
        %v6736 = vunpack.c.h.b16 %v6667
        %v6737 = vunpack.c.l.b16 %v6668
        %v6738 = vunpack.c.l.b16 %v6669
        %v6739 = vunpack.c.h.b16 %v6669
        %v6740 = vunpack.c.l.b16 %v6670
        %v6741 = vunpack.c.l.b16 %v6671
        %v6742 = vunpack.c.h.b16 %v6671
        %v6743 = vunpack.c.l.b16 %v6672
        %v6744 = vunpack.c.l.b16 %v6673
        %v6745 = vunpack.c.h.b16 %v6673
        %v6746 = vunpack.c.l.b16 %v6674
        %v6747 = vunpack.c.l.b16 %v6675
        %v6748 = vunpack.c.h.b16 %v6675
        %v6749 = vunpack.c.l.b16 %v6676
        %v6750 = vunpack.c.l.b16 %v6677
        %v6751 = vunpack.c.h.b16 %v6677
        %v6752 = vunpack.c.l.b16 %v6678
        %v6753 = vunpack.c.l.b16 %v6679
        %v6754 = vunpack.c.h.b16 %v6679
        %v6755 = vunpack.c.l.b16 %v6680
        %v6756 = vunpack.c.l.b16 %v6681
        %v6757 = vunpack.c.h.b16 %v6681
        %v6758 = vunpack.c.l.b16 %v6682
        %v6759 = vunpack.c.l.b16 %v6683
        %v6760 = vunpack.c.h.b16 %v6683
        %v6761 = vunpack.c.l.b16 %v6684
        %v6762 = vunpack.c.l.b16 %v6685
        %v6763 = vunpack.c.h.b16 %v6685
        %v6764 = vunpack.c.l.b16 %v6686
        %v6765 = vunpack.c.l.b16 %v6687
        %v6766 = vunpack.c.h.b16 %v6687
        %v6767 = vunpack.c.l.b16 %v6688
        %v6768 = vunpack.c.l.b16 %v6689
        %v6769 = vunpack.c.h.b16 %v6689
        %v6770 = vunpack.c.l.b16 %v6690
        %v6771 = vpack.c.b16 %v6726, %v6723
        %v6772 = vpack.c.b16 %v6727, %v6724
        %v6773 = vpack.c.b16 %v6728, %v6725
        %v6774 = vpack.c.b16 %v6732, %v6729
        %v6775 = vpack.c.b16 %v6733, %v6730
        %v6776 = vpack.c.b16 %v6734, %v6731
        %v6777 = vpack.c.b16 %v6738, %v6735
        %v6778 = vpack.c.b16 %v6739, %v6736
        %v6779 = vpack.c.b16 %v6740, %v6737
        %v6780 = vpack.c.b16 %v6744, %v6741
        %v6781 = vpack.c.b16 %v6745, %v6742
        %v6782 = vpack.c.b16 %v6746, %v6743
        %v6783 = vpack.c.b16 %v6750, %v6747
        %v6784 = vpack.c.b16 %v6751, %v6748
        %v6785 = vpack.c.b16 %v6752, %v6749
        %v6786 = vpack.c.b16 %v6756, %v6753
        %v6787 = vpack.c.b16 %v6757, %v6754
        %v6788 = vpack.c.b16 %v6758, %v6755
        %v6789 = vpack.c.b16 %v6762, %v6759
        %v6790 = vpack.c.b16 %v6763, %v6760
        %v6791 = vpack.c.b16 %v6764, %v6761
        %v6792 = vpack.c.b16 %v6768, %v6765
        %v6793 = vpack.c.b16 %v6769, %v6766
        %v6794 = vpack.c.b16 %v6770, %v6767
        %v6812 = vsel %vm971, %v6773, 0
        %v6815 = vsel %vm971, %v6776, 0
        %v6818 = vsel %vm971, %v6779, 0
        %v6821 = vsel %vm971, %v6782, 0
        %v6824 = vsel %vm971, %v6785, 0
        %v6827 = vsel %vm971, %v6788, 0
        %v6830 = vsel %vm971, %v6791, 0
        %v6833 = vsel %vm971, %v6794, 0
        %6835 = vmatprep.subr.bf16.mxu0 %v6211
        %6836 = vmatpush1.bf16.msra.mxu0 %v6210
        %6837 = vmatprep.subr.bf16.mxu0 %v6213
        %6838 = vmatpush1.bf16.msra.mxu0 %v6212
        %6839 = vmatprep.subr.bf16.mxu0 %v6267
        %6840 = vmatpush1.bf16.msra.mxu0 %v6266
        %6841 = vmatprep.subr.bf16.mxu0 %v6269
        %6842 = vmatpush1.bf16.msra.mxu0 %v6268
        %6843 = vmatprep.subr.bf16.mxu0 %v6323
        %6844 = vmatpush1.bf16.msra.mxu0 %v6322
        %6845 = vmatprep.subr.bf16.mxu0 %v6325
        %6846 = vmatpush1.bf16.msra.mxu0 %v6324
        %6847 = vmatprep.subr.bf16.mxu0 %v6379
        %6848 = vmatpush1.bf16.msra.mxu0 %v6378
        %6849 = vmatprep.subr.bf16.mxu0 %v6381
        %6850 = vmatpush1.bf16.msra.mxu0 %v6380
        %6851 = vmatprep.subr.bf16.mxu0 %v6399
        %6852 = vmatpush1.bf16.msra.mxu0 %v6398
        %6853 = vmatprep.subr.bf16.mxu0 %v6401
        %6854 = vmatpush1.bf16.msra.mxu0 %v6400
        %6855 = vmatprep.subr.bf16.mxu0 %v6455
        %6856 = vmatpush1.bf16.msra.mxu0 %v6454
        %6857 = vmatprep.subr.bf16.mxu0 %v6457
        %6858 = vmatpush1.bf16.msra.mxu0 %v6456
        %6859 = vmatprep.subr.bf16.mxu0 %v6511
        %6860 = vmatpush1.bf16.msra.mxu0 %v6510
        %6861 = vmatprep.subr.bf16.mxu0 %v6513
        %6862 = vmatpush1.bf16.msra.mxu0 %v6512
        %6863 = vmatprep.subr.bf16.mxu0 %v6567
        %6864 = vmatpush1.bf16.msra.mxu0 %v6566
        %6865 = vmatprep.subr.bf16.mxu0 %v6569
        %6866 = vmatpush1.bf16.msra.mxu0 %v6568
        %6867 = vmatprep.mubr.bf16.mxu0 %v6772
        %6868 = vmatmul.mubr.bf16.gmra.mrb[0].mxu0 %v6771
        %v6869 = vpop.f32.mrb[0].mxu0
        %v6870 = vadd.f32 0.0, %v6869
        %v6871 = vpop.f32.mrb[0].mxu0
        %v6872 = vadd.f32 0.0, %v6871
        %v6873 = vpop.f32.mrb[0].mxu0
        %v6874 = vadd.f32 0.0, %v6873
        %v6875 = vpop.f32.mrb[0].mxu0
        %v6876 = vadd.f32 0.0, %v6875
        %6877 = vmatprep.mubr.bf16.mxu0 %v6775
        %6878 = vmatmul.mubr.bf16.gmra.mrb[0].mxu0 %v6774
        %v6879 = vpop.f32.mrb[0].mxu0
        %v6880 = vadd.f32 0.0, %v6879
        %v6881 = vpop.f32.mrb[0].mxu0
        %v6882 = vadd.f32 0.0, %v6881
        %v6883 = vpop.f32.mrb[0].mxu0
        %v6884 = vadd.f32 0.0, %v6883
        %v6885 = vpop.f32.mrb[0].mxu0
        %v6886 = vadd.f32 0.0, %v6885
        %6887 = vmatprep.mubr.bf16.mxu0 %v6778
        %6888 = vmatmul.mubr.bf16.gmra.mrb[0].mxu0 %v6777
        %v6889 = vpop.f32.mrb[0].mxu0
        %v6890 = vadd.f32 0.0, %v6889
        %v6891 = vpop.f32.mrb[0].mxu0
        %v6892 = vadd.f32 0.0, %v6891
        %v6893 = vpop.f32.mrb[0].mxu0
        %v6894 = vadd.f32 0.0, %v6893
        %v6895 = vpop.f32.mrb[0].mxu0
        %v6896 = vadd.f32 0.0, %v6895
        %6897 = vmatprep.mubr.bf16.mxu0 %v6781
        %6898 = vmatmul.mubr.bf16.gmra.mrb[0].mxu0 %v6780
        %v6899 = vpop.f32.mrb[0].mxu0
        %v6900 = vadd.f32 0.0, %v6899
        %v6901 = vpop.f32.mrb[0].mxu0
        %v6902 = vadd.f32 0.0, %v6901
        %v6903 = vpop.f32.mrb[0].mxu0
        %v6904 = vadd.f32 0.0, %v6903
        %v6905 = vpop.f32.mrb[0].mxu0
        %v6906 = vadd.f32 0.0, %v6905
        %6907 = vmatprep.mubr.bf16.mxu0 %v6784
        %6908 = vmatmul.mubr.bf16.gmra.mrb[0].mxu0 %v6783
        %v6909 = vpop.f32.mrb[0].mxu0
        %v6910 = vadd.f32 0.0, %v6909
        %v6911 = vpop.f32.mrb[0].mxu0
        %v6912 = vadd.f32 0.0, %v6911
        %v6913 = vpop.f32.mrb[0].mxu0
        %v6914 = vadd.f32 0.0, %v6913
        %v6915 = vpop.f32.mrb[0].mxu0
        %v6916 = vadd.f32 0.0, %v6915
        %6917 = vmatprep.mubr.bf16.mxu0 %v6787
        %6918 = vmatmul.mubr.bf16.gmra.mrb[0].mxu0 %v6786
        %v6919 = vpop.f32.mrb[0].mxu0
        %v6920 = vadd.f32 0.0, %v6919
        %v6921 = vpop.f32.mrb[0].mxu0
        %v6922 = vadd.f32 0.0, %v6921
        %v6923 = vpop.f32.mrb[0].mxu0
        %v6924 = vadd.f32 0.0, %v6923
        %v6925 = vpop.f32.mrb[0].mxu0
        %v6926 = vadd.f32 0.0, %v6925
        %6927 = vmatprep.mubr.bf16.mxu0 %v6790
        %6928 = vmatmul.mubr.bf16.gmra.mrb[0].mxu0 %v6789
        %v6929 = vpop.f32.mrb[0].mxu0
        %v6930 = vadd.f32 0.0, %v6929
        %v6931 = vpop.f32.mrb[0].mxu0
        %v6932 = vadd.f32 0.0, %v6931
        %v6933 = vpop.f32.mrb[0].mxu0
        %v6934 = vadd.f32 0.0, %v6933
        %v6935 = vpop.f32.mrb[0].mxu0
        %v6936 = vadd.f32 0.0, %v6935
        %6937 = vmatprep.mubr.bf16.mxu0 %v6793
        %6938 = vmatmul.mubr.bf16.gmra.mrb[0].mxu0 %v6792
        %v6939 = vpop.f32.mrb[0].mxu0
        %v6940 = vadd.f32 0.0, %v6939
        %v6941 = vpop.f32.mrb[0].mxu0
        %v6942 = vadd.f32 0.0, %v6941
        %v6943 = vpop.f32.mrb[0].mxu0
        %v6944 = vadd.f32 0.0, %v6943
        %v6945 = vpop.f32.mrb[0].mxu0
        %v6946 = vadd.f32 0.0, %v6945
        %6947 = vdwg.mxu0
        %6948 = vmatprep.subr.bf16.mxu0 %v6623
        %6949 = vmatpush1.bf16.msra.mxu0 %v6622
        %6950 = vmatprep.subr.bf16.mxu0 %v6625
        %6951 = vmatpush1.bf16.msra.mxu0 %v6624
        %6952 = vmatprep.subr.bf16.mxu0 0
        %6953 = vmatpush1.bf16.msra.mxu0 0
        %6954 = vmatprep.subr.bf16.mxu0 0
        %6955 = vmatpush1.bf16.msra.mxu0 0
        %6956 = vmatprep.subr.bf16.mxu0 0
        %6957 = vmatpush1.bf16.msra.mxu0 0
        %6958 = vmatprep.subr.bf16.mxu0 0
        %6959 = vmatpush1.bf16.msra.mxu0 0
        %6960 = vmatprep.subr.bf16.mxu0 0
        %6961 = vmatpush1.bf16.msra.mxu0 0
        %6962 = vmatprep.subr.bf16.mxu0 0
        %6963 = vmatpush1.bf16.msra.mxu0 0
        %6964 = vmatprep.subr.bf16.mxu0 0
        %6965 = vmatpush1.bf16.msra.mxu0 0
        %6966 = vmatprep.subr.bf16.mxu0 0
        %6967 = vmatpush1.bf16.msra.mxu0 0
        %6968 = vmatprep.subr.bf16.mxu0 0
        %6969 = vmatpush1.bf16.msra.mxu0 0
        %6970 = vmatprep.subr.bf16.mxu0 0
        %6971 = vmatpush1.bf16.msra.mxu0 0
        %6972 = vmatprep.subr.bf16.mxu0 0
        %6973 = vmatpush1.bf16.msra.mxu0 0
        %6974 = vmatprep.subr.bf16.mxu0 0
        %6975 = vmatpush1.bf16.msra.mxu0 0
        %6976 = vmatprep.subr.bf16.mxu0 0
        %6977 = vmatpush1.bf16.msra.mxu0 0
        %6978 = vmatprep.subr.bf16.mxu0 0
        %6979 = vmatpush1.bf16.msra.mxu0 0
        %6980 = vmatprep.mubr.bf16.mxu0 0
        %6981 = vmatmul.mubr.bf16.gmra.mrb[0].mxu0 %v6812
        %v6982 = vpop.f32.mrb[0].mxu0
        %v6983 = vadd.f32 %v6870, %v6982
        %v6984 = vpop.f32.mrb[0].mxu0
        %v6985 = vadd.f32 %v6872, %v6984
        %v6986 = vpop.f32.mrb[0].mxu0
        %v6987 = vadd.f32 %v6874, %v6986
        %v6988 = vpop.f32.mrb[0].mxu0
        %v6989 = vadd.f32 %v6876, %v6988
        %6990 = vmatprep.mubr.bf16.mxu0 0
        %6991 = vmatmul.mubr.bf16.gmra.mrb[0].mxu0 %v6815
        %v6992 = vpop.f32.mrb[0].mxu0
        %v6993 = vadd.f32 %v6880, %v6992
        %v6994 = vpop.f32.mrb[0].mxu0
        %v6995 = vadd.f32 %v6882, %v6994
        %v6996 = vpop.f32.mrb[0].mxu0
        %v6997 = vadd.f32 %v6884, %v6996
        %v6998 = vpop.f32.mrb[0].mxu0
        %v6999 = vadd.f32 %v6886, %v6998
        %7000 = vmatprep.mubr.bf16.mxu0 0
        %7001 = vmatmul.mubr.bf16.gmra.mrb[0].mxu0 %v6818
        %v7002 = vpop.f32.mrb[0].mxu0
        %v7003 = vadd.f32 %v6890, %v7002
        %v7004 = vpop.f32.mrb[0].mxu0
        %v7005 = vadd.f32 %v6892, %v7004
        %v7006 = vpop.f32.mrb[0].mxu0
        %v7007 = vadd.f32 %v6894, %v7006
        %v7008 = vpop.f32.mrb[0].mxu0
        %v7009 = vadd.f32 %v6896, %v7008
        %7010 = vmatprep.mubr.bf16.mxu0 0
        %7011 = vmatmul.mubr.bf16.gmra.mrb[0].mxu0 %v6821
        %v7012 = vpop.f32.mrb[0].mxu0
        %v7013 = vadd.f32 %v6900, %v7012
        %v7014 = vpop.f32.mrb[0].mxu0
        %v7015 = vadd.f32 %v6902, %v7014
        %v7016 = vpop.f32.mrb[0].mxu0
        %v7017 = vadd.f32 %v6904, %v7016
        %v7018 = vpop.f32.mrb[0].mxu0
        %v7019 = vadd.f32 %v6906, %v7018
        %7020 = vmatprep.mubr.bf16.mxu0 0
        %7021 = vmatmul.mubr.bf16.gmra.mrb[0].mxu0 %v6824
        %v7022 = vpop.f32.mrb[0].mxu0
        %v7023 = vadd.f32 %v6910, %v7022
        %v7024 = vpop.f32.mrb[0].mxu0
        %v7025 = vadd.f32 %v6912, %v7024
        %v7026 = vpop.f32.mrb[0].mxu0
        %v7027 = vadd.f32 %v6914, %v7026
        %v7028 = vpop.f32.mrb[0].mxu0
        %v7029 = vadd.f32 %v6916, %v7028
        %7030 = vmatprep.mubr.bf16.mxu0 0
        %7031 = vmatmul.mubr.bf16.gmra.mrb[0].mxu0 %v6827
        %v7032 = vpop.f32.mrb[0].mxu0
        %v7033 = vadd.f32 %v6920, %v7032
        %v7034 = vpop.f32.mrb[0].mxu0
        %v7035 = vadd.f32 %v6922, %v7034
        %v7036 = vpop.f32.mrb[0].mxu0
        %v7037 = vadd.f32 %v6924, %v7036
        %v7038 = vpop.f32.mrb[0].mxu0
        %v7039 = vadd.f32 %v6926, %v7038
        %7040 = vmatprep.mubr.bf16.mxu0 0
        %7041 = vmatmul.mubr.bf16.gmra.mrb[0].mxu0 %v6830
        %v7042 = vpop.f32.mrb[0].mxu0
        %v7043 = vadd.f32 %v6930, %v7042
        %v7044 = vpop.f32.mrb[0].mxu0
        %v7045 = vadd.f32 %v6932, %v7044
        %v7046 = vpop.f32.mrb[0].mxu0
        %v7047 = vadd.f32 %v6934, %v7046
        %v7048 = vpop.f32.mrb[0].mxu0
        %v7049 = vadd.f32 %v6936, %v7048
        %7050 = vmatprep.mubr.bf16.mxu0 0
        %7051 = vmatmul.mubr.bf16.gmra.mrb[0].mxu0 %v6833
        %v7052 = vpop.f32.mrb[0].mxu0
        %v7053 = vadd.f32 %v6940, %v7052
        %v7054 = vpop.f32.mrb[0].mxu0
        %v7055 = vadd.f32 %v6942, %v7054
        %v7056 = vpop.f32.mrb[0].mxu0
        %v7057 = vadd.f32 %v6944, %v7056
        %v7058 = vpop.f32.mrb[0].mxu0
        %v7059 = vadd.f32 %v6946, %v7058
        %7060 = vdwg.mxu0
        %v7061 = vadd.f32 %v6627, %v6983
        %v7062 = vadd.f32 %v6628, %v6985
        %v7063 = vadd.f32 %v6629, %v6987
        %v7064 = vadd.f32 %v6630, %v6989
        %v7065 = vadd.f32 %v6631, %v6993
        %v7066 = vadd.f32 %v6632, %v6995
        %v7067 = vadd.f32 %v6633, %v6997
        %v7068 = vadd.f32 %v6634, %v6999
        %v7069 = vadd.f32 %v6635, %v7003
        %v7070 = vadd.f32 %v6636, %v7005
        %v7071 = vadd.f32 %v6637, %v7007
        %v7072 = vadd.f32 %v6638, %v7009
        %v7073 = vadd.f32 %v6639, %v7013
        %v7074 = vadd.f32 %v6640, %v7015
        %v7075 = vadd.f32 %v6641, %v7017
        %v7076 = vadd.f32 %v6642, %v7019
        %v7077 = vadd.f32 %v6643, %v7023
        %v7078 = vadd.f32 %v6644, %v7025
        %v7079 = vadd.f32 %v6645, %v7027
        %v7080 = vadd.f32 %v6646, %v7029
        %v7081 = vadd.f32 %v6647, %v7033
        %v7082 = vadd.f32 %v6648, %v7035
        %v7083 = vadd.f32 %v6649, %v7037
        %v7084 = vadd.f32 %v6650, %v7039
        %v7085 = vadd.f32 %v6651, %v7043
        %v7086 = vadd.f32 %v6652, %v7045
        %v7087 = vadd.f32 %v6653, %v7047
        %v7088 = vadd.f32 %v6654, %v7049
        %v7089 = vadd.f32 %v6655, %v7053
        %v7090 = vadd.f32 %v6656, %v7055
        %v7091 = vadd.f32 %v6657, %v7057
        %v7092 = vadd.f32 %v6658, %v7059
        %v7093 = vld [vmem:[#allocation9] sm:$0xff]
        %v7094 = vld [vmem:[#allocation9 + $0x8] sm:$0xff]
        %v7095 = vld [vmem:[#allocation9 + $0x10] sm:$0xff]
        %v7096 = vld [vmem:[#allocation9 + $0x18] sm:$0xff]
        %v7097 = vld [vmem:[#allocation9 + $0x20] sm:$0xff]
        %v7098 = vld [vmem:[#allocation9 + $0x28] sm:$0xff]
        %v7099 = vld [vmem:[#allocation9 + $0x30] sm:$0xff]
        %v7100 = vld [vmem:[#allocation9 + $0x38] sm:$0xff]
        %v7101 = vld [vmem:[#allocation9 + $0x40] sm:$0xff]
        %v7102 = vld [vmem:[#allocation9 + $0x48] sm:$0xff]
        %v7103 = vld [vmem:[#allocation9 + $0x50] sm:$0xff]
        %v7104 = vld [vmem:[#allocation9 + $0x58] sm:$0xff]
        %v7105 = vld [vmem:[#allocation9 + $0x60] sm:$0xff]
        %v7106 = vld [vmem:[#allocation9 + $0x68] sm:$0xff]
        %v7107 = vld [vmem:[#allocation9 + $0x70] sm:$0xff]
        %v7108 = vld [vmem:[#allocation9 + $0x78] sm:$0xff]
        %v7109 = vld [vmem:[#allocation9 + $0x80] sm:$0xff]
        %v7110 = vld [vmem:[#allocation9 + $0x88] sm:$0xff]
        %v7111 = vld [vmem:[#allocation9 + $0x90] sm:$0xff]
        %v7112 = vld [vmem:[#allocation9 + $0x98] sm:$0xff]
        %v7113 = vld [vmem:[#allocation9 + $0xa0] sm:$0xff]
        %v7114 = vld [vmem:[#allocation9 + $0xa8] sm:$0xff]
        %v7115 = vld [vmem:[#allocation9 + $0xb0] sm:$0xff]
        %v7116 = vld [vmem:[#allocation9 + $0xb8] sm:$0xff]
        %v7117 = vmul.f32 %v7093, %v6069
        %v7118 = vmul.f32 %v7094, %v6070
        %v7119 = vmul.f32 %v7095, %v6071
        %v7120 = vmul.f32 %v7096, %v6072
        %v7121 = vmul.f32 %v7097, %v6073
        %v7122 = vmul.f32 %v7098, %v6074
        %v7123 = vmul.f32 %v7099, %v6075
        %v7124 = vmul.f32 %v7100, %v6076
        %v7125 = vadd.f32 %v7061, %v7117
        %v7126 = vadd.f32 %v7062, %v7118
        %v7127 = vadd.f32 %v7063, %v7119
        %v7128 = vadd.f32 %v7064, %v7120
        %v7129 = vadd.f32 %v7065, %v7121
        %v7130 = vadd.f32 %v7066, %v7122
        %v7131 = vadd.f32 %v7067, %v7123
        %v7132 = vadd.f32 %v7068, %v7124
        %v7133 = vmul.f32 %v7125, 0.5
        %v7134 = vmul.f32 %v7126, 0.5
        %v7135 = vmul.f32 %v7127, 0.5
        %v7136 = vmul.f32 %v7128, 0.5
        %v7137 = vmul.f32 %v7129, 0.5
        %v7138 = vmul.f32 %v7130, 0.5
        %v7139 = vmul.f32 %v7131, 0.5
        %v7140 = vmul.f32 %v7132, 0.5
        %v7141 = vtanh.pop %v7133
        %v7142 = vtanh.pop %v7134
        %v7143 = vtanh.pop %v7135
        %v7144 = vtanh.pop %v7136
        %v7145 = vtanh.pop %v7137
        %v7146 = vtanh.pop %v7138
        %v7147 = vtanh.pop %v7139
        %v7148 = vtanh.pop %v7140
        %v7149 = vmul.f32 %v7141, 0.5
        %v7150 = vmul.f32 %v7142, 0.5
        %v7151 = vmul.f32 %v7143, 0.5
        %v7152 = vmul.f32 %v7144, 0.5
        %v7153 = vmul.f32 %v7145, 0.5
        %v7154 = vmul.f32 %v7146, 0.5
        %v7155 = vmul.f32 %v7147, 0.5
        %v7156 = vmul.f32 %v7148, 0.5
        %v7157 = vadd.f32 %v7149, 0.5
        %v7158 = vadd.f32 %v7150, 0.5
        %v7159 = vadd.f32 %v7151, 0.5
        %v7160 = vadd.f32 %v7152, 0.5
        %v7161 = vadd.f32 %v7153, 0.5
        %v7162 = vadd.f32 %v7154, 0.5
        %v7163 = vadd.f32 %v7155, 0.5
        %v7164 = vadd.f32 %v7156, 0.5
        %v7165 = vmul.f32 %v7101, %v6069
        %v7166 = vmul.f32 %v7102, %v6070
        %v7167 = vmul.f32 %v7103, %v6071
        %v7168 = vmul.f32 %v7104, %v6072
        %v7169 = vmul.f32 %v7105, %v6073
        %v7170 = vmul.f32 %v7106, %v6074
        %v7171 = vmul.f32 %v7107, %v6075
        %v7172 = vmul.f32 %v7108, %v6076
        %v7173 = vadd.f32 %v7069, %v7165
        %v7174 = vadd.f32 %v7070, %v7166
        %v7175 = vadd.f32 %v7071, %v7167
        %v7176 = vadd.f32 %v7072, %v7168
        %v7177 = vadd.f32 %v7073, %v7169
        %v7178 = vadd.f32 %v7074, %v7170
        %v7179 = vadd.f32 %v7075, %v7171
        %v7180 = vadd.f32 %v7076, %v7172
        %v7181 = vmul.f32 %v7173, 0.5
        %v7182 = vmul.f32 %v7174, 0.5
        %v7183 = vmul.f32 %v7175, 0.5
        %v7184 = vmul.f32 %v7176, 0.5
        %v7185 = vmul.f32 %v7177, 0.5
        %v7186 = vmul.f32 %v7178, 0.5
        %v7187 = vmul.f32 %v7179, 0.5
        %v7188 = vmul.f32 %v7180, 0.5
        %v7189 = vtanh.pop %v7181
        %v7190 = vtanh.pop %v7182
        %v7191 = vtanh.pop %v7183
        %v7192 = vtanh.pop %v7184
        %v7193 = vtanh.pop %v7185
        %v7194 = vtanh.pop %v7186
        %v7195 = vtanh.pop %v7187
        %v7196 = vtanh.pop %v7188
        %v7197 = vmul.f32 %v7189, 0.5
        %v7198 = vmul.f32 %v7190, 0.5
        %v7199 = vmul.f32 %v7191, 0.5
        %v7200 = vmul.f32 %v7192, 0.5
        %v7201 = vmul.f32 %v7193, 0.5
        %v7202 = vmul.f32 %v7194, 0.5
        %v7203 = vmul.f32 %v7195, 0.5
        %v7204 = vmul.f32 %v7196, 0.5
        %v7205 = vadd.f32 %v7197, 0.5
        %v7206 = vadd.f32 %v7198, 0.5
        %v7207 = vadd.f32 %v7199, 0.5
        %v7208 = vadd.f32 %v7200, 0.5
        %v7209 = vadd.f32 %v7201, 0.5
        %v7210 = vadd.f32 %v7202, 0.5
        %v7211 = vadd.f32 %v7203, 0.5
        %v7212 = vadd.f32 %v7204, 0.5
        %v7213 = vmul.f32 %v7205, %v6069
        %v7214 = vmul.f32 %v7206, %v6070
        %v7215 = vmul.f32 %v7207, %v6071
        %v7216 = vmul.f32 %v7208, %v6072
        %v7217 = vmul.f32 %v7209, %v6073
        %v7218 = vmul.f32 %v7210, %v6074
        %v7219 = vmul.f32 %v7211, %v6075
        %v7220 = vmul.f32 %v7212, %v6076
        %v7221 = vtanh.pop %v7077
        %v7222 = vtanh.pop %v7078
        %v7223 = vtanh.pop %v7079
        %v7224 = vtanh.pop %v7080
        %v7225 = vtanh.pop %v7081
        %v7226 = vtanh.pop %v7082
        %v7227 = vtanh.pop %v7083
        %v7228 = vtanh.pop %v7084
        %v7229 = vmul.f32 %v7157, %v7221
        %v7230 = vmul.f32 %v7158, %v7222
        %v7231 = vmul.f32 %v7159, %v7223
        %v7232 = vmul.f32 %v7160, %v7224
        %v7233 = vmul.f32 %v7161, %v7225
        %v7234 = vmul.f32 %v7162, %v7226
        %v7235 = vmul.f32 %v7163, %v7227
        %v7236 = vmul.f32 %v7164, %v7228
        %v7237 = vadd.f32 %v7213, %v7229
        %v7238 = vadd.f32 %v7214, %v7230
        %v7239 = vadd.f32 %v7215, %v7231
        %v7240 = vadd.f32 %v7216, %v7232
        %v7241 = vadd.f32 %v7217, %v7233
        %v7242 = vadd.f32 %v7218, %v7234
        %v7243 = vadd.f32 %v7219, %v7235
        %v7244 = vadd.f32 %v7220, %v7236
        %v7245 = vmul.f32 %v7109, %v7237
        %v7246 = vmul.f32 %v7110, %v7238
        %v7247 = vmul.f32 %v7111, %v7239
        %v7248 = vmul.f32 %v7112, %v7240
        %v7249 = vmul.f32 %v7113, %v7241
        %v7250 = vmul.f32 %v7114, %v7242
        %v7251 = vmul.f32 %v7115, %v7243
        %v7252 = vmul.f32 %v7116, %v7244
        %v7253 = vadd.f32 %v7085, %v7245
        %v7254 = vadd.f32 %v7086, %v7246
        %v7255 = vadd.f32 %v7087, %v7247
        %v7256 = vadd.f32 %v7088, %v7248
        %v7257 = vadd.f32 %v7089, %v7249
        %v7258 = vadd.f32 %v7090, %v7250
        %v7259 = vadd.f32 %v7091, %v7251
        %v7260 = vadd.f32 %v7092, %v7252
        %v7261 = vmul.f32 %v7253, 0.5
        %v7262 = vmul.f32 %v7254, 0.5
        %v7263 = vmul.f32 %v7255, 0.5
        %v7264 = vmul.f32 %v7256, 0.5
        %v7265 = vmul.f32 %v7257, 0.5
        %v7266 = vmul.f32 %v7258, 0.5
        %v7267 = vmul.f32 %v7259, 0.5
        %v7268 = vmul.f32 %v7260, 0.5
        %v7269 = vtanh.pop %v7261
        %v7270 = vtanh.pop %v7262
        %v7271 = vtanh.pop %v7263
        %v7272 = vtanh.pop %v7264
        %v7273 = vtanh.pop %v7265
        %v7274 = vtanh.pop %v7266
        %v7275 = vtanh.pop %v7267
        %v7276 = vtanh.pop %v7268
        %v7277 = vmul.f32 %v7269, 0.5
        %v7278 = vmul.f32 %v7270, 0.5
        %v7279 = vmul.f32 %v7271, 0.5
        %v7280 = vmul.f32 %v7272, 0.5
        %v7281 = vmul.f32 %v7273, 0.5
        %v7282 = vmul.f32 %v7274, 0.5
        %v7283 = vmul.f32 %v7275, 0.5
        %v7284 = vmul.f32 %v7276, 0.5
        %v7285 = vadd.f32 %v7277, 0.5
        %v7286 = vadd.f32 %v7278, 0.5
        %v7287 = vadd.f32 %v7279, 0.5
        %v7288 = vadd.f32 %v7280, 0.5
        %v7289 = vadd.f32 %v7281, 0.5
        %v7290 = vadd.f32 %v7282, 0.5
        %v7291 = vadd.f32 %v7283, 0.5
        %v7292 = vadd.f32 %v7284, 0.5
        %v7293 = vtanh.pop %v7237
        %v7294 = vtanh.pop %v7238
        %v7295 = vtanh.pop %v7239
        %v7296 = vtanh.pop %v7240
        %v7297 = vtanh.pop %v7241
        %v7298 = vtanh.pop %v7242
        %v7299 = vtanh.pop %v7243
        %v7300 = vtanh.pop %v7244
        %v7301 = vmul.f32 %v7285, %v7293
        %v7302 = vmul.f32 %v7286, %v7294
        %v7303 = vmul.f32 %v7287, %v7295
        %v7304 = vmul.f32 %v7288, %v7296
        %v7305 = vmul.f32 %v7289, %v7297
        %v7306 = vmul.f32 %v7290, %v7298
        %v7307 = vmul.f32 %v7291, %v7299
        %v7308 = vmul.f32 %v7292, %v7300
        %s7309 = scalar_lea.vmem %s263, 320 [#allocation10]
        %7310 = vst [vmem:[%s7309] sm:$0xff] %v7301
        %7311 = vst [vmem:[%s7309 + $0x8] sm:$0xff] %v7302
        %7312 = vst [vmem:[%s7309 + $0x10] sm:$0xff] %v7303
        %7313 = vst [vmem:[%s7309 + $0x18] sm:$0xff] %v7304
        %7314 = vst [vmem:[%s7309 + $0x20] sm:$0xff] %v7305
        %7315 = vst [vmem:[%s7309 + $0x28] sm:$0xff] %v7306
        %7316 = vst [vmem:[%s7309 + $0x30] sm:$0xff] %v7307
        %7317 = vst [vmem:[%s7309 + $0x38] sm:$0xff] %v7308
        %7322 = vrot.lane.b32.xlu0 %v7302, 17
        %v7323 = vpop.permute.xlu0 %7322
        %7324 = vrot.lane.b32.xlu0 %v7304, 17
        %v7325 = vpop.permute.xlu0 %7324
        %7326 = vrot.lane.b32.xlu0 %v7306, 17
        %v7327 = vpop.permute.xlu0 %7326
        %7328 = vrot.lane.b32.xlu0 %v7308, 17
        %v7329 = vpop.permute.xlu0 %7328
        %7338 = vrot.lane.b32.xlu0 %v7301, 17
        %v7339 = vpop.permute.xlu0 %7338
        %7340 = vrot.lane.b32.xlu0 %v7303, 17
        %v7341 = vpop.permute.xlu0 %7340
        %7342 = vrot.lane.b32.xlu0 %v7305, 17
        %v7343 = vpop.permute.xlu0 %7342
        %7344 = vrot.lane.b32.xlu0 %v7307, 17
        %v7345 = vpop.permute.xlu0 %7344
        %v7346 = vsel %vm331, %v7339, %v7323
        %v7347 = vsel %vm331, %v7341, %v7325
        %v7348 = vsel %vm331, %v7343, %v7327
        %v7349 = vsel %vm331, %v7345, %v7329
        %v7358 = vsel %vm331, %v7323, %v7339
        %v7359 = vsel %vm331, %v7325, %v7341
        %v7360 = vsel %vm331, %v7327, %v7343
        %v7361 = vsel %vm331, %v7329, %v7345
        %v7362 = vld [vmem:[#allocation7] sm:$0xff]
        %v7363 = vld [vmem:[#allocation7 + $0x8] sm:$0xff]
        %v7364 = vld [vmem:[#allocation7 + $0x10] sm:$0xff]
        %v7365 = vld [vmem:[#allocation7 + $0x18] sm:$0xff]
        %v7366 = vld [vmem:[#allocation7 + $0x20] sm:$0xff]
        %v7367 = vld [vmem:[#allocation7 + $0x28] sm:$0xff]
        %v7368 = vld [vmem:[#allocation7 + $0x30] sm:$0xff]
        %v7369 = vld [vmem:[#allocation7 + $0x38] sm:$0xff]
        %v7370 = vmul.f32 %v7358, %v7362
        %v7371 = vmul.f32 %v7346, %v7363
        %v7372 = vmul.f32 %v7359, %v7364
        %v7373 = vmul.f32 %v7347, %v7365
        %v7374 = vmul.f32 %v7360, %v7366
        %v7375 = vmul.f32 %v7348, %v7367
        %v7376 = vmul.f32 %v7361, %v7368
        %v7377 = vmul.f32 %v7349, %v7369
        %v7378 = vpack.c.bf16 %v7372, %v7370
        %v7379 = vpack.c.bf16 %v7373, %v7371
        %v7380 = vpack.c.bf16 %v7376, %v7374
        %v7381 = vpack.c.bf16 %v7377, %v7375
        %7382 = vrot.lane.b32.xlu0 %v7302, 16
        %v7383 = vpop.permute.xlu0 %7382
        %7384 = vrot.lane.b32.xlu0 %v7304, 16
        %v7385 = vpop.permute.xlu0 %7384
        %7386 = vrot.lane.b32.xlu0 %v7306, 16
        %v7387 = vpop.permute.xlu0 %7386
        %7388 = vrot.lane.b32.xlu0 %v7308, 16
        %v7389 = vpop.permute.xlu0 %7388
        %7394 = vrot.lane.b32.xlu0 %v7301, 16
        %v7395 = vpop.permute.xlu0 %7394
        %7396 = vrot.lane.b32.xlu0 %v7303, 16
        %v7397 = vpop.permute.xlu0 %7396
        %7398 = vrot.lane.b32.xlu0 %v7305, 16
        %v7399 = vpop.permute.xlu0 %7398
        %7400 = vrot.lane.b32.xlu0 %v7307, 16
        %v7401 = vpop.permute.xlu0 %7400
        %v7402 = vsel %vm388, %v7395, %v7383
        %v7403 = vsel %vm388, %v7397, %v7385
        %v7404 = vsel %vm388, %v7399, %v7387
        %v7405 = vsel %vm388, %v7401, %v7389
        %v7414 = vsel %vm388, %v7383, %v7395
        %v7415 = vsel %vm388, %v7385, %v7397
        %v7416 = vsel %vm388, %v7387, %v7399
        %v7417 = vsel %vm388, %v7389, %v7401
        %v7418 = vld [vmem:[#allocation7 + $0x40] sm:$0xff]
        %v7419 = vld [vmem:[#allocation7 + $0x48] sm:$0xff]
        %v7420 = vld [vmem:[#allocation7 + $0x50] sm:$0xff]
        %v7421 = vld [vmem:[#allocation7 + $0x58] sm:$0xff]
        %v7422 = vld [vmem:[#allocation7 + $0x60] sm:$0xff]
        %v7423 = vld [vmem:[#allocation7 + $0x68] sm:$0xff]
        %v7424 = vld [vmem:[#allocation7 + $0x70] sm:$0xff]
        %v7425 = vld [vmem:[#allocation7 + $0x78] sm:$0xff]
        %v7426 = vmul.f32 %v7414, %v7418
        %v7427 = vmul.f32 %v7402, %v7419
        %v7428 = vmul.f32 %v7415, %v7420
        %v7429 = vmul.f32 %v7403, %v7421
        %v7430 = vmul.f32 %v7416, %v7422
        %v7431 = vmul.f32 %v7404, %v7423
        %v7432 = vmul.f32 %v7417, %v7424
        %v7433 = vmul.f32 %v7405, %v7425
        %v7434 = vpack.c.bf16 %v7428, %v7426
        %v7435 = vpack.c.bf16 %v7429, %v7427
        %v7436 = vpack.c.bf16 %v7432, %v7430
        %v7437 = vpack.c.bf16 %v7433, %v7431
        %7438 = vrot.lane.b32.xlu0 %v7302, 15
        %v7439 = vpop.permute.xlu0 %7438
        %7440 = vrot.lane.b32.xlu0 %v7304, 15
        %v7441 = vpop.permute.xlu0 %7440
        %7442 = vrot.lane.b32.xlu0 %v7306, 15
        %v7443 = vpop.permute.xlu0 %7442
        %7444 = vrot.lane.b32.xlu0 %v7308, 15
        %v7445 = vpop.permute.xlu0 %7444
        %7450 = vrot.lane.b32.xlu0 %v7301, 15
        %v7451 = vpop.permute.xlu0 %7450
        %7452 = vrot.lane.b32.xlu0 %v7303, 15
        %v7453 = vpop.permute.xlu0 %7452
        %7454 = vrot.lane.b32.xlu0 %v7305, 15
        %v7455 = vpop.permute.xlu0 %7454
        %7456 = vrot.lane.b32.xlu0 %v7307, 15
        %v7457 = vpop.permute.xlu0 %7456
        %v7458 = vsel %vm445, %v7451, %v7439
        %v7459 = vsel %vm445, %v7453, %v7441
        %v7460 = vsel %vm445, %v7455, %v7443
        %v7461 = vsel %vm445, %v7457, %v7445
        %v7470 = vsel %vm445, %v7439, %v7451
        %v7471 = vsel %vm445, %v7441, %v7453
        %v7472 = vsel %vm445, %v7443, %v7455
        %v7473 = vsel %vm445, %v7445, %v7457
        %v7474 = vld [vmem:[#allocation7 + $0x80] sm:$0xff]
        %v7475 = vld [vmem:[#allocation7 + $0x88] sm:$0xff]
        %v7476 = vld [vmem:[#allocation7 + $0x90] sm:$0xff]
        %v7477 = vld [vmem:[#allocation7 + $0x98] sm:$0xff]
        %v7478 = vld [vmem:[#allocation7 + $0xa0] sm:$0xff]
        %v7479 = vld [vmem:[#allocation7 + $0xa8] sm:$0xff]
        %v7480 = vld [vmem:[#allocation7 + $0xb0] sm:$0xff]
        %v7481 = vld [vmem:[#allocation7 + $0xb8] sm:$0xff]
        %v7482 = vmul.f32 %v7470, %v7474
        %v7483 = vmul.f32 %v7458, %v7475
        %v7484 = vmul.f32 %v7471, %v7476
        %v7485 = vmul.f32 %v7459, %v7477
        %v7486 = vmul.f32 %v7472, %v7478
        %v7487 = vmul.f32 %v7460, %v7479
        %v7488 = vmul.f32 %v7473, %v7480
        %v7489 = vmul.f32 %v7461, %v7481
        %v7490 = vpack.c.bf16 %v7484, %v7482
        %v7491 = vpack.c.bf16 %v7485, %v7483
        %v7492 = vpack.c.bf16 %v7488, %v7486
        %v7493 = vpack.c.bf16 %v7489, %v7487
        %7494 = vrot.lane.b32.xlu0 %v7302, 1
        %v7495 = vpop.permute.xlu0 %7494
        %7496 = vrot.lane.b32.xlu0 %v7304, 1
        %v7497 = vpop.permute.xlu0 %7496
        %7498 = vrot.lane.b32.xlu0 %v7306, 1
        %v7499 = vpop.permute.xlu0 %7498
        %7500 = vrot.lane.b32.xlu0 %v7308, 1
        %v7501 = vpop.permute.xlu0 %7500
        %7506 = vrot.lane.b32.xlu0 %v7301, 1
        %v7507 = vpop.permute.xlu0 %7506
        %7508 = vrot.lane.b32.xlu0 %v7303, 1
        %v7509 = vpop.permute.xlu0 %7508
        %7510 = vrot.lane.b32.xlu0 %v7305, 1
        %v7511 = vpop.permute.xlu0 %7510
        %7512 = vrot.lane.b32.xlu0 %v7307, 1
        %v7513 = vpop.permute.xlu0 %7512
        %v7514 = vsel %vm502, %v7507, %v7495
        %v7515 = vsel %vm502, %v7509, %v7497
        %v7516 = vsel %vm502, %v7511, %v7499
        %v7517 = vsel %vm502, %v7513, %v7501
        %v7526 = vsel %vm502, %v7495, %v7507
        %v7527 = vsel %vm502, %v7497, %v7509
        %v7528 = vsel %vm502, %v7499, %v7511
        %v7529 = vsel %vm502, %v7501, %v7513
        %v7530 = vld [vmem:[#allocation7 + $0xc0] sm:$0xff]
        %v7531 = vld [vmem:[#allocation7 + $0xc8] sm:$0xff]
        %v7532 = vld [vmem:[#allocation7 + $0xd0] sm:$0xff]
        %v7533 = vld [vmem:[#allocation7 + $0xd8] sm:$0xff]
        %v7534 = vld [vmem:[#allocation7 + $0xe0] sm:$0xff]
        %v7535 = vld [vmem:[#allocation7 + $0xe8] sm:$0xff]
        %v7536 = vld [vmem:[#allocation7 + $0xf0] sm:$0xff]
        %v7537 = vld [vmem:[#allocation7 + $0xf8] sm:$0xff]
        %v7538 = vmul.f32 %v7526, %v7530
        %v7539 = vmul.f32 %v7514, %v7531
        %v7540 = vmul.f32 %v7527, %v7532
        %v7541 = vmul.f32 %v7515, %v7533
        %v7542 = vmul.f32 %v7528, %v7534
        %v7543 = vmul.f32 %v7516, %v7535
        %v7544 = vmul.f32 %v7529, %v7536
        %v7545 = vmul.f32 %v7517, %v7537
        %v7546 = vpack.c.bf16 %v7540, %v7538
        %v7547 = vpack.c.bf16 %v7541, %v7539
        %v7548 = vpack.c.bf16 %v7544, %v7542
        %v7549 = vpack.c.bf16 %v7545, %v7543
        %v7550 = vld [vmem:[#allocation7 + $0x100] sm:$0xff]
        %v7551 = vld [vmem:[#allocation7 + $0x108] sm:$0xff]
        %v7552 = vld [vmem:[#allocation7 + $0x110] sm:$0xff]
        %v7553 = vld [vmem:[#allocation7 + $0x118] sm:$0xff]
        %v7554 = vld [vmem:[#allocation7 + $0x120] sm:$0xff]
        %v7555 = vld [vmem:[#allocation7 + $0x128] sm:$0xff]
        %v7556 = vld [vmem:[#allocation7 + $0x130] sm:$0xff]
        %v7557 = vld [vmem:[#allocation7 + $0x138] sm:$0xff]
        %v7558 = vmul.f32 %v7301, %v7550
        %v7559 = vmul.f32 %v7302, %v7551
        %v7560 = vmul.f32 %v7303, %v7552
        %v7561 = vmul.f32 %v7304, %v7553
        %v7562 = vmul.f32 %v7305, %v7554
        %v7563 = vmul.f32 %v7306, %v7555
        %v7564 = vmul.f32 %v7307, %v7556
        %v7565 = vmul.f32 %v7308, %v7557
        %v7566 = vpack.c.bf16 %v7560, %v7558
        %v7567 = vpack.c.bf16 %v7561, %v7559
        %v7568 = vpack.c.bf16 %v7564, %v7562
        %v7569 = vpack.c.bf16 %v7565, %v7563
        %7570 = vrot.lane.b32.xlu0 %v7301, 127
        %v7571 = vpop.permute.xlu0 %7570
        %7572 = vrot.lane.b32.xlu0 %v7302, 127
        %v7573 = vpop.permute.xlu0 %7572
        %7574 = vrot.lane.b32.xlu0 %v7303, 127
        %v7575 = vpop.permute.xlu0 %7574
        %7576 = vrot.lane.b32.xlu0 %v7304, 127
        %v7577 = vpop.permute.xlu0 %7576
        %7578 = vrot.lane.b32.xlu0 %v7305, 127
        %v7579 = vpop.permute.xlu0 %7578
        %7580 = vrot.lane.b32.xlu0 %v7306, 127
        %v7581 = vpop.permute.xlu0 %7580
        %7582 = vrot.lane.b32.xlu0 %v7307, 127
        %v7583 = vpop.permute.xlu0 %7582
        %7584 = vrot.lane.b32.xlu0 %v7308, 127
        %v7585 = vpop.permute.xlu0 %7584
        %v7586 = vsel %vm575, %v7571, %v7573
        %v7587 = vsel %vm575, %v7575, %v7577
        %v7588 = vsel %vm575, %v7579, %v7581
        %v7589 = vsel %vm575, %v7583, %v7585
        %v7602 = vsel %vm575, %v7573, %v7571
        %v7603 = vsel %vm575, %v7577, %v7575
        %v7604 = vsel %vm575, %v7581, %v7579
        %v7605 = vsel %vm575, %v7585, %v7583
        %v7606 = vld [vmem:[#allocation7 + $0x140] sm:$0xff]
        %v7607 = vld [vmem:[#allocation7 + $0x148] sm:$0xff]
        %v7608 = vld [vmem:[#allocation7 + $0x150] sm:$0xff]
        %v7609 = vld [vmem:[#allocation7 + $0x158] sm:$0xff]
        %v7610 = vld [vmem:[#allocation7 + $0x160] sm:$0xff]
        %v7611 = vld [vmem:[#allocation7 + $0x168] sm:$0xff]
        %v7612 = vld [vmem:[#allocation7 + $0x170] sm:$0xff]
        %v7613 = vld [vmem:[#allocation7 + $0x178] sm:$0xff]
        %v7614 = vmul.f32 %v7586, %v7606
        %v7615 = vmul.f32 %v7602, %v7607
        %v7616 = vmul.f32 %v7587, %v7608
        %v7617 = vmul.f32 %v7603, %v7609
        %v7618 = vmul.f32 %v7588, %v7610
        %v7619 = vmul.f32 %v7604, %v7611
        %v7620 = vmul.f32 %v7589, %v7612
        %v7621 = vmul.f32 %v7605, %v7613
        %v7622 = vpack.c.bf16 %v7616, %v7614
        %v7623 = vpack.c.bf16 %v7617, %v7615
        %v7624 = vpack.c.bf16 %v7620, %v7618
        %v7625 = vpack.c.bf16 %v7621, %v7619
        %7626 = vrot.lane.b32.xlu0 %v7301, 113
        %v7627 = vpop.permute.xlu0 %7626
        %7628 = vrot.lane.b32.xlu0 %v7302, 113
        %v7629 = vpop.permute.xlu0 %7628
        %7630 = vrot.lane.b32.xlu0 %v7303, 113
        %v7631 = vpop.permute.xlu0 %7630
        %7632 = vrot.lane.b32.xlu0 %v7304, 113
        %v7633 = vpop.permute.xlu0 %7632
        %7634 = vrot.lane.b32.xlu0 %v7305, 113
        %v7635 = vpop.permute.xlu0 %7634
        %7636 = vrot.lane.b32.xlu0 %v7306, 113
        %v7637 = vpop.permute.xlu0 %7636
        %7638 = vrot.lane.b32.xlu0 %v7307, 113
        %v7639 = vpop.permute.xlu0 %7638
        %7640 = vrot.lane.b32.xlu0 %v7308, 113
        %v7641 = vpop.permute.xlu0 %7640
        %v7642 = vsel %vm632, %v7627, %v7629
        %v7643 = vsel %vm632, %v7631, %v7633
        %v7644 = vsel %vm632, %v7635, %v7637
        %v7645 = vsel %vm632, %v7639, %v7641
        %v7658 = vsel %vm632, %v7629, %v7627
        %v7659 = vsel %vm632, %v7633, %v7631
        %v7660 = vsel %vm632, %v7637, %v7635
        %v7661 = vsel %vm632, %v7641, %v7639
        %v7662 = vld [vmem:[#allocation7 + $0x180] sm:$0xff]
        %v7663 = vld [vmem:[#allocation7 + $0x188] sm:$0xff]
        %v7664 = vld [vmem:[#allocation7 + $0x190] sm:$0xff]
        %v7665 = vld [vmem:[#allocation7 + $0x198] sm:$0xff]
        %v7666 = vld [vmem:[#allocation7 + $0x1a0] sm:$0xff]
        %v7667 = vld [vmem:[#allocation7 + $0x1a8] sm:$0xff]
        %v7668 = vld [vmem:[#allocation7 + $0x1b0] sm:$0xff]
        %v7669 = vld [vmem:[#allocation7 + $0x1b8] sm:$0xff]
        %v7670 = vmul.f32 %v7642, %v7662
        %v7671 = vmul.f32 %v7658, %v7663
        %v7672 = vmul.f32 %v7643, %v7664
        %v7673 = vmul.f32 %v7659, %v7665
        %v7674 = vmul.f32 %v7644, %v7666
        %v7675 = vmul.f32 %v7660, %v7667
        %v7676 = vmul.f32 %v7645, %v7668
        %v7677 = vmul.f32 %v7661, %v7669
        %v7678 = vpack.c.bf16 %v7672, %v7670
        %v7679 = vpack.c.bf16 %v7673, %v7671
        %v7680 = vpack.c.bf16 %v7676, %v7674
        %v7681 = vpack.c.bf16 %v7677, %v7675
        %7682 = vrot.lane.b32.xlu0 %v7301, 112
        %v7683 = vpop.permute.xlu0 %7682
        %7684 = vrot.lane.b32.xlu0 %v7302, 112
        %v7685 = vpop.permute.xlu0 %7684
        %7686 = vrot.lane.b32.xlu0 %v7303, 112
        %v7687 = vpop.permute.xlu0 %7686
        %7688 = vrot.lane.b32.xlu0 %v7304, 112
        %v7689 = vpop.permute.xlu0 %7688
        %7690 = vrot.lane.b32.xlu0 %v7305, 112
        %v7691 = vpop.permute.xlu0 %7690
        %7692 = vrot.lane.b32.xlu0 %v7306, 112
        %v7693 = vpop.permute.xlu0 %7692
        %7694 = vrot.lane.b32.xlu0 %v7307, 112
        %v7695 = vpop.permute.xlu0 %7694
        %7696 = vrot.lane.b32.xlu0 %v7308, 112
        %v7697 = vpop.permute.xlu0 %7696
        %v7698 = vsel %vm689, %v7683, %v7685
        %v7699 = vsel %vm689, %v7687, %v7689
        %v7700 = vsel %vm689, %v7691, %v7693
        %v7701 = vsel %vm689, %v7695, %v7697
        %v7714 = vsel %vm689, %v7685, %v7683
        %v7715 = vsel %vm689, %v7689, %v7687
        %v7716 = vsel %vm689, %v7693, %v7691
        %v7717 = vsel %vm689, %v7697, %v7695
        %v7718 = vld [vmem:[#allocation7 + $0x1c0] sm:$0xff]
        %v7719 = vld [vmem:[#allocation7 + $0x1c8] sm:$0xff]
        %v7720 = vld [vmem:[#allocation7 + $0x1d0] sm:$0xff]
        %v7721 = vld [vmem:[#allocation7 + $0x1d8] sm:$0xff]
        %v7722 = vld [vmem:[#allocation7 + $0x1e0] sm:$0xff]
        %v7723 = vld [vmem:[#allocation7 + $0x1e8] sm:$0xff]
        %v7724 = vld [vmem:[#allocation7 + $0x1f0] sm:$0xff]
        %v7725 = vld [vmem:[#allocation7 + $0x1f8] sm:$0xff]
        %v7726 = vmul.f32 %v7698, %v7718
        %v7727 = vmul.f32 %v7714, %v7719
        %v7728 = vmul.f32 %v7699, %v7720
        %v7729 = vmul.f32 %v7715, %v7721
        %v7730 = vmul.f32 %v7700, %v7722
        %v7731 = vmul.f32 %v7716, %v7723
        %v7732 = vmul.f32 %v7701, %v7724
        %v7733 = vmul.f32 %v7717, %v7725
        %v7734 = vpack.c.bf16 %v7728, %v7726
        %v7735 = vpack.c.bf16 %v7729, %v7727
        %v7736 = vpack.c.bf16 %v7732, %v7730
        %v7737 = vpack.c.bf16 %v7733, %v7731
        %7738 = vrot.lane.b32.xlu0 %v7301, 111
        %v7739 = vpop.permute.xlu0 %7738
        %7740 = vrot.lane.b32.xlu0 %v7302, 111
        %v7741 = vpop.permute.xlu0 %7740
        %7742 = vrot.lane.b32.xlu0 %v7303, 111
        %v7743 = vpop.permute.xlu0 %7742
        %7744 = vrot.lane.b32.xlu0 %v7304, 111
        %v7745 = vpop.permute.xlu0 %7744
        %7746 = vrot.lane.b32.xlu0 %v7305, 111
        %v7747 = vpop.permute.xlu0 %7746
        %7748 = vrot.lane.b32.xlu0 %v7306, 111
        %v7749 = vpop.permute.xlu0 %7748
        %7750 = vrot.lane.b32.xlu0 %v7307, 111
        %v7751 = vpop.permute.xlu0 %7750
        %7752 = vrot.lane.b32.xlu0 %v7308, 111
        %v7753 = vpop.permute.xlu0 %7752
        %v7754 = vsel %vm746, %v7739, %v7741
        %v7755 = vsel %vm746, %v7743, %v7745
        %v7756 = vsel %vm746, %v7747, %v7749
        %v7757 = vsel %vm746, %v7751, %v7753
        %v7770 = vsel %vm746, %v7741, %v7739
        %v7771 = vsel %vm746, %v7745, %v7743
        %v7772 = vsel %vm746, %v7749, %v7747
        %v7773 = vsel %vm746, %v7753, %v7751
        %v7774 = vld [vmem:[#allocation7 + $0x200] sm:$0xff]
        %v7775 = vld [vmem:[#allocation7 + $0x208] sm:$0xff]
        %v7776 = vld [vmem:[#allocation7 + $0x210] sm:$0xff]
        %v7777 = vld [vmem:[#allocation7 + $0x218] sm:$0xff]
        %v7778 = vld [vmem:[#allocation7 + $0x220] sm:$0xff]
        %v7779 = vld [vmem:[#allocation7 + $0x228] sm:$0xff]
        %v7780 = vld [vmem:[#allocation7 + $0x230] sm:$0xff]
        %v7781 = vld [vmem:[#allocation7 + $0x238] sm:$0xff]
        %v7782 = vmul.f32 %v7754, %v7774
        %v7783 = vmul.f32 %v7770, %v7775
        %v7784 = vmul.f32 %v7755, %v7776
        %v7785 = vmul.f32 %v7771, %v7777
        %v7786 = vmul.f32 %v7756, %v7778
        %v7787 = vmul.f32 %v7772, %v7779
        %v7788 = vmul.f32 %v7757, %v7780
        %v7789 = vmul.f32 %v7773, %v7781
        %v7790 = vpack.c.bf16 %v7784, %v7782
        %v7791 = vpack.c.bf16 %v7785, %v7783
        %v7792 = vpack.c.bf16 %v7788, %v7786
        %v7793 = vpack.c.bf16 %v7789, %v7787
        %s7794 = scalar_lea.vmem %s231, 1536 [#allocation4]
        %v7795 = vld [vmem:[%s7794] sm:$0xff]
        %v7796 = vld [vmem:[%s7794 + $0x8] sm:$0xff]
        %v7797 = vld [vmem:[%s7794 + $0x10] sm:$0xff]
        %v7798 = vld [vmem:[%s7794 + $0x18] sm:$0xff]
        %v7799 = vld [vmem:[%s7794 + $0x20] sm:$0xff]
        %v7800 = vld [vmem:[%s7794 + $0x28] sm:$0xff]
        %v7801 = vld [vmem:[%s7794 + $0x30] sm:$0xff]
        %v7802 = vld [vmem:[%s7794 + $0x38] sm:$0xff]
        %v7803 = vld [vmem:[%s7794 + $0x40] sm:$0xff]
        %v7804 = vld [vmem:[%s7794 + $0x48] sm:$0xff]
        %v7805 = vld [vmem:[%s7794 + $0x50] sm:$0xff]
        %v7806 = vld [vmem:[%s7794 + $0x58] sm:$0xff]
        %v7807 = vld [vmem:[%s7794 + $0x60] sm:$0xff]
        %v7808 = vld [vmem:[%s7794 + $0x68] sm:$0xff]
        %v7809 = vld [vmem:[%s7794 + $0x70] sm:$0xff]
        %v7810 = vld [vmem:[%s7794 + $0x78] sm:$0xff]
        %v7811 = vld [vmem:[%s7794 + $0x80] sm:$0xff]
        %v7812 = vld [vmem:[%s7794 + $0x88] sm:$0xff]
        %v7813 = vld [vmem:[%s7794 + $0x90] sm:$0xff]
        %v7814 = vld [vmem:[%s7794 + $0x98] sm:$0xff]
        %v7815 = vld [vmem:[%s7794 + $0xa0] sm:$0xff]
        %v7816 = vld [vmem:[%s7794 + $0xa8] sm:$0xff]
        %v7817 = vld [vmem:[%s7794 + $0xb0] sm:$0xff]
        %v7818 = vld [vmem:[%s7794 + $0xb8] sm:$0xff]
        %v7819 = vld [vmem:[%s7794 + $0xc0] sm:$0xff]
        %v7820 = vld [vmem:[%s7794 + $0xc8] sm:$0xff]
        %v7821 = vld [vmem:[%s7794 + $0xd0] sm:$0xff]
        %v7822 = vld [vmem:[%s7794 + $0xd8] sm:$0xff]
        %v7823 = vld [vmem:[%s7794 + $0xe0] sm:$0xff]
        %v7824 = vld [vmem:[%s7794 + $0xe8] sm:$0xff]
        %v7825 = vld [vmem:[%s7794 + $0xf0] sm:$0xff]
        %v7826 = vld [vmem:[%s7794 + $0xf8] sm:$0xff]
        %v7827 = vld [vmem:[%s1] sm:$0xff]
        %v7828 = vld [vmem:[%s1 + $0x8] sm:$0xf]
        %v7829 = vld [vmem:[%s1 + $0xc] sm:$0xff]
        %v7830 = vld [vmem:[%s1 + $0x14] sm:$0xf]
        %v7831 = vld [vmem:[%s1 + $0x18] sm:$0xff]
        %v7832 = vld [vmem:[%s1 + $0x20] sm:$0xf]
        %v7833 = vld [vmem:[%s1 + $0x24] sm:$0xff]
        %v7834 = vld [vmem:[%s1 + $0x2c] sm:$0xf]
        %v7835 = vld [vmem:[%s1 + $0x30] sm:$0xff]
        %v7836 = vld [vmem:[%s1 + $0x38] sm:$0xf]
        %v7837 = vld [vmem:[%s1 + $0x3c] sm:$0xff]
        %v7838 = vld [vmem:[%s1 + $0x44] sm:$0xf]
        %v7839 = vld [vmem:[%s1 + $0x48] sm:$0xff]
        %v7840 = vld [vmem:[%s1 + $0x50] sm:$0xf]
        %v7841 = vld [vmem:[%s1 + $0x54] sm:$0xff]
        %v7842 = vld [vmem:[%s1 + $0x5c] sm:$0xf]
        %v7843 = vld [vmem:[%s1 + $0x60] sm:$0xff]
        %v7844 = vld [vmem:[%s1 + $0x68] sm:$0xf]
        %v7845 = vld [vmem:[%s1 + $0x6c] sm:$0xff]
        %v7846 = vld [vmem:[%s1 + $0x74] sm:$0xf]
        %v7847 = vld [vmem:[%s1 + $0x78] sm:$0xff]
        %v7848 = vld [vmem:[%s1 + $0x80] sm:$0xf]
        %v7849 = vld [vmem:[%s1 + $0x84] sm:$0xff]
        %v7850 = vld [vmem:[%s1 + $0x8c] sm:$0xf]
        %v7851 = vld [vmem:[%s1 + $0x90] sm:$0xff]
        %v7852 = vld [vmem:[%s1 + $0x98] sm:$0xf]
        %v7853 = vld [vmem:[%s1 + $0x9c] sm:$0xff]
        %v7854 = vld [vmem:[%s1 + $0xa4] sm:$0xf]
        %v7855 = vld [vmem:[%s1 + $0xa8] sm:$0xff]
        %v7856 = vld [vmem:[%s1 + $0xb0] sm:$0xf]
        %v7857 = vld [vmem:[%s1 + $0xb4] sm:$0xff]
        %v7858 = vld [vmem:[%s1 + $0xbc] sm:$0xf]
        %v7891 = vunpack.c.l.b16 %v7827
        %v7892 = vunpack.c.h.b16 %v7827
        %v7893 = vunpack.c.l.b16 %v7828
        %v7894 = vunpack.c.l.b16 %v7829
        %v7895 = vunpack.c.h.b16 %v7829
        %v7896 = vunpack.c.l.b16 %v7830
        %v7897 = vunpack.c.l.b16 %v7831
        %v7898 = vunpack.c.h.b16 %v7831
        %v7899 = vunpack.c.l.b16 %v7832
        %v7900 = vunpack.c.l.b16 %v7833
        %v7901 = vunpack.c.h.b16 %v7833
        %v7902 = vunpack.c.l.b16 %v7834
        %v7903 = vunpack.c.l.b16 %v7835
        %v7904 = vunpack.c.h.b16 %v7835
        %v7905 = vunpack.c.l.b16 %v7836
        %v7906 = vunpack.c.l.b16 %v7837
        %v7907 = vunpack.c.h.b16 %v7837
        %v7908 = vunpack.c.l.b16 %v7838
        %v7909 = vunpack.c.l.b16 %v7839
        %v7910 = vunpack.c.h.b16 %v7839
        %v7911 = vunpack.c.l.b16 %v7840
        %v7912 = vunpack.c.l.b16 %v7841
        %v7913 = vunpack.c.h.b16 %v7841
        %v7914 = vunpack.c.l.b16 %v7842
        %v7915 = vunpack.c.l.b16 %v7843
        %v7916 = vunpack.c.h.b16 %v7843
        %v7917 = vunpack.c.l.b16 %v7844
        %v7918 = vunpack.c.l.b16 %v7845
        %v7919 = vunpack.c.h.b16 %v7845
        %v7920 = vunpack.c.l.b16 %v7846
        %v7921 = vunpack.c.l.b16 %v7847
        %v7922 = vunpack.c.h.b16 %v7847
        %v7923 = vunpack.c.l.b16 %v7848
        %v7924 = vunpack.c.l.b16 %v7849
        %v7925 = vunpack.c.h.b16 %v7849
        %v7926 = vunpack.c.l.b16 %v7850
        %v7927 = vunpack.c.l.b16 %v7851
        %v7928 = vunpack.c.h.b16 %v7851
        %v7929 = vunpack.c.l.b16 %v7852
        %v7930 = vunpack.c.l.b16 %v7853
        %v7931 = vunpack.c.h.b16 %v7853
        %v7932 = vunpack.c.l.b16 %v7854
        %v7933 = vunpack.c.l.b16 %v7855
        %v7934 = vunpack.c.h.b16 %v7855
        %v7935 = vunpack.c.l.b16 %v7856
        %v7936 = vunpack.c.l.b16 %v7857
        %v7937 = vunpack.c.h.b16 %v7857
        %v7938 = vunpack.c.l.b16 %v7858
        %v7939 = vpack.c.b16 %v7894, %v7891
        %v7940 = vpack.c.b16 %v7895, %v7892
        %v7941 = vpack.c.b16 %v7896, %v7893
        %v7942 = vpack.c.b16 %v7900, %v7897
        %v7943 = vpack.c.b16 %v7901, %v7898
        %v7944 = vpack.c.b16 %v7902, %v7899
        %v7945 = vpack.c.b16 %v7906, %v7903
        %v7946 = vpack.c.b16 %v7907, %v7904
        %v7947 = vpack.c.b16 %v7908, %v7905
        %v7948 = vpack.c.b16 %v7912, %v7909
        %v7949 = vpack.c.b16 %v7913, %v7910
        %v7950 = vpack.c.b16 %v7914, %v7911
        %v7951 = vpack.c.b16 %v7918, %v7915
        %v7952 = vpack.c.b16 %v7919, %v7916
        %v7953 = vpack.c.b16 %v7920, %v7917
        %v7954 = vpack.c.b16 %v7924, %v7921
        %v7955 = vpack.c.b16 %v7925, %v7922
        %v7956 = vpack.c.b16 %v7926, %v7923
        %v7957 = vpack.c.b16 %v7930, %v7927
        %v7958 = vpack.c.b16 %v7931, %v7928
        %v7959 = vpack.c.b16 %v7932, %v7929
        %v7960 = vpack.c.b16 %v7936, %v7933
        %v7961 = vpack.c.b16 %v7937, %v7934
        %v7962 = vpack.c.b16 %v7938, %v7935
        %v7980 = vsel %vm971, %v7941, 0
        %v7983 = vsel %vm971, %v7944, 0
        %v7986 = vsel %vm971, %v7947, 0
        %v7989 = vsel %vm971, %v7950, 0
        %v7992 = vsel %vm971, %v7953, 0
        %v7995 = vsel %vm971, %v7956, 0
        %v7998 = vsel %vm971, %v7959, 0
        %v8001 = vsel %vm971, %v7962, 0
        %8003 = vmatprep.subr.bf16.mxu0 %v7379
        %8004 = vmatpush1.bf16.msra.mxu0 %v7378
        %8005 = vmatprep.subr.bf16.mxu0 %v7381
        %8006 = vmatpush1.bf16.msra.mxu0 %v7380
        %8007 = vmatprep.subr.bf16.mxu0 %v7435
        %8008 = vmatpush1.bf16.msra.mxu0 %v7434
        %8009 = vmatprep.subr.bf16.mxu0 %v7437
        %8010 = vmatpush1.bf16.msra.mxu0 %v7436
        %8011 = vmatprep.subr.bf16.mxu0 %v7491
        %8012 = vmatpush1.bf16.msra.mxu0 %v7490
        %8013 = vmatprep.subr.bf16.mxu0 %v7493
        %8014 = vmatpush1.bf16.msra.mxu0 %v7492
        %8015 = vmatprep.subr.bf16.mxu0 %v7547
        %8016 = vmatpush1.bf16.msra.mxu0 %v7546
        %8017 = vmatprep.subr.bf16.mxu0 %v7549
        %8018 = vmatpush1.bf16.msra.mxu0 %v7548
        %8019 = vmatprep.subr.bf16.mxu0 %v7567
        %8020 = vmatpush1.bf16.msra.mxu0 %v7566
        %8021 = vmatprep.subr.bf16.mxu0 %v7569
        %8022 = vmatpush1.bf16.msra.mxu0 %v7568
        %8023 = vmatprep.subr.bf16.mxu0 %v7623
        %8024 = vmatpush1.bf16.msra.mxu0 %v7622
        %8025 = vmatprep.subr.bf16.mxu0 %v7625
        %8026 = vmatpush1.bf16.msra.mxu0 %v7624
        %8027 = vmatprep.subr.bf16.mxu0 %v7679
        %8028 = vmatpush1.bf16.msra.mxu0 %v7678
        %8029 = vmatprep.subr.bf16.mxu0 %v7681
        %8030 = vmatpush1.bf16.msra.mxu0 %v7680
        %8031 = vmatprep.subr.bf16.mxu0 %v7735
        %8032 = vmatpush1.bf16.msra.mxu0 %v7734
        %8033 = vmatprep.subr.bf16.mxu0 %v7737
        %8034 = vmatpush1.bf16.msra.mxu0 %v7736
        %8035 = vmatprep.mubr.bf16.mxu0 %v7940
        %8036 = vmatmul.mubr.bf16.gmra.mrb[0].mxu0 %v7939
        %v8037 = vpop.f32.mrb[0].mxu0
        %v8038 = vadd.f32 0.0, %v8037
        %v8039 = vpop.f32.mrb[0].mxu0
        %v8040 = vadd.f32 0.0, %v8039
        %v8041 = vpop.f32.mrb[0].mxu0
        %v8042 = vadd.f32 0.0, %v8041
        %v8043 = vpop.f32.mrb[0].mxu0
        %v8044 = vadd.f32 0.0, %v8043
        %8045 = vmatprep.mubr.bf16.mxu0 %v7943
        %8046 = vmatmul.mubr.bf16.gmra.mrb[0].mxu0 %v7942
        %v8047 = vpop.f32.mrb[0].mxu0
        %v8048 = vadd.f32 0.0, %v8047
        %v8049 = vpop.f32.mrb[0].mxu0
        %v8050 = vadd.f32 0.0, %v8049
        %v8051 = vpop.f32.mrb[0].mxu0
        %v8052 = vadd.f32 0.0, %v8051
        %v8053 = vpop.f32.mrb[0].mxu0
        %v8054 = vadd.f32 0.0, %v8053
        %8055 = vmatprep.mubr.bf16.mxu0 %v7946
        %8056 = vmatmul.mubr.bf16.gmra.mrb[0].mxu0 %v7945
        %v8057 = vpop.f32.mrb[0].mxu0
        %v8058 = vadd.f32 0.0, %v8057
        %v8059 = vpop.f32.mrb[0].mxu0
        %v8060 = vadd.f32 0.0, %v8059
        %v8061 = vpop.f32.mrb[0].mxu0
        %v8062 = vadd.f32 0.0, %v8061
        %v8063 = vpop.f32.mrb[0].mxu0
        %v8064 = vadd.f32 0.0, %v8063
        %8065 = vmatprep.mubr.bf16.mxu0 %v7949
        %8066 = vmatmul.mubr.bf16.gmra.mrb[0].mxu0 %v7948
        %v8067 = vpop.f32.mrb[0].mxu0
        %v8068 = vadd.f32 0.0, %v8067
        %v8069 = vpop.f32.mrb[0].mxu0
        %v8070 = vadd.f32 0.0, %v8069
        %v8071 = vpop.f32.mrb[0].mxu0
        %v8072 = vadd.f32 0.0, %v8071
        %v8073 = vpop.f32.mrb[0].mxu0
        %v8074 = vadd.f32 0.0, %v8073
        %8075 = vmatprep.mubr.bf16.mxu0 %v7952
        %8076 = vmatmul.mubr.bf16.gmra.mrb[0].mxu0 %v7951
        %v8077 = vpop.f32.mrb[0].mxu0
        %v8078 = vadd.f32 0.0, %v8077
        %v8079 = vpop.f32.mrb[0].mxu0
        %v8080 = vadd.f32 0.0, %v8079
        %v8081 = vpop.f32.mrb[0].mxu0
        %v8082 = vadd.f32 0.0, %v8081
        %v8083 = vpop.f32.mrb[0].mxu0
        %v8084 = vadd.f32 0.0, %v8083
        %8085 = vmatprep.mubr.bf16.mxu0 %v7955
        %8086 = vmatmul.mubr.bf16.gmra.mrb[0].mxu0 %v7954
        %v8087 = vpop.f32.mrb[0].mxu0
        %v8088 = vadd.f32 0.0, %v8087
        %v8089 = vpop.f32.mrb[0].mxu0
        %v8090 = vadd.f32 0.0, %v8089
        %v8091 = vpop.f32.mrb[0].mxu0
        %v8092 = vadd.f32 0.0, %v8091
        %v8093 = vpop.f32.mrb[0].mxu0
        %v8094 = vadd.f32 0.0, %v8093
        %8095 = vmatprep.mubr.bf16.mxu0 %v7958
        %8096 = vmatmul.mubr.bf16.gmra.mrb[0].mxu0 %v7957
        %v8097 = vpop.f32.mrb[0].mxu0
        %v8098 = vadd.f32 0.0, %v8097
        %v8099 = vpop.f32.mrb[0].mxu0
        %v8100 = vadd.f32 0.0, %v8099
        %v8101 = vpop.f32.mrb[0].mxu0
        %v8102 = vadd.f32 0.0, %v8101
        %v8103 = vpop.f32.mrb[0].mxu0
        %v8104 = vadd.f32 0.0, %v8103
        %8105 = vmatprep.mubr.bf16.mxu0 %v7961
        %8106 = vmatmul.mubr.bf16.gmra.mrb[0].mxu0 %v7960
        %v8107 = vpop.f32.mrb[0].mxu0
        %v8108 = vadd.f32 0.0, %v8107
        %v8109 = vpop.f32.mrb[0].mxu0
        %v8110 = vadd.f32 0.0, %v8109
        %v8111 = vpop.f32.mrb[0].mxu0
        %v8112 = vadd.f32 0.0, %v8111
        %v8113 = vpop.f32.mrb[0].mxu0
        %v8114 = vadd.f32 0.0, %v8113
        %8115 = vdwg.mxu0
        %8116 = vmatprep.subr.bf16.mxu0 %v7791
        %8117 = vmatpush1.bf16.msra.mxu0 %v7790
        %8118 = vmatprep.subr.bf16.mxu0 %v7793
        %8119 = vmatpush1.bf16.msra.mxu0 %v7792
        %8120 = vmatprep.subr.bf16.mxu0 0
        %8121 = vmatpush1.bf16.msra.mxu0 0
        %8122 = vmatprep.subr.bf16.mxu0 0
        %8123 = vmatpush1.bf16.msra.mxu0 0
        %8124 = vmatprep.subr.bf16.mxu0 0
        %8125 = vmatpush1.bf16.msra.mxu0 0
        %8126 = vmatprep.subr.bf16.mxu0 0
        %8127 = vmatpush1.bf16.msra.mxu0 0
        %8128 = vmatprep.subr.bf16.mxu0 0
        %8129 = vmatpush1.bf16.msra.mxu0 0
        %8130 = vmatprep.subr.bf16.mxu0 0
        %8131 = vmatpush1.bf16.msra.mxu0 0
        %8132 = vmatprep.subr.bf16.mxu0 0
        %8133 = vmatpush1.bf16.msra.mxu0 0
        %8134 = vmatprep.subr.bf16.mxu0 0
        %8135 = vmatpush1.bf16.msra.mxu0 0
        %8136 = vmatprep.subr.bf16.mxu0 0
        %8137 = vmatpush1.bf16.msra.mxu0 0
        %8138 = vmatprep.subr.bf16.mxu0 0
        %8139 = vmatpush1.bf16.msra.mxu0 0
        %8140 = vmatprep.subr.bf16.mxu0 0
        %8141 = vmatpush1.bf16.msra.mxu0 0
        %8142 = vmatprep.subr.bf16.mxu0 0
        %8143 = vmatpush1.bf16.msra.mxu0 0
        %8144 = vmatprep.subr.bf16.mxu0 0
        %8145 = vmatpush1.bf16.msra.mxu0 0
        %8146 = vmatprep.subr.bf16.mxu0 0
        %8147 = vmatpush1.bf16.msra.mxu0 0
        %8148 = vmatprep.mubr.bf16.mxu0 0
        %8149 = vmatmul.mubr.bf16.gmra.mrb[0].mxu0 %v7980
        %v8150 = vpop.f32.mrb[0].mxu0
        %v8151 = vadd.f32 %v8038, %v8150
        %v8152 = vpop.f32.mrb[0].mxu0
        %v8153 = vadd.f32 %v8040, %v8152
        %v8154 = vpop.f32.mrb[0].mxu0
        %v8155 = vadd.f32 %v8042, %v8154
        %v8156 = vpop.f32.mrb[0].mxu0
        %v8157 = vadd.f32 %v8044, %v8156
        %8158 = vmatprep.mubr.bf16.mxu0 0
        %8159 = vmatmul.mubr.bf16.gmra.mrb[0].mxu0 %v7983
        %v8160 = vpop.f32.mrb[0].mxu0
        %v8161 = vadd.f32 %v8048, %v8160
        %v8162 = vpop.f32.mrb[0].mxu0
        %v8163 = vadd.f32 %v8050, %v8162
        %v8164 = vpop.f32.mrb[0].mxu0
        %v8165 = vadd.f32 %v8052, %v8164
        %v8166 = vpop.f32.mrb[0].mxu0
        %v8167 = vadd.f32 %v8054, %v8166
        %8168 = vmatprep.mubr.bf16.mxu0 0
        %8169 = vmatmul.mubr.bf16.gmra.mrb[0].mxu0 %v7986
        %v8170 = vpop.f32.mrb[0].mxu0
        %v8171 = vadd.f32 %v8058, %v8170
        %v8172 = vpop.f32.mrb[0].mxu0
        %v8173 = vadd.f32 %v8060, %v8172
        %v8174 = vpop.f32.mrb[0].mxu0
        %v8175 = vadd.f32 %v8062, %v8174
        %v8176 = vpop.f32.mrb[0].mxu0
        %v8177 = vadd.f32 %v8064, %v8176
        %8178 = vmatprep.mubr.bf16.mxu0 0
        %8179 = vmatmul.mubr.bf16.gmra.mrb[0].mxu0 %v7989
        %v8180 = vpop.f32.mrb[0].mxu0
        %v8181 = vadd.f32 %v8068, %v8180
        %v8182 = vpop.f32.mrb[0].mxu0
        %v8183 = vadd.f32 %v8070, %v8182
        %v8184 = vpop.f32.mrb[0].mxu0
        %v8185 = vadd.f32 %v8072, %v8184
        %v8186 = vpop.f32.mrb[0].mxu0
        %v8187 = vadd.f32 %v8074, %v8186
        %8188 = vmatprep.mubr.bf16.mxu0 0
        %8189 = vmatmul.mubr.bf16.gmra.mrb[0].mxu0 %v7992
        %v8190 = vpop.f32.mrb[0].mxu0
        %v8191 = vadd.f32 %v8078, %v8190
        %v8192 = vpop.f32.mrb[0].mxu0
        %v8193 = vadd.f32 %v8080, %v8192
        %v8194 = vpop.f32.mrb[0].mxu0
        %v8195 = vadd.f32 %v8082, %v8194
        %v8196 = vpop.f32.mrb[0].mxu0
        %v8197 = vadd.f32 %v8084, %v8196
        %8198 = vmatprep.mubr.bf16.mxu0 0
        %8199 = vmatmul.mubr.bf16.gmra.mrb[0].mxu0 %v7995
        %v8200 = vpop.f32.mrb[0].mxu0
        %v8201 = vadd.f32 %v8088, %v8200
        %v8202 = vpop.f32.mrb[0].mxu0
        %v8203 = vadd.f32 %v8090, %v8202
        %v8204 = vpop.f32.mrb[0].mxu0
        %v8205 = vadd.f32 %v8092, %v8204
        %v8206 = vpop.f32.mrb[0].mxu0
        %v8207 = vadd.f32 %v8094, %v8206
        %8208 = vmatprep.mubr.bf16.mxu0 0
        %8209 = vmatmul.mubr.bf16.gmra.mrb[0].mxu0 %v7998
        %v8210 = vpop.f32.mrb[0].mxu0
        %v8211 = vadd.f32 %v8098, %v8210
        %v8212 = vpop.f32.mrb[0].mxu0
        %v8213 = vadd.f32 %v8100, %v8212
        %v8214 = vpop.f32.mrb[0].mxu0
        %v8215 = vadd.f32 %v8102, %v8214
        %v8216 = vpop.f32.mrb[0].mxu0
        %v8217 = vadd.f32 %v8104, %v8216
        %8218 = vmatprep.mubr.bf16.mxu0 0
        %8219 = vmatmul.mubr.bf16.gmra.mrb[0].mxu0 %v8001
        %v8220 = vpop.f32.mrb[0].mxu0
        %v8221 = vadd.f32 %v8108, %v8220
        %v8222 = vpop.f32.mrb[0].mxu0
        %v8223 = vadd.f32 %v8110, %v8222
        %v8224 = vpop.f32.mrb[0].mxu0
        %v8225 = vadd.f32 %v8112, %v8224
        %v8226 = vpop.f32.mrb[0].mxu0
        %v8227 = vadd.f32 %v8114, %v8226
        %8228 = vdwg.mxu0
        %v8229 = vadd.f32 %v7795, %v8151
        %v8230 = vadd.f32 %v7796, %v8153
        %v8231 = vadd.f32 %v7797, %v8155
        %v8232 = vadd.f32 %v7798, %v8157
        %v8233 = vadd.f32 %v7799, %v8161
        %v8234 = vadd.f32 %v7800, %v8163
        %v8235 = vadd.f32 %v7801, %v8165
        %v8236 = vadd.f32 %v7802, %v8167
        %v8237 = vadd.f32 %v7803, %v8171
        %v8238 = vadd.f32 %v7804, %v8173
        %v8239 = vadd.f32 %v7805, %v8175
        %v8240 = vadd.f32 %v7806, %v8177
        %v8241 = vadd.f32 %v7807, %v8181
        %v8242 = vadd.f32 %v7808, %v8183
        %v8243 = vadd.f32 %v7809, %v8185
        %v8244 = vadd.f32 %v7810, %v8187
        %v8245 = vadd.f32 %v7811, %v8191
        %v8246 = vadd.f32 %v7812, %v8193
        %v8247 = vadd.f32 %v7813, %v8195
        %v8248 = vadd.f32 %v7814, %v8197
        %v8249 = vadd.f32 %v7815, %v8201
        %v8250 = vadd.f32 %v7816, %v8203
        %v8251 = vadd.f32 %v7817, %v8205
        %v8252 = vadd.f32 %v7818, %v8207
        %v8253 = vadd.f32 %v7819, %v8211
        %v8254 = vadd.f32 %v7820, %v8213
        %v8255 = vadd.f32 %v7821, %v8215
        %v8256 = vadd.f32 %v7822, %v8217
        %v8257 = vadd.f32 %v7823, %v8221
        %v8258 = vadd.f32 %v7824, %v8223
        %v8259 = vadd.f32 %v7825, %v8225
        %v8260 = vadd.f32 %v7826, %v8227
        %v8261 = vld [vmem:[#allocation9] sm:$0xff]
        %v8262 = vld [vmem:[#allocation9 + $0x8] sm:$0xff]
        %v8263 = vld [vmem:[#allocation9 + $0x10] sm:$0xff]
        %v8264 = vld [vmem:[#allocation9 + $0x18] sm:$0xff]
        %v8265 = vld [vmem:[#allocation9 + $0x20] sm:$0xff]
        %v8266 = vld [vmem:[#allocation9 + $0x28] sm:$0xff]
        %v8267 = vld [vmem:[#allocation9 + $0x30] sm:$0xff]
        %v8268 = vld [vmem:[#allocation9 + $0x38] sm:$0xff]
        %v8269 = vld [vmem:[#allocation9 + $0x40] sm:$0xff]
        %v8270 = vld [vmem:[#allocation9 + $0x48] sm:$0xff]
        %v8271 = vld [vmem:[#allocation9 + $0x50] sm:$0xff]
        %v8272 = vld [vmem:[#allocation9 + $0x58] sm:$0xff]
        %v8273 = vld [vmem:[#allocation9 + $0x60] sm:$0xff]
        %v8274 = vld [vmem:[#allocation9 + $0x68] sm:$0xff]
        %v8275 = vld [vmem:[#allocation9 + $0x70] sm:$0xff]
        %v8276 = vld [vmem:[#allocation9 + $0x78] sm:$0xff]
        %v8277 = vld [vmem:[#allocation9 + $0x80] sm:$0xff]
        %v8278 = vld [vmem:[#allocation9 + $0x88] sm:$0xff]
        %v8279 = vld [vmem:[#allocation9 + $0x90] sm:$0xff]
        %v8280 = vld [vmem:[#allocation9 + $0x98] sm:$0xff]
        %v8281 = vld [vmem:[#allocation9 + $0xa0] sm:$0xff]
        %v8282 = vld [vmem:[#allocation9 + $0xa8] sm:$0xff]
        %v8283 = vld [vmem:[#allocation9 + $0xb0] sm:$0xff]
        %v8284 = vld [vmem:[#allocation9 + $0xb8] sm:$0xff]
        %v8285 = vmul.f32 %v8261, %v7237
        %v8286 = vmul.f32 %v8262, %v7238
        %v8287 = vmul.f32 %v8263, %v7239
        %v8288 = vmul.f32 %v8264, %v7240
        %v8289 = vmul.f32 %v8265, %v7241
        %v8290 = vmul.f32 %v8266, %v7242
        %v8291 = vmul.f32 %v8267, %v7243
        %v8292 = vmul.f32 %v8268, %v7244
        %v8293 = vadd.f32 %v8229, %v8285
        %v8294 = vadd.f32 %v8230, %v8286
        %v8295 = vadd.f32 %v8231, %v8287
        %v8296 = vadd.f32 %v8232, %v8288
        %v8297 = vadd.f32 %v8233, %v8289
        %v8298 = vadd.f32 %v8234, %v8290
        %v8299 = vadd.f32 %v8235, %v8291
        %v8300 = vadd.f32 %v8236, %v8292
        %v8301 = vmul.f32 %v8293, 0.5
        %v8302 = vmul.f32 %v8294, 0.5
        %v8303 = vmul.f32 %v8295, 0.5
        %v8304 = vmul.f32 %v8296, 0.5
        %v8305 = vmul.f32 %v8297, 0.5
        %v8306 = vmul.f32 %v8298, 0.5
        %v8307 = vmul.f32 %v8299, 0.5
        %v8308 = vmul.f32 %v8300, 0.5
        %v8309 = vtanh.pop %v8301
        %v8310 = vtanh.pop %v8302
        %v8311 = vtanh.pop %v8303
        %v8312 = vtanh.pop %v8304
        %v8313 = vtanh.pop %v8305
        %v8314 = vtanh.pop %v8306
        %v8315 = vtanh.pop %v8307
        %v8316 = vtanh.pop %v8308
        %v8317 = vmul.f32 %v8309, 0.5
        %v8318 = vmul.f32 %v8310, 0.5
        %v8319 = vmul.f32 %v8311, 0.5
        %v8320 = vmul.f32 %v8312, 0.5
        %v8321 = vmul.f32 %v8313, 0.5
        %v8322 = vmul.f32 %v8314, 0.5
        %v8323 = vmul.f32 %v8315, 0.5
        %v8324 = vmul.f32 %v8316, 0.5
        %v8325 = vadd.f32 %v8317, 0.5
        %v8326 = vadd.f32 %v8318, 0.5
        %v8327 = vadd.f32 %v8319, 0.5
        %v8328 = vadd.f32 %v8320, 0.5
        %v8329 = vadd.f32 %v8321, 0.5
        %v8330 = vadd.f32 %v8322, 0.5
        %v8331 = vadd.f32 %v8323, 0.5
        %v8332 = vadd.f32 %v8324, 0.5
        %v8333 = vmul.f32 %v8269, %v7237
        %v8334 = vmul.f32 %v8270, %v7238
        %v8335 = vmul.f32 %v8271, %v7239
        %v8336 = vmul.f32 %v8272, %v7240
        %v8337 = vmul.f32 %v8273, %v7241
        %v8338 = vmul.f32 %v8274, %v7242
        %v8339 = vmul.f32 %v8275, %v7243
        %v8340 = vmul.f32 %v8276, %v7244
        %v8341 = vadd.f32 %v8237, %v8333
        %v8342 = vadd.f32 %v8238, %v8334
        %v8343 = vadd.f32 %v8239, %v8335
        %v8344 = vadd.f32 %v8240, %v8336
        %v8345 = vadd.f32 %v8241, %v8337
        %v8346 = vadd.f32 %v8242, %v8338
        %v8347 = vadd.f32 %v8243, %v8339
        %v8348 = vadd.f32 %v8244, %v8340
        %v8349 = vmul.f32 %v8341, 0.5
        %v8350 = vmul.f32 %v8342, 0.5
        %v8351 = vmul.f32 %v8343, 0.5
        %v8352 = vmul.f32 %v8344, 0.5
        %v8353 = vmul.f32 %v8345, 0.5
        %v8354 = vmul.f32 %v8346, 0.5
        %v8355 = vmul.f32 %v8347, 0.5
        %v8356 = vmul.f32 %v8348, 0.5
        %v8357 = vtanh.pop %v8349
        %v8358 = vtanh.pop %v8350
        %v8359 = vtanh.pop %v8351
        %v8360 = vtanh.pop %v8352
        %v8361 = vtanh.pop %v8353
        %v8362 = vtanh.pop %v8354
        %v8363 = vtanh.pop %v8355
        %v8364 = vtanh.pop %v8356
        %v8365 = vmul.f32 %v8357, 0.5
        %v8366 = vmul.f32 %v8358, 0.5
        %v8367 = vmul.f32 %v8359, 0.5
        %v8368 = vmul.f32 %v8360, 0.5
        %v8369 = vmul.f32 %v8361, 0.5
        %v8370 = vmul.f32 %v8362, 0.5
        %v8371 = vmul.f32 %v8363, 0.5
        %v8372 = vmul.f32 %v8364, 0.5
        %v8373 = vadd.f32 %v8365, 0.5
        %v8374 = vadd.f32 %v8366, 0.5
        %v8375 = vadd.f32 %v8367, 0.5
        %v8376 = vadd.f32 %v8368, 0.5
        %v8377 = vadd.f32 %v8369, 0.5
        %v8378 = vadd.f32 %v8370, 0.5
        %v8379 = vadd.f32 %v8371, 0.5
        %v8380 = vadd.f32 %v8372, 0.5
        %v8381 = vmul.f32 %v8373, %v7237
        %v8382 = vmul.f32 %v8374, %v7238
        %v8383 = vmul.f32 %v8375, %v7239
        %v8384 = vmul.f32 %v8376, %v7240
        %v8385 = vmul.f32 %v8377, %v7241
        %v8386 = vmul.f32 %v8378, %v7242
        %v8387 = vmul.f32 %v8379, %v7243
        %v8388 = vmul.f32 %v8380, %v7244
        %v8389 = vtanh.pop %v8245
        %v8390 = vtanh.pop %v8246
        %v8391 = vtanh.pop %v8247
        %v8392 = vtanh.pop %v8248
        %v8393 = vtanh.pop %v8249
        %v8394 = vtanh.pop %v8250
        %v8395 = vtanh.pop %v8251
        %v8396 = vtanh.pop %v8252
        %v8397 = vmul.f32 %v8325, %v8389
        %v8398 = vmul.f32 %v8326, %v8390
        %v8399 = vmul.f32 %v8327, %v8391
        %v8400 = vmul.f32 %v8328, %v8392
        %v8401 = vmul.f32 %v8329, %v8393
        %v8402 = vmul.f32 %v8330, %v8394
        %v8403 = vmul.f32 %v8331, %v8395
        %v8404 = vmul.f32 %v8332, %v8396
        %v8405 = vadd.f32 %v8381, %v8397
        %v8406 = vadd.f32 %v8382, %v8398
        %v8407 = vadd.f32 %v8383, %v8399
        %v8408 = vadd.f32 %v8384, %v8400
        %v8409 = vadd.f32 %v8385, %v8401
        %v8410 = vadd.f32 %v8386, %v8402
        %v8411 = vadd.f32 %v8387, %v8403
        %v8412 = vadd.f32 %v8388, %v8404
        %v8413 = vmul.f32 %v8277, %v8405
        %v8414 = vmul.f32 %v8278, %v8406
        %v8415 = vmul.f32 %v8279, %v8407
        %v8416 = vmul.f32 %v8280, %v8408
        %v8417 = vmul.f32 %v8281, %v8409
        %v8418 = vmul.f32 %v8282, %v8410
        %v8419 = vmul.f32 %v8283, %v8411
        %v8420 = vmul.f32 %v8284, %v8412
        %v8421 = vadd.f32 %v8253, %v8413
        %v8422 = vadd.f32 %v8254, %v8414
        %v8423 = vadd.f32 %v8255, %v8415
        %v8424 = vadd.f32 %v8256, %v8416
        %v8425 = vadd.f32 %v8257, %v8417
        %v8426 = vadd.f32 %v8258, %v8418
        %v8427 = vadd.f32 %v8259, %v8419
        %v8428 = vadd.f32 %v8260, %v8420
        %v8429 = vmul.f32 %v8421, 0.5
        %v8430 = vmul.f32 %v8422, 0.5
        %v8431 = vmul.f32 %v8423, 0.5
        %v8432 = vmul.f32 %v8424, 0.5
        %v8433 = vmul.f32 %v8425, 0.5
        %v8434 = vmul.f32 %v8426, 0.5
        %v8435 = vmul.f32 %v8427, 0.5
        %v8436 = vmul.f32 %v8428, 0.5
        %v8437 = vtanh.pop %v8429
        %v8438 = vtanh.pop %v8430
        %v8439 = vtanh.pop %v8431
        %v8440 = vtanh.pop %v8432
        %v8441 = vtanh.pop %v8433
        %v8442 = vtanh.pop %v8434
        %v8443 = vtanh.pop %v8435
        %v8444 = vtanh.pop %v8436
        %v8445 = vmul.f32 %v8437, 0.5
        %v8446 = vmul.f32 %v8438, 0.5
        %v8447 = vmul.f32 %v8439, 0.5
        %v8448 = vmul.f32 %v8440, 0.5
        %v8449 = vmul.f32 %v8441, 0.5
        %v8450 = vmul.f32 %v8442, 0.5
        %v8451 = vmul.f32 %v8443, 0.5
        %v8452 = vmul.f32 %v8444, 0.5
        %v8453 = vadd.f32 %v8445, 0.5
        %v8454 = vadd.f32 %v8446, 0.5
        %v8455 = vadd.f32 %v8447, 0.5
        %v8456 = vadd.f32 %v8448, 0.5
        %v8457 = vadd.f32 %v8449, 0.5
        %v8458 = vadd.f32 %v8450, 0.5
        %v8459 = vadd.f32 %v8451, 0.5
        %v8460 = vadd.f32 %v8452, 0.5
        %v8461 = vtanh.pop %v8405
        %v8462 = vtanh.pop %v8406
        %v8463 = vtanh.pop %v8407
        %v8464 = vtanh.pop %v8408
        %v8465 = vtanh.pop %v8409
        %v8466 = vtanh.pop %v8410
        %v8467 = vtanh.pop %v8411
        %v8468 = vtanh.pop %v8412
        %v8469 = vmul.f32 %v8453, %v8461
        %v8470 = vmul.f32 %v8454, %v8462
        %v8471 = vmul.f32 %v8455, %v8463
        %v8472 = vmul.f32 %v8456, %v8464
        %v8473 = vmul.f32 %v8457, %v8465
        %v8474 = vmul.f32 %v8458, %v8466
        %v8475 = vmul.f32 %v8459, %v8467
        %v8476 = vmul.f32 %v8460, %v8468
        %s8477 = scalar_lea.vmem %s263, 384 [#allocation10]
        %8478 = vst [vmem:[%s8477] sm:$0xff] %v8469
        %8479 = vst [vmem:[%s8477 + $0x8] sm:$0xff] %v8470
        %8480 = vst [vmem:[%s8477 + $0x10] sm:$0xff] %v8471
        %8481 = vst [vmem:[%s8477 + $0x18] sm:$0xff] %v8472
        %8482 = vst [vmem:[%s8477 + $0x20] sm:$0xff] %v8473
        %8483 = vst [vmem:[%s8477 + $0x28] sm:$0xff] %v8474
        %8484 = vst [vmem:[%s8477 + $0x30] sm:$0xff] %v8475
        %8485 = vst [vmem:[%s8477 + $0x38] sm:$0xff] %v8476
        %8490 = vrot.lane.b32.xlu0 %v8470, 17
        %v8491 = vpop.permute.xlu0 %8490
        %8492 = vrot.lane.b32.xlu0 %v8472, 17
        %v8493 = vpop.permute.xlu0 %8492
        %8494 = vrot.lane.b32.xlu0 %v8474, 17
        %v8495 = vpop.permute.xlu0 %8494
        %8496 = vrot.lane.b32.xlu0 %v8476, 17
        %v8497 = vpop.permute.xlu0 %8496
        %8506 = vrot.lane.b32.xlu0 %v8469, 17
        %v8507 = vpop.permute.xlu0 %8506
        %8508 = vrot.lane.b32.xlu0 %v8471, 17
        %v8509 = vpop.permute.xlu0 %8508
        %8510 = vrot.lane.b32.xlu0 %v8473, 17
        %v8511 = vpop.permute.xlu0 %8510
        %8512 = vrot.lane.b32.xlu0 %v8475, 17
        %v8513 = vpop.permute.xlu0 %8512
        %v8514 = vsel %vm331, %v8507, %v8491
        %v8515 = vsel %vm331, %v8509, %v8493
        %v8516 = vsel %vm331, %v8511, %v8495
        %v8517 = vsel %vm331, %v8513, %v8497
        %v8526 = vsel %vm331, %v8491, %v8507
        %v8527 = vsel %vm331, %v8493, %v8509
        %v8528 = vsel %vm331, %v8495, %v8511
        %v8529 = vsel %vm331, %v8497, %v8513
        %v8530 = vld [vmem:[#allocation7] sm:$0xff]
        %v8531 = vld [vmem:[#allocation7 + $0x8] sm:$0xff]
        %v8532 = vld [vmem:[#allocation7 + $0x10] sm:$0xff]
        %v8533 = vld [vmem:[#allocation7 + $0x18] sm:$0xff]
        %v8534 = vld [vmem:[#allocation7 + $0x20] sm:$0xff]
        %v8535 = vld [vmem:[#allocation7 + $0x28] sm:$0xff]
        %v8536 = vld [vmem:[#allocation7 + $0x30] sm:$0xff]
        %v8537 = vld [vmem:[#allocation7 + $0x38] sm:$0xff]
        %v8538 = vmul.f32 %v8526, %v8530
        %v8539 = vmul.f32 %v8514, %v8531
        %v8540 = vmul.f32 %v8527, %v8532
        %v8541 = vmul.f32 %v8515, %v8533
        %v8542 = vmul.f32 %v8528, %v8534
        %v8543 = vmul.f32 %v8516, %v8535
        %v8544 = vmul.f32 %v8529, %v8536
        %v8545 = vmul.f32 %v8517, %v8537
        %v8546 = vpack.c.bf16 %v8540, %v8538
        %v8547 = vpack.c.bf16 %v8541, %v8539
        %v8548 = vpack.c.bf16 %v8544, %v8542
        %v8549 = vpack.c.bf16 %v8545, %v8543
        %8550 = vrot.lane.b32.xlu0 %v8470, 16
        %v8551 = vpop.permute.xlu0 %8550
        %8552 = vrot.lane.b32.xlu0 %v8472, 16
        %v8553 = vpop.permute.xlu0 %8552
        %8554 = vrot.lane.b32.xlu0 %v8474, 16
        %v8555 = vpop.permute.xlu0 %8554
        %8556 = vrot.lane.b32.xlu0 %v8476, 16
        %v8557 = vpop.permute.xlu0 %8556
        %8562 = vrot.lane.b32.xlu0 %v8469, 16
        %v8563 = vpop.permute.xlu0 %8562
        %8564 = vrot.lane.b32.xlu0 %v8471, 16
        %v8565 = vpop.permute.xlu0 %8564
        %8566 = vrot.lane.b32.xlu0 %v8473, 16
        %v8567 = vpop.permute.xlu0 %8566
        %8568 = vrot.lane.b32.xlu0 %v8475, 16
        %v8569 = vpop.permute.xlu0 %8568
        %v8570 = vsel %vm388, %v8563, %v8551
        %v8571 = vsel %vm388, %v8565, %v8553
        %v8572 = vsel %vm388, %v8567, %v8555
        %v8573 = vsel %vm388, %v8569, %v8557
        %v8582 = vsel %vm388, %v8551, %v8563
        %v8583 = vsel %vm388, %v8553, %v8565
        %v8584 = vsel %vm388, %v8555, %v8567
        %v8585 = vsel %vm388, %v8557, %v8569
        %v8586 = vld [vmem:[#allocation7 + $0x40] sm:$0xff]
        %v8587 = vld [vmem:[#allocation7 + $0x48] sm:$0xff]
        %v8588 = vld [vmem:[#allocation7 + $0x50] sm:$0xff]
        %v8589 = vld [vmem:[#allocation7 + $0x58] sm:$0xff]
        %v8590 = vld [vmem:[#allocation7 + $0x60] sm:$0xff]
        %v8591 = vld [vmem:[#allocation7 + $0x68] sm:$0xff]
        %v8592 = vld [vmem:[#allocation7 + $0x70] sm:$0xff]
        %v8593 = vld [vmem:[#allocation7 + $0x78] sm:$0xff]
        %v8594 = vmul.f32 %v8582, %v8586
        %v8595 = vmul.f32 %v8570, %v8587
        %v8596 = vmul.f32 %v8583, %v8588
        %v8597 = vmul.f32 %v8571, %v8589
        %v8598 = vmul.f32 %v8584, %v8590
        %v8599 = vmul.f32 %v8572, %v8591
        %v8600 = vmul.f32 %v8585, %v8592
        %v8601 = vmul.f32 %v8573, %v8593
        %v8602 = vpack.c.bf16 %v8596, %v8594
        %v8603 = vpack.c.bf16 %v8597, %v8595
        %v8604 = vpack.c.bf16 %v8600, %v8598
        %v8605 = vpack.c.bf16 %v8601, %v8599
        %8606 = vrot.lane.b32.xlu0 %v8470, 15
        %v8607 = vpop.permute.xlu0 %8606
        %8608 = vrot.lane.b32.xlu0 %v8472, 15
        %v8609 = vpop.permute.xlu0 %8608
        %8610 = vrot.lane.b32.xlu0 %v8474, 15
        %v8611 = vpop.permute.xlu0 %8610
        %8612 = vrot.lane.b32.xlu0 %v8476, 15
        %v8613 = vpop.permute.xlu0 %8612
        %8618 = vrot.lane.b32.xlu0 %v8469, 15
        %v8619 = vpop.permute.xlu0 %8618
        %8620 = vrot.lane.b32.xlu0 %v8471, 15
        %v8621 = vpop.permute.xlu0 %8620
        %8622 = vrot.lane.b32.xlu0 %v8473, 15
        %v8623 = vpop.permute.xlu0 %8622
        %8624 = vrot.lane.b32.xlu0 %v8475, 15
        %v8625 = vpop.permute.xlu0 %8624
        %v8626 = vsel %vm445, %v8619, %v8607
        %v8627 = vsel %vm445, %v8621, %v8609
        %v8628 = vsel %vm445, %v8623, %v8611
        %v8629 = vsel %vm445, %v8625, %v8613
        %v8638 = vsel %vm445, %v8607, %v8619
        %v8639 = vsel %vm445, %v8609, %v8621
        %v8640 = vsel %vm445, %v8611, %v8623
        %v8641 = vsel %vm445, %v8613, %v8625
        %v8642 = vld [vmem:[#allocation7 + $0x80] sm:$0xff]
        %v8643 = vld [vmem:[#allocation7 + $0x88] sm:$0xff]
        %v8644 = vld [vmem:[#allocation7 + $0x90] sm:$0xff]
        %v8645 = vld [vmem:[#allocation7 + $0x98] sm:$0xff]
        %v8646 = vld [vmem:[#allocation7 + $0xa0] sm:$0xff]
        %v8647 = vld [vmem:[#allocation7 + $0xa8] sm:$0xff]
        %v8648 = vld [vmem:[#allocation7 + $0xb0] sm:$0xff]
        %v8649 = vld [vmem:[#allocation7 + $0xb8] sm:$0xff]
        %v8650 = vmul.f32 %v8638, %v8642
        %v8651 = vmul.f32 %v8626, %v8643
        %v8652 = vmul.f32 %v8639, %v8644
        %v8653 = vmul.f32 %v8627, %v8645
        %v8654 = vmul.f32 %v8640, %v8646
        %v8655 = vmul.f32 %v8628, %v8647
        %v8656 = vmul.f32 %v8641, %v8648
        %v8657 = vmul.f32 %v8629, %v8649
        %v8658 = vpack.c.bf16 %v8652, %v8650
        %v8659 = vpack.c.bf16 %v8653, %v8651
        %v8660 = vpack.c.bf16 %v8656, %v8654
        %v8661 = vpack.c.bf16 %v8657, %v8655
        %8662 = vrot.lane.b32.xlu0 %v8470, 1
        %v8663 = vpop.permute.xlu0 %8662
        %8664 = vrot.lane.b32.xlu0 %v8472, 1
        %v8665 = vpop.permute.xlu0 %8664
        %8666 = vrot.lane.b32.xlu0 %v8474, 1
        %v8667 = vpop.permute.xlu0 %8666
        %8668 = vrot.lane.b32.xlu0 %v8476, 1
        %v8669 = vpop.permute.xlu0 %8668
        %8674 = vrot.lane.b32.xlu0 %v8469, 1
        %v8675 = vpop.permute.xlu0 %8674
        %8676 = vrot.lane.b32.xlu0 %v8471, 1
        %v8677 = vpop.permute.xlu0 %8676
        %8678 = vrot.lane.b32.xlu0 %v8473, 1
        %v8679 = vpop.permute.xlu0 %8678
        %8680 = vrot.lane.b32.xlu0 %v8475, 1
        %v8681 = vpop.permute.xlu0 %8680
        %v8682 = vsel %vm502, %v8675, %v8663
        %v8683 = vsel %vm502, %v8677, %v8665
        %v8684 = vsel %vm502, %v8679, %v8667
        %v8685 = vsel %vm502, %v8681, %v8669
        %v8694 = vsel %vm502, %v8663, %v8675
        %v8695 = vsel %vm502, %v8665, %v8677
        %v8696 = vsel %vm502, %v8667, %v8679
        %v8697 = vsel %vm502, %v8669, %v8681
        %v8698 = vld [vmem:[#allocation7 + $0xc0] sm:$0xff]
        %v8699 = vld [vmem:[#allocation7 + $0xc8] sm:$0xff]
        %v8700 = vld [vmem:[#allocation7 + $0xd0] sm:$0xff]
        %v8701 = vld [vmem:[#allocation7 + $0xd8] sm:$0xff]
        %v8702 = vld [vmem:[#allocation7 + $0xe0] sm:$0xff]
        %v8703 = vld [vmem:[#allocation7 + $0xe8] sm:$0xff]
        %v8704 = vld [vmem:[#allocation7 + $0xf0] sm:$0xff]
        %v8705 = vld [vmem:[#allocation7 + $0xf8] sm:$0xff]
        %v8706 = vmul.f32 %v8694, %v8698
        %v8707 = vmul.f32 %v8682, %v8699
        %v8708 = vmul.f32 %v8695, %v8700
        %v8709 = vmul.f32 %v8683, %v8701
        %v8710 = vmul.f32 %v8696, %v8702
        %v8711 = vmul.f32 %v8684, %v8703
        %v8712 = vmul.f32 %v8697, %v8704
        %v8713 = vmul.f32 %v8685, %v8705
        %v8714 = vpack.c.bf16 %v8708, %v8706
        %v8715 = vpack.c.bf16 %v8709, %v8707
        %v8716 = vpack.c.bf16 %v8712, %v8710
        %v8717 = vpack.c.bf16 %v8713, %v8711
        %v8718 = vld [vmem:[#allocation7 + $0x100] sm:$0xff]
        %v8719 = vld [vmem:[#allocation7 + $0x108] sm:$0xff]
        %v8720 = vld [vmem:[#allocation7 + $0x110] sm:$0xff]
        %v8721 = vld [vmem:[#allocation7 + $0x118] sm:$0xff]
        %v8722 = vld [vmem:[#allocation7 + $0x120] sm:$0xff]
        %v8723 = vld [vmem:[#allocation7 + $0x128] sm:$0xff]
        %v8724 = vld [vmem:[#allocation7 + $0x130] sm:$0xff]
        %v8725 = vld [vmem:[#allocation7 + $0x138] sm:$0xff]
        %v8726 = vmul.f32 %v8469, %v8718
        %v8727 = vmul.f32 %v8470, %v8719
        %v8728 = vmul.f32 %v8471, %v8720
        %v8729 = vmul.f32 %v8472, %v8721
        %v8730 = vmul.f32 %v8473, %v8722
        %v8731 = vmul.f32 %v8474, %v8723
        %v8732 = vmul.f32 %v8475, %v8724
        %v8733 = vmul.f32 %v8476, %v8725
        %v8734 = vpack.c.bf16 %v8728, %v8726
        %v8735 = vpack.c.bf16 %v8729, %v8727
        %v8736 = vpack.c.bf16 %v8732, %v8730
        %v8737 = vpack.c.bf16 %v8733, %v8731
        %8738 = vrot.lane.b32.xlu0 %v8469, 127
        %v8739 = vpop.permute.xlu0 %8738
        %8740 = vrot.lane.b32.xlu0 %v8470, 127
        %v8741 = vpop.permute.xlu0 %8740
        %8742 = vrot.lane.b32.xlu0 %v8471, 127
        %v8743 = vpop.permute.xlu0 %8742
        %8744 = vrot.lane.b32.xlu0 %v8472, 127
        %v8745 = vpop.permute.xlu0 %8744
        %8746 = vrot.lane.b32.xlu0 %v8473, 127
        %v8747 = vpop.permute.xlu0 %8746
        %8748 = vrot.lane.b32.xlu0 %v8474, 127
        %v8749 = vpop.permute.xlu0 %8748
        %8750 = vrot.lane.b32.xlu0 %v8475, 127
        %v8751 = vpop.permute.xlu0 %8750
        %8752 = vrot.lane.b32.xlu0 %v8476, 127
        %v8753 = vpop.permute.xlu0 %8752
        %v8754 = vsel %vm575, %v8739, %v8741
        %v8755 = vsel %vm575, %v8743, %v8745
        %v8756 = vsel %vm575, %v8747, %v8749
        %v8757 = vsel %vm575, %v8751, %v8753
        %v8770 = vsel %vm575, %v8741, %v8739
        %v8771 = vsel %vm575, %v8745, %v8743
        %v8772 = vsel %vm575, %v8749, %v8747
        %v8773 = vsel %vm575, %v8753, %v8751
        %v8774 = vld [vmem:[#allocation7 + $0x140] sm:$0xff]
        %v8775 = vld [vmem:[#allocation7 + $0x148] sm:$0xff]
        %v8776 = vld [vmem:[#allocation7 + $0x150] sm:$0xff]
        %v8777 = vld [vmem:[#allocation7 + $0x158] sm:$0xff]
        %v8778 = vld [vmem:[#allocation7 + $0x160] sm:$0xff]
        %v8779 = vld [vmem:[#allocation7 + $0x168] sm:$0xff]
        %v8780 = vld [vmem:[#allocation7 + $0x170] sm:$0xff]
        %v8781 = vld [vmem:[#allocation7 + $0x178] sm:$0xff]
        %v8782 = vmul.f32 %v8754, %v8774
        %v8783 = vmul.f32 %v8770, %v8775
        %v8784 = vmul.f32 %v8755, %v8776
        %v8785 = vmul.f32 %v8771, %v8777
        %v8786 = vmul.f32 %v8756, %v8778
        %v8787 = vmul.f32 %v8772, %v8779
        %v8788 = vmul.f32 %v8757, %v8780
        %v8789 = vmul.f32 %v8773, %v8781
        %v8790 = vpack.c.bf16 %v8784, %v8782
        %v8791 = vpack.c.bf16 %v8785, %v8783
        %v8792 = vpack.c.bf16 %v8788, %v8786
        %v8793 = vpack.c.bf16 %v8789, %v8787
        %8794 = vrot.lane.b32.xlu0 %v8469, 113
        %v8795 = vpop.permute.xlu0 %8794
        %8796 = vrot.lane.b32.xlu0 %v8470, 113
        %v8797 = vpop.permute.xlu0 %8796
        %8798 = vrot.lane.b32.xlu0 %v8471, 113
        %v8799 = vpop.permute.xlu0 %8798
        %8800 = vrot.lane.b32.xlu0 %v8472, 113
        %v8801 = vpop.permute.xlu0 %8800
        %8802 = vrot.lane.b32.xlu0 %v8473, 113
        %v8803 = vpop.permute.xlu0 %8802
        %8804 = vrot.lane.b32.xlu0 %v8474, 113
        %v8805 = vpop.permute.xlu0 %8804
        %8806 = vrot.lane.b32.xlu0 %v8475, 113
        %v8807 = vpop.permute.xlu0 %8806
        %8808 = vrot.lane.b32.xlu0 %v8476, 113
        %v8809 = vpop.permute.xlu0 %8808
        %v8810 = vsel %vm632, %v8795, %v8797
        %v8811 = vsel %vm632, %v8799, %v8801
        %v8812 = vsel %vm632, %v8803, %v8805
        %v8813 = vsel %vm632, %v8807, %v8809
        %v8826 = vsel %vm632, %v8797, %v8795
        %v8827 = vsel %vm632, %v8801, %v8799
        %v8828 = vsel %vm632, %v8805, %v8803
        %v8829 = vsel %vm632, %v8809, %v8807
        %v8830 = vld [vmem:[#allocation7 + $0x180] sm:$0xff]
        %v8831 = vld [vmem:[#allocation7 + $0x188] sm:$0xff]
        %v8832 = vld [vmem:[#allocation7 + $0x190] sm:$0xff]
        %v8833 = vld [vmem:[#allocation7 + $0x198] sm:$0xff]
        %v8834 = vld [vmem:[#allocation7 + $0x1a0] sm:$0xff]
        %v8835 = vld [vmem:[#allocation7 + $0x1a8] sm:$0xff]
        %v8836 = vld [vmem:[#allocation7 + $0x1b0] sm:$0xff]
        %v8837 = vld [vmem:[#allocation7 + $0x1b8] sm:$0xff]
        %v8838 = vmul.f32 %v8810, %v8830
        %v8839 = vmul.f32 %v8826, %v8831
        %v8840 = vmul.f32 %v8811, %v8832
        %v8841 = vmul.f32 %v8827, %v8833
        %v8842 = vmul.f32 %v8812, %v8834
        %v8843 = vmul.f32 %v8828, %v8835
        %v8844 = vmul.f32 %v8813, %v8836
        %v8845 = vmul.f32 %v8829, %v8837
        %v8846 = vpack.c.bf16 %v8840, %v8838
        %v8847 = vpack.c.bf16 %v8841, %v8839
        %v8848 = vpack.c.bf16 %v8844, %v8842
        %v8849 = vpack.c.bf16 %v8845, %v8843
        %8850 = vrot.lane.b32.xlu0 %v8469, 112
        %v8851 = vpop.permute.xlu0 %8850
        %8852 = vrot.lane.b32.xlu0 %v8470, 112
        %v8853 = vpop.permute.xlu0 %8852
        %8854 = vrot.lane.b32.xlu0 %v8471, 112
        %v8855 = vpop.permute.xlu0 %8854
        %8856 = vrot.lane.b32.xlu0 %v8472, 112
        %v8857 = vpop.permute.xlu0 %8856
        %8858 = vrot.lane.b32.xlu0 %v8473, 112
        %v8859 = vpop.permute.xlu0 %8858
        %8860 = vrot.lane.b32.xlu0 %v8474, 112
        %v8861 = vpop.permute.xlu0 %8860
        %8862 = vrot.lane.b32.xlu0 %v8475, 112
        %v8863 = vpop.permute.xlu0 %8862
        %8864 = vrot.lane.b32.xlu0 %v8476, 112
        %v8865 = vpop.permute.xlu0 %8864
        %v8866 = vsel %vm689, %v8851, %v8853
        %v8867 = vsel %vm689, %v8855, %v8857
        %v8868 = vsel %vm689, %v8859, %v8861
        %v8869 = vsel %vm689, %v8863, %v8865
        %v8882 = vsel %vm689, %v8853, %v8851
        %v8883 = vsel %vm689, %v8857, %v8855
        %v8884 = vsel %vm689, %v8861, %v8859
        %v8885 = vsel %vm689, %v8865, %v8863
        %v8886 = vld [vmem:[#allocation7 + $0x1c0] sm:$0xff]
        %v8887 = vld [vmem:[#allocation7 + $0x1c8] sm:$0xff]
        %v8888 = vld [vmem:[#allocation7 + $0x1d0] sm:$0xff]
        %v8889 = vld [vmem:[#allocation7 + $0x1d8] sm:$0xff]
        %v8890 = vld [vmem:[#allocation7 + $0x1e0] sm:$0xff]
        %v8891 = vld [vmem:[#allocation7 + $0x1e8] sm:$0xff]
        %v8892 = vld [vmem:[#allocation7 + $0x1f0] sm:$0xff]
        %v8893 = vld [vmem:[#allocation7 + $0x1f8] sm:$0xff]
        %v8894 = vmul.f32 %v8866, %v8886
        %v8895 = vmul.f32 %v8882, %v8887
        %v8896 = vmul.f32 %v8867, %v8888
        %v8897 = vmul.f32 %v8883, %v8889
        %v8898 = vmul.f32 %v8868, %v8890
        %v8899 = vmul.f32 %v8884, %v8891
        %v8900 = vmul.f32 %v8869, %v8892
        %v8901 = vmul.f32 %v8885, %v8893
        %v8902 = vpack.c.bf16 %v8896, %v8894
        %v8903 = vpack.c.bf16 %v8897, %v8895
        %v8904 = vpack.c.bf16 %v8900, %v8898
        %v8905 = vpack.c.bf16 %v8901, %v8899
        %8906 = vrot.lane.b32.xlu0 %v8469, 111
        %v8907 = vpop.permute.xlu0 %8906
        %8908 = vrot.lane.b32.xlu0 %v8470, 111
        %v8909 = vpop.permute.xlu0 %8908
        %8910 = vrot.lane.b32.xlu0 %v8471, 111
        %v8911 = vpop.permute.xlu0 %8910
        %8912 = vrot.lane.b32.xlu0 %v8472, 111
        %v8913 = vpop.permute.xlu0 %8912
        %8914 = vrot.lane.b32.xlu0 %v8473, 111
        %v8915 = vpop.permute.xlu0 %8914
        %8916 = vrot.lane.b32.xlu0 %v8474, 111
        %v8917 = vpop.permute.xlu0 %8916
        %8918 = vrot.lane.b32.xlu0 %v8475, 111
        %v8919 = vpop.permute.xlu0 %8918
        %8920 = vrot.lane.b32.xlu0 %v8476, 111
        %v8921 = vpop.permute.xlu0 %8920
        %v8922 = vsel %vm746, %v8907, %v8909
        %v8923 = vsel %vm746, %v8911, %v8913
        %v8924 = vsel %vm746, %v8915, %v8917
        %v8925 = vsel %vm746, %v8919, %v8921
        %v8938 = vsel %vm746, %v8909, %v8907
        %v8939 = vsel %vm746, %v8913, %v8911
        %v8940 = vsel %vm746, %v8917, %v8915
        %v8941 = vsel %vm746, %v8921, %v8919
        %v8942 = vld [vmem:[#allocation7 + $0x200] sm:$0xff]
        %v8943 = vld [vmem:[#allocation7 + $0x208] sm:$0xff]
        %v8944 = vld [vmem:[#allocation7 + $0x210] sm:$0xff]
        %v8945 = vld [vmem:[#allocation7 + $0x218] sm:$0xff]
        %v8946 = vld [vmem:[#allocation7 + $0x220] sm:$0xff]
        %v8947 = vld [vmem:[#allocation7 + $0x228] sm:$0xff]
        %v8948 = vld [vmem:[#allocation7 + $0x230] sm:$0xff]
        %v8949 = vld [vmem:[#allocation7 + $0x238] sm:$0xff]
        %v8950 = vmul.f32 %v8922, %v8942
        %v8951 = vmul.f32 %v8938, %v8943
        %v8952 = vmul.f32 %v8923, %v8944
        %v8953 = vmul.f32 %v8939, %v8945
        %v8954 = vmul.f32 %v8924, %v8946
        %v8955 = vmul.f32 %v8940, %v8947
        %v8956 = vmul.f32 %v8925, %v8948
        %v8957 = vmul.f32 %v8941, %v8949
        %v8958 = vpack.c.bf16 %v8952, %v8950
        %v8959 = vpack.c.bf16 %v8953, %v8951
        %v8960 = vpack.c.bf16 %v8956, %v8954
        %v8961 = vpack.c.bf16 %v8957, %v8955
        %s8962 = scalar_lea.vmem %s231, 1792 [#allocation4]
        %v8963 = vld [vmem:[%s8962] sm:$0xff]
        %v8964 = vld [vmem:[%s8962 + $0x8] sm:$0xff]
        %v8965 = vld [vmem:[%s8962 + $0x10] sm:$0xff]
        %v8966 = vld [vmem:[%s8962 + $0x18] sm:$0xff]
        %v8967 = vld [vmem:[%s8962 + $0x20] sm:$0xff]
        %v8968 = vld [vmem:[%s8962 + $0x28] sm:$0xff]
        %v8969 = vld [vmem:[%s8962 + $0x30] sm:$0xff]
        %v8970 = vld [vmem:[%s8962 + $0x38] sm:$0xff]
        %v8971 = vld [vmem:[%s8962 + $0x40] sm:$0xff]
        %v8972 = vld [vmem:[%s8962 + $0x48] sm:$0xff]
        %v8973 = vld [vmem:[%s8962 + $0x50] sm:$0xff]
        %v8974 = vld [vmem:[%s8962 + $0x58] sm:$0xff]
        %v8975 = vld [vmem:[%s8962 + $0x60] sm:$0xff]
        %v8976 = vld [vmem:[%s8962 + $0x68] sm:$0xff]
        %v8977 = vld [vmem:[%s8962 + $0x70] sm:$0xff]
        %v8978 = vld [vmem:[%s8962 + $0x78] sm:$0xff]
        %v8979 = vld [vmem:[%s8962 + $0x80] sm:$0xff]
        %v8980 = vld [vmem:[%s8962 + $0x88] sm:$0xff]
        %v8981 = vld [vmem:[%s8962 + $0x90] sm:$0xff]
        %v8982 = vld [vmem:[%s8962 + $0x98] sm:$0xff]
        %v8983 = vld [vmem:[%s8962 + $0xa0] sm:$0xff]
        %v8984 = vld [vmem:[%s8962 + $0xa8] sm:$0xff]
        %v8985 = vld [vmem:[%s8962 + $0xb0] sm:$0xff]
        %v8986 = vld [vmem:[%s8962 + $0xb8] sm:$0xff]
        %v8987 = vld [vmem:[%s8962 + $0xc0] sm:$0xff]
        %v8988 = vld [vmem:[%s8962 + $0xc8] sm:$0xff]
        %v8989 = vld [vmem:[%s8962 + $0xd0] sm:$0xff]
        %v8990 = vld [vmem:[%s8962 + $0xd8] sm:$0xff]
        %v8991 = vld [vmem:[%s8962 + $0xe0] sm:$0xff]
        %v8992 = vld [vmem:[%s8962 + $0xe8] sm:$0xff]
        %v8993 = vld [vmem:[%s8962 + $0xf0] sm:$0xff]
        %v8994 = vld [vmem:[%s8962 + $0xf8] sm:$0xff]
        %v8995 = vld [vmem:[%s1] sm:$0xff]
        %v8996 = vld [vmem:[%s1 + $0x8] sm:$0xf]
        %v8997 = vld [vmem:[%s1 + $0xc] sm:$0xff]
        %v8998 = vld [vmem:[%s1 + $0x14] sm:$0xf]
        %v8999 = vld [vmem:[%s1 + $0x18] sm:$0xff]
        %v9000 = vld [vmem:[%s1 + $0x20] sm:$0xf]
        %v9001 = vld [vmem:[%s1 + $0x24] sm:$0xff]
        %v9002 = vld [vmem:[%s1 + $0x2c] sm:$0xf]
        %v9003 = vld [vmem:[%s1 + $0x30] sm:$0xff]
        %v9004 = vld [vmem:[%s1 + $0x38] sm:$0xf]
        %v9005 = vld [vmem:[%s1 + $0x3c] sm:$0xff]
        %v9006 = vld [vmem:[%s1 + $0x44] sm:$0xf]
        %v9007 = vld [vmem:[%s1 + $0x48] sm:$0xff]
        %v9008 = vld [vmem:[%s1 + $0x50] sm:$0xf]
        %v9009 = vld [vmem:[%s1 + $0x54] sm:$0xff]
        %v9010 = vld [vmem:[%s1 + $0x5c] sm:$0xf]
        %v9011 = vld [vmem:[%s1 + $0x60] sm:$0xff]
        %v9012 = vld [vmem:[%s1 + $0x68] sm:$0xf]
        %v9013 = vld [vmem:[%s1 + $0x6c] sm:$0xff]
        %v9014 = vld [vmem:[%s1 + $0x74] sm:$0xf]
        %v9015 = vld [vmem:[%s1 + $0x78] sm:$0xff]
        %v9016 = vld [vmem:[%s1 + $0x80] sm:$0xf]
        %v9017 = vld [vmem:[%s1 + $0x84] sm:$0xff]
        %v9018 = vld [vmem:[%s1 + $0x8c] sm:$0xf]
        %v9019 = vld [vmem:[%s1 + $0x90] sm:$0xff]
        %v9020 = vld [vmem:[%s1 + $0x98] sm:$0xf]
        %v9021 = vld [vmem:[%s1 + $0x9c] sm:$0xff]
        %v9022 = vld [vmem:[%s1 + $0xa4] sm:$0xf]
        %v9023 = vld [vmem:[%s1 + $0xa8] sm:$0xff]
        %v9024 = vld [vmem:[%s1 + $0xb0] sm:$0xf]
        %v9025 = vld [vmem:[%s1 + $0xb4] sm:$0xff]
        %v9026 = vld [vmem:[%s1 + $0xbc] sm:$0xf]
        %v9059 = vunpack.c.l.b16 %v8995
        %v9060 = vunpack.c.h.b16 %v8995
        %v9061 = vunpack.c.l.b16 %v8996
        %v9062 = vunpack.c.l.b16 %v8997
        %v9063 = vunpack.c.h.b16 %v8997
        %v9064 = vunpack.c.l.b16 %v8998
        %v9065 = vunpack.c.l.b16 %v8999
        %v9066 = vunpack.c.h.b16 %v8999
        %v9067 = vunpack.c.l.b16 %v9000
        %v9068 = vunpack.c.l.b16 %v9001
        %v9069 = vunpack.c.h.b16 %v9001
        %v9070 = vunpack.c.l.b16 %v9002
        %v9071 = vunpack.c.l.b16 %v9003
        %v9072 = vunpack.c.h.b16 %v9003
        %v9073 = vunpack.c.l.b16 %v9004
        %v9074 = vunpack.c.l.b16 %v9005
        %v9075 = vunpack.c.h.b16 %v9005
        %v9076 = vunpack.c.l.b16 %v9006
        %v9077 = vunpack.c.l.b16 %v9007
        %v9078 = vunpack.c.h.b16 %v9007
        %v9079 = vunpack.c.l.b16 %v9008
        %v9080 = vunpack.c.l.b16 %v9009
        %v9081 = vunpack.c.h.b16 %v9009
        %v9082 = vunpack.c.l.b16 %v9010
        %v9083 = vunpack.c.l.b16 %v9011
        %v9084 = vunpack.c.h.b16 %v9011
        %v9085 = vunpack.c.l.b16 %v9012
        %v9086 = vunpack.c.l.b16 %v9013
        %v9087 = vunpack.c.h.b16 %v9013
        %v9088 = vunpack.c.l.b16 %v9014
        %v9089 = vunpack.c.l.b16 %v9015
        %v9090 = vunpack.c.h.b16 %v9015
        %v9091 = vunpack.c.l.b16 %v9016
        %v9092 = vunpack.c.l.b16 %v9017
        %v9093 = vunpack.c.h.b16 %v9017
        %v9094 = vunpack.c.l.b16 %v9018
        %v9095 = vunpack.c.l.b16 %v9019
        %v9096 = vunpack.c.h.b16 %v9019
        %v9097 = vunpack.c.l.b16 %v9020
        %v9098 = vunpack.c.l.b16 %v9021
        %v9099 = vunpack.c.h.b16 %v9021
        %v9100 = vunpack.c.l.b16 %v9022
        %v9101 = vunpack.c.l.b16 %v9023
        %v9102 = vunpack.c.h.b16 %v9023
        %v9103 = vunpack.c.l.b16 %v9024
        %v9104 = vunpack.c.l.b16 %v9025
        %v9105 = vunpack.c.h.b16 %v9025
        %v9106 = vunpack.c.l.b16 %v9026
        %v9107 = vpack.c.b16 %v9062, %v9059
        %v9108 = vpack.c.b16 %v9063, %v9060
        %v9109 = vpack.c.b16 %v9064, %v9061
        %v9110 = vpack.c.b16 %v9068, %v9065
        %v9111 = vpack.c.b16 %v9069, %v9066
        %v9112 = vpack.c.b16 %v9070, %v9067
        %v9113 = vpack.c.b16 %v9074, %v9071
        %v9114 = vpack.c.b16 %v9075, %v9072
        %v9115 = vpack.c.b16 %v9076, %v9073
        %v9116 = vpack.c.b16 %v9080, %v9077
        %v9117 = vpack.c.b16 %v9081, %v9078
        %v9118 = vpack.c.b16 %v9082, %v9079
        %v9119 = vpack.c.b16 %v9086, %v9083
        %v9120 = vpack.c.b16 %v9087, %v9084
        %v9121 = vpack.c.b16 %v9088, %v9085
        %v9122 = vpack.c.b16 %v9092, %v9089
        %v9123 = vpack.c.b16 %v9093, %v9090
        %v9124 = vpack.c.b16 %v9094, %v9091
        %v9125 = vpack.c.b16 %v9098, %v9095
        %v9126 = vpack.c.b16 %v9099, %v9096
        %v9127 = vpack.c.b16 %v9100, %v9097
        %v9128 = vpack.c.b16 %v9104, %v9101
        %v9129 = vpack.c.b16 %v9105, %v9102
        %v9130 = vpack.c.b16 %v9106, %v9103
        %v9148 = vsel %vm971, %v9109, 0
        %v9151 = vsel %vm971, %v9112, 0
        %v9154 = vsel %vm971, %v9115, 0
        %v9157 = vsel %vm971, %v9118, 0
        %v9160 = vsel %vm971, %v9121, 0
        %v9163 = vsel %vm971, %v9124, 0
        %v9166 = vsel %vm971, %v9127, 0
        %v9169 = vsel %vm971, %v9130, 0
        %9171 = vmatprep.subr.bf16.mxu0 %v8547
        %9172 = vmatpush1.bf16.msra.mxu0 %v8546
        %9173 = vmatprep.subr.bf16.mxu0 %v8549
        %9174 = vmatpush1.bf16.msra.mxu0 %v8548
        %9175 = vmatprep.subr.bf16.mxu0 %v8603
        %9176 = vmatpush1.bf16.msra.mxu0 %v8602
        %9177 = vmatprep.subr.bf16.mxu0 %v8605
        %9178 = vmatpush1.bf16.msra.mxu0 %v8604
        %9179 = vmatprep.subr.bf16.mxu0 %v8659
        %9180 = vmatpush1.bf16.msra.mxu0 %v8658
        %9181 = vmatprep.subr.bf16.mxu0 %v8661
        %9182 = vmatpush1.bf16.msra.mxu0 %v8660
        %9183 = vmatprep.subr.bf16.mxu0 %v8715
        %9184 = vmatpush1.bf16.msra.mxu0 %v8714
        %9185 = vmatprep.subr.bf16.mxu0 %v8717
        %9186 = vmatpush1.bf16.msra.mxu0 %v8716
        %9187 = vmatprep.subr.bf16.mxu0 %v8735
        %9188 = vmatpush1.bf16.msra.mxu0 %v8734
        %9189 = vmatprep.subr.bf16.mxu0 %v8737
        %9190 = vmatpush1.bf16.msra.mxu0 %v8736
        %9191 = vmatprep.subr.bf16.mxu0 %v8791
        %9192 = vmatpush1.bf16.msra.mxu0 %v8790
        %9193 = vmatprep.subr.bf16.mxu0 %v8793
        %9194 = vmatpush1.bf16.msra.mxu0 %v8792
        %9195 = vmatprep.subr.bf16.mxu0 %v8847
        %9196 = vmatpush1.bf16.msra.mxu0 %v8846
        %9197 = vmatprep.subr.bf16.mxu0 %v8849
        %9198 = vmatpush1.bf16.msra.mxu0 %v8848
        %9199 = vmatprep.subr.bf16.mxu0 %v8903
        %9200 = vmatpush1.bf16.msra.mxu0 %v8902
        %9201 = vmatprep.subr.bf16.mxu0 %v8905
        %9202 = vmatpush1.bf16.msra.mxu0 %v8904
        %9203 = vmatprep.mubr.bf16.mxu0 %v9108
        %9204 = vmatmul.mubr.bf16.gmra.mrb[0].mxu0 %v9107
        %v9205 = vpop.f32.mrb[0].mxu0
        %v9206 = vadd.f32 0.0, %v9205
        %v9207 = vpop.f32.mrb[0].mxu0
        %v9208 = vadd.f32 0.0, %v9207
        %v9209 = vpop.f32.mrb[0].mxu0
        %v9210 = vadd.f32 0.0, %v9209
        %v9211 = vpop.f32.mrb[0].mxu0
        %v9212 = vadd.f32 0.0, %v9211
        %9213 = vmatprep.mubr.bf16.mxu0 %v9111
        %9214 = vmatmul.mubr.bf16.gmra.mrb[0].mxu0 %v9110
        %v9215 = vpop.f32.mrb[0].mxu0
        %v9216 = vadd.f32 0.0, %v9215
        %v9217 = vpop.f32.mrb[0].mxu0
        %v9218 = vadd.f32 0.0, %v9217
        %v9219 = vpop.f32.mrb[0].mxu0
        %v9220 = vadd.f32 0.0, %v9219
        %v9221 = vpop.f32.mrb[0].mxu0
        %v9222 = vadd.f32 0.0, %v9221
        %9223 = vmatprep.mubr.bf16.mxu0 %v9114
        %9224 = vmatmul.mubr.bf16.gmra.mrb[0].mxu0 %v9113
        %v9225 = vpop.f32.mrb[0].mxu0
        %v9226 = vadd.f32 0.0, %v9225
        %v9227 = vpop.f32.mrb[0].mxu0
        %v9228 = vadd.f32 0.0, %v9227
        %v9229 = vpop.f32.mrb[0].mxu0
        %v9230 = vadd.f32 0.0, %v9229
        %v9231 = vpop.f32.mrb[0].mxu0
        %v9232 = vadd.f32 0.0, %v9231
        %9233 = vmatprep.mubr.bf16.mxu0 %v9117
        %9234 = vmatmul.mubr.bf16.gmra.mrb[0].mxu0 %v9116
        %v9235 = vpop.f32.mrb[0].mxu0
        %v9236 = vadd.f32 0.0, %v9235
        %v9237 = vpop.f32.mrb[0].mxu0
        %v9238 = vadd.f32 0.0, %v9237
        %v9239 = vpop.f32.mrb[0].mxu0
        %v9240 = vadd.f32 0.0, %v9239
        %v9241 = vpop.f32.mrb[0].mxu0
        %v9242 = vadd.f32 0.0, %v9241
        %9243 = vmatprep.mubr.bf16.mxu0 %v9120
        %9244 = vmatmul.mubr.bf16.gmra.mrb[0].mxu0 %v9119
        %v9245 = vpop.f32.mrb[0].mxu0
        %v9246 = vadd.f32 0.0, %v9245
        %v9247 = vpop.f32.mrb[0].mxu0
        %v9248 = vadd.f32 0.0, %v9247
        %v9249 = vpop.f32.mrb[0].mxu0
        %v9250 = vadd.f32 0.0, %v9249
        %v9251 = vpop.f32.mrb[0].mxu0
        %v9252 = vadd.f32 0.0, %v9251
        %9253 = vmatprep.mubr.bf16.mxu0 %v9123
        %9254 = vmatmul.mubr.bf16.gmra.mrb[0].mxu0 %v9122
        %v9255 = vpop.f32.mrb[0].mxu0
        %v9256 = vadd.f32 0.0, %v9255
        %v9257 = vpop.f32.mrb[0].mxu0
        %v9258 = vadd.f32 0.0, %v9257
        %v9259 = vpop.f32.mrb[0].mxu0
        %v9260 = vadd.f32 0.0, %v9259
        %v9261 = vpop.f32.mrb[0].mxu0
        %v9262 = vadd.f32 0.0, %v9261
        %9263 = vmatprep.mubr.bf16.mxu0 %v9126
        %9264 = vmatmul.mubr.bf16.gmra.mrb[0].mxu0 %v9125
        %v9265 = vpop.f32.mrb[0].mxu0
        %v9266 = vadd.f32 0.0, %v9265
        %v9267 = vpop.f32.mrb[0].mxu0
        %v9268 = vadd.f32 0.0, %v9267
        %v9269 = vpop.f32.mrb[0].mxu0
        %v9270 = vadd.f32 0.0, %v9269
        %v9271 = vpop.f32.mrb[0].mxu0
        %v9272 = vadd.f32 0.0, %v9271
        %9273 = vmatprep.mubr.bf16.mxu0 %v9129
        %9274 = vmatmul.mubr.bf16.gmra.mrb[0].mxu0 %v9128
        %v9275 = vpop.f32.mrb[0].mxu0
        %v9276 = vadd.f32 0.0, %v9275
        %v9277 = vpop.f32.mrb[0].mxu0
        %v9278 = vadd.f32 0.0, %v9277
        %v9279 = vpop.f32.mrb[0].mxu0
        %v9280 = vadd.f32 0.0, %v9279
        %v9281 = vpop.f32.mrb[0].mxu0
        %v9282 = vadd.f32 0.0, %v9281
        %9283 = vdwg.mxu0
        %9284 = vmatprep.subr.bf16.mxu0 %v8959
        %9285 = vmatpush1.bf16.msra.mxu0 %v8958
        %9286 = vmatprep.subr.bf16.mxu0 %v8961
        %9287 = vmatpush1.bf16.msra.mxu0 %v8960
        %9288 = vmatprep.subr.bf16.mxu0 0
        %9289 = vmatpush1.bf16.msra.mxu0 0
        %9290 = vmatprep.subr.bf16.mxu0 0
        %9291 = vmatpush1.bf16.msra.mxu0 0
        %9292 = vmatprep.subr.bf16.mxu0 0
        %9293 = vmatpush1.bf16.msra.mxu0 0
        %9294 = vmatprep.subr.bf16.mxu0 0
        %9295 = vmatpush1.bf16.msra.mxu0 0
        %9296 = vmatprep.subr.bf16.mxu0 0
        %9297 = vmatpush1.bf16.msra.mxu0 0
        %9298 = vmatprep.subr.bf16.mxu0 0
        %9299 = vmatpush1.bf16.msra.mxu0 0
        %9300 = vmatprep.subr.bf16.mxu0 0
        %9301 = vmatpush1.bf16.msra.mxu0 0
        %9302 = vmatprep.subr.bf16.mxu0 0
        %9303 = vmatpush1.bf16.msra.mxu0 0
        %9304 = vmatprep.subr.bf16.mxu0 0
        %9305 = vmatpush1.bf16.msra.mxu0 0
        %9306 = vmatprep.subr.bf16.mxu0 0
        %9307 = vmatpush1.bf16.msra.mxu0 0
        %9308 = vmatprep.subr.bf16.mxu0 0
        %9309 = vmatpush1.bf16.msra.mxu0 0
        %9310 = vmatprep.subr.bf16.mxu0 0
        %9311 = vmatpush1.bf16.msra.mxu0 0
        %9312 = vmatprep.subr.bf16.mxu0 0
        %9313 = vmatpush1.bf16.msra.mxu0 0
        %9314 = vmatprep.subr.bf16.mxu0 0
        %9315 = vmatpush1.bf16.msra.mxu0 0
        %9316 = vmatprep.mubr.bf16.mxu0 0
        %9317 = vmatmul.mubr.bf16.gmra.mrb[0].mxu0 %v9148
        %v9318 = vpop.f32.mrb[0].mxu0
        %v9319 = vadd.f32 %v9206, %v9318
        %v9320 = vpop.f32.mrb[0].mxu0
        %v9321 = vadd.f32 %v9208, %v9320
        %v9322 = vpop.f32.mrb[0].mxu0
        %v9323 = vadd.f32 %v9210, %v9322
        %v9324 = vpop.f32.mrb[0].mxu0
        %v9325 = vadd.f32 %v9212, %v9324
        %9326 = vmatprep.mubr.bf16.mxu0 0
        %9327 = vmatmul.mubr.bf16.gmra.mrb[0].mxu0 %v9151
        %v9328 = vpop.f32.mrb[0].mxu0
        %v9329 = vadd.f32 %v9216, %v9328
        %v9330 = vpop.f32.mrb[0].mxu0
        %v9331 = vadd.f32 %v9218, %v9330
        %v9332 = vpop.f32.mrb[0].mxu0
        %v9333 = vadd.f32 %v9220, %v9332
        %v9334 = vpop.f32.mrb[0].mxu0
        %v9335 = vadd.f32 %v9222, %v9334
        %9336 = vmatprep.mubr.bf16.mxu0 0
        %9337 = vmatmul.mubr.bf16.gmra.mrb[0].mxu0 %v9154
        %v9338 = vpop.f32.mrb[0].mxu0
        %v9339 = vadd.f32 %v9226, %v9338
        %v9340 = vpop.f32.mrb[0].mxu0
        %v9341 = vadd.f32 %v9228, %v9340
        %v9342 = vpop.f32.mrb[0].mxu0
        %v9343 = vadd.f32 %v9230, %v9342
        %v9344 = vpop.f32.mrb[0].mxu0
        %v9345 = vadd.f32 %v9232, %v9344
        %9346 = vmatprep.mubr.bf16.mxu0 0
        %9347 = vmatmul.mubr.bf16.gmra.mrb[0].mxu0 %v9157
        %v9348 = vpop.f32.mrb[0].mxu0
        %v9349 = vadd.f32 %v9236, %v9348
        %v9350 = vpop.f32.mrb[0].mxu0
        %v9351 = vadd.f32 %v9238, %v9350
        %v9352 = vpop.f32.mrb[0].mxu0
        %v9353 = vadd.f32 %v9240, %v9352
        %v9354 = vpop.f32.mrb[0].mxu0
        %v9355 = vadd.f32 %v9242, %v9354
        %9356 = vmatprep.mubr.bf16.mxu0 0
        %9357 = vmatmul.mubr.bf16.gmra.mrb[0].mxu0 %v9160
        %v9358 = vpop.f32.mrb[0].mxu0
        %v9359 = vadd.f32 %v9246, %v9358
        %v9360 = vpop.f32.mrb[0].mxu0
        %v9361 = vadd.f32 %v9248, %v9360
        %v9362 = vpop.f32.mrb[0].mxu0
        %v9363 = vadd.f32 %v9250, %v9362
        %v9364 = vpop.f32.mrb[0].mxu0
        %v9365 = vadd.f32 %v9252, %v9364
        %9366 = vmatprep.mubr.bf16.mxu0 0
        %9367 = vmatmul.mubr.bf16.gmra.mrb[0].mxu0 %v9163
        %v9368 = vpop.f32.mrb[0].mxu0
        %v9369 = vadd.f32 %v9256, %v9368
        %v9370 = vpop.f32.mrb[0].mxu0
        %v9371 = vadd.f32 %v9258, %v9370
        %v9372 = vpop.f32.mrb[0].mxu0
        %v9373 = vadd.f32 %v9260, %v9372
        %v9374 = vpop.f32.mrb[0].mxu0
        %v9375 = vadd.f32 %v9262, %v9374
        %9376 = vmatprep.mubr.bf16.mxu0 0
        %9377 = vmatmul.mubr.bf16.gmra.mrb[0].mxu0 %v9166
        %v9378 = vpop.f32.mrb[0].mxu0
        %v9379 = vadd.f32 %v9266, %v9378
        %v9380 = vpop.f32.mrb[0].mxu0
        %v9381 = vadd.f32 %v9268, %v9380
        %v9382 = vpop.f32.mrb[0].mxu0
        %v9383 = vadd.f32 %v9270, %v9382
        %v9384 = vpop.f32.mrb[0].mxu0
        %v9385 = vadd.f32 %v9272, %v9384
        %9386 = vmatprep.mubr.bf16.mxu0 0
        %9387 = vmatmul.mubr.bf16.gmra.mrb[0].mxu0 %v9169
        %v9388 = vpop.f32.mrb[0].mxu0
        %v9389 = vadd.f32 %v9276, %v9388
        %v9390 = vpop.f32.mrb[0].mxu0
        %v9391 = vadd.f32 %v9278, %v9390
        %v9392 = vpop.f32.mrb[0].mxu0
        %v9393 = vadd.f32 %v9280, %v9392
        %v9394 = vpop.f32.mrb[0].mxu0
        %v9395 = vadd.f32 %v9282, %v9394
        %9396 = vdwg.mxu0
        %v9397 = vadd.f32 %v8963, %v9319
        %v9398 = vadd.f32 %v8964, %v9321
        %v9399 = vadd.f32 %v8965, %v9323
        %v9400 = vadd.f32 %v8966, %v9325
        %v9401 = vadd.f32 %v8967, %v9329
        %v9402 = vadd.f32 %v8968, %v9331
        %v9403 = vadd.f32 %v8969, %v9333
        %v9404 = vadd.f32 %v8970, %v9335
        %v9405 = vadd.f32 %v8971, %v9339
        %v9406 = vadd.f32 %v8972, %v9341
        %v9407 = vadd.f32 %v8973, %v9343
        %v9408 = vadd.f32 %v8974, %v9345
        %v9409 = vadd.f32 %v8975, %v9349
        %v9410 = vadd.f32 %v8976, %v9351
        %v9411 = vadd.f32 %v8977, %v9353
        %v9412 = vadd.f32 %v8978, %v9355
        %v9413 = vadd.f32 %v8979, %v9359
        %v9414 = vadd.f32 %v8980, %v9361
        %v9415 = vadd.f32 %v8981, %v9363
        %v9416 = vadd.f32 %v8982, %v9365
        %v9417 = vadd.f32 %v8983, %v9369
        %v9418 = vadd.f32 %v8984, %v9371
        %v9419 = vadd.f32 %v8985, %v9373
        %v9420 = vadd.f32 %v8986, %v9375
        %v9421 = vadd.f32 %v8987, %v9379
        %v9422 = vadd.f32 %v8988, %v9381
        %v9423 = vadd.f32 %v8989, %v9383
        %v9424 = vadd.f32 %v8990, %v9385
        %v9425 = vadd.f32 %v8991, %v9389
        %v9426 = vadd.f32 %v8992, %v9391
        %v9427 = vadd.f32 %v8993, %v9393
        %v9428 = vadd.f32 %v8994, %v9395
        %v9429 = vld [vmem:[#allocation9] sm:$0xff]
        %v9430 = vld [vmem:[#allocation9 + $0x8] sm:$0xff]
        %v9431 = vld [vmem:[#allocation9 + $0x10] sm:$0xff]
        %v9432 = vld [vmem:[#allocation9 + $0x18] sm:$0xff]
        %v9433 = vld [vmem:[#allocation9 + $0x20] sm:$0xff]
        %v9434 = vld [vmem:[#allocation9 + $0x28] sm:$0xff]
        %v9435 = vld [vmem:[#allocation9 + $0x30] sm:$0xff]
        %v9436 = vld [vmem:[#allocation9 + $0x38] sm:$0xff]
        %v9437 = vld [vmem:[#allocation9 + $0x40] sm:$0xff]
        %v9438 = vld [vmem:[#allocation9 + $0x48] sm:$0xff]
        %v9439 = vld [vmem:[#allocation9 + $0x50] sm:$0xff]
        %v9440 = vld [vmem:[#allocation9 + $0x58] sm:$0xff]
        %v9441 = vld [vmem:[#allocation9 + $0x60] sm:$0xff]
        %v9442 = vld [vmem:[#allocation9 + $0x68] sm:$0xff]
        %v9443 = vld [vmem:[#allocation9 + $0x70] sm:$0xff]
        %v9444 = vld [vmem:[#allocation9 + $0x78] sm:$0xff]
        %v9445 = vld [vmem:[#allocation9 + $0x80] sm:$0xff]
        %v9446 = vld [vmem:[#allocation9 + $0x88] sm:$0xff]
        %v9447 = vld [vmem:[#allocation9 + $0x90] sm:$0xff]
        %v9448 = vld [vmem:[#allocation9 + $0x98] sm:$0xff]
        %v9449 = vld [vmem:[#allocation9 + $0xa0] sm:$0xff]
        %v9450 = vld [vmem:[#allocation9 + $0xa8] sm:$0xff]
        %v9451 = vld [vmem:[#allocation9 + $0xb0] sm:$0xff]
        %v9452 = vld [vmem:[#allocation9 + $0xb8] sm:$0xff]
        %v9453 = vmul.f32 %v9429, %v8405
        %v9454 = vmul.f32 %v9430, %v8406
        %v9455 = vmul.f32 %v9431, %v8407
        %v9456 = vmul.f32 %v9432, %v8408
        %v9457 = vmul.f32 %v9433, %v8409
        %v9458 = vmul.f32 %v9434, %v8410
        %v9459 = vmul.f32 %v9435, %v8411
        %v9460 = vmul.f32 %v9436, %v8412
        %v9461 = vadd.f32 %v9397, %v9453
        %v9462 = vadd.f32 %v9398, %v9454
        %v9463 = vadd.f32 %v9399, %v9455
        %v9464 = vadd.f32 %v9400, %v9456
        %v9465 = vadd.f32 %v9401, %v9457
        %v9466 = vadd.f32 %v9402, %v9458
        %v9467 = vadd.f32 %v9403, %v9459
        %v9468 = vadd.f32 %v9404, %v9460
        %v9469 = vmul.f32 %v9461, 0.5
        %v9470 = vmul.f32 %v9462, 0.5
        %v9471 = vmul.f32 %v9463, 0.5
        %v9472 = vmul.f32 %v9464, 0.5
        %v9473 = vmul.f32 %v9465, 0.5
        %v9474 = vmul.f32 %v9466, 0.5
        %v9475 = vmul.f32 %v9467, 0.5
        %v9476 = vmul.f32 %v9468, 0.5
        %v9477 = vtanh.pop %v9469
        %v9478 = vtanh.pop %v9470
        %v9479 = vtanh.pop %v9471
        %v9480 = vtanh.pop %v9472
        %v9481 = vtanh.pop %v9473
        %v9482 = vtanh.pop %v9474
        %v9483 = vtanh.pop %v9475
        %v9484 = vtanh.pop %v9476
        %v9485 = vmul.f32 %v9477, 0.5
        %v9486 = vmul.f32 %v9478, 0.5
        %v9487 = vmul.f32 %v9479, 0.5
        %v9488 = vmul.f32 %v9480, 0.5
        %v9489 = vmul.f32 %v9481, 0.5
        %v9490 = vmul.f32 %v9482, 0.5
        %v9491 = vmul.f32 %v9483, 0.5
        %v9492 = vmul.f32 %v9484, 0.5
        %v9493 = vadd.f32 %v9485, 0.5
        %v9494 = vadd.f32 %v9486, 0.5
        %v9495 = vadd.f32 %v9487, 0.5
        %v9496 = vadd.f32 %v9488, 0.5
        %v9497 = vadd.f32 %v9489, 0.5
        %v9498 = vadd.f32 %v9490, 0.5
        %v9499 = vadd.f32 %v9491, 0.5
        %v9500 = vadd.f32 %v9492, 0.5
        %v9501 = vmul.f32 %v9437, %v8405
        %v9502 = vmul.f32 %v9438, %v8406
        %v9503 = vmul.f32 %v9439, %v8407
        %v9504 = vmul.f32 %v9440, %v8408
        %v9505 = vmul.f32 %v9441, %v8409
        %v9506 = vmul.f32 %v9442, %v8410
        %v9507 = vmul.f32 %v9443, %v8411
        %v9508 = vmul.f32 %v9444, %v8412
        %v9509 = vadd.f32 %v9405, %v9501
        %v9510 = vadd.f32 %v9406, %v9502
        %v9511 = vadd.f32 %v9407, %v9503
        %v9512 = vadd.f32 %v9408, %v9504
        %v9513 = vadd.f32 %v9409, %v9505
        %v9514 = vadd.f32 %v9410, %v9506
        %v9515 = vadd.f32 %v9411, %v9507
        %v9516 = vadd.f32 %v9412, %v9508
        %v9517 = vmul.f32 %v9509, 0.5
        %v9518 = vmul.f32 %v9510, 0.5
        %v9519 = vmul.f32 %v9511, 0.5
        %v9520 = vmul.f32 %v9512, 0.5
        %v9521 = vmul.f32 %v9513, 0.5
        %v9522 = vmul.f32 %v9514, 0.5
        %v9523 = vmul.f32 %v9515, 0.5
        %v9524 = vmul.f32 %v9516, 0.5
        %v9525 = vtanh.pop %v9517
        %v9526 = vtanh.pop %v9518
        %v9527 = vtanh.pop %v9519
        %v9528 = vtanh.pop %v9520
        %v9529 = vtanh.pop %v9521
        %v9530 = vtanh.pop %v9522
        %v9531 = vtanh.pop %v9523
        %v9532 = vtanh.pop %v9524
        %v9533 = vmul.f32 %v9525, 0.5
        %v9534 = vmul.f32 %v9526, 0.5
        %v9535 = vmul.f32 %v9527, 0.5
        %v9536 = vmul.f32 %v9528, 0.5
        %v9537 = vmul.f32 %v9529, 0.5
        %v9538 = vmul.f32 %v9530, 0.5
        %v9539 = vmul.f32 %v9531, 0.5
        %v9540 = vmul.f32 %v9532, 0.5
        %v9541 = vadd.f32 %v9533, 0.5
        %v9542 = vadd.f32 %v9534, 0.5
        %v9543 = vadd.f32 %v9535, 0.5
        %v9544 = vadd.f32 %v9536, 0.5
        %v9545 = vadd.f32 %v9537, 0.5
        %v9546 = vadd.f32 %v9538, 0.5
        %v9547 = vadd.f32 %v9539, 0.5
        %v9548 = vadd.f32 %v9540, 0.5
        %v9549 = vmul.f32 %v9541, %v8405
        %v9550 = vmul.f32 %v9542, %v8406
        %v9551 = vmul.f32 %v9543, %v8407
        %v9552 = vmul.f32 %v9544, %v8408
        %v9553 = vmul.f32 %v9545, %v8409
        %v9554 = vmul.f32 %v9546, %v8410
        %v9555 = vmul.f32 %v9547, %v8411
        %v9556 = vmul.f32 %v9548, %v8412
        %v9557 = vtanh.pop %v9413
        %v9558 = vtanh.pop %v9414
        %v9559 = vtanh.pop %v9415
        %v9560 = vtanh.pop %v9416
        %v9561 = vtanh.pop %v9417
        %v9562 = vtanh.pop %v9418
        %v9563 = vtanh.pop %v9419
        %v9564 = vtanh.pop %v9420
        %v9565 = vmul.f32 %v9493, %v9557
        %v9566 = vmul.f32 %v9494, %v9558
        %v9567 = vmul.f32 %v9495, %v9559
        %v9568 = vmul.f32 %v9496, %v9560
        %v9569 = vmul.f32 %v9497, %v9561
        %v9570 = vmul.f32 %v9498, %v9562
        %v9571 = vmul.f32 %v9499, %v9563
        %v9572 = vmul.f32 %v9500, %v9564
        %v9573 = vadd.f32 %v9549, %v9565
        %v9574 = vadd.f32 %v9550, %v9566
        %v9575 = vadd.f32 %v9551, %v9567
        %v9576 = vadd.f32 %v9552, %v9568
        %v9577 = vadd.f32 %v9553, %v9569
        %v9578 = vadd.f32 %v9554, %v9570
        %v9579 = vadd.f32 %v9555, %v9571
        %v9580 = vadd.f32 %v9556, %v9572
        %v9581 = vmul.f32 %v9445, %v9573
        %v9582 = vmul.f32 %v9446, %v9574
        %v9583 = vmul.f32 %v9447, %v9575
        %v9584 = vmul.f32 %v9448, %v9576
        %v9585 = vmul.f32 %v9449, %v9577
        %v9586 = vmul.f32 %v9450, %v9578
        %v9587 = vmul.f32 %v9451, %v9579
        %v9588 = vmul.f32 %v9452, %v9580
        %v9589 = vadd.f32 %v9421, %v9581
        %v9590 = vadd.f32 %v9422, %v9582
        %v9591 = vadd.f32 %v9423, %v9583
        %v9592 = vadd.f32 %v9424, %v9584
        %v9593 = vadd.f32 %v9425, %v9585
        %v9594 = vadd.f32 %v9426, %v9586
        %v9595 = vadd.f32 %v9427, %v9587
        %v9596 = vadd.f32 %v9428, %v9588
        %v9597 = vmul.f32 %v9589, 0.5
        %v9598 = vmul.f32 %v9590, 0.5
        %v9599 = vmul.f32 %v9591, 0.5
        %v9600 = vmul.f32 %v9592, 0.5
        %v9601 = vmul.f32 %v9593, 0.5
        %v9602 = vmul.f32 %v9594, 0.5
        %v9603 = vmul.f32 %v9595, 0.5
        %v9604 = vmul.f32 %v9596, 0.5
        %v9605 = vtanh.pop %v9597
        %v9606 = vtanh.pop %v9598
        %v9607 = vtanh.pop %v9599
        %v9608 = vtanh.pop %v9600
        %v9609 = vtanh.pop %v9601
        %v9610 = vtanh.pop %v9602
        %v9611 = vtanh.pop %v9603
        %v9612 = vtanh.pop %v9604
        %v9613 = vmul.f32 %v9605, 0.5
        %v9614 = vmul.f32 %v9606, 0.5
        %v9615 = vmul.f32 %v9607, 0.5
        %v9616 = vmul.f32 %v9608, 0.5
        %v9617 = vmul.f32 %v9609, 0.5
        %v9618 = vmul.f32 %v9610, 0.5
        %v9619 = vmul.f32 %v9611, 0.5
        %v9620 = vmul.f32 %v9612, 0.5
        %v9621 = vadd.f32 %v9613, 0.5
        %v9622 = vadd.f32 %v9614, 0.5
        %v9623 = vadd.f32 %v9615, 0.5
        %v9624 = vadd.f32 %v9616, 0.5
        %v9625 = vadd.f32 %v9617, 0.5
        %v9626 = vadd.f32 %v9618, 0.5
        %v9627 = vadd.f32 %v9619, 0.5
        %v9628 = vadd.f32 %v9620, 0.5
        %v9629 = vtanh.pop %v9573
        %v9630 = vtanh.pop %v9574
        %v9631 = vtanh.pop %v9575
        %v9632 = vtanh.pop %v9576
        %v9633 = vtanh.pop %v9577
        %v9634 = vtanh.pop %v9578
        %v9635 = vtanh.pop %v9579
        %v9636 = vtanh.pop %v9580
        %v9637 = vmul.f32 %v9621, %v9629
        %v9638 = vmul.f32 %v9622, %v9630
        %v9639 = vmul.f32 %v9623, %v9631
        %v9640 = vmul.f32 %v9624, %v9632
        %v9641 = vmul.f32 %v9625, %v9633
        %v9642 = vmul.f32 %v9626, %v9634
        %v9643 = vmul.f32 %v9627, %v9635
        %v9644 = vmul.f32 %v9628, %v9636
        %s9645 = scalar_lea.vmem %s263, 448 [#allocation10]
        %9646 = vst [vmem:[%s9645] sm:$0xff] %v9637
        %9647 = vst [vmem:[%s9645 + $0x8] sm:$0xff] %v9638
        %9648 = vst [vmem:[%s9645 + $0x10] sm:$0xff] %v9639
        %9649 = vst [vmem:[%s9645 + $0x18] sm:$0xff] %v9640
        %9650 = vst [vmem:[%s9645 + $0x20] sm:$0xff] %v9641
        %9651 = vst [vmem:[%s9645 + $0x28] sm:$0xff] %v9642
        %9652 = vst [vmem:[%s9645 + $0x30] sm:$0xff] %v9643
        %9653 = vst [vmem:[%s9645 + $0x38] sm:$0xff] %v9644
        %9654 = vst [vmem:[#allocation2] sm:$0xff] %v9637
        %9655 = vst [vmem:[#allocation2 + $0x8] sm:$0xff] %v9638
        %9656 = vst [vmem:[#allocation2 + $0x10] sm:$0xff] %v9639
        %9657 = vst [vmem:[#allocation2 + $0x18] sm:$0xff] %v9640
        %9658 = vst [vmem:[#allocation2 + $0x20] sm:$0xff] %v9641
        %9659 = vst [vmem:[#allocation2 + $0x28] sm:$0xff] %v9642
        %9660 = vst [vmem:[#allocation2 + $0x30] sm:$0xff] %v9643
        %9661 = vst [vmem:[#allocation2 + $0x38] sm:$0xff] %v9644
        %9662 = vst [vmem:[#allocation3] sm:$0xff] %v9573
        %9663 = vst [vmem:[#allocation3 + $0x8] sm:$0xff] %v9574
        %9664 = vst [vmem:[#allocation3 + $0x10] sm:$0xff] %v9575
        %9665 = vst [vmem:[#allocation3 + $0x18] sm:$0xff] %v9576
        %9666 = vst [vmem:[#allocation3 + $0x20] sm:$0xff] %v9577
        %9667 = vst [vmem:[#allocation3 + $0x28] sm:$0xff] %v9578
        %9668 = vst [vmem:[#allocation3 + $0x30] sm:$0xff] %v9579
        %9669 = vst [vmem:[#allocation3 + $0x38] sm:$0xff] %v9580
        %s9670 = sand.u32 %s135, 1
        %s9671 = scalar_lea.sflag [#allocation6], %s9670
        %s9672 = sand.u32 %s135, 1
        %s9673 = smul.addr %s9672, 512
        %s9674 = scalar_lea.vmem [#allocation10], %s9673
        // Predicated region
        $region53: #{tpu_custom_call.1} parent=35 // pred_check
          %p9675 = pneg %p145
        $region54: #{tpu_custom_call.1} parent=35 // pred_check_branch
          %9677 = sbr.rel (%p9675) target = $region56
        $region55: #{tpu_custom_call.1} parent=35 // pred_region
          %s9678 = smul.u32 8, %s27
          %s9680 = ssub.s32 8192, 8192
          %9681 = vsyncadd %s9671, %s9680
          %s9682 = smul.addr %s9678, 8
          %s9683 = smul.addr %s26, 64
          %s9684 = sadd.s32 %s9682, %s9683
          %s9685 = smul.addr %s9684, 128
          %s9686 = scalar_lea.hbm %s4, %s9685
          %s9687 = sshll.u32 %s9674, 4
          %s9688 = int_to_ptr.vmem [resolvable:$true] %s9687
          %9693 = dma.vmem_to_hbm [thread:$0]  %s9688, 8192, %s9686, %s9671, 256, 256, 16
        $region56: #{tpu_custom_call.1} parent=35 // pred_fallthru
          _
      $region36: #{tpu_custom_call.1} parent=5 // pred_fallthru
        _
      %p9694 = scmp.le.s32.totalorder 2, %s17
      // Predicated region
      $region57: #{tpu_custom_call.1} parent=5 // pred_check
        %p9695 = pneg %p9694
      $region58: #{tpu_custom_call.1} parent=5 // pred_check_branch
        %9697 = sbr.rel (%p9695) target = $region60
      $region59: #{tpu_custom_call.1} parent=5 // pred_region
        %s9698 = ssub.s32 %s17, 2
        // Predicated region
        $region61: #{tpu_custom_call.1} parent=59 // pred_check
          %p9699 = pneg %p151
        $region62: #{tpu_custom_call.1} parent=59 // pred_check_branch
          %9701 = sbr.rel (%p9699) target = $region64
        $region63: #{tpu_custom_call.1} parent=59 // pred_region
          %s9702 = sand.u32 %s136, 1
          %s9703 = scalar_lea.sflag [#allocation6], %s9702
          %s9704 = sand.u32 %s136, 1
          %s9705 = smul.addr %s9704, 512
          %s9706 = scalar_lea.vmem [#allocation10], %s9705
          %9707 = dma.done %s9703, 8192
        $region64: #{tpu_custom_call.1} parent=59 // pred_fallthru
          _
      $region60: #{tpu_custom_call.1} parent=5 // pred_fallthru
        _
    $region6: #{tpu_custom_call.1} parent=1 // loop_footer
      %s21 = sadd.s32 1, %s17
    $region7: #{tpu_custom_call.1} parent=1 // loop_footer_branch
      %16 = sbr.rel target = $region3
    $region8: #{tpu_custom_call.1} parent=1 // loop_exit
      _
    %9708 = vsyncpa [#allocation5], 1
    %s9709 = scalar_lea.sflag [#allocation5], 1
    %9710 = vsyncpa %s9709, 1
    %9711 = vsyncpa [#allocation8], 1
    %9712 = vsyncpa [#allocation6], 1
    %s9713 = scalar_lea.sflag [#allocation6], 1
    %9714 = vsyncpa %s9713, 1

</llo_original>
